<compile_context>
chip_gen: v5e
topology: v5e:2x2
jax: 0.10.0
libtpu: 0.0.40
codegen_flags: <defaults>
</compile_context>

<pallas_src>
import numpy as np
import jax
import jax.numpy as jnp
from jax.experimental import pallas as pl
from jax.experimental.pallas import tpu as pltpu  # noqa: F401  (TPU backend assumed)


# ---------------- one-time parameter preparation ----------------

def _make_pool_matrix(H, W, k=5, s=3):
    """Static (H*W, OH*OW) matrix implementing AvgPool2d(kernel=5, stride=3)."""
    OH = (H - k) // s + 1
    OW = (W - k) // s + 1
    P = np.zeros((H * W, OH * OW), np.float32)
    inv = 1.0 / float(k * k)
    for oh in range(OH):
        for ow in range(OW):
            for kh in range(k):
                for kw in range(k):
                    P[(oh * s + kh) * W + (ow * s + kw), oh * OW + ow] = inv
    return jnp.asarray(P), OH, OW


def prepare_params(params, H=14, W=14, eps=1e-5):
    """Fold BN, permute/transposed/cast weights ONCE (outside the per-call path)."""
    pool_mat, OH, OW = _make_pool_matrix(H, W)
    S = OH * OW
    assert 128 * S == 2048, "fc1 expects 2048 features (spatial must be 14x14)"

    # BatchNorm2d(eval) + conv bias folded into per-channel scale/shift.
    sc = params["gamma"] / jnp.sqrt(params["rvar"] + eps)               # (128,)
    sh = params["beta"] - params["rmean"] * sc + params["bconv"] * sc   # (128,)

    # torch.flatten gives feature index f = c*S + s.  The fused kernel produces
    # features in order f' = s*128 + c, so permute w1's input axis to match.
    w1 = params["w1"]                                                   # (1024, 2048)
    w1p = w1.reshape(1024, 128, S).transpose(0, 2, 1).reshape(1024, 128 * S)

    prepped = {
        "pool_mat": pool_mat.astype(jnp.float32),                        # (HW, S)
        "wconvT": params["wconv"].T.astype(jnp.float32),                 # (C, 128)
        "scale": sc.reshape(1, 128).astype(jnp.float32),
        "shift": sh.reshape(1, 128).astype(jnp.float32),
        "w1pt": w1p.T.astype(jnp.bfloat16),                              # (2048, 1024)
        "b1": params["b1"].reshape(1, -1).astype(jnp.float32),           # (1, 1024)
        "w2t": params["w2"].T.astype(jnp.bfloat16),                      # (1024, K)
        "b2": params["b2"].reshape(1, -1).astype(jnp.float32),           # (1, K)
    }
    return prepped


# ---------------- fused forward ----------------

def inception_aux_forward(x, prepped):
    """x: (N, C, 14, 14) float32 NCHW.  Returns (N, num_classes) float32."""
    N, C, H, W = x.shape
    HW = H * W
    S = prepped["pool_mat"].shape[1]          # 16 pooled spatial positions
    F = prepped["w1pt"].shape[0]              # 2048 = 128 * S
    K = prepped["w2t"].shape[1]
    assert F == 128 * S

    x2d = x.reshape(N * C, HW).astype(jnp.float32)   # pure reshape, no transpose

    def kernel(x_ref, pool_ref, wct_ref, scale_ref, shift_ref,
               w1pt_ref, b1_ref, w2t_ref, b2_ref, o_ref):
        # AvgPool2d(5,3) as one batched matmul over the whole batch.
        pooled = jnp.dot(x_ref[...], pool_ref[...],
                         preferred_element_type=jnp.float32)          # (N*C, S)
        # Re-layout (n, c, s) -> (n, s, c) (tiny, minor-2-dims transpose) so the
        # 1x1 conv is a single lane-dense (N*S, C) x (C, 128) matmul.
        pooled = jnp.swapaxes(pooled.reshape(N, C, S), 1, 2)          # (N, S, C)
        pooled = pooled.reshape(N * S, C)
        z = jnp.dot(pooled, wct_ref[...],
                    preferred_element_type=jnp.float32)               # (N*S, 128)
        z = jnp.maximum(z * scale_ref[...] + shift_ref[...], 0.0)     # BN(eval)+ReLU
        # Flatten: (N*S, 128) -> (N, S*128); w1 was permuted to this order at prep.
        flat = z.reshape(N, F).astype(jnp.bfloat16)
        # dropout(p=0.5) in eval mode == identity (before fc1 and fc2)
        h = jnp.dot(flat, w1pt_ref[...],
                    preferred_element_type=jnp.float32) + b1_ref[...]  # fc1
        h = jnp.maximum(h, 0.0).astype(jnp.bfloat16)                   # ReLU
        o_ref[...] = jnp.dot(h, w2t_ref[...],
                             preferred_element_type=jnp.float32) + b2_ref[...]  # fc2

    return pl.pallas_call(
        kernel,
        out_shape=jax.ShapeDtypeStruct((N, K), jnp.float32),
    )(x2d, prepped["pool_mat"], prepped["wconvT"], prepped["scale"],
      prepped["shift"], prepped["w1pt"], prepped["b1"],
      prepped["w2t"], prepped["b2"])


# ---------------- Pure-JAX reference (for sanity check) ----------------

def inception_aux_reference(x, params):
    eps = 1e-5
    pooled = jax.lax.reduce_window(
        x, 0.0, jax.lax.add,
        window_dimensions=(1, 1, 5, 5),
        window_strides=(1, 1, 3, 3),
        padding="VALID") / 25.0                                     # AvgPool2d(5, 3)
    conv = jnp.einsum("nchw,oc->nohw", pooled, params["wconv"]) + \
        params["bconv"][None, :, None, None]
    bn = (conv - params["rmean"][None, :, None, None]) / \
        jnp.sqrt(params["rvar"][None, :, None, None] + eps) * \
        params["gamma"][None, :, None, None] + params["beta"][None, :, None, None]
    act = jnp.maximum(bn, 0.0)
    flat = act.reshape(act.shape[0], -1)
    h = jnp.maximum(flat @ params["w1"].T + params["b1"], 0.0)
    return h @ params["w2"].T + params["b2"]


# ---------------- Main ----------------

if __name__ == "__main__":
    # Spatial 14x14 is forced by fc1's 2048-wide input (128 * 4 * 4); other dims small.
    N, C_IN, H, W = 2, 16, 14, 14
    NUM_CLASSES = 10

    key = jax.random.PRNGKey(0)
    ks = jax.random.split(key, 10)

    params = {
        "wconv": jax.random.normal(ks[0], (128, C_IN), jnp.float32) / np.sqrt(C_IN),
        "bconv": jax.random.normal(ks[1], (128,), jnp.float32) * 0.1,
        "gamma": 1.0 + 0.1 * jax.random.normal(ks[2], (128,), jnp.float32),
        "beta": 0.1 * jax.random.normal(ks[3], (128,), jnp.float32),
        "rmean": 0.1 * jax.random.normal(ks[4], (128,), jnp.float32),
        "rvar": jnp.abs(jax.random.normal(ks[5], (128,), jnp.float32)) + 0.5,
        "w1": jax.random.normal(ks[6], (1024, 2048), jnp.float32) / np.sqrt(2048.0),
        "b1": 0.1 * jax.random.normal(ks[7], (1024,), jnp.float32),
        "w2": jax.random.normal(ks[8], (NUM_CLASSES, 1024), jnp.float32) / np.sqrt(1024.0),
        "b2": 0.1 * jax.random.normal(ks[9], (NUM_CLASSES,), jnp.float32),
    }

    x = jax.random.normal(jax.random.PRNGKey(1), (N, C_IN, H, W), jnp.float32)

    # One-time weight prep (BN fold, permute, transpose, bf16 cast, pool matrix).
    prepped = jax.block_until_ready(prepare_params(params, H=H, W=W))

    fwd = jax.jit(inception_aux_forward)
    out = jax.block_until_ready(fwd(x, prepped))

    ref = jax.block_until_ready(inception_aux_reference(x, params))
    assert out.shape == (N, NUM_CLASSES), out.shape
    np.testing.assert_allclose(np.asarray(out), np.asarray(ref), rtol=2e-2, atol=2e-2)

    print("KERNEL_OK")
</pallas_src>

<mosaic_0001>
module attributes {stable_mosaic.version = 11 : i64} {
  func.func @kernel(%arg0: memref<32x196xf32, #tpu.memory_space<vmem>>, %arg1: memref<196x16xf32, #tpu.memory_space<vmem>>, %arg2: memref<16x128xf32, #tpu.memory_space<vmem>>, %arg3: memref<1x128xf32, #tpu.memory_space<vmem>>, %arg4: memref<1x128xf32, #tpu.memory_space<vmem>>, %arg5: memref<2048x1024xbf16, #tpu.memory_space<vmem>>, %arg6: memref<1x1024xf32, #tpu.memory_space<vmem>>, %arg7: memref<1024x10xbf16, #tpu.memory_space<vmem>>, %arg8: memref<1x10xf32, #tpu.memory_space<vmem>>, %arg9: memref<2x10xf32, #tpu.memory_space<vmem>>) attributes {dimension_semantics = [], scalar_prefetch = 0 : i64, scratch_operands = 0 : i64, tpu.core_type = #tpu.core_type<tc>} {
    %c0 = arith.constant 0 : index
    %c0_0 = arith.constant 0 : index
    %0 = vector.load %arg0[%c0, %c0_0] : memref<32x196xf32, #tpu.memory_space<vmem>>, vector<32x196xf32>
    %c0_1 = arith.constant 0 : index
    %c0_2 = arith.constant 0 : index
    %1 = vector.load %arg1[%c0_1, %c0_2] : memref<196x16xf32, #tpu.memory_space<vmem>>, vector<196x16xf32>
    %cst = arith.constant dense<0.000000e+00> : vector<32x16xf32>
    %2 = tpu.matmul %0, %1, %cst {dimension_numbers = #tpu.dot_dimension_numbers<[1], [0], [0], [1], [0, 0, 1, 1], [], []>} : vector<32x196xf32>, vector<196x16xf32>, vector<32x16xf32> -> vector<32x16xf32>
    %3 = vector.shape_cast %2 : vector<32x16xf32> to vector<2x16x16xf32>
    %4 = tpu.transpose %3, [0, 2, 1] : vector<2x16x16xf32> -> vector<2x16x16xf32>
    %5 = vector.shape_cast %4 : vector<2x16x16xf32> to vector<32x16xf32>
    %c0_3 = arith.constant 0 : index
    %c0_4 = arith.constant 0 : index
    %6 = vector.load %arg2[%c0_3, %c0_4] : memref<16x128xf32, #tpu.memory_space<vmem>>, vector<16x128xf32>
    %cst_5 = arith.constant dense<0.000000e+00> : vector<32x128xf32>
    %7 = tpu.matmul %5, %6, %cst_5 {dimension_numbers = #tpu.dot_dimension_numbers<[1], [0], [0], [1], [0, 0, 1, 1], [], []>} : vector<32x16xf32>, vector<16x128xf32>, vector<32x128xf32> -> vector<32x128xf32>
    %c0_6 = arith.constant 0 : index
    %c0_7 = arith.constant 0 : index
    %8 = vector.load %arg3[%c0_6, %c0_7] : memref<1x128xf32, #tpu.memory_space<vmem>>, vector<1x128xf32>
    %9 = vector.broadcast %8 : vector<1x128xf32> to vector<32x128xf32>
    %10 = arith.mulf %7, %9 : vector<32x128xf32>
    %c0_8 = arith.constant 0 : index
    %c0_9 = arith.constant 0 : index
    %11 = vector.load %arg4[%c0_8, %c0_9] : memref<1x128xf32, #tpu.memory_space<vmem>>, vector<1x128xf32>
    %12 = vector.broadcast %11 : vector<1x128xf32> to vector<32x128xf32>
    %13 = arith.addf %10, %12 : vector<32x128xf32>
    %cst_10 = arith.constant 0.000000e+00 : f32
    %14 = vector.broadcast %cst_10 : f32 to vector<32x128xf32>
    %15 = arith.maximumf %13, %14 : vector<32x128xf32>
    %16 = vector.shape_cast %15 : vector<32x128xf32> to vector<2x2048xf32>
    %17 = arith.truncf %16 : vector<2x2048xf32> to vector<2x2048xbf16>
    %c0_11 = arith.constant 0 : index
    %c0_12 = arith.constant 0 : index
    %18 = vector.load %arg5[%c0_11, %c0_12] : memref<2048x1024xbf16, #tpu.memory_space<vmem>>, vector<2048x1024xbf16>
    %cst_13 = arith.constant dense<0.000000e+00> : vector<2x1024xf32>
    %19 = tpu.matmul %17, %18, %cst_13 {dimension_numbers = #tpu.dot_dimension_numbers<[1], [0], [0], [1], [0, 0, 1, 1], [], []>} : vector<2x2048xbf16>, vector<2048x1024xbf16>, vector<2x1024xf32> -> vector<2x1024xf32>
    %c0_14 = arith.constant 0 : index
    %c0_15 = arith.constant 0 : index
    %20 = vector.load %arg6[%c0_14, %c0_15] : memref<1x1024xf32, #tpu.memory_space<vmem>>, vector<1x1024xf32>
    %21 = vector.broadcast %20 : vector<1x1024xf32> to vector<2x1024xf32>
    %22 = arith.addf %19, %21 : vector<2x1024xf32>
    %cst_16 = arith.constant 0.000000e+00 : f32
    %23 = vector.broadcast %cst_16 : f32 to vector<2x1024xf32>
    %24 = arith.maximumf %22, %23 : vector<2x1024xf32>
    %25 = arith.truncf %24 : vector<2x1024xf32> to vector<2x1024xbf16>
    %c0_17 = arith.constant 0 : index
    %c0_18 = arith.constant 0 : index
    %26 = vector.load %arg7[%c0_17, %c0_18] : memref<1024x10xbf16, #tpu.memory_space<vmem>>, vector<1024x10xbf16>
    %cst_19 = arith.constant dense<0.000000e+00> : vector<2x10xf32>
    %27 = tpu.matmul %25, %26, %cst_19 {dimension_numbers = #tpu.dot_dimension_numbers<[1], [0], [0], [1], [0, 0, 1, 1], [], []>} : vector<2x1024xbf16>, vector<1024x10xbf16>, vector<2x10xf32> -> vector<2x10xf32>
    %c0_20 = arith.constant 0 : index
    %c0_21 = arith.constant 0 : index
    %28 = vector.load %arg8[%c0_20, %c0_21] : memref<1x10xf32, #tpu.memory_space<vmem>>, vector<1x10xf32>
    %29 = vector.broadcast %28 : vector<1x10xf32> to vector<2x10xf32>
    %30 = arith.addf %27, %29 : vector<2x10xf32>
    %c0_22 = arith.constant 0 : index
    %c0_23 = arith.constant 0 : index
    %31 = vector.load %arg9[%c0_22, %c0_23] : memref<2x10xf32, #tpu.memory_space<vmem>>, vector<2x10xf32>
    tpu.vector_store %arg9[%c0_22, %c0_23], %30 {strides = array<i32>} : memref<2x10xf32, #tpu.memory_space<vmem>>, vector<2x10xf32>,
    return
  }
}

</mosaic_0001>

<llo_original>
// kernel: inception_aux_forward.1
$region0: #{inception_aux_forward.1}
  #allocation0 [shape = 'u32[]', space=smem, size = 0x4, offset = 0x4, fixed_abs, tag = 'smem constant byte address 0x4 - core index']
  #allocation1 [shape = 'u32[72,128]{1,0:T(1,128)}', space=vmem, size = 0x9000, scoped, tag = 'internal scratch']
  %s0 = inlined_call_operand.vmem [shape: f32[32,196], index: 0, kind: input, shape index: {}]
  %s1 = inlined_call_operand.vmem [shape: f32[196,16], index: 1, kind: input, shape index: {}]
  %s2 = inlined_call_operand.hbm [shape: f32[16,128], index: 2, kind: input, shape index: {}]
  %s3 = inlined_call_operand.hbm [shape: f32[1,128], index: 3, kind: input, shape index: {}]
  %s4 = inlined_call_operand.hbm [shape: f32[1,128], index: 4, kind: input, shape index: {}]
  %s5 = inlined_call_operand.hbm [shape: bf16[2048,1024], index: 5, kind: input, shape index: {}]
  %s6 = inlined_call_operand.hbm [shape: f32[1,1024], index: 6, kind: input, shape index: {}]
  %s7 = inlined_call_operand.vmem [shape: bf16[1024,10], index: 7, kind: input, shape index: {}]
  %s8 = inlined_call_operand.hbm [shape: f32[1,10], index: 8, kind: input, shape index: {}]
  %s9 = inlined_call_operand.hbm [shape: f32[2,10], index: 9, kind: output, shape index: {}]
  %s10 = sld [smem:[#allocation0]]
  $region70: #{inception_aux_forward.1} parent=0
    _
  %s12 = ssub.s32 1, %s10
  %s13 = scalar_select 0, %s12, %s10
  $region1: #{inception_aux_forward.1} parent=0
    #allocation2 [shape = 'u8[8192]{0}', space=vmem, size = 0x2000, scoped, tag = 'input window, operand 2, single buffered']
    #allocation3 [shape = 's32[1]{0}', space=sflag, size = 0x4, scoped, tag = 'scoped memory for inception_aux_forward.1']
    #allocation4 [shape = 's32[1]{0}', space=sflag, size = 0x4, scoped, tag = 'scoped memory for inception_aux_forward.1']
    #allocation5 [shape = 'u8[512]{0}', space=vmem, size = 0x400, scoped, tag = 'input window, operand 3, single buffered']
    #allocation6 [shape = 's32[1]{0}', space=sflag, size = 0x4, scoped, tag = 'scoped memory for inception_aux_forward.1']
    #allocation7 [shape = 'u8[512]{0}', space=vmem, size = 0x400, scoped, tag = 'input window, operand 4, single buffered']
    #allocation8 [shape = 'u8[4194304]{0}', space=vmem, size = 0x400000, scoped, tag = 'input window, operand 5, single buffered']
    #allocation9 [shape = 's32[1]{0}', space=sflag, size = 0x4, scoped, tag = 'scoped memory for inception_aux_forward.1']
    #allocation10 [shape = 'u8[4096]{0}', space=vmem, size = 0x1000, scoped, tag = 'input window, operand 6, single buffered']
    #allocation11 [shape = 'u8[512]{0}', space=vmem, size = 0x400, scoped, tag = 'input window, operand 8, single buffered']
    #allocation12 [shape = 's32[1]{0}', space=sflag, size = 0x4, scoped, tag = 'scoped memory for inception_aux_forward.1']
    #allocation13 [shape = 'u8[1024]{0}', space=vmem, size = 0x400, scoped, tag = 'output window, operand 0, single buffered']
    %14 = vsyncpa [#allocation3], 0
    %15 = vsyncpa [#allocation6], 0
    %16 = vsyncpa [#allocation9], 0
    %17 = vsyncpa [#allocation12], 0
    %18 = vsyncpa [#allocation4], 0
    // Predicated region
    $region2: #{inception_aux_forward.1} parent=1 // pred_check
      _
    $region3: #{inception_aux_forward.1} parent=1 // pred_check_branch
      %20 = sbr.rel (0) target = $region5
    $region4: #{inception_aux_forward.1} parent=1 // pred_region
      _
    $region5: #{inception_aux_forward.1} parent=1 // pred_fallthru
      _
    // Predicated region
    $region6: #{inception_aux_forward.1} parent=1 // pred_check
      _
    $region7: #{inception_aux_forward.1} parent=1 // pred_check_branch
      %22 = sbr.rel (0) target = $region9
    $region8: #{inception_aux_forward.1} parent=1 // pred_region
      _
    $region9: #{inception_aux_forward.1} parent=1 // pred_fallthru
      _
    // Predicated region
    $region10: #{inception_aux_forward.1} parent=1 // pred_check
      _
    $region11: #{inception_aux_forward.1} parent=1 // pred_check_branch
      %24 = sbr.rel (0) target = $region13
    $region12: #{inception_aux_forward.1} parent=1 // pred_region
      %26 = vsyncadd [#allocation3], 0
      %s27 = sshll.u32 %s2, 4
      %s28 = int_to_ptr.hbm [resolvable:$true] %s27
      %s29 = sshll.u32 [#allocation2], 4
      %s30 = int_to_ptr.vmem [resolvable:$true] %s29
      %35 = dma.hbm_to_vmem [thread:$0]  %s28, 256, %s30, [#allocation3], 128, 128, 8
    $region13: #{inception_aux_forward.1} parent=1 // pred_fallthru
      _
    // Predicated region
    $region14: #{inception_aux_forward.1} parent=1 // pred_check
      _
    $region15: #{inception_aux_forward.1} parent=1 // pred_check_branch
      %37 = sbr.rel (0) target = $region17
    $region16: #{inception_aux_forward.1} parent=1 // pred_region
      %39 = vsyncadd [#allocation6], 0
      %s41 = sshll.u32 %s3, 4
      %s42 = int_to_ptr.hbm [resolvable:$true] %s41
      %s43 = sshll.u32 [#allocation5], 4
      %s44 = int_to_ptr.vmem [resolvable:$true] %s43
      %46 = dma.hbm_to_vmem [thread:$0]  %s42, 16, %s44, [#allocation6]
    $region17: #{inception_aux_forward.1} parent=1 // pred_fallthru
      _
    // Predicated region
    $region18: #{inception_aux_forward.1} parent=1 // pred_check
      _
    $region19: #{inception_aux_forward.1} parent=1 // pred_check_branch
      %48 = sbr.rel (0) target = $region21
    $region20: #{inception_aux_forward.1} parent=1 // pred_region
      %50 = vsyncadd [#allocation6], 0
      %s52 = sshll.u32 %s4, 4
      %s53 = int_to_ptr.hbm [resolvable:$true] %s52
      %s54 = sshll.u32 [#allocation7], 4
      %s55 = int_to_ptr.vmem [resolvable:$true] %s54
      %57 = dma.hbm_to_vmem [thread:$0]  %s53, 16, %s55, [#allocation6]
    $region21: #{inception_aux_forward.1} parent=1 // pred_fallthru
      _
    // Predicated region
    $region22: #{inception_aux_forward.1} parent=1 // pred_check
      _
    $region23: #{inception_aux_forward.1} parent=1 // pred_check_branch
      %59 = sbr.rel (0) target = $region25
    $region24: #{inception_aux_forward.1} parent=1 // pred_region
      %61 = vsyncadd [#allocation9], 0
      %s62 = sshll.u32 %s5, 4
      %s63 = int_to_ptr.hbm [resolvable:$true] %s62
      %s64 = sshll.u32 [#allocation8], 4
      %s65 = int_to_ptr.vmem [resolvable:$true] %s64
      %70 = dma.hbm_to_vmem [thread:$0]  %s63, 131072, %s65, [#allocation9], 512, 512, 32
    $region25: #{inception_aux_forward.1} parent=1 // pred_fallthru
      _
    // Predicated region
    $region26: #{inception_aux_forward.1} parent=1 // pred_check
      _
    $region27: #{inception_aux_forward.1} parent=1 // pred_check_branch
      %72 = sbr.rel (0) target = $region29
    $region28: #{inception_aux_forward.1} parent=1 // pred_region
      %74 = vsyncadd [#allocation9], 0
      %s76 = sshll.u32 %s6, 4
      %s77 = int_to_ptr.hbm [resolvable:$true] %s76
      %s78 = sshll.u32 [#allocation10], 4
      %s79 = int_to_ptr.vmem [resolvable:$true] %s78
      %81 = dma.hbm_to_vmem [thread:$0]  %s77, 128, %s79, [#allocation9]
    $region29: #{inception_aux_forward.1} parent=1 // pred_fallthru
      _
    // Predicated region
    $region30: #{inception_aux_forward.1} parent=1 // pred_check
      _
    $region31: #{inception_aux_forward.1} parent=1 // pred_check_branch
      %83 = sbr.rel (0) target = $region33
    $region32: #{inception_aux_forward.1} parent=1 // pred_region
      _
    $region33: #{inception_aux_forward.1} parent=1 // pred_fallthru
      _
    // Predicated region
    $region34: #{inception_aux_forward.1} parent=1 // pred_check
      _
    $region35: #{inception_aux_forward.1} parent=1 // pred_check_branch
      %85 = sbr.rel (0) target = $region37
    $region36: #{inception_aux_forward.1} parent=1 // pred_region
      %87 = vsyncadd [#allocation12], 0
      %s89 = sshll.u32 %s8, 4
      %s90 = int_to_ptr.hbm [resolvable:$true] %s89
      %s91 = sshll.u32 [#allocation11], 4
      %s92 = int_to_ptr.vmem [resolvable:$true] %s91
      %94 = dma.hbm_to_vmem [thread:$0]  %s90, 16, %s92, [#allocation12]
    $region37: #{inception_aux_forward.1} parent=1 // pred_fallthru
      _
    // Predicated region
    $region38: #{inception_aux_forward.1} parent=1 // pred_check
      _
    $region39: #{inception_aux_forward.1} parent=1 // pred_check_branch
      %96 = sbr.rel (0) target = $region41
    $region40: #{inception_aux_forward.1} parent=1 // pred_region
      %98 = dma.done [#allocation3], 256
    $region41: #{inception_aux_forward.1} parent=1 // pred_fallthru
      _
    // Predicated region
    $region42: #{inception_aux_forward.1} parent=1 // pred_check
      _
    $region43: #{inception_aux_forward.1} parent=1 // pred_check_branch
      %100 = sbr.rel (0) target = $region45
    $region44: #{inception_aux_forward.1} parent=1 // pred_region
      %102 = dma.done [#allocation6], 16
    $region45: #{inception_aux_forward.1} parent=1 // pred_fallthru
      _
    // Predicated region
    $region46: #{inception_aux_forward.1} parent=1 // pred_check
      _
    $region47: #{inception_aux_forward.1} parent=1 // pred_check_branch
      %104 = sbr.rel (0) target = $region49
    $region48: #{inception_aux_forward.1} parent=1 // pred_region
      %106 = dma.done [#allocation6], 16
    $region49: #{inception_aux_forward.1} parent=1 // pred_fallthru
      _
    // Predicated region
    $region50: #{inception_aux_forward.1} parent=1 // pred_check
      _
    $region51: #{inception_aux_forward.1} parent=1 // pred_check_branch
      %108 = sbr.rel (0) target = $region53
    $region52: #{inception_aux_forward.1} parent=1 // pred_region
      %110 = dma.done [#allocation9], 131072
    $region53: #{inception_aux_forward.1} parent=1 // pred_fallthru
      _
    // Predicated region
    $region54: #{inception_aux_forward.1} parent=1 // pred_check
      _
    $region55: #{inception_aux_forward.1} parent=1 // pred_check_branch
      %112 = sbr.rel (0) target = $region57
    $region56: #{inception_aux_forward.1} parent=1 // pred_region
      %114 = dma.done [#allocation9], 128
    $region57: #{inception_aux_forward.1} parent=1 // pred_fallthru
      _
    // Predicated region
    $region58: #{inception_aux_forward.1} parent=1 // pred_check
      _
    $region59: #{inception_aux_forward.1} parent=1 // pred_check_branch
      %116 = sbr.rel (0) target = $region61
    $region60: #{inception_aux_forward.1} parent=1 // pred_region
      %118 = dma.done [#allocation12], 16
    $region61: #{inception_aux_forward.1} parent=1 // pred_fallthru
      _
    %v119 = vld [vmem:[%s0] sm:$0xff]
    %v120 = vld [vmem:[%s0 + $0x8] sm:$0xff]
    %v121 = vld [vmem:[%s0 + $0x10] sm:$0xff]
    %v122 = vld [vmem:[%s0 + $0x18] sm:$0xff]
    %v123 = vld [vmem:[%s0 + $0x20] sm:$0xff]
    %v124 = vld [vmem:[%s0 + $0x28] sm:$0xff]
    %v125 = vld [vmem:[%s0 + $0x30] sm:$0xff]
    %v126 = vld [vmem:[%s0 + $0x38] sm:$0xff]
    %v127 = vld [vmem:[%s1] sm:$0xff]
    %v128 = vld [vmem:[%s1 + $0x8] sm:$0xff]
    %v129 = vld [vmem:[%s1 + $0x10] sm:$0xff]
    %v130 = vld [vmem:[%s1 + $0x18] sm:$0xff]
    %v131 = vld [vmem:[%s1 + $0x20] sm:$0xff]
    %v132 = vld [vmem:[%s1 + $0x28] sm:$0xff]
    %v133 = vld [vmem:[%s1 + $0x30] sm:$0xff]
    %v134 = vld [vmem:[%s1 + $0x38] sm:$0xff]
    %v135 = vld [vmem:[%s1 + $0x40] sm:$0xff]
    %v136 = vld [vmem:[%s1 + $0x48] sm:$0xff]
    %v137 = vld [vmem:[%s1 + $0x50] sm:$0xff]
    %v138 = vld [vmem:[%s1 + $0x58] sm:$0xff]
    %v139 = vld [vmem:[%s1 + $0x60] sm:$0xff]
    %v140 = vld [vmem:[%s1 + $0x68] sm:$0xff]
    %v141 = vld [vmem:[%s1 + $0x70] sm:$0xff]
    %v142 = vld [vmem:[%s1 + $0x78] sm:$0xff]
    %v143 = vld [vmem:[%s1 + $0x80] sm:$0xff]
    %v144 = vld [vmem:[%s1 + $0x88] sm:$0xff]
    %v145 = vld [vmem:[%s1 + $0x90] sm:$0xff]
    %v146 = vld [vmem:[%s1 + $0x98] sm:$0xff]
    %v147 = vld [vmem:[%s1 + $0xa0] sm:$0xff]
    %v148 = vld [vmem:[%s1 + $0xa8] sm:$0xff]
    %v149 = vld [vmem:[%s1 + $0xb0] sm:$0xff]
    %v150 = vld [vmem:[%s1 + $0xb8] sm:$0xff]
    %v151 = vld [vmem:[%s1 + $0xc0] sm:$0xf]
    %vm152 = vcmask 556032
    %v154 = vsel %vm152, %v120, 0
    %v157 = vsel %vm152, %v122, 0
    %v160 = vsel %vm152, %v124, 0
    %v163 = vsel %vm152, %v126, 0
    %vm165 = vcmask 1043456
    %v167 = vsel %vm165, %v151, 0
    %169 = vmatpush.msra.mxu0 %v142
    %170 = vmatpush.msra.mxu0 %v141
    %171 = vmatpush.msra.mxu0 %v140
    %172 = vmatpush.msra.mxu0 %v139
    %173 = vmatpush.msra.mxu0 %v138
    %174 = vmatpush.msra.mxu0 %v137
    %175 = vmatpush.msra.mxu0 %v136
    %176 = vmatpush.msra.mxu0 %v135
    %177 = vmatpush.msra.mxu0 %v134
    %178 = vmatpush.msra.mxu0 %v133
    %179 = vmatpush.msra.mxu0 %v132
    %180 = vmatpush.msra.mxu0 %v131
    %181 = vmatpush.msra.mxu0 %v130
    %182 = vmatpush.msra.mxu0 %v129
    %183 = vmatpush.msra.mxu0 %v128
    %184 = vmatpush.msra.mxu0 %v127
    %185 = vmatmul.f32.gmra.mxu0 %v119
    %v186 = vpop.f32.mrf.mxu0
    %v187 = vadd.f32 0.0, %v186
    %188 = vmatmul.f32.gmra.mxu0 %v121
    %v189 = vpop.f32.mrf.mxu0
    %v190 = vadd.f32 0.0, %v189
    %191 = vmatmul.f32.gmra.mxu0 %v123
    %v192 = vpop.f32.mrf.mxu0
    %v193 = vadd.f32 0.0, %v192
    %194 = vmatmul.f32.gmra.mxu0 %v125
    %v195 = vpop.f32.mrf.mxu0
    %v196 = vadd.f32 0.0, %v195
    %197 = vdwg.mxu0
    %198 = vmatpush.msra.mxu0 0.0
    %199 = vmatpush.msra.mxu0 0.0
    %200 = vmatpush.msra.mxu0 0.0
    %201 = vmatpush.msra.mxu0 0.0
    %202 = vmatpush.msra.mxu0 0.0
    %203 = vmatpush.msra.mxu0 0.0
    %204 = vmatpush.msra.mxu0 0.0
    %205 = vmatpush.msra.mxu0 %v167
    %206 = vmatpush.msra.mxu0 %v150
    %207 = vmatpush.msra.mxu0 %v149
    %208 = vmatpush.msra.mxu0 %v148
    %209 = vmatpush.msra.mxu0 %v147
    %210 = vmatpush.msra.mxu0 %v146
    %211 = vmatpush.msra.mxu0 %v145
    %212 = vmatpush.msra.mxu0 %v144
    %213 = vmatpush.msra.mxu0 %v143
    %214 = vmatmul.f32.gmra.mxu0 %v154
    %v215 = vpop.f32.mrf.mxu0
    %v216 = vadd.f32 %v187, %v215
    %217 = vmatmul.f32.gmra.mxu0 %v157
    %v218 = vpop.f32.mrf.mxu0
    %v219 = vadd.f32 %v190, %v218
    %220 = vmatmul.f32.gmra.mxu0 %v160
    %v221 = vpop.f32.mrf.mxu0
    %v222 = vadd.f32 %v193, %v221
    %223 = vmatmul.f32.gmra.mxu0 %v163
    %v224 = vpop.f32.mrf.mxu0
    %v225 = vadd.f32 %v196, %v224
    %226 = vdwg.mxu0
    %227 = vxpose.xlu0.b32.start [1/16] %v216, 128
    %228 = vxpose.xlu0.b32.cont [2/16] %v219, 128
    %229 = vxpose.xlu0.b32.cont [3/16] 0.0, 128
    %230 = vxpose.xlu0.b32.cont [4/16] 0.0, 128
    %231 = vxpose.xlu0.b32.cont [5/16] 0.0, 128
    %232 = vxpose.xlu0.b32.cont [6/16] 0.0, 128
    %233 = vxpose.xlu0.b32.cont [7/16] 0.0, 128
    %234 = vxpose.xlu0.b32.cont [8/16] 0.0, 128
    %235 = vxpose.xlu0.b32.cont [9/16] 0.0, 128
    %236 = vxpose.xlu0.b32.cont [10/16] 0.0, 128
    %237 = vxpose.xlu0.b32.cont [11/16] 0.0, 128
    %238 = vxpose.xlu0.b32.cont [12/16] 0.0, 128
    %239 = vxpose.xlu0.b32.cont [13/16] 0.0, 128
    %240 = vxpose.xlu0.b32.cont [14/16] 0.0, 128
    %241 = vxpose.xlu0.b32.cont [15/16] 0.0, 128
    %242 = vxpose.xlu0.b32.end [16/16] 0.0, 128
    %v243 = vpop.trf.xlu0
    %v244 = vpop.trf.xlu0
    %v245 = vpop.trf.xlu0
    %v246 = vpop.trf.xlu0
    %v247 = vpop.trf.xlu0
    %v248 = vpop.trf.xlu0
    %v249 = vpop.trf.xlu0
    %v250 = vpop.trf.xlu0
    %v251 = vpop.trf.xlu0
    %v252 = vpop.trf.xlu0
    %v253 = vpop.trf.xlu0
    %v254 = vpop.trf.xlu0
    %v255 = vpop.trf.xlu0
    %v256 = vpop.trf.xlu0
    %v257 = vpop.trf.xlu0
    %v258 = vpop.trf.xlu0
    %259 = vxpose.xlu0.b32.start [1/16] %v222, 128
    %260 = vxpose.xlu0.b32.cont [2/16] %v225, 128
    %261 = vxpose.xlu0.b32.cont [3/16] 0.0, 128
    %262 = vxpose.xlu0.b32.cont [4/16] 0.0, 128
    %263 = vxpose.xlu0.b32.cont [5/16] 0.0, 128
    %264 = vxpose.xlu0.b32.cont [6/16] 0.0, 128
    %265 = vxpose.xlu0.b32.cont [7/16] 0.0, 128
    %266 = vxpose.xlu0.b32.cont [8/16] 0.0, 128
    %267 = vxpose.xlu0.b32.cont [9/16] 0.0, 128
    %268 = vxpose.xlu0.b32.cont [10/16] 0.0, 128
    %269 = vxpose.xlu0.b32.cont [11/16] 0.0, 128
    %270 = vxpose.xlu0.b32.cont [12/16] 0.0, 128
    %271 = vxpose.xlu0.b32.cont [13/16] 0.0, 128
    %272 = vxpose.xlu0.b32.cont [14/16] 0.0, 128
    %273 = vxpose.xlu0.b32.cont [15/16] 0.0, 128
    %274 = vxpose.xlu0.b32.end [16/16] 0.0, 128
    %v275 = vpop.trf.xlu0
    %v276 = vpop.trf.xlu0
    %v277 = vpop.trf.xlu0
    %v278 = vpop.trf.xlu0
    %v279 = vpop.trf.xlu0
    %v280 = vpop.trf.xlu0
    %v281 = vpop.trf.xlu0
    %v282 = vpop.trf.xlu0
    %v283 = vpop.trf.xlu0
    %v284 = vpop.trf.xlu0
    %v285 = vpop.trf.xlu0
    %v286 = vpop.trf.xlu0
    %v287 = vpop.trf.xlu0
    %v288 = vpop.trf.xlu0
    %v289 = vpop.trf.xlu0
    %v290 = vpop.trf.xlu0
    %v291 = vld [vmem:[#allocation2] sm:$0xff]
    %v292 = vld [vmem:[#allocation2 + $0x8] sm:$0xff]
    %vm293 = vcmask 130048
    %v295 = vsel %vm293, %v243, 0
    %v298 = vsel %vm293, %v244, 0
    %v301 = vsel %vm293, %v275, 0
    %v304 = vsel %vm293, %v276, 0
    %306 = vmatpush.msra.mxu0 0.0
    %307 = vmatpush.msra.mxu0 0.0
    %308 = vmatpush.msra.mxu0 0.0
    %309 = vmatpush.msra.mxu0 0.0
    %310 = vmatpush.msra.mxu0 0.0
    %311 = vmatpush.msra.mxu0 0.0
    %312 = vmatpush.msra.mxu0 0.0
    %313 = vmatpush.msra.mxu0 0.0
    %314 = vmatpush.msra.mxu0 0.0
    %315 = vmatpush.msra.mxu0 0.0
    %316 = vmatpush.msra.mxu0 0.0
    %317 = vmatpush.msra.mxu0 0.0
    %318 = vmatpush.msra.mxu0 0.0
    %319 = vmatpush.msra.mxu0 0.0
    %320 = vmatpush.msra.mxu0 %v292
    %321 = vmatpush.msra.mxu0 %v291
    %322 = vmatmul.f32.gmra.mxu0 %v295
    %v323 = vpop.f32.mrf.mxu0
    %v324 = vadd.f32 0.0, %v323
    %325 = vmatmul.f32.gmra.mxu0 %v298
    %v326 = vpop.f32.mrf.mxu0
    %v327 = vadd.f32 0.0, %v326
    %328 = vmatmul.f32.gmra.mxu0 %v301
    %v329 = vpop.f32.mrf.mxu0
    %v330 = vadd.f32 0.0, %v329
    %331 = vmatmul.f32.gmra.mxu0 %v304
    %v332 = vpop.f32.mrf.mxu0
    %v333 = vadd.f32 0.0, %v332
    %334 = vdwg.mxu0
    %v335 = vld [vmem:[#allocation5] sm:$0x1]
    %v337 = vperm.slane %v335, 0
    %v339 = vmul.f32 %v324, %v337
    %v340 = vmul.f32 %v327, %v337
    %v341 = vmul.f32 %v330, %v337
    %v342 = vmul.f32 %v333, %v337
    %v343 = vld [vmem:[#allocation7] sm:$0x1]
    %v345 = vperm.slane %v343, 0
    %v347 = vadd.f32 %v339, %v345
    %v348 = vadd.f32 %v340, %v345
    %v349 = vadd.f32 %v341, %v345
    %v350 = vadd.f32 %v342, %v345
    %v351 = vmax.f32 %v347, 0.0
    %v352 = vmax.f32 %v348, 0.0
    %v353 = vmax.f32 %v349, 0.0
    %v354 = vmax.f32 %v350, 0.0
    %359 = vst [vmem:[#allocation1] ss:$9 sm:$0xff] %v351
    %s360 = scalar_lea.vmem [#allocation1], 1
    %361 = vst [vmem:[%s360] ss:$9 sm:$0xff] %v353
    %v362 = vld [vmem:[#allocation1] sm:$0xff]
    %v363 = vld [vmem:[#allocation1 + $0x9] sm:$0xff]
    %v364 = vld [vmem:[#allocation1 + $0x12] sm:$0xff]
    %v365 = vld [vmem:[#allocation1 + $0x1b] sm:$0xff]
    %v366 = vld [vmem:[#allocation1 + $0x24] sm:$0xff]
    %v367 = vld [vmem:[#allocation1 + $0x2d] sm:$0xff]
    %v368 = vld [vmem:[#allocation1 + $0x36] sm:$0xff]
    %v369 = vld [vmem:[#allocation1 + $0x3f] sm:$0xff]
    %370 = vst [vmem:[#allocation1] ss:$9 sm:$0xff] %v352
    %371 = vst [vmem:[%s360] ss:$9 sm:$0xff] %v354
    %v372 = vld [vmem:[#allocation1] sm:$0xff]
    %v373 = vld [vmem:[#allocation1 + $0x9] sm:$0xff]
    %v374 = vld [vmem:[#allocation1 + $0x12] sm:$0xff]
    %v375 = vld [vmem:[#allocation1 + $0x1b] sm:$0xff]
    %v376 = vld [vmem:[#allocation1 + $0x24] sm:$0xff]
    %v377 = vld [vmem:[#allocation1 + $0x2d] sm:$0xff]
    %v378 = vld [vmem:[#allocation1 + $0x36] sm:$0xff]
    %v379 = vld [vmem:[#allocation1 + $0x3f] sm:$0xff]
    %v396 = vpack.c.bf16 %v362, %v362
    %v397 = vpack.c.bf16 %v363, %v363
    %v398 = vpack.c.bf16 %v364, %v364
    %v399 = vpack.c.bf16 %v365, %v365
    %v400 = vpack.c.bf16 %v366, %v366
    %v401 = vpack.c.bf16 %v367, %v367
    %v402 = vpack.c.bf16 %v368, %v368
    %v403 = vpack.c.bf16 %v369, %v369
    %v404 = vpack.c.bf16 %v372, %v372
    %v405 = vpack.c.bf16 %v373, %v373
    %v406 = vpack.c.bf16 %v374, %v374
    %v407 = vpack.c.bf16 %v375, %v375
    %v408 = vpack.c.bf16 %v376, %v376
    %v409 = vpack.c.bf16 %v377, %v377
    %v410 = vpack.c.bf16 %v378, %v378
    %v411 = vpack.c.bf16 %v379, %v379
    %v412 = vld [vmem:[#allocation8] sm:$0xff]
    %v413 = vld [vmem:[#allocation8 + $0x8] sm:$0xff]
    %v414 = vld [vmem:[#allocation8 + $0x10] sm:$0xff]
    %v415 = vld [vmem:[#allocation8 + $0x18] sm:$0xff]
    %v416 = vld [vmem:[#allocation8 + $0x20] sm:$0xff]
    %v417 = vld [vmem:[#allocation8 + $0x28] sm:$0xff]
    %v418 = vld [vmem:[#allocation8 + $0x30] sm:$0xff]
    %v419 = vld [vmem:[#allocation8 + $0x38] sm:$0xff]
    %v420 = vld [vmem:[#allocation8 + $0x40] sm:$0xff]
    %v421 = vld [vmem:[#allocation8 + $0x48] sm:$0xff]
    %v422 = vld [vmem:[#allocation8 + $0x50] sm:$0xff]
    %v423 = vld [vmem:[#allocation8 + $0x58] sm:$0xff]
    %v424 = vld [vmem:[#allocation8 + $0x60] sm:$0xff]
    %v425 = vld [vmem:[#allocation8 + $0x68] sm:$0xff]
    %v426 = vld [vmem:[#allocation8 + $0x70] sm:$0xff]
    %v427 = vld [vmem:[#allocation8 + $0x78] sm:$0xff]
    %v428 = vld [vmem:[#allocation8 + $0x80] sm:$0xff]
    %v429 = vld [vmem:[#allocation8 + $0x88] sm:$0xff]
    %v430 = vld [vmem:[#allocation8 + $0x90] sm:$0xff]
    %v431 = vld [vmem:[#allocation8 + $0x98] sm:$0xff]
    %v432 = vld [vmem:[#allocation8 + $0xa0] sm:$0xff]
    %v433 = vld [vmem:[#allocation8 + $0xa8] sm:$0xff]
    %v434 = vld [vmem:[#allocation8 + $0xb0] sm:$0xff]
    %v435 = vld [vmem:[#allocation8 + $0xb8] sm:$0xff]
    %v436 = vld [vmem:[#allocation8 + $0xc0] sm:$0xff]
    %v437 = vld [vmem:[#allocation8 + $0xc8] sm:$0xff]
    %v438 = vld [vmem:[#allocation8 + $0xd0] sm:$0xff]
    %v439 = vld [vmem:[#allocation8 + $0xd8] sm:$0xff]
    %v440 = vld [vmem:[#allocation8 + $0xe0] sm:$0xff]
    %v441 = vld [vmem:[#allocation8 + $0xe8] sm:$0xff]
    %v442 = vld [vmem:[#allocation8 + $0xf0] sm:$0xff]
    %v443 = vld [vmem:[#allocation8 + $0xf8] sm:$0xff]
    %v444 = vld [vmem:[#allocation8 + $0x100] sm:$0xff]
    %v445 = vld [vmem:[#allocation8 + $0x108] sm:$0xff]
    %v446 = vld [vmem:[#allocation8 + $0x110] sm:$0xff]
    %v447 = vld [vmem:[#allocation8 + $0x118] sm:$0xff]
    %v448 = vld [vmem:[#allocation8 + $0x120] sm:$0xff]
    %v449 = vld [vmem:[#allocation8 + $0x128] sm:$0xff]
    %v450 = vld [vmem:[#allocation8 + $0x130] sm:$0xff]
    %v451 = vld [vmem:[#allocation8 + $0x138] sm:$0xff]
    %v452 = vld [vmem:[#allocation8 + $0x140] sm:$0xff]
    %v453 = vld [vmem:[#allocation8 + $0x148] sm:$0xff]
    %v454 = vld [vmem:[#allocation8 + $0x150] sm:$0xff]
    %v455 = vld [vmem:[#allocation8 + $0x158] sm:$0xff]
    %v456 = vld [vmem:[#allocation8 + $0x160] sm:$0xff]
    %v457 = vld [vmem:[#allocation8 + $0x168] sm:$0xff]
    %v458 = vld [vmem:[#allocation8 + $0x170] sm:$0xff]
    %v459 = vld [vmem:[#allocation8 + $0x178] sm:$0xff]
    %v460 = vld [vmem:[#allocation8 + $0x180] sm:$0xff]
    %v461 = vld [vmem:[#allocation8 + $0x188] sm:$0xff]
    %v462 = vld [vmem:[#allocation8 + $0x190] sm:$0xff]
    %v463 = vld [vmem:[#allocation8 + $0x198] sm:$0xff]
    %v464 = vld [vmem:[#allocation8 + $0x1a0] sm:$0xff]
    %v465 = vld [vmem:[#allocation8 + $0x1a8] sm:$0xff]
    %v466 = vld [vmem:[#allocation8 + $0x1b0] sm:$0xff]
    %v467 = vld [vmem:[#allocation8 + $0x1b8] sm:$0xff]
    %v468 = vld [vmem:[#allocation8 + $0x1c0] sm:$0xff]
    %v469 = vld [vmem:[#allocation8 + $0x1c8] sm:$0xff]
    %v470 = vld [vmem:[#allocation8 + $0x1d0] sm:$0xff]
    %v471 = vld [vmem:[#allocation8 + $0x1d8] sm:$0xff]
    %v472 = vld [vmem:[#allocation8 + $0x1e0] sm:$0xff]
    %v473 = vld [vmem:[#allocation8 + $0x1e8] sm:$0xff]
    %v474 = vld [vmem:[#allocation8 + $0x1f0] sm:$0xff]
    %v475 = vld [vmem:[#allocation8 + $0x1f8] sm:$0xff]
    %v476 = vld [vmem:[#allocation8 + $0x200] sm:$0xff]
    %v477 = vld [vmem:[#allocation8 + $0x208] sm:$0xff]
    %v478 = vld [vmem:[#allocation8 + $0x210] sm:$0xff]
    %v479 = vld [vmem:[#allocation8 + $0x218] sm:$0xff]
    %v480 = vld [vmem:[#allocation8 + $0x220] sm:$0xff]
    %v481 = vld [vmem:[#allocation8 + $0x228] sm:$0xff]
    %v482 = vld [vmem:[#allocation8 + $0x230] sm:$0xff]
    %v483 = vld [vmem:[#allocation8 + $0x238] sm:$0xff]
    %v484 = vld [vmem:[#allocation8 + $0x240] sm:$0xff]
    %v485 = vld [vmem:[#allocation8 + $0x248] sm:$0xff]
    %v486 = vld [vmem:[#allocation8 + $0x250] sm:$0xff]
    %v487 = vld [vmem:[#allocation8 + $0x258] sm:$0xff]
    %v488 = vld [vmem:[#allocation8 + $0x260] sm:$0xff]
    %v489 = vld [vmem:[#allocation8 + $0x268] sm:$0xff]
    %v490 = vld [vmem:[#allocation8 + $0x270] sm:$0xff]
    %v491 = vld [vmem:[#allocation8 + $0x278] sm:$0xff]
    %v492 = vld [vmem:[#allocation8 + $0x280] sm:$0xff]
    %v493 = vld [vmem:[#allocation8 + $0x288] sm:$0xff]
    %v494 = vld [vmem:[#allocation8 + $0x290] sm:$0xff]
    %v495 = vld [vmem:[#allocation8 + $0x298] sm:$0xff]
    %v496 = vld [vmem:[#allocation8 + $0x2a0] sm:$0xff]
    %v497 = vld [vmem:[#allocation8 + $0x2a8] sm:$0xff]
    %v498 = vld [vmem:[#allocation8 + $0x2b0] sm:$0xff]
    %v499 = vld [vmem:[#allocation8 + $0x2b8] sm:$0xff]
    %v500 = vld [vmem:[#allocation8 + $0x2c0] sm:$0xff]
    %v501 = vld [vmem:[#allocation8 + $0x2c8] sm:$0xff]
    %v502 = vld [vmem:[#allocation8 + $0x2d0] sm:$0xff]
    %v503 = vld [vmem:[#allocation8 + $0x2d8] sm:$0xff]
    %v504 = vld [vmem:[#allocation8 + $0x2e0] sm:$0xff]
    %v505 = vld [vmem:[#allocation8 + $0x2e8] sm:$0xff]
    %v506 = vld [vmem:[#allocation8 + $0x2f0] sm:$0xff]
    %v507 = vld [vmem:[#allocation8 + $0x2f8] sm:$0xff]
    %v508 = vld [vmem:[#allocation8 + $0x300] sm:$0xff]
    %v509 = vld [vmem:[#allocation8 + $0x308] sm:$0xff]
    %v510 = vld [vmem:[#allocation8 + $0x310] sm:$0xff]
    %v511 = vld [vmem:[#allocation8 + $0x318] sm:$0xff]
    %v512 = vld [vmem:[#allocation8 + $0x320] sm:$0xff]
    %v513 = vld [vmem:[#allocation8 + $0x328] sm:$0xff]
    %v514 = vld [vmem:[#allocation8 + $0x330] sm:$0xff]
    %v515 = vld [vmem:[#allocation8 + $0x338] sm:$0xff]
    %v516 = vld [vmem:[#allocation8 + $0x340] sm:$0xff]
    %v517 = vld [vmem:[#allocation8 + $0x348] sm:$0xff]
    %v518 = vld [vmem:[#allocation8 + $0x350] sm:$0xff]
    %v519 = vld [vmem:[#allocation8 + $0x358] sm:$0xff]
    %v520 = vld [vmem:[#allocation8 + $0x360] sm:$0xff]
    %v521 = vld [vmem:[#allocation8 + $0x368] sm:$0xff]
    %v522 = vld [vmem:[#allocation8 + $0x370] sm:$0xff]
    %v523 = vld [vmem:[#allocation8 + $0x378] sm:$0xff]
    %v524 = vld [vmem:[#allocation8 + $0x380] sm:$0xff]
    %v525 = vld [vmem:[#allocation8 + $0x388] sm:$0xff]
    %v526 = vld [vmem:[#allocation8 + $0x390] sm:$0xff]
    %v527 = vld [vmem:[#allocation8 + $0x398] sm:$0xff]
    %v528 = vld [vmem:[#allocation8 + $0x3a0] sm:$0xff]
    %v529 = vld [vmem:[#allocation8 + $0x3a8] sm:$0xff]
    %v530 = vld [vmem:[#allocation8 + $0x3b0] sm:$0xff]
    %v531 = vld [vmem:[#allocation8 + $0x3b8] sm:$0xff]
    %v532 = vld [vmem:[#allocation8 + $0x3c0] sm:$0xff]
    %v533 = vld [vmem:[#allocation8 + $0x3c8] sm:$0xff]
    %v534 = vld [vmem:[#allocation8 + $0x3d0] sm:$0xff]
    %v535 = vld [vmem:[#allocation8 + $0x3d8] sm:$0xff]
    %v536 = vld [vmem:[#allocation8 + $0x3e0] sm:$0xff]
    %v537 = vld [vmem:[#allocation8 + $0x3e8] sm:$0xff]
    %v538 = vld [vmem:[#allocation8 + $0x3f0] sm:$0xff]
    %v539 = vld [vmem:[#allocation8 + $0x3f8] sm:$0xff]
    %v540 = vld [vmem:[#allocation8 + $0x400] sm:$0xff]
    %v541 = vld [vmem:[#allocation8 + $0x408] sm:$0xff]
    %v542 = vld [vmem:[#allocation8 + $0x410] sm:$0xff]
    %v543 = vld [vmem:[#allocation8 + $0x418] sm:$0xff]
    %v544 = vld [vmem:[#allocation8 + $0x420] sm:$0xff]
    %v545 = vld [vmem:[#allocation8 + $0x428] sm:$0xff]
    %v546 = vld [vmem:[#allocation8 + $0x430] sm:$0xff]
    %v547 = vld [vmem:[#allocation8 + $0x438] sm:$0xff]
    %v548 = vld [vmem:[#allocation8 + $0x440] sm:$0xff]
    %v549 = vld [vmem:[#allocation8 + $0x448] sm:$0xff]
    %v550 = vld [vmem:[#allocation8 + $0x450] sm:$0xff]
    %v551 = vld [vmem:[#allocation8 + $0x458] sm:$0xff]
    %v552 = vld [vmem:[#allocation8 + $0x460] sm:$0xff]
    %v553 = vld [vmem:[#allocation8 + $0x468] sm:$0xff]
    %v554 = vld [vmem:[#allocation8 + $0x470] sm:$0xff]
    %v555 = vld [vmem:[#allocation8 + $0x478] sm:$0xff]
    %v556 = vld [vmem:[#allocation8 + $0x480] sm:$0xff]
    %v557 = vld [vmem:[#allocation8 + $0x488] sm:$0xff]
    %v558 = vld [vmem:[#allocation8 + $0x490] sm:$0xff]
    %v559 = vld [vmem:[#allocation8 + $0x498] sm:$0xff]
    %v560 = vld [vmem:[#allocation8 + $0x4a0] sm:$0xff]
    %v561 = vld [vmem:[#allocation8 + $0x4a8] sm:$0xff]
    %v562 = vld [vmem:[#allocation8 + $0x4b0] sm:$0xff]
    %v563 = vld [vmem:[#allocation8 + $0x4b8] sm:$0xff]
    %v564 = vld [vmem:[#allocation8 + $0x4c0] sm:$0xff]
    %v565 = vld [vmem:[#allocation8 + $0x4c8] sm:$0xff]
    %v566 = vld [vmem:[#allocation8 + $0x4d0] sm:$0xff]
    %v567 = vld [vmem:[#allocation8 + $0x4d8] sm:$0xff]
    %v568 = vld [vmem:[#allocation8 + $0x4e0] sm:$0xff]
    %v569 = vld [vmem:[#allocation8 + $0x4e8] sm:$0xff]
    %v570 = vld [vmem:[#allocation8 + $0x4f0] sm:$0xff]
    %v571 = vld [vmem:[#allocation8 + $0x4f8] sm:$0xff]
    %v572 = vld [vmem:[#allocation8 + $0x500] sm:$0xff]
    %v573 = vld [vmem:[#allocation8 + $0x508] sm:$0xff]
    %v574 = vld [vmem:[#allocation8 + $0x510] sm:$0xff]
    %v575 = vld [vmem:[#allocation8 + $0x518] sm:$0xff]
    %v576 = vld [vmem:[#allocation8 + $0x520] sm:$0xff]
    %v577 = vld [vmem:[#allocation8 + $0x528] sm:$0xff]
    %v578 = vld [vmem:[#allocation8 + $0x530] sm:$0xff]
    %v579 = vld [vmem:[#allocation8 + $0x538] sm:$0xff]
    %v580 = vld [vmem:[#allocation8 + $0x540] sm:$0xff]
    %v581 = vld [vmem:[#allocation8 + $0x548] sm:$0xff]
    %v582 = vld [vmem:[#allocation8 + $0x550] sm:$0xff]
    %v583 = vld [vmem:[#allocation8 + $0x558] sm:$0xff]
    %v584 = vld [vmem:[#allocation8 + $0x560] sm:$0xff]
    %v585 = vld [vmem:[#allocation8 + $0x568] sm:$0xff]
    %v586 = vld [vmem:[#allocation8 + $0x570] sm:$0xff]
    %v587 = vld [vmem:[#allocation8 + $0x578] sm:$0xff]
    %v588 = vld [vmem:[#allocation8 + $0x580] sm:$0xff]
    %v589 = vld [vmem:[#allocation8 + $0x588] sm:$0xff]
    %v590 = vld [vmem:[#allocation8 + $0x590] sm:$0xff]
    %v591 = vld [vmem:[#allocation8 + $0x598] sm:$0xff]
    %v592 = vld [vmem:[#allocation8 + $0x5a0] sm:$0xff]
    %v593 = vld [vmem:[#allocation8 + $0x5a8] sm:$0xff]
    %v594 = vld [vmem:[#allocation8 + $0x5b0] sm:$0xff]
    %v595 = vld [vmem:[#allocation8 + $0x5b8] sm:$0xff]
    %v596 = vld [vmem:[#allocation8 + $0x5c0] sm:$0xff]
    %v597 = vld [vmem:[#allocation8 + $0x5c8] sm:$0xff]
    %v598 = vld [vmem:[#allocation8 + $0x5d0] sm:$0xff]
    %v599 = vld [vmem:[#allocation8 + $0x5d8] sm:$0xff]
    %v600 = vld [vmem:[#allocation8 + $0x5e0] sm:$0xff]
    %v601 = vld [vmem:[#allocation8 + $0x5e8] sm:$0xff]
    %v602 = vld [vmem:[#allocation8 + $0x5f0] sm:$0xff]
    %v603 = vld [vmem:[#allocation8 + $0x5f8] sm:$0xff]
    %v604 = vld [vmem:[#allocation8 + $0x600] sm:$0xff]
    %v605 = vld [vmem:[#allocation8 + $0x608] sm:$0xff]
    %v606 = vld [vmem:[#allocation8 + $0x610] sm:$0xff]
    %v607 = vld [vmem:[#allocation8 + $0x618] sm:$0xff]
    %v608 = vld [vmem:[#allocation8 + $0x620] sm:$0xff]
    %v609 = vld [vmem:[#allocation8 + $0x628] sm:$0xff]
    %v610 = vld [vmem:[#allocation8 + $0x630] sm:$0xff]
    %v611 = vld [vmem:[#allocation8 + $0x638] sm:$0xff]
    %v612 = vld [vmem:[#allocation8 + $0x640] sm:$0xff]
    %v613 = vld [vmem:[#allocation8 + $0x648] sm:$0xff]
    %v614 = vld [vmem:[#allocation8 + $0x650] sm:$0xff]
    %v615 = vld [vmem:[#allocation8 + $0x658] sm:$0xff]
    %v616 = vld [vmem:[#allocation8 + $0x660] sm:$0xff]
    %v617 = vld [vmem:[#allocation8 + $0x668] sm:$0xff]
    %v618 = vld [vmem:[#allocation8 + $0x670] sm:$0xff]
    %v619 = vld [vmem:[#allocation8 + $0x678] sm:$0xff]
    %v620 = vld [vmem:[#allocation8 + $0x680] sm:$0xff]
    %v621 = vld [vmem:[#allocation8 + $0x688] sm:$0xff]
    %v622 = vld [vmem:[#allocation8 + $0x690] sm:$0xff]
    %v623 = vld [vmem:[#allocation8 + $0x698] sm:$0xff]
    %v624 = vld [vmem:[#allocation8 + $0x6a0] sm:$0xff]
    %v625 = vld [vmem:[#allocation8 + $0x6a8] sm:$0xff]
    %v626 = vld [vmem:[#allocation8 + $0x6b0] sm:$0xff]
    %v627 = vld [vmem:[#allocation8 + $0x6b8] sm:$0xff]
    %v628 = vld [vmem:[#allocation8 + $0x6c0] sm:$0xff]
    %v629 = vld [vmem:[#allocation8 + $0x6c8] sm:$0xff]
    %v630 = vld [vmem:[#allocation8 + $0x6d0] sm:$0xff]
    %v631 = vld [vmem:[#allocation8 + $0x6d8] sm:$0xff]
    %v632 = vld [vmem:[#allocation8 + $0x6e0] sm:$0xff]
    %v633 = vld [vmem:[#allocation8 + $0x6e8] sm:$0xff]
    %v634 = vld [vmem:[#allocation8 + $0x6f0] sm:$0xff]
    %v635 = vld [vmem:[#allocation8 + $0x6f8] sm:$0xff]
    %v636 = vld [vmem:[#allocation8 + $0x700] sm:$0xff]
    %v637 = vld [vmem:[#allocation8 + $0x708] sm:$0xff]
    %v638 = vld [vmem:[#allocation8 + $0x710] sm:$0xff]
    %v639 = vld [vmem:[#allocation8 + $0x718] sm:$0xff]
    %v640 = vld [vmem:[#allocation8 + $0x720] sm:$0xff]
    %v641 = vld [vmem:[#allocation8 + $0x728] sm:$0xff]
    %v642 = vld [vmem:[#allocation8 + $0x730] sm:$0xff]
    %v643 = vld [vmem:[#allocation8 + $0x738] sm:$0xff]
    %v644 = vld [vmem:[#allocation8 + $0x740] sm:$0xff]
    %v645 = vld [vmem:[#allocation8 + $0x748] sm:$0xff]
    %v646 = vld [vmem:[#allocation8 + $0x750] sm:$0xff]
    %v647 = vld [vmem:[#allocation8 + $0x758] sm:$0xff]
    %v648 = vld [vmem:[#allocation8 + $0x760] sm:$0xff]
    %v649 = vld [vmem:[#allocation8 + $0x768] sm:$0xff]
    %v650 = vld [vmem:[#allocation8 + $0x770] sm:$0xff]
    %v651 = vld [vmem:[#allocation8 + $0x778] sm:$0xff]
    %v652 = vld [vmem:[#allocation8 + $0x780] sm:$0xff]
    %v653 = vld [vmem:[#allocation8 + $0x788] sm:$0xff]
    %v654 = vld [vmem:[#allocation8 + $0x790] sm:$0xff]
    %v655 = vld [vmem:[#allocation8 + $0x798] sm:$0xff]
    %v656 = vld [vmem:[#allocation8 + $0x7a0] sm:$0xff]
    %v657 = vld [vmem:[#allocation8 + $0x7a8] sm:$0xff]
    %v658 = vld [vmem:[#allocation8 + $0x7b0] sm:$0xff]
    %v659 = vld [vmem:[#allocation8 + $0x7b8] sm:$0xff]
    %v660 = vld [vmem:[#allocation8 + $0x7c0] sm:$0xff]
    %v661 = vld [vmem:[#allocation8 + $0x7c8] sm:$0xff]
    %v662 = vld [vmem:[#allocation8 + $0x7d0] sm:$0xff]
    %v663 = vld [vmem:[#allocation8 + $0x7d8] sm:$0xff]
    %v664 = vld [vmem:[#allocation8 + $0x7e0] sm:$0xff]
    %v665 = vld [vmem:[#allocation8 + $0x7e8] sm:$0xff]
    %v666 = vld [vmem:[#allocation8 + $0x7f0] sm:$0xff]
    %v667 = vld [vmem:[#allocation8 + $0x7f8] sm:$0xff]
    %v668 = vld [vmem:[#allocation8 + $0x800] sm:$0xff]
    %v669 = vld [vmem:[#allocation8 + $0x808] sm:$0xff]
    %v670 = vld [vmem:[#allocation8 + $0x810] sm:$0xff]
    %v671 = vld [vmem:[#allocation8 + $0x818] sm:$0xff]
    %v672 = vld [vmem:[#allocation8 + $0x820] sm:$0xff]
    %v673 = vld [vmem:[#allocation8 + $0x828] sm:$0xff]
    %v674 = vld [vmem:[#allocation8 + $0x830] sm:$0xff]
    %v675 = vld [vmem:[#allocation8 + $0x838] sm:$0xff]
    %v676 = vld [vmem:[#allocation8 + $0x840] sm:$0xff]
    %v677 = vld [vmem:[#allocation8 + $0x848] sm:$0xff]
    %v678 = vld [vmem:[#allocation8 + $0x850] sm:$0xff]
    %v679 = vld [vmem:[#allocation8 + $0x858] sm:$0xff]
    %v680 = vld [vmem:[#allocation8 + $0x860] sm:$0xff]
    %v681 = vld [vmem:[#allocation8 + $0x868] sm:$0xff]
    %v682 = vld [vmem:[#allocation8 + $0x870] sm:$0xff]
    %v683 = vld [vmem:[#allocation8 + $0x878] sm:$0xff]
    %v684 = vld [vmem:[#allocation8 + $0x880] sm:$0xff]
    %v685 = vld [vmem:[#allocation8 + $0x888] sm:$0xff]
    %v686 = vld [vmem:[#allocation8 + $0x890] sm:$0xff]
    %v687 = vld [vmem:[#allocation8 + $0x898] sm:$0xff]
    %v688 = vld [vmem:[#allocation8 + $0x8a0] sm:$0xff]
    %v689 = vld [vmem:[#allocation8 + $0x8a8] sm:$0xff]
    %v690 = vld [vmem:[#allocation8 + $0x8b0] sm:$0xff]
    %v691 = vld [vmem:[#allocation8 + $0x8b8] sm:$0xff]
    %v692 = vld [vmem:[#allocation8 + $0x8c0] sm:$0xff]
    %v693 = vld [vmem:[#allocation8 + $0x8c8] sm:$0xff]
    %v694 = vld [vmem:[#allocation8 + $0x8d0] sm:$0xff]
    %v695 = vld [vmem:[#allocation8 + $0x8d8] sm:$0xff]
    %v696 = vld [vmem:[#allocation8 + $0x8e0] sm:$0xff]
    %v697 = vld [vmem:[#allocation8 + $0x8e8] sm:$0xff]
    %v698 = vld [vmem:[#allocation8 + $0x8f0] sm:$0xff]
    %v699 = vld [vmem:[#allocation8 + $0x8f8] sm:$0xff]
    %v700 = vld [vmem:[#allocation8 + $0x900] sm:$0xff]
    %v701 = vld [vmem:[#allocation8 + $0x908] sm:$0xff]
    %v702 = vld [vmem:[#allocation8 + $0x910] sm:$0xff]
    %v703 = vld [vmem:[#allocation8 + $0x918] sm:$0xff]
    %v704 = vld [vmem:[#allocation8 + $0x920] sm:$0xff]
    %v705 = vld [vmem:[#allocation8 + $0x928] sm:$0xff]
    %v706 = vld [vmem:[#allocation8 + $0x930] sm:$0xff]
    %v707 = vld [vmem:[#allocation8 + $0x938] sm:$0xff]
    %v708 = vld [vmem:[#allocation8 + $0x940] sm:$0xff]
    %v709 = vld [vmem:[#allocation8 + $0x948] sm:$0xff]
    %v710 = vld [vmem:[#allocation8 + $0x950] sm:$0xff]
    %v711 = vld [vmem:[#allocation8 + $0x958] sm:$0xff]
    %v712 = vld [vmem:[#allocation8 + $0x960] sm:$0xff]
    %v713 = vld [vmem:[#allocation8 + $0x968] sm:$0xff]
    %v714 = vld [vmem:[#allocation8 + $0x970] sm:$0xff]
    %v715 = vld [vmem:[#allocation8 + $0x978] sm:$0xff]
    %v716 = vld [vmem:[#allocation8 + $0x980] sm:$0xff]
    %v717 = vld [vmem:[#allocation8 + $0x988] sm:$0xff]
    %v718 = vld [vmem:[#allocation8 + $0x990] sm:$0xff]
    %v719 = vld [vmem:[#allocation8 + $0x998] sm:$0xff]
    %v720 = vld [vmem:[#allocation8 + $0x9a0] sm:$0xff]
    %v721 = vld [vmem:[#allocation8 + $0x9a8] sm:$0xff]
    %v722 = vld [vmem:[#allocation8 + $0x9b0] sm:$0xff]
    %v723 = vld [vmem:[#allocation8 + $0x9b8] sm:$0xff]
    %v724 = vld [vmem:[#allocation8 + $0x9c0] sm:$0xff]
    %v725 = vld [vmem:[#allocation8 + $0x9c8] sm:$0xff]
    %v726 = vld [vmem:[#allocation8 + $0x9d0] sm:$0xff]
    %v727 = vld [vmem:[#allocation8 + $0x9d8] sm:$0xff]
    %v728 = vld [vmem:[#allocation8 + $0x9e0] sm:$0xff]
    %v729 = vld [vmem:[#allocation8 + $0x9e8] sm:$0xff]
    %v730 = vld [vmem:[#allocation8 + $0x9f0] sm:$0xff]
    %v731 = vld [vmem:[#allocation8 + $0x9f8] sm:$0xff]
    %v732 = vld [vmem:[#allocation8 + $0xa00] sm:$0xff]
    %v733 = vld [vmem:[#allocation8 + $0xa08] sm:$0xff]
    %v734 = vld [vmem:[#allocation8 + $0xa10] sm:$0xff]
    %v735 = vld [vmem:[#allocation8 + $0xa18] sm:$0xff]
    %v736 = vld [vmem:[#allocation8 + $0xa20] sm:$0xff]
    %v737 = vld [vmem:[#allocation8 + $0xa28] sm:$0xff]
    %v738 = vld [vmem:[#allocation8 + $0xa30] sm:$0xff]
    %v739 = vld [vmem:[#allocation8 + $0xa38] sm:$0xff]
    %v740 = vld [vmem:[#allocation8 + $0xa40] sm:$0xff]
    %v741 = vld [vmem:[#allocation8 + $0xa48] sm:$0xff]
    %v742 = vld [vmem:[#allocation8 + $0xa50] sm:$0xff]
    %v743 = vld [vmem:[#allocation8 + $0xa58] sm:$0xff]
    %v744 = vld [vmem:[#allocation8 + $0xa60] sm:$0xff]
    %v745 = vld [vmem:[#allocation8 + $0xa68] sm:$0xff]
    %v746 = vld [vmem:[#allocation8 + $0xa70] sm:$0xff]
    %v747 = vld [vmem:[#allocation8 + $0xa78] sm:$0xff]
    %v748 = vld [vmem:[#allocation8 + $0xa80] sm:$0xff]
    %v749 = vld [vmem:[#allocation8 + $0xa88] sm:$0xff]
    %v750 = vld [vmem:[#allocation8 + $0xa90] sm:$0xff]
    %v751 = vld [vmem:[#allocation8 + $0xa98] sm:$0xff]
    %v752 = vld [vmem:[#allocation8 + $0xaa0] sm:$0xff]
    %v753 = vld [vmem:[#allocation8 + $0xaa8] sm:$0xff]
    %v754 = vld [vmem:[#allocation8 + $0xab0] sm:$0xff]
    %v755 = vld [vmem:[#allocation8 + $0xab8] sm:$0xff]
    %v756 = vld [vmem:[#allocation8 + $0xac0] sm:$0xff]
    %v757 = vld [vmem:[#allocation8 + $0xac8] sm:$0xff]
    %v758 = vld [vmem:[#allocation8 + $0xad0] sm:$0xff]
    %v759 = vld [vmem:[#allocation8 + $0xad8] sm:$0xff]
    %v760 = vld [vmem:[#allocation8 + $0xae0] sm:$0xff]
    %v761 = vld [vmem:[#allocation8 + $0xae8] sm:$0xff]
    %v762 = vld [vmem:[#allocation8 + $0xaf0] sm:$0xff]
    %v763 = vld [vmem:[#allocation8 + $0xaf8] sm:$0xff]
    %v764 = vld [vmem:[#allocation8 + $0xb00] sm:$0xff]
    %v765 = vld [vmem:[#allocation8 + $0xb08] sm:$0xff]
    %v766 = vld [vmem:[#allocation8 + $0xb10] sm:$0xff]
    %v767 = vld [vmem:[#allocation8 + $0xb18] sm:$0xff]
    %v768 = vld [vmem:[#allocation8 + $0xb20] sm:$0xff]
    %v769 = vld [vmem:[#allocation8 + $0xb28] sm:$0xff]
    %v770 = vld [vmem:[#allocation8 + $0xb30] sm:$0xff]
    %v771 = vld [vmem:[#allocation8 + $0xb38] sm:$0xff]
    %v772 = vld [vmem:[#allocation8 + $0xb40] sm:$0xff]
    %v773 = vld [vmem:[#allocation8 + $0xb48] sm:$0xff]
    %v774 = vld [vmem:[#allocation8 + $0xb50] sm:$0xff]
    %v775 = vld [vmem:[#allocation8 + $0xb58] sm:$0xff]
    %v776 = vld [vmem:[#allocation8 + $0xb60] sm:$0xff]
    %v777 = vld [vmem:[#allocation8 + $0xb68] sm:$0xff]
    %v778 = vld [vmem:[#allocation8 + $0xb70] sm:$0xff]
    %v779 = vld [vmem:[#allocation8 + $0xb78] sm:$0xff]
    %v780 = vld [vmem:[#allocation8 + $0xb80] sm:$0xff]
    %v781 = vld [vmem:[#allocation8 + $0xb88] sm:$0xff]
    %v782 = vld [vmem:[#allocation8 + $0xb90] sm:$0xff]
    %v783 = vld [vmem:[#allocation8 + $0xb98] sm:$0xff]
    %v784 = vld [vmem:[#allocation8 + $0xba0] sm:$0xff]
    %v785 = vld [vmem:[#allocation8 + $0xba8] sm:$0xff]
    %v786 = vld [vmem:[#allocation8 + $0xbb0] sm:$0xff]
    %v787 = vld [vmem:[#allocation8 + $0xbb8] sm:$0xff]
    %v788 = vld [vmem:[#allocation8 + $0xbc0] sm:$0xff]
    %v789 = vld [vmem:[#allocation8 + $0xbc8] sm:$0xff]
    %v790 = vld [vmem:[#allocation8 + $0xbd0] sm:$0xff]
    %v791 = vld [vmem:[#allocation8 + $0xbd8] sm:$0xff]
    %v792 = vld [vmem:[#allocation8 + $0xbe0] sm:$0xff]
    %v793 = vld [vmem:[#allocation8 + $0xbe8] sm:$0xff]
    %v794 = vld [vmem:[#allocation8 + $0xbf0] sm:$0xff]
    %v795 = vld [vmem:[#allocation8 + $0xbf8] sm:$0xff]
    %v796 = vld [vmem:[#allocation8 + $0xc00] sm:$0xff]
    %v797 = vld [vmem:[#allocation8 + $0xc08] sm:$0xff]
    %v798 = vld [vmem:[#allocation8 + $0xc10] sm:$0xff]
    %v799 = vld [vmem:[#allocation8 + $0xc18] sm:$0xff]
    %v800 = vld [vmem:[#allocation8 + $0xc20] sm:$0xff]
    %v801 = vld [vmem:[#allocation8 + $0xc28] sm:$0xff]
    %v802 = vld [vmem:[#allocation8 + $0xc30] sm:$0xff]
    %v803 = vld [vmem:[#allocation8 + $0xc38] sm:$0xff]
    %v804 = vld [vmem:[#allocation8 + $0xc40] sm:$0xff]
    %v805 = vld [vmem:[#allocation8 + $0xc48] sm:$0xff]
    %v806 = vld [vmem:[#allocation8 + $0xc50] sm:$0xff]
    %v807 = vld [vmem:[#allocation8 + $0xc58] sm:$0xff]
    %v808 = vld [vmem:[#allocation8 + $0xc60] sm:$0xff]
    %v809 = vld [vmem:[#allocation8 + $0xc68] sm:$0xff]
    %v810 = vld [vmem:[#allocation8 + $0xc70] sm:$0xff]
    %v811 = vld [vmem:[#allocation8 + $0xc78] sm:$0xff]
    %v812 = vld [vmem:[#allocation8 + $0xc80] sm:$0xff]
    %v813 = vld [vmem:[#allocation8 + $0xc88] sm:$0xff]
    %v814 = vld [vmem:[#allocation8 + $0xc90] sm:$0xff]
    %v815 = vld [vmem:[#allocation8 + $0xc98] sm:$0xff]
    %v816 = vld [vmem:[#allocation8 + $0xca0] sm:$0xff]
    %v817 = vld [vmem:[#allocation8 + $0xca8] sm:$0xff]
    %v818 = vld [vmem:[#allocation8 + $0xcb0] sm:$0xff]
    %v819 = vld [vmem:[#allocation8 + $0xcb8] sm:$0xff]
    %v820 = vld [vmem:[#allocation8 + $0xcc0] sm:$0xff]
    %v821 = vld [vmem:[#allocation8 + $0xcc8] sm:$0xff]
    %v822 = vld [vmem:[#allocation8 + $0xcd0] sm:$0xff]
    %v823 = vld [vmem:[#allocation8 + $0xcd8] sm:$0xff]
    %v824 = vld [vmem:[#allocation8 + $0xce0] sm:$0xff]
    %v825 = vld [vmem:[#allocation8 + $0xce8] sm:$0xff]
    %v826 = vld [vmem:[#allocation8 + $0xcf0] sm:$0xff]
    %v827 = vld [vmem:[#allocation8 + $0xcf8] sm:$0xff]
    %v828 = vld [vmem:[#allocation8 + $0xd00] sm:$0xff]
    %v829 = vld [vmem:[#allocation8 + $0xd08] sm:$0xff]
    %v830 = vld [vmem:[#allocation8 + $0xd10] sm:$0xff]
    %v831 = vld [vmem:[#allocation8 + $0xd18] sm:$0xff]
    %v832 = vld [vmem:[#allocation8 + $0xd20] sm:$0xff]
    %v833 = vld [vmem:[#allocation8 + $0xd28] sm:$0xff]
    %v834 = vld [vmem:[#allocation8 + $0xd30] sm:$0xff]
    %v835 = vld [vmem:[#allocation8 + $0xd38] sm:$0xff]
    %v836 = vld [vmem:[#allocation8 + $0xd40] sm:$0xff]
    %v837 = vld [vmem:[#allocation8 + $0xd48] sm:$0xff]
    %v838 = vld [vmem:[#allocation8 + $0xd50] sm:$0xff]
    %v839 = vld [vmem:[#allocation8 + $0xd58] sm:$0xff]
    %v840 = vld [vmem:[#allocation8 + $0xd60] sm:$0xff]
    %v841 = vld [vmem:[#allocation8 + $0xd68] sm:$0xff]
    %v842 = vld [vmem:[#allocation8 + $0xd70] sm:$0xff]
    %v843 = vld [vmem:[#allocation8 + $0xd78] sm:$0xff]
    %v844 = vld [vmem:[#allocation8 + $0xd80] sm:$0xff]
    %v845 = vld [vmem:[#allocation8 + $0xd88] sm:$0xff]
    %v846 = vld [vmem:[#allocation8 + $0xd90] sm:$0xff]
    %v847 = vld [vmem:[#allocation8 + $0xd98] sm:$0xff]
    %v848 = vld [vmem:[#allocation8 + $0xda0] sm:$0xff]
    %v849 = vld [vmem:[#allocation8 + $0xda8] sm:$0xff]
    %v850 = vld [vmem:[#allocation8 + $0xdb0] sm:$0xff]
    %v851 = vld [vmem:[#allocation8 + $0xdb8] sm:$0xff]
    %v852 = vld [vmem:[#allocation8 + $0xdc0] sm:$0xff]
    %v853 = vld [vmem:[#allocation8 + $0xdc8] sm:$0xff]
    %v854 = vld [vmem:[#allocation8 + $0xdd0] sm:$0xff]
    %v855 = vld [vmem:[#allocation8 + $0xdd8] sm:$0xff]
    %v856 = vld [vmem:[#allocation8 + $0xde0] sm:$0xff]
    %v857 = vld [vmem:[#allocation8 + $0xde8] sm:$0xff]
    %v858 = vld [vmem:[#allocation8 + $0xdf0] sm:$0xff]
    %v859 = vld [vmem:[#allocation8 + $0xdf8] sm:$0xff]
    %v860 = vld [vmem:[#allocation8 + $0xe00] sm:$0xff]
    %v861 = vld [vmem:[#allocation8 + $0xe08] sm:$0xff]
    %v862 = vld [vmem:[#allocation8 + $0xe10] sm:$0xff]
    %v863 = vld [vmem:[#allocation8 + $0xe18] sm:$0xff]
    %v864 = vld [vmem:[#allocation8 + $0xe20] sm:$0xff]
    %v865 = vld [vmem:[#allocation8 + $0xe28] sm:$0xff]
    %v866 = vld [vmem:[#allocation8 + $0xe30] sm:$0xff]
    %v867 = vld [vmem:[#allocation8 + $0xe38] sm:$0xff]
    %v868 = vld [vmem:[#allocation8 + $0xe40] sm:$0xff]
    %v869 = vld [vmem:[#allocation8 + $0xe48] sm:$0xff]
    %v870 = vld [vmem:[#allocation8 + $0xe50] sm:$0xff]
    %v871 = vld [vmem:[#allocation8 + $0xe58] sm:$0xff]
    %v872 = vld [vmem:[#allocation8 + $0xe60] sm:$0xff]
    %v873 = vld [vmem:[#allocation8 + $0xe68] sm:$0xff]
    %v874 = vld [vmem:[#allocation8 + $0xe70] sm:$0xff]
    %v875 = vld [vmem:[#allocation8 + $0xe78] sm:$0xff]
    %v876 = vld [vmem:[#allocation8 + $0xe80] sm:$0xff]
    %v877 = vld [vmem:[#allocation8 + $0xe88] sm:$0xff]
    %v878 = vld [vmem:[#allocation8 + $0xe90] sm:$0xff]
    %v879 = vld [vmem:[#allocation8 + $0xe98] sm:$0xff]
    %v880 = vld [vmem:[#allocation8 + $0xea0] sm:$0xff]
    %v881 = vld [vmem:[#allocation8 + $0xea8] sm:$0xff]
    %v882 = vld [vmem:[#allocation8 + $0xeb0] sm:$0xff]
    %v883 = vld [vmem:[#allocation8 + $0xeb8] sm:$0xff]
    %v884 = vld [vmem:[#allocation8 + $0xec0] sm:$0xff]
    %v885 = vld [vmem:[#allocation8 + $0xec8] sm:$0xff]
    %v886 = vld [vmem:[#allocation8 + $0xed0] sm:$0xff]
    %v887 = vld [vmem:[#allocation8 + $0xed8] sm:$0xff]
    %v888 = vld [vmem:[#allocation8 + $0xee0] sm:$0xff]
    %v889 = vld [vmem:[#allocation8 + $0xee8] sm:$0xff]
    %v890 = vld [vmem:[#allocation8 + $0xef0] sm:$0xff]
    %v891 = vld [vmem:[#allocation8 + $0xef8] sm:$0xff]
    %v892 = vld [vmem:[#allocation8 + $0xf00] sm:$0xff]
    %v893 = vld [vmem:[#allocation8 + $0xf08] sm:$0xff]
    %v894 = vld [vmem:[#allocation8 + $0xf10] sm:$0xff]
    %v895 = vld [vmem:[#allocation8 + $0xf18] sm:$0xff]
    %v896 = vld [vmem:[#allocation8 + $0xf20] sm:$0xff]
    %v897 = vld [vmem:[#allocation8 + $0xf28] sm:$0xff]
    %v898 = vld [vmem:[#allocation8 + $0xf30] sm:$0xff]
    %v899 = vld [vmem:[#allocation8 + $0xf38] sm:$0xff]
    %v900 = vld [vmem:[#allocation8 + $0xf40] sm:$0xff]
    %v901 = vld [vmem:[#allocation8 + $0xf48] sm:$0xff]
    %v902 = vld [vmem:[#allocation8 + $0xf50] sm:$0xff]
    %v903 = vld [vmem:[#allocation8 + $0xf58] sm:$0xff]
    %v904 = vld [vmem:[#allocation8 + $0xf60] sm:$0xff]
    %v905 = vld [vmem:[#allocation8 + $0xf68] sm:$0xff]
    %v906 = vld [vmem:[#allocation8 + $0xf70] sm:$0xff]
    %v907 = vld [vmem:[#allocation8 + $0xf78] sm:$0xff]
    %v908 = vld [vmem:[#allocation8 + $0xf80] sm:$0xff]
    %v909 = vld [vmem:[#allocation8 + $0xf88] sm:$0xff]
    %v910 = vld [vmem:[#allocation8 + $0xf90] sm:$0xff]
    %v911 = vld [vmem:[#allocation8 + $0xf98] sm:$0xff]
    %v912 = vld [vmem:[#allocation8 + $0xfa0] sm:$0xff]
    %v913 = vld [vmem:[#allocation8 + $0xfa8] sm:$0xff]
    %v914 = vld [vmem:[#allocation8 + $0xfb0] sm:$0xff]
    %v915 = vld [vmem:[#allocation8 + $0xfb8] sm:$0xff]
    %v916 = vld [vmem:[#allocation8 + $0xfc0] sm:$0xff]
    %v917 = vld [vmem:[#allocation8 + $0xfc8] sm:$0xff]
    %v918 = vld [vmem:[#allocation8 + $0xfd0] sm:$0xff]
    %v919 = vld [vmem:[#allocation8 + $0xfd8] sm:$0xff]
    %v920 = vld [vmem:[#allocation8 + $0xfe0] sm:$0xff]
    %v921 = vld [vmem:[#allocation8 + $0xfe8] sm:$0xff]
    %v922 = vld [vmem:[#allocation8 + $0xff0] sm:$0xff]
    %v923 = vld [vmem:[#allocation8 + $0xff8] sm:$0xff]
    %v924 = vld [vmem:[#allocation8 + $0x1000] sm:$0xff]
    %v925 = vld [vmem:[#allocation8 + $0x1008] sm:$0xff]
    %v926 = vld [vmem:[#allocation8 + $0x1010] sm:$0xff]
    %v927 = vld [vmem:[#allocation8 + $0x1018] sm:$0xff]
    %v928 = vld [vmem:[#allocation8 + $0x1020] sm:$0xff]
    %v929 = vld [vmem:[#allocation8 + $0x1028] sm:$0xff]
    %v930 = vld [vmem:[#allocation8 + $0x1030] sm:$0xff]
    %v931 = vld [vmem:[#allocation8 + $0x1038] sm:$0xff]
    %v932 = vld [vmem:[#allocation8 + $0x1040] sm:$0xff]
    %v933 = vld [vmem:[#allocation8 + $0x1048] sm:$0xff]
    %v934 = vld [vmem:[#allocation8 + $0x1050] sm:$0xff]
    %v935 = vld [vmem:[#allocation8 + $0x1058] sm:$0xff]
    %v936 = vld [vmem:[#allocation8 + $0x1060] sm:$0xff]
    %v937 = vld [vmem:[#allocation8 + $0x1068] sm:$0xff]
    %v938 = vld [vmem:[#allocation8 + $0x1070] sm:$0xff]
    %v939 = vld [vmem:[#allocation8 + $0x1078] sm:$0xff]
    %v940 = vld [vmem:[#allocation8 + $0x1080] sm:$0xff]
    %v941 = vld [vmem:[#allocation8 + $0x1088] sm:$0xff]
    %v942 = vld [vmem:[#allocation8 + $0x1090] sm:$0xff]
    %v943 = vld [vmem:[#allocation8 + $0x1098] sm:$0xff]
    %v944 = vld [vmem:[#allocation8 + $0x10a0] sm:$0xff]
    %v945 = vld [vmem:[#allocation8 + $0x10a8] sm:$0xff]
    %v946 = vld [vmem:[#allocation8 + $0x10b0] sm:$0xff]
    %v947 = vld [vmem:[#allocation8 + $0x10b8] sm:$0xff]
    %v948 = vld [vmem:[#allocation8 + $0x10c0] sm:$0xff]
    %v949 = vld [vmem:[#allocation8 + $0x10c8] sm:$0xff]
    %v950 = vld [vmem:[#allocation8 + $0x10d0] sm:$0xff]
    %v951 = vld [vmem:[#allocation8 + $0x10d8] sm:$0xff]
    %v952 = vld [vmem:[#allocation8 + $0x10e0] sm:$0xff]
    %v953 = vld [vmem:[#allocation8 + $0x10e8] sm:$0xff]
    %v954 = vld [vmem:[#allocation8 + $0x10f0] sm:$0xff]
    %v955 = vld [vmem:[#allocation8 + $0x10f8] sm:$0xff]
    %v956 = vld [vmem:[#allocation8 + $0x1100] sm:$0xff]
    %v957 = vld [vmem:[#allocation8 + $0x1108] sm:$0xff]
    %v958 = vld [vmem:[#allocation8 + $0x1110] sm:$0xff]
    %v959 = vld [vmem:[#allocation8 + $0x1118] sm:$0xff]
    %v960 = vld [vmem:[#allocation8 + $0x1120] sm:$0xff]
    %v961 = vld [vmem:[#allocation8 + $0x1128] sm:$0xff]
    %v962 = vld [vmem:[#allocation8 + $0x1130] sm:$0xff]
    %v963 = vld [vmem:[#allocation8 + $0x1138] sm:$0xff]
    %v964 = vld [vmem:[#allocation8 + $0x1140] sm:$0xff]
    %v965 = vld [vmem:[#allocation8 + $0x1148] sm:$0xff]
    %v966 = vld [vmem:[#allocation8 + $0x1150] sm:$0xff]
    %v967 = vld [vmem:[#allocation8 + $0x1158] sm:$0xff]
    %v968 = vld [vmem:[#allocation8 + $0x1160] sm:$0xff]
    %v969 = vld [vmem:[#allocation8 + $0x1168] sm:$0xff]
    %v970 = vld [vmem:[#allocation8 + $0x1170] sm:$0xff]
    %v971 = vld [vmem:[#allocation8 + $0x1178] sm:$0xff]
    %v972 = vld [vmem:[#allocation8 + $0x1180] sm:$0xff]
    %v973 = vld [vmem:[#allocation8 + $0x1188] sm:$0xff]
    %v974 = vld [vmem:[#allocation8 + $0x1190] sm:$0xff]
    %v975 = vld [vmem:[#allocation8 + $0x1198] sm:$0xff]
    %v976 = vld [vmem:[#allocation8 + $0x11a0] sm:$0xff]
    %v977 = vld [vmem:[#allocation8 + $0x11a8] sm:$0xff]
    %v978 = vld [vmem:[#allocation8 + $0x11b0] sm:$0xff]
    %v979 = vld [vmem:[#allocation8 + $0x11b8] sm:$0xff]
    %v980 = vld [vmem:[#allocation8 + $0x11c0] sm:$0xff]
    %v981 = vld [vmem:[#allocation8 + $0x11c8] sm:$0xff]
    %v982 = vld [vmem:[#allocation8 + $0x11d0] sm:$0xff]
    %v983 = vld [vmem:[#allocation8 + $0x11d8] sm:$0xff]
    %v984 = vld [vmem:[#allocation8 + $0x11e0] sm:$0xff]
    %v985 = vld [vmem:[#allocation8 + $0x11e8] sm:$0xff]
    %v986 = vld [vmem:[#allocation8 + $0x11f0] sm:$0xff]
    %v987 = vld [vmem:[#allocation8 + $0x11f8] sm:$0xff]
    %v988 = vld [vmem:[#allocation8 + $0x1200] sm:$0xff]
    %v989 = vld [vmem:[#allocation8 + $0x1208] sm:$0xff]
    %v990 = vld [vmem:[#allocation8 + $0x1210] sm:$0xff]
    %v991 = vld [vmem:[#allocation8 + $0x1218] sm:$0xff]
    %v992 = vld [vmem:[#allocation8 + $0x1220] sm:$0xff]
    %v993 = vld [vmem:[#allocation8 + $0x1228] sm:$0xff]
    %v994 = vld [vmem:[#allocation8 + $0x1230] sm:$0xff]
    %v995 = vld [vmem:[#allocation8 + $0x1238] sm:$0xff]
    %v996 = vld [vmem:[#allocation8 + $0x1240] sm:$0xff]
    %v997 = vld [vmem:[#allocation8 + $0x1248] sm:$0xff]
    %v998 = vld [vmem:[#allocation8 + $0x1250] sm:$0xff]
    %v999 = vld [vmem:[#allocation8 + $0x1258] sm:$0xff]
    %v1000 = vld [vmem:[#allocation8 + $0x1260] sm:$0xff]
    %v1001 = vld [vmem:[#allocation8 + $0x1268] sm:$0xff]
    %v1002 = vld [vmem:[#allocation8 + $0x1270] sm:$0xff]
    %v1003 = vld [vmem:[#allocation8 + $0x1278] sm:$0xff]
    %v1004 = vld [vmem:[#allocation8 + $0x1280] sm:$0xff]
    %v1005 = vld [vmem:[#allocation8 + $0x1288] sm:$0xff]
    %v1006 = vld [vmem:[#allocation8 + $0x1290] sm:$0xff]
    %v1007 = vld [vmem:[#allocation8 + $0x1298] sm:$0xff]
    %v1008 = vld [vmem:[#allocation8 + $0x12a0] sm:$0xff]
    %v1009 = vld [vmem:[#allocation8 + $0x12a8] sm:$0xff]
    %v1010 = vld [vmem:[#allocation8 + $0x12b0] sm:$0xff]
    %v1011 = vld [vmem:[#allocation8 + $0x12b8] sm:$0xff]
    %v1012 = vld [vmem:[#allocation8 + $0x12c0] sm:$0xff]
    %v1013 = vld [vmem:[#allocation8 + $0x12c8] sm:$0xff]
    %v1014 = vld [vmem:[#allocation8 + $0x12d0] sm:$0xff]
    %v1015 = vld [vmem:[#allocation8 + $0x12d8] sm:$0xff]
    %v1016 = vld [vmem:[#allocation8 + $0x12e0] sm:$0xff]
    %v1017 = vld [vmem:[#allocation8 + $0x12e8] sm:$0xff]
    %v1018 = vld [vmem:[#allocation8 + $0x12f0] sm:$0xff]
    %v1019 = vld [vmem:[#allocation8 + $0x12f8] sm:$0xff]
    %v1020 = vld [vmem:[#allocation8 + $0x1300] sm:$0xff]
    %v1021 = vld [vmem:[#allocation8 + $0x1308] sm:$0xff]
    %v1022 = vld [vmem:[#allocation8 + $0x1310] sm:$0xff]
    %v1023 = vld [vmem:[#allocation8 + $0x1318] sm:$0xff]
    %v1024 = vld [vmem:[#allocation8 + $0x1320] sm:$0xff]
    %v1025 = vld [vmem:[#allocation8 + $0x1328] sm:$0xff]
    %v1026 = vld [vmem:[#allocation8 + $0x1330] sm:$0xff]
    %v1027 = vld [vmem:[#allocation8 + $0x1338] sm:$0xff]
    %v1028 = vld [vmem:[#allocation8 + $0x1340] sm:$0xff]
    %v1029 = vld [vmem:[#allocation8 + $0x1348] sm:$0xff]
    %v1030 = vld [vmem:[#allocation8 + $0x1350] sm:$0xff]
    %v1031 = vld [vmem:[#allocation8 + $0x1358] sm:$0xff]
    %v1032 = vld [vmem:[#allocation8 + $0x1360] sm:$0xff]
    %v1033 = vld [vmem:[#allocation8 + $0x1368] sm:$0xff]
    %v1034 = vld [vmem:[#allocation8 + $0x1370] sm:$0xff]
    %v1035 = vld [vmem:[#allocation8 + $0x1378] sm:$0xff]
    %v1036 = vld [vmem:[#allocation8 + $0x1380] sm:$0xff]
    %v1037 = vld [vmem:[#allocation8 + $0x1388] sm:$0xff]
    %v1038 = vld [vmem:[#allocation8 + $0x1390] sm:$0xff]
    %v1039 = vld [vmem:[#allocation8 + $0x1398] sm:$0xff]
    %v1040 = vld [vmem:[#allocation8 + $0x13a0] sm:$0xff]
    %v1041 = vld [vmem:[#allocation8 + $0x13a8] sm:$0xff]
    %v1042 = vld [vmem:[#allocation8 + $0x13b0] sm:$0xff]
    %v1043 = vld [vmem:[#allocation8 + $0x13b8] sm:$0xff]
    %v1044 = vld [vmem:[#allocation8 + $0x13c0] sm:$0xff]
    %v1045 = vld [vmem:[#allocation8 + $0x13c8] sm:$0xff]
    %v1046 = vld [vmem:[#allocation8 + $0x13d0] sm:$0xff]
    %v1047 = vld [vmem:[#allocation8 + $0x13d8] sm:$0xff]
    %v1048 = vld [vmem:[#allocation8 + $0x13e0] sm:$0xff]
    %v1049 = vld [vmem:[#allocation8 + $0x13e8] sm:$0xff]
    %v1050 = vld [vmem:[#allocation8 + $0x13f0] sm:$0xff]
    %v1051 = vld [vmem:[#allocation8 + $0x13f8] sm:$0xff]
    %v1052 = vld [vmem:[#allocation8 + $0x1400] sm:$0xff]
    %v1053 = vld [vmem:[#allocation8 + $0x1408] sm:$0xff]
    %v1054 = vld [vmem:[#allocation8 + $0x1410] sm:$0xff]
    %v1055 = vld [vmem:[#allocation8 + $0x1418] sm:$0xff]
    %v1056 = vld [vmem:[#allocation8 + $0x1420] sm:$0xff]
    %v1057 = vld [vmem:[#allocation8 + $0x1428] sm:$0xff]
    %v1058 = vld [vmem:[#allocation8 + $0x1430] sm:$0xff]
    %v1059 = vld [vmem:[#allocation8 + $0x1438] sm:$0xff]
    %v1060 = vld [vmem:[#allocation8 + $0x1440] sm:$0xff]
    %v1061 = vld [vmem:[#allocation8 + $0x1448] sm:$0xff]
    %v1062 = vld [vmem:[#allocation8 + $0x1450] sm:$0xff]
    %v1063 = vld [vmem:[#allocation8 + $0x1458] sm:$0xff]
    %v1064 = vld [vmem:[#allocation8 + $0x1460] sm:$0xff]
    %v1065 = vld [vmem:[#allocation8 + $0x1468] sm:$0xff]
    %v1066 = vld [vmem:[#allocation8 + $0x1470] sm:$0xff]
    %v1067 = vld [vmem:[#allocation8 + $0x1478] sm:$0xff]
    %v1068 = vld [vmem:[#allocation8 + $0x1480] sm:$0xff]
    %v1069 = vld [vmem:[#allocation8 + $0x1488] sm:$0xff]
    %v1070 = vld [vmem:[#allocation8 + $0x1490] sm:$0xff]
    %v1071 = vld [vmem:[#allocation8 + $0x1498] sm:$0xff]
    %v1072 = vld [vmem:[#allocation8 + $0x14a0] sm:$0xff]
    %v1073 = vld [vmem:[#allocation8 + $0x14a8] sm:$0xff]
    %v1074 = vld [vmem:[#allocation8 + $0x14b0] sm:$0xff]
    %v1075 = vld [vmem:[#allocation8 + $0x14b8] sm:$0xff]
    %v1076 = vld [vmem:[#allocation8 + $0x14c0] sm:$0xff]
    %v1077 = vld [vmem:[#allocation8 + $0x14c8] sm:$0xff]
    %v1078 = vld [vmem:[#allocation8 + $0x14d0] sm:$0xff]
    %v1079 = vld [vmem:[#allocation8 + $0x14d8] sm:$0xff]
    %v1080 = vld [vmem:[#allocation8 + $0x14e0] sm:$0xff]
    %v1081 = vld [vmem:[#allocation8 + $0x14e8] sm:$0xff]
    %v1082 = vld [vmem:[#allocation8 + $0x14f0] sm:$0xff]
    %v1083 = vld [vmem:[#allocation8 + $0x14f8] sm:$0xff]
    %v1084 = vld [vmem:[#allocation8 + $0x1500] sm:$0xff]
    %v1085 = vld [vmem:[#allocation8 + $0x1508] sm:$0xff]
    %v1086 = vld [vmem:[#allocation8 + $0x1510] sm:$0xff]
    %v1087 = vld [vmem:[#allocation8 + $0x1518] sm:$0xff]
    %v1088 = vld [vmem:[#allocation8 + $0x1520] sm:$0xff]
    %v1089 = vld [vmem:[#allocation8 + $0x1528] sm:$0xff]
    %v1090 = vld [vmem:[#allocation8 + $0x1530] sm:$0xff]
    %v1091 = vld [vmem:[#allocation8 + $0x1538] sm:$0xff]
    %v1092 = vld [vmem:[#allocation8 + $0x1540] sm:$0xff]
    %v1093 = vld [vmem:[#allocation8 + $0x1548] sm:$0xff]
    %v1094 = vld [vmem:[#allocation8 + $0x1550] sm:$0xff]
    %v1095 = vld [vmem:[#allocation8 + $0x1558] sm:$0xff]
    %v1096 = vld [vmem:[#allocation8 + $0x1560] sm:$0xff]
    %v1097 = vld [vmem:[#allocation8 + $0x1568] sm:$0xff]
    %v1098 = vld [vmem:[#allocation8 + $0x1570] sm:$0xff]
    %v1099 = vld [vmem:[#allocation8 + $0x1578] sm:$0xff]
    %v1100 = vld [vmem:[#allocation8 + $0x1580] sm:$0xff]
    %v1101 = vld [vmem:[#allocation8 + $0x1588] sm:$0xff]
    %v1102 = vld [vmem:[#allocation8 + $0x1590] sm:$0xff]
    %v1103 = vld [vmem:[#allocation8 + $0x1598] sm:$0xff]
    %v1104 = vld [vmem:[#allocation8 + $0x15a0] sm:$0xff]
    %v1105 = vld [vmem:[#allocation8 + $0x15a8] sm:$0xff]
    %v1106 = vld [vmem:[#allocation8 + $0x15b0] sm:$0xff]
    %v1107 = vld [vmem:[#allocation8 + $0x15b8] sm:$0xff]
    %v1108 = vld [vmem:[#allocation8 + $0x15c0] sm:$0xff]
    %v1109 = vld [vmem:[#allocation8 + $0x15c8] sm:$0xff]
    %v1110 = vld [vmem:[#allocation8 + $0x15d0] sm:$0xff]
    %v1111 = vld [vmem:[#allocation8 + $0x15d8] sm:$0xff]
    %v1112 = vld [vmem:[#allocation8 + $0x15e0] sm:$0xff]
    %v1113 = vld [vmem:[#allocation8 + $0x15e8] sm:$0xff]
    %v1114 = vld [vmem:[#allocation8 + $0x15f0] sm:$0xff]
    %v1115 = vld [vmem:[#allocation8 + $0x15f8] sm:$0xff]
    %v1116 = vld [vmem:[#allocation8 + $0x1600] sm:$0xff]
    %v1117 = vld [vmem:[#allocation8 + $0x1608] sm:$0xff]
    %v1118 = vld [vmem:[#allocation8 + $0x1610] sm:$0xff]
    %v1119 = vld [vmem:[#allocation8 + $0x1618] sm:$0xff]
    %v1120 = vld [vmem:[#allocation8 + $0x1620] sm:$0xff]
    %v1121 = vld [vmem:[#allocation8 + $0x1628] sm:$0xff]
    %v1122 = vld [vmem:[#allocation8 + $0x1630] sm:$0xff]
    %v1123 = vld [vmem:[#allocation8 + $0x1638] sm:$0xff]
    %v1124 = vld [vmem:[#allocation8 + $0x1640] sm:$0xff]
    %v1125 = vld [vmem:[#allocation8 + $0x1648] sm:$0xff]
    %v1126 = vld [vmem:[#allocation8 + $0x1650] sm:$0xff]
    %v1127 = vld [vmem:[#allocation8 + $0x1658] sm:$0xff]
    %v1128 = vld [vmem:[#allocation8 + $0x1660] sm:$0xff]
    %v1129 = vld [vmem:[#allocation8 + $0x1668] sm:$0xff]
    %v1130 = vld [vmem:[#allocation8 + $0x1670] sm:$0xff]
    %v1131 = vld [vmem:[#allocation8 + $0x1678] sm:$0xff]
    %v1132 = vld [vmem:[#allocation8 + $0x1680] sm:$0xff]
    %v1133 = vld [vmem:[#allocation8 + $0x1688] sm:$0xff]
    %v1134 = vld [vmem:[#allocation8 + $0x1690] sm:$0xff]
    %v1135 = vld [vmem:[#allocation8 + $0x1698] sm:$0xff]
    %v1136 = vld [vmem:[#allocation8 + $0x16a0] sm:$0xff]
    %v1137 = vld [vmem:[#allocation8 + $0x16a8] sm:$0xff]
    %v1138 = vld [vmem:[#allocation8 + $0x16b0] sm:$0xff]
    %v1139 = vld [vmem:[#allocation8 + $0x16b8] sm:$0xff]
    %v1140 = vld [vmem:[#allocation8 + $0x16c0] sm:$0xff]
    %v1141 = vld [vmem:[#allocation8 + $0x16c8] sm:$0xff]
    %v1142 = vld [vmem:[#allocation8 + $0x16d0] sm:$0xff]
    %v1143 = vld [vmem:[#allocation8 + $0x16d8] sm:$0xff]
    %v1144 = vld [vmem:[#allocation8 + $0x16e0] sm:$0xff]
    %v1145 = vld [vmem:[#allocation8 + $0x16e8] sm:$0xff]
    %v1146 = vld [vmem:[#allocation8 + $0x16f0] sm:$0xff]
    %v1147 = vld [vmem:[#allocation8 + $0x16f8] sm:$0xff]
    %v1148 = vld [vmem:[#allocation8 + $0x1700] sm:$0xff]
    %v1149 = vld [vmem:[#allocation8 + $0x1708] sm:$0xff]
    %v1150 = vld [vmem:[#allocation8 + $0x1710] sm:$0xff]
    %v1151 = vld [vmem:[#allocation8 + $0x1718] sm:$0xff]
    %v1152 = vld [vmem:[#allocation8 + $0x1720] sm:$0xff]
    %v1153 = vld [vmem:[#allocation8 + $0x1728] sm:$0xff]
    %v1154 = vld [vmem:[#allocation8 + $0x1730] sm:$0xff]
    %v1155 = vld [vmem:[#allocation8 + $0x1738] sm:$0xff]
    %v1156 = vld [vmem:[#allocation8 + $0x1740] sm:$0xff]
    %v1157 = vld [vmem:[#allocation8 + $0x1748] sm:$0xff]
    %v1158 = vld [vmem:[#allocation8 + $0x1750] sm:$0xff]
    %v1159 = vld [vmem:[#allocation8 + $0x1758] sm:$0xff]
    %v1160 = vld [vmem:[#allocation8 + $0x1760] sm:$0xff]
    %v1161 = vld [vmem:[#allocation8 + $0x1768] sm:$0xff]
    %v1162 = vld [vmem:[#allocation8 + $0x1770] sm:$0xff]
    %v1163 = vld [vmem:[#allocation8 + $0x1778] sm:$0xff]
    %v1164 = vld [vmem:[#allocation8 + $0x1780] sm:$0xff]
    %v1165 = vld [vmem:[#allocation8 + $0x1788] sm:$0xff]
    %v1166 = vld [vmem:[#allocation8 + $0x1790] sm:$0xff]
    %v1167 = vld [vmem:[#allocation8 + $0x1798] sm:$0xff]
    %v1168 = vld [vmem:[#allocation8 + $0x17a0] sm:$0xff]
    %v1169 = vld [vmem:[#allocation8 + $0x17a8] sm:$0xff]
    %v1170 = vld [vmem:[#allocation8 + $0x17b0] sm:$0xff]
    %v1171 = vld [vmem:[#allocation8 + $0x17b8] sm:$0xff]
    %v1172 = vld [vmem:[#allocation8 + $0x17c0] sm:$0xff]
    %v1173 = vld [vmem:[#allocation8 + $0x17c8] sm:$0xff]
    %v1174 = vld [vmem:[#allocation8 + $0x17d0] sm:$0xff]
    %v1175 = vld [vmem:[#allocation8 + $0x17d8] sm:$0xff]
    %v1176 = vld [vmem:[#allocation8 + $0x17e0] sm:$0xff]
    %v1177 = vld [vmem:[#allocation8 + $0x17e8] sm:$0xff]
    %v1178 = vld [vmem:[#allocation8 + $0x17f0] sm:$0xff]
    %v1179 = vld [vmem:[#allocation8 + $0x17f8] sm:$0xff]
    %v1180 = vld [vmem:[#allocation8 + $0x1800] sm:$0xff]
    %v1181 = vld [vmem:[#allocation8 + $0x1808] sm:$0xff]
    %v1182 = vld [vmem:[#allocation8 + $0x1810] sm:$0xff]
    %v1183 = vld [vmem:[#allocation8 + $0x1818] sm:$0xff]
    %v1184 = vld [vmem:[#allocation8 + $0x1820] sm:$0xff]
    %v1185 = vld [vmem:[#allocation8 + $0x1828] sm:$0xff]
    %v1186 = vld [vmem:[#allocation8 + $0x1830] sm:$0xff]
    %v1187 = vld [vmem:[#allocation8 + $0x1838] sm:$0xff]
    %v1188 = vld [vmem:[#allocation8 + $0x1840] sm:$0xff]
    %v1189 = vld [vmem:[#allocation8 + $0x1848] sm:$0xff]
    %v1190 = vld [vmem:[#allocation8 + $0x1850] sm:$0xff]
    %v1191 = vld [vmem:[#allocation8 + $0x1858] sm:$0xff]
    %v1192 = vld [vmem:[#allocation8 + $0x1860] sm:$0xff]
    %v1193 = vld [vmem:[#allocation8 + $0x1868] sm:$0xff]
    %v1194 = vld [vmem:[#allocation8 + $0x1870] sm:$0xff]
    %v1195 = vld [vmem:[#allocation8 + $0x1878] sm:$0xff]
    %v1196 = vld [vmem:[#allocation8 + $0x1880] sm:$0xff]
    %v1197 = vld [vmem:[#allocation8 + $0x1888] sm:$0xff]
    %v1198 = vld [vmem:[#allocation8 + $0x1890] sm:$0xff]
    %v1199 = vld [vmem:[#allocation8 + $0x1898] sm:$0xff]
    %v1200 = vld [vmem:[#allocation8 + $0x18a0] sm:$0xff]
    %v1201 = vld [vmem:[#allocation8 + $0x18a8] sm:$0xff]
    %v1202 = vld [vmem:[#allocation8 + $0x18b0] sm:$0xff]
    %v1203 = vld [vmem:[#allocation8 + $0x18b8] sm:$0xff]
    %v1204 = vld [vmem:[#allocation8 + $0x18c0] sm:$0xff]
    %v1205 = vld [vmem:[#allocation8 + $0x18c8] sm:$0xff]
    %v1206 = vld [vmem:[#allocation8 + $0x18d0] sm:$0xff]
    %v1207 = vld [vmem:[#allocation8 + $0x18d8] sm:$0xff]
    %v1208 = vld [vmem:[#allocation8 + $0x18e0] sm:$0xff]
    %v1209 = vld [vmem:[#allocation8 + $0x18e8] sm:$0xff]
    %v1210 = vld [vmem:[#allocation8 + $0x18f0] sm:$0xff]
    %v1211 = vld [vmem:[#allocation8 + $0x18f8] sm:$0xff]
    %v1212 = vld [vmem:[#allocation8 + $0x1900] sm:$0xff]
    %v1213 = vld [vmem:[#allocation8 + $0x1908] sm:$0xff]
    %v1214 = vld [vmem:[#allocation8 + $0x1910] sm:$0xff]
    %v1215 = vld [vmem:[#allocation8 + $0x1918] sm:$0xff]
    %v1216 = vld [vmem:[#allocation8 + $0x1920] sm:$0xff]
    %v1217 = vld [vmem:[#allocation8 + $0x1928] sm:$0xff]
    %v1218 = vld [vmem:[#allocation8 + $0x1930] sm:$0xff]
    %v1219 = vld [vmem:[#allocation8 + $0x1938] sm:$0xff]
    %v1220 = vld [vmem:[#allocation8 + $0x1940] sm:$0xff]
    %v1221 = vld [vmem:[#allocation8 + $0x1948] sm:$0xff]
    %v1222 = vld [vmem:[#allocation8 + $0x1950] sm:$0xff]
    %v1223 = vld [vmem:[#allocation8 + $0x1958] sm:$0xff]
    %v1224 = vld [vmem:[#allocation8 + $0x1960] sm:$0xff]
    %v1225 = vld [vmem:[#allocation8 + $0x1968] sm:$0xff]
    %v1226 = vld [vmem:[#allocation8 + $0x1970] sm:$0xff]
    %v1227 = vld [vmem:[#allocation8 + $0x1978] sm:$0xff]
    %v1228 = vld [vmem:[#allocation8 + $0x1980] sm:$0xff]
    %v1229 = vld [vmem:[#allocation8 + $0x1988] sm:$0xff]
    %v1230 = vld [vmem:[#allocation8 + $0x1990] sm:$0xff]
    %v1231 = vld [vmem:[#allocation8 + $0x1998] sm:$0xff]
    %v1232 = vld [vmem:[#allocation8 + $0x19a0] sm:$0xff]
    %v1233 = vld [vmem:[#allocation8 + $0x19a8] sm:$0xff]
    %v1234 = vld [vmem:[#allocation8 + $0x19b0] sm:$0xff]
    %v1235 = vld [vmem:[#allocation8 + $0x19b8] sm:$0xff]
    %v1236 = vld [vmem:[#allocation8 + $0x19c0] sm:$0xff]
    %v1237 = vld [vmem:[#allocation8 + $0x19c8] sm:$0xff]
    %v1238 = vld [vmem:[#allocation8 + $0x19d0] sm:$0xff]
    %v1239 = vld [vmem:[#allocation8 + $0x19d8] sm:$0xff]
    %v1240 = vld [vmem:[#allocation8 + $0x19e0] sm:$0xff]
    %v1241 = vld [vmem:[#allocation8 + $0x19e8] sm:$0xff]
    %v1242 = vld [vmem:[#allocation8 + $0x19f0] sm:$0xff]
    %v1243 = vld [vmem:[#allocation8 + $0x19f8] sm:$0xff]
    %v1244 = vld [vmem:[#allocation8 + $0x1a00] sm:$0xff]
    %v1245 = vld [vmem:[#allocation8 + $0x1a08] sm:$0xff]
    %v1246 = vld [vmem:[#allocation8 + $0x1a10] sm:$0xff]
    %v1247 = vld [vmem:[#allocation8 + $0x1a18] sm:$0xff]
    %v1248 = vld [vmem:[#allocation8 + $0x1a20] sm:$0xff]
    %v1249 = vld [vmem:[#allocation8 + $0x1a28] sm:$0xff]
    %v1250 = vld [vmem:[#allocation8 + $0x1a30] sm:$0xff]
    %v1251 = vld [vmem:[#allocation8 + $0x1a38] sm:$0xff]
    %v1252 = vld [vmem:[#allocation8 + $0x1a40] sm:$0xff]
    %v1253 = vld [vmem:[#allocation8 + $0x1a48] sm:$0xff]
    %v1254 = vld [vmem:[#allocation8 + $0x1a50] sm:$0xff]
    %v1255 = vld [vmem:[#allocation8 + $0x1a58] sm:$0xff]
    %v1256 = vld [vmem:[#allocation8 + $0x1a60] sm:$0xff]
    %v1257 = vld [vmem:[#allocation8 + $0x1a68] sm:$0xff]
    %v1258 = vld [vmem:[#allocation8 + $0x1a70] sm:$0xff]
    %v1259 = vld [vmem:[#allocation8 + $0x1a78] sm:$0xff]
    %v1260 = vld [vmem:[#allocation8 + $0x1a80] sm:$0xff]
    %v1261 = vld [vmem:[#allocation8 + $0x1a88] sm:$0xff]
    %v1262 = vld [vmem:[#allocation8 + $0x1a90] sm:$0xff]
    %v1263 = vld [vmem:[#allocation8 + $0x1a98] sm:$0xff]
    %v1264 = vld [vmem:[#allocation8 + $0x1aa0] sm:$0xff]
    %v1265 = vld [vmem:[#allocation8 + $0x1aa8] sm:$0xff]
    %v1266 = vld [vmem:[#allocation8 + $0x1ab0] sm:$0xff]
    %v1267 = vld [vmem:[#allocation8 + $0x1ab8] sm:$0xff]
    %v1268 = vld [vmem:[#allocation8 + $0x1ac0] sm:$0xff]
    %v1269 = vld [vmem:[#allocation8 + $0x1ac8] sm:$0xff]
    %v1270 = vld [vmem:[#allocation8 + $0x1ad0] sm:$0xff]
    %v1271 = vld [vmem:[#allocation8 + $0x1ad8] sm:$0xff]
    %v1272 = vld [vmem:[#allocation8 + $0x1ae0] sm:$0xff]
    %v1273 = vld [vmem:[#allocation8 + $0x1ae8] sm:$0xff]
    %v1274 = vld [vmem:[#allocation8 + $0x1af0] sm:$0xff]
    %v1275 = vld [vmem:[#allocation8 + $0x1af8] sm:$0xff]
    %v1276 = vld [vmem:[#allocation8 + $0x1b00] sm:$0xff]
    %v1277 = vld [vmem:[#allocation8 + $0x1b08] sm:$0xff]
    %v1278 = vld [vmem:[#allocation8 + $0x1b10] sm:$0xff]
    %v1279 = vld [vmem:[#allocation8 + $0x1b18] sm:$0xff]
    %v1280 = vld [vmem:[#allocation8 + $0x1b20] sm:$0xff]
    %v1281 = vld [vmem:[#allocation8 + $0x1b28] sm:$0xff]
    %v1282 = vld [vmem:[#allocation8 + $0x1b30] sm:$0xff]
    %v1283 = vld [vmem:[#allocation8 + $0x1b38] sm:$0xff]
    %v1284 = vld [vmem:[#allocation8 + $0x1b40] sm:$0xff]
    %v1285 = vld [vmem:[#allocation8 + $0x1b48] sm:$0xff]
    %v1286 = vld [vmem:[#allocation8 + $0x1b50] sm:$0xff]
    %v1287 = vld [vmem:[#allocation8 + $0x1b58] sm:$0xff]
    %v1288 = vld [vmem:[#allocation8 + $0x1b60] sm:$0xff]
    %v1289 = vld [vmem:[#allocation8 + $0x1b68] sm:$0xff]
    %v1290 = vld [vmem:[#allocation8 + $0x1b70] sm:$0xff]
    %v1291 = vld [vmem:[#allocation8 + $0x1b78] sm:$0xff]
    %v1292 = vld [vmem:[#allocation8 + $0x1b80] sm:$0xff]
    %v1293 = vld [vmem:[#allocation8 + $0x1b88] sm:$0xff]
    %v1294 = vld [vmem:[#allocation8 + $0x1b90] sm:$0xff]
    %v1295 = vld [vmem:[#allocation8 + $0x1b98] sm:$0xff]
    %v1296 = vld [vmem:[#allocation8 + $0x1ba0] sm:$0xff]
    %v1297 = vld [vmem:[#allocation8 + $0x1ba8] sm:$0xff]
    %v1298 = vld [vmem:[#allocation8 + $0x1bb0] sm:$0xff]
    %v1299 = vld [vmem:[#allocation8 + $0x1bb8] sm:$0xff]
    %v1300 = vld [vmem:[#allocation8 + $0x1bc0] sm:$0xff]
    %v1301 = vld [vmem:[#allocation8 + $0x1bc8] sm:$0xff]
    %v1302 = vld [vmem:[#allocation8 + $0x1bd0] sm:$0xff]
    %v1303 = vld [vmem:[#allocation8 + $0x1bd8] sm:$0xff]
    %v1304 = vld [vmem:[#allocation8 + $0x1be0] sm:$0xff]
    %v1305 = vld [vmem:[#allocation8 + $0x1be8] sm:$0xff]
    %v1306 = vld [vmem:[#allocation8 + $0x1bf0] sm:$0xff]
    %v1307 = vld [vmem:[#allocation8 + $0x1bf8] sm:$0xff]
    %v1308 = vld [vmem:[#allocation8 + $0x1c00] sm:$0xff]
    %v1309 = vld [vmem:[#allocation8 + $0x1c08] sm:$0xff]
    %v1310 = vld [vmem:[#allocation8 + $0x1c10] sm:$0xff]
    %v1311 = vld [vmem:[#allocation8 + $0x1c18] sm:$0xff]
    %v1312 = vld [vmem:[#allocation8 + $0x1c20] sm:$0xff]
    %v1313 = vld [vmem:[#allocation8 + $0x1c28] sm:$0xff]
    %v1314 = vld [vmem:[#allocation8 + $0x1c30] sm:$0xff]
    %v1315 = vld [vmem:[#allocation8 + $0x1c38] sm:$0xff]
    %v1316 = vld [vmem:[#allocation8 + $0x1c40] sm:$0xff]
    %v1317 = vld [vmem:[#allocation8 + $0x1c48] sm:$0xff]
    %v1318 = vld [vmem:[#allocation8 + $0x1c50] sm:$0xff]
    %v1319 = vld [vmem:[#allocation8 + $0x1c58] sm:$0xff]
    %v1320 = vld [vmem:[#allocation8 + $0x1c60] sm:$0xff]
    %v1321 = vld [vmem:[#allocation8 + $0x1c68] sm:$0xff]
    %v1322 = vld [vmem:[#allocation8 + $0x1c70] sm:$0xff]
    %v1323 = vld [vmem:[#allocation8 + $0x1c78] sm:$0xff]
    %v1324 = vld [vmem:[#allocation8 + $0x1c80] sm:$0xff]
    %v1325 = vld [vmem:[#allocation8 + $0x1c88] sm:$0xff]
    %v1326 = vld [vmem:[#allocation8 + $0x1c90] sm:$0xff]
    %v1327 = vld [vmem:[#allocation8 + $0x1c98] sm:$0xff]
    %v1328 = vld [vmem:[#allocation8 + $0x1ca0] sm:$0xff]
    %v1329 = vld [vmem:[#allocation8 + $0x1ca8] sm:$0xff]
    %v1330 = vld [vmem:[#allocation8 + $0x1cb0] sm:$0xff]
    %v1331 = vld [vmem:[#allocation8 + $0x1cb8] sm:$0xff]
    %v1332 = vld [vmem:[#allocation8 + $0x1cc0] sm:$0xff]
    %v1333 = vld [vmem:[#allocation8 + $0x1cc8] sm:$0xff]
    %v1334 = vld [vmem:[#allocation8 + $0x1cd0] sm:$0xff]
    %v1335 = vld [vmem:[#allocation8 + $0x1cd8] sm:$0xff]
    %v1336 = vld [vmem:[#allocation8 + $0x1ce0] sm:$0xff]
    %v1337 = vld [vmem:[#allocation8 + $0x1ce8] sm:$0xff]
    %v1338 = vld [vmem:[#allocation8 + $0x1cf0] sm:$0xff]
    %v1339 = vld [vmem:[#allocation8 + $0x1cf8] sm:$0xff]
    %v1340 = vld [vmem:[#allocation8 + $0x1d00] sm:$0xff]
    %v1341 = vld [vmem:[#allocation8 + $0x1d08] sm:$0xff]
    %v1342 = vld [vmem:[#allocation8 + $0x1d10] sm:$0xff]
    %v1343 = vld [vmem:[#allocation8 + $0x1d18] sm:$0xff]
    %v1344 = vld [vmem:[#allocation8 + $0x1d20] sm:$0xff]
    %v1345 = vld [vmem:[#allocation8 + $0x1d28] sm:$0xff]
    %v1346 = vld [vmem:[#allocation8 + $0x1d30] sm:$0xff]
    %v1347 = vld [vmem:[#allocation8 + $0x1d38] sm:$0xff]
    %v1348 = vld [vmem:[#allocation8 + $0x1d40] sm:$0xff]
    %v1349 = vld [vmem:[#allocation8 + $0x1d48] sm:$0xff]
    %v1350 = vld [vmem:[#allocation8 + $0x1d50] sm:$0xff]
    %v1351 = vld [vmem:[#allocation8 + $0x1d58] sm:$0xff]
    %v1352 = vld [vmem:[#allocation8 + $0x1d60] sm:$0xff]
    %v1353 = vld [vmem:[#allocation8 + $0x1d68] sm:$0xff]
    %v1354 = vld [vmem:[#allocation8 + $0x1d70] sm:$0xff]
    %v1355 = vld [vmem:[#allocation8 + $0x1d78] sm:$0xff]
    %v1356 = vld [vmem:[#allocation8 + $0x1d80] sm:$0xff]
    %v1357 = vld [vmem:[#allocation8 + $0x1d88] sm:$0xff]
    %v1358 = vld [vmem:[#allocation8 + $0x1d90] sm:$0xff]
    %v1359 = vld [vmem:[#allocation8 + $0x1d98] sm:$0xff]
    %v1360 = vld [vmem:[#allocation8 + $0x1da0] sm:$0xff]
    %v1361 = vld [vmem:[#allocation8 + $0x1da8] sm:$0xff]
    %v1362 = vld [vmem:[#allocation8 + $0x1db0] sm:$0xff]
    %v1363 = vld [vmem:[#allocation8 + $0x1db8] sm:$0xff]
    %v1364 = vld [vmem:[#allocation8 + $0x1dc0] sm:$0xff]
    %v1365 = vld [vmem:[#allocation8 + $0x1dc8] sm:$0xff]
    %v1366 = vld [vmem:[#allocation8 + $0x1dd0] sm:$0xff]
    %v1367 = vld [vmem:[#allocation8 + $0x1dd8] sm:$0xff]
    %v1368 = vld [vmem:[#allocation8 + $0x1de0] sm:$0xff]
    %v1369 = vld [vmem:[#allocation8 + $0x1de8] sm:$0xff]
    %v1370 = vld [vmem:[#allocation8 + $0x1df0] sm:$0xff]
    %v1371 = vld [vmem:[#allocation8 + $0x1df8] sm:$0xff]
    %v1372 = vld [vmem:[#allocation8 + $0x1e00] sm:$0xff]
    %v1373 = vld [vmem:[#allocation8 + $0x1e08] sm:$0xff]
    %v1374 = vld [vmem:[#allocation8 + $0x1e10] sm:$0xff]
    %v1375 = vld [vmem:[#allocation8 + $0x1e18] sm:$0xff]
    %v1376 = vld [vmem:[#allocation8 + $0x1e20] sm:$0xff]
    %v1377 = vld [vmem:[#allocation8 + $0x1e28] sm:$0xff]
    %v1378 = vld [vmem:[#allocation8 + $0x1e30] sm:$0xff]
    %v1379 = vld [vmem:[#allocation8 + $0x1e38] sm:$0xff]
    %v1380 = vld [vmem:[#allocation8 + $0x1e40] sm:$0xff]
    %v1381 = vld [vmem:[#allocation8 + $0x1e48] sm:$0xff]
    %v1382 = vld [vmem:[#allocation8 + $0x1e50] sm:$0xff]
    %v1383 = vld [vmem:[#allocation8 + $0x1e58] sm:$0xff]
    %v1384 = vld [vmem:[#allocation8 + $0x1e60] sm:$0xff]
    %v1385 = vld [vmem:[#allocation8 + $0x1e68] sm:$0xff]
    %v1386 = vld [vmem:[#allocation8 + $0x1e70] sm:$0xff]
    %v1387 = vld [vmem:[#allocation8 + $0x1e78] sm:$0xff]
    %v1388 = vld [vmem:[#allocation8 + $0x1e80] sm:$0xff]
    %v1389 = vld [vmem:[#allocation8 + $0x1e88] sm:$0xff]
    %v1390 = vld [vmem:[#allocation8 + $0x1e90] sm:$0xff]
    %v1391 = vld [vmem:[#allocation8 + $0x1e98] sm:$0xff]
    %v1392 = vld [vmem:[#allocation8 + $0x1ea0] sm:$0xff]
    %v1393 = vld [vmem:[#allocation8 + $0x1ea8] sm:$0xff]
    %v1394 = vld [vmem:[#allocation8 + $0x1eb0] sm:$0xff]
    %v1395 = vld [vmem:[#allocation8 + $0x1eb8] sm:$0xff]
    %v1396 = vld [vmem:[#allocation8 + $0x1ec0] sm:$0xff]
    %v1397 = vld [vmem:[#allocation8 + $0x1ec8] sm:$0xff]
    %v1398 = vld [vmem:[#allocation8 + $0x1ed0] sm:$0xff]
    %v1399 = vld [vmem:[#allocation8 + $0x1ed8] sm:$0xff]
    %v1400 = vld [vmem:[#allocation8 + $0x1ee0] sm:$0xff]
    %v1401 = vld [vmem:[#allocation8 + $0x1ee8] sm:$0xff]
    %v1402 = vld [vmem:[#allocation8 + $0x1ef0] sm:$0xff]
    %v1403 = vld [vmem:[#allocation8 + $0x1ef8] sm:$0xff]
    %v1404 = vld [vmem:[#allocation8 + $0x1f00] sm:$0xff]
    %v1405 = vld [vmem:[#allocation8 + $0x1f08] sm:$0xff]
    %v1406 = vld [vmem:[#allocation8 + $0x1f10] sm:$0xff]
    %v1407 = vld [vmem:[#allocation8 + $0x1f18] sm:$0xff]
    %v1408 = vld [vmem:[#allocation8 + $0x1f20] sm:$0xff]
    %v1409 = vld [vmem:[#allocation8 + $0x1f28] sm:$0xff]
    %v1410 = vld [vmem:[#allocation8 + $0x1f30] sm:$0xff]
    %v1411 = vld [vmem:[#allocation8 + $0x1f38] sm:$0xff]
    %v1412 = vld [vmem:[#allocation8 + $0x1f40] sm:$0xff]
    %v1413 = vld [vmem:[#allocation8 + $0x1f48] sm:$0xff]
    %v1414 = vld [vmem:[#allocation8 + $0x1f50] sm:$0xff]
    %v1415 = vld [vmem:[#allocation8 + $0x1f58] sm:$0xff]
    %v1416 = vld [vmem:[#allocation8 + $0x1f60] sm:$0xff]
    %v1417 = vld [vmem:[#allocation8 + $0x1f68] sm:$0xff]
    %v1418 = vld [vmem:[#allocation8 + $0x1f70] sm:$0xff]
    %v1419 = vld [vmem:[#allocation8 + $0x1f78] sm:$0xff]
    %v1420 = vld [vmem:[#allocation8 + $0x1f80] sm:$0xff]
    %v1421 = vld [vmem:[#allocation8 + $0x1f88] sm:$0xff]
    %v1422 = vld [vmem:[#allocation8 + $0x1f90] sm:$0xff]
    %v1423 = vld [vmem:[#allocation8 + $0x1f98] sm:$0xff]
    %v1424 = vld [vmem:[#allocation8 + $0x1fa0] sm:$0xff]
    %v1425 = vld [vmem:[#allocation8 + $0x1fa8] sm:$0xff]
    %v1426 = vld [vmem:[#allocation8 + $0x1fb0] sm:$0xff]
    %v1427 = vld [vmem:[#allocation8 + $0x1fb8] sm:$0xff]
    %v1428 = vld [vmem:[#allocation8 + $0x1fc0] sm:$0xff]
    %v1429 = vld [vmem:[#allocation8 + $0x1fc8] sm:$0xff]
    %v1430 = vld [vmem:[#allocation8 + $0x1fd0] sm:$0xff]
    %v1431 = vld [vmem:[#allocation8 + $0x1fd8] sm:$0xff]
    %v1432 = vld [vmem:[#allocation8 + $0x1fe0] sm:$0xff]
    %v1433 = vld [vmem:[#allocation8 + $0x1fe8] sm:$0xff]
    %v1434 = vld [vmem:[#allocation8 + $0x1ff0] sm:$0xff]
    %v1435 = vld [vmem:[#allocation8 + $0x1ff8] sm:$0xff]
    %v1436 = vld [vmem:[#allocation10] sm:$0xff]
    %v1438 = vperm.slane %v1436, 0
    %v1439 = vperm.slane %v1436, 1
    %v1440 = vperm.slane %v1436, 2
    %v1441 = vperm.slane %v1436, 3
    %v1442 = vperm.slane %v1436, 4
    %v1443 = vperm.slane %v1436, 5
    %v1444 = vperm.slane %v1436, 6
    %v1445 = vperm.slane %v1436, 7
    %v2478 = vunpack.c.l.b16 %v412
    %v2479 = vunpack.c.h.b16 %v412
    %v2480 = vunpack.c.l.b16 %v413
    %v2481 = vunpack.c.h.b16 %v413
    %v2482 = vunpack.c.l.b16 %v414
    %v2483 = vunpack.c.h.b16 %v414
    %v2484 = vunpack.c.l.b16 %v415
    %v2485 = vunpack.c.h.b16 %v415
    %v2486 = vunpack.c.l.b16 %v416
    %v2487 = vunpack.c.h.b16 %v416
    %v2488 = vunpack.c.l.b16 %v417
    %v2489 = vunpack.c.h.b16 %v417
    %v2490 = vunpack.c.l.b16 %v418
    %v2491 = vunpack.c.h.b16 %v418
    %v2492 = vunpack.c.l.b16 %v419
    %v2493 = vunpack.c.h.b16 %v419
    %v2494 = vunpack.c.l.b16 %v420
    %v2495 = vunpack.c.h.b16 %v420
    %v2496 = vunpack.c.l.b16 %v421
    %v2497 = vunpack.c.h.b16 %v421
    %v2498 = vunpack.c.l.b16 %v422
    %v2499 = vunpack.c.h.b16 %v422
    %v2500 = vunpack.c.l.b16 %v423
    %v2501 = vunpack.c.h.b16 %v423
    %v2502 = vunpack.c.l.b16 %v424
    %v2503 = vunpack.c.h.b16 %v424
    %v2504 = vunpack.c.l.b16 %v425
    %v2505 = vunpack.c.h.b16 %v425
    %v2506 = vunpack.c.l.b16 %v426
    %v2507 = vunpack.c.h.b16 %v426
    %v2508 = vunpack.c.l.b16 %v427
    %v2509 = vunpack.c.h.b16 %v427
    %v2510 = vunpack.c.l.b16 %v428
    %v2511 = vunpack.c.h.b16 %v428
    %v2512 = vunpack.c.l.b16 %v429
    %v2513 = vunpack.c.h.b16 %v429
    %v2514 = vunpack.c.l.b16 %v430
    %v2515 = vunpack.c.h.b16 %v430
    %v2516 = vunpack.c.l.b16 %v431
    %v2517 = vunpack.c.h.b16 %v431
    %v2518 = vunpack.c.l.b16 %v432
    %v2519 = vunpack.c.h.b16 %v432
    %v2520 = vunpack.c.l.b16 %v433
    %v2521 = vunpack.c.h.b16 %v433
    %v2522 = vunpack.c.l.b16 %v434
    %v2523 = vunpack.c.h.b16 %v434
    %v2524 = vunpack.c.l.b16 %v435
    %v2525 = vunpack.c.h.b16 %v435
    %v2526 = vunpack.c.l.b16 %v436
    %v2527 = vunpack.c.h.b16 %v436
    %v2528 = vunpack.c.l.b16 %v437
    %v2529 = vunpack.c.h.b16 %v437
    %v2530 = vunpack.c.l.b16 %v438
    %v2531 = vunpack.c.h.b16 %v438
    %v2532 = vunpack.c.l.b16 %v439
    %v2533 = vunpack.c.h.b16 %v439
    %v2534 = vunpack.c.l.b16 %v440
    %v2535 = vunpack.c.h.b16 %v440
    %v2536 = vunpack.c.l.b16 %v441
    %v2537 = vunpack.c.h.b16 %v441
    %v2538 = vunpack.c.l.b16 %v442
    %v2539 = vunpack.c.h.b16 %v442
    %v2540 = vunpack.c.l.b16 %v443
    %v2541 = vunpack.c.h.b16 %v443
    %v2542 = vunpack.c.l.b16 %v444
    %v2543 = vunpack.c.h.b16 %v444
    %v2544 = vunpack.c.l.b16 %v445
    %v2545 = vunpack.c.h.b16 %v445
    %v2546 = vunpack.c.l.b16 %v446
    %v2547 = vunpack.c.h.b16 %v446
    %v2548 = vunpack.c.l.b16 %v447
    %v2549 = vunpack.c.h.b16 %v447
    %v2550 = vunpack.c.l.b16 %v448
    %v2551 = vunpack.c.h.b16 %v448
    %v2552 = vunpack.c.l.b16 %v449
    %v2553 = vunpack.c.h.b16 %v449
    %v2554 = vunpack.c.l.b16 %v450
    %v2555 = vunpack.c.h.b16 %v450
    %v2556 = vunpack.c.l.b16 %v451
    %v2557 = vunpack.c.h.b16 %v451
    %v2558 = vunpack.c.l.b16 %v452
    %v2559 = vunpack.c.h.b16 %v452
    %v2560 = vunpack.c.l.b16 %v453
    %v2561 = vunpack.c.h.b16 %v453
    %v2562 = vunpack.c.l.b16 %v454
    %v2563 = vunpack.c.h.b16 %v454
    %v2564 = vunpack.c.l.b16 %v455
    %v2565 = vunpack.c.h.b16 %v455
    %v2566 = vunpack.c.l.b16 %v456
    %v2567 = vunpack.c.h.b16 %v456
    %v2568 = vunpack.c.l.b16 %v457
    %v2569 = vunpack.c.h.b16 %v457
    %v2570 = vunpack.c.l.b16 %v458
    %v2571 = vunpack.c.h.b16 %v458
    %v2572 = vunpack.c.l.b16 %v459
    %v2573 = vunpack.c.h.b16 %v459
    %v2574 = vunpack.c.l.b16 %v460
    %v2575 = vunpack.c.h.b16 %v460
    %v2576 = vunpack.c.l.b16 %v461
    %v2577 = vunpack.c.h.b16 %v461
    %v2578 = vunpack.c.l.b16 %v462
    %v2579 = vunpack.c.h.b16 %v462
    %v2580 = vunpack.c.l.b16 %v463
    %v2581 = vunpack.c.h.b16 %v463
    %v2582 = vunpack.c.l.b16 %v464
    %v2583 = vunpack.c.h.b16 %v464
    %v2584 = vunpack.c.l.b16 %v465
    %v2585 = vunpack.c.h.b16 %v465
    %v2586 = vunpack.c.l.b16 %v466
    %v2587 = vunpack.c.h.b16 %v466
    %v2588 = vunpack.c.l.b16 %v467
    %v2589 = vunpack.c.h.b16 %v467
    %v2590 = vunpack.c.l.b16 %v468
    %v2591 = vunpack.c.h.b16 %v468
    %v2592 = vunpack.c.l.b16 %v469
    %v2593 = vunpack.c.h.b16 %v469
    %v2594 = vunpack.c.l.b16 %v470
    %v2595 = vunpack.c.h.b16 %v470
    %v2596 = vunpack.c.l.b16 %v471
    %v2597 = vunpack.c.h.b16 %v471
    %v2598 = vunpack.c.l.b16 %v472
    %v2599 = vunpack.c.h.b16 %v472
    %v2600 = vunpack.c.l.b16 %v473
    %v2601 = vunpack.c.h.b16 %v473
    %v2602 = vunpack.c.l.b16 %v474
    %v2603 = vunpack.c.h.b16 %v474
    %v2604 = vunpack.c.l.b16 %v475
    %v2605 = vunpack.c.h.b16 %v475
    %v2606 = vunpack.c.l.b16 %v476
    %v2607 = vunpack.c.h.b16 %v476
    %v2608 = vunpack.c.l.b16 %v477
    %v2609 = vunpack.c.h.b16 %v477
    %v2610 = vunpack.c.l.b16 %v478
    %v2611 = vunpack.c.h.b16 %v478
    %v2612 = vunpack.c.l.b16 %v479
    %v2613 = vunpack.c.h.b16 %v479
    %v2614 = vunpack.c.l.b16 %v480
    %v2615 = vunpack.c.h.b16 %v480
    %v2616 = vunpack.c.l.b16 %v481
    %v2617 = vunpack.c.h.b16 %v481
    %v2618 = vunpack.c.l.b16 %v482
    %v2619 = vunpack.c.h.b16 %v482
    %v2620 = vunpack.c.l.b16 %v483
    %v2621 = vunpack.c.h.b16 %v483
    %v2622 = vunpack.c.l.b16 %v484
    %v2623 = vunpack.c.h.b16 %v484
    %v2624 = vunpack.c.l.b16 %v485
    %v2625 = vunpack.c.h.b16 %v485
    %v2626 = vunpack.c.l.b16 %v486
    %v2627 = vunpack.c.h.b16 %v486
    %v2628 = vunpack.c.l.b16 %v487
    %v2629 = vunpack.c.h.b16 %v487
    %v2630 = vunpack.c.l.b16 %v488
    %v2631 = vunpack.c.h.b16 %v488
    %v2632 = vunpack.c.l.b16 %v489
    %v2633 = vunpack.c.h.b16 %v489
    %v2634 = vunpack.c.l.b16 %v490
    %v2635 = vunpack.c.h.b16 %v490
    %v2636 = vunpack.c.l.b16 %v491
    %v2637 = vunpack.c.h.b16 %v491
    %v2638 = vunpack.c.l.b16 %v492
    %v2639 = vunpack.c.h.b16 %v492
    %v2640 = vunpack.c.l.b16 %v493
    %v2641 = vunpack.c.h.b16 %v493
    %v2642 = vunpack.c.l.b16 %v494
    %v2643 = vunpack.c.h.b16 %v494
    %v2644 = vunpack.c.l.b16 %v495
    %v2645 = vunpack.c.h.b16 %v495
    %v2646 = vunpack.c.l.b16 %v496
    %v2647 = vunpack.c.h.b16 %v496
    %v2648 = vunpack.c.l.b16 %v497
    %v2649 = vunpack.c.h.b16 %v497
    %v2650 = vunpack.c.l.b16 %v498
    %v2651 = vunpack.c.h.b16 %v498
    %v2652 = vunpack.c.l.b16 %v499
    %v2653 = vunpack.c.h.b16 %v499
    %v2654 = vunpack.c.l.b16 %v500
    %v2655 = vunpack.c.h.b16 %v500
    %v2656 = vunpack.c.l.b16 %v501
    %v2657 = vunpack.c.h.b16 %v501
    %v2658 = vunpack.c.l.b16 %v502
    %v2659 = vunpack.c.h.b16 %v502
    %v2660 = vunpack.c.l.b16 %v503
    %v2661 = vunpack.c.h.b16 %v503
    %v2662 = vunpack.c.l.b16 %v504
    %v2663 = vunpack.c.h.b16 %v504
    %v2664 = vunpack.c.l.b16 %v505
    %v2665 = vunpack.c.h.b16 %v505
    %v2666 = vunpack.c.l.b16 %v506
    %v2667 = vunpack.c.h.b16 %v506
    %v2668 = vunpack.c.l.b16 %v507
    %v2669 = vunpack.c.h.b16 %v507
    %v2670 = vunpack.c.l.b16 %v508
    %v2671 = vunpack.c.h.b16 %v508
    %v2672 = vunpack.c.l.b16 %v509
    %v2673 = vunpack.c.h.b16 %v509
    %v2674 = vunpack.c.l.b16 %v510
    %v2675 = vunpack.c.h.b16 %v510
    %v2676 = vunpack.c.l.b16 %v511
    %v2677 = vunpack.c.h.b16 %v511
    %v2678 = vunpack.c.l.b16 %v512
    %v2679 = vunpack.c.h.b16 %v512
    %v2680 = vunpack.c.l.b16 %v513
    %v2681 = vunpack.c.h.b16 %v513
    %v2682 = vunpack.c.l.b16 %v514
    %v2683 = vunpack.c.h.b16 %v514
    %v2684 = vunpack.c.l.b16 %v515
    %v2685 = vunpack.c.h.b16 %v515
    %v2686 = vunpack.c.l.b16 %v516
    %v2687 = vunpack.c.h.b16 %v516
    %v2688 = vunpack.c.l.b16 %v517
    %v2689 = vunpack.c.h.b16 %v517
    %v2690 = vunpack.c.l.b16 %v518
    %v2691 = vunpack.c.h.b16 %v518
    %v2692 = vunpack.c.l.b16 %v519
    %v2693 = vunpack.c.h.b16 %v519
    %v2694 = vunpack.c.l.b16 %v520
    %v2695 = vunpack.c.h.b16 %v520
    %v2696 = vunpack.c.l.b16 %v521
    %v2697 = vunpack.c.h.b16 %v521
    %v2698 = vunpack.c.l.b16 %v522
    %v2699 = vunpack.c.h.b16 %v522
    %v2700 = vunpack.c.l.b16 %v523
    %v2701 = vunpack.c.h.b16 %v523
    %v2702 = vunpack.c.l.b16 %v524
    %v2703 = vunpack.c.h.b16 %v524
    %v2704 = vunpack.c.l.b16 %v525
    %v2705 = vunpack.c.h.b16 %v525
    %v2706 = vunpack.c.l.b16 %v526
    %v2707 = vunpack.c.h.b16 %v526
    %v2708 = vunpack.c.l.b16 %v527
    %v2709 = vunpack.c.h.b16 %v527
    %v2710 = vunpack.c.l.b16 %v528
    %v2711 = vunpack.c.h.b16 %v528
    %v2712 = vunpack.c.l.b16 %v529
    %v2713 = vunpack.c.h.b16 %v529
    %v2714 = vunpack.c.l.b16 %v530
    %v2715 = vunpack.c.h.b16 %v530
    %v2716 = vunpack.c.l.b16 %v531
    %v2717 = vunpack.c.h.b16 %v531
    %v2718 = vunpack.c.l.b16 %v532
    %v2719 = vunpack.c.h.b16 %v532
    %v2720 = vunpack.c.l.b16 %v533
    %v2721 = vunpack.c.h.b16 %v533
    %v2722 = vunpack.c.l.b16 %v534
    %v2723 = vunpack.c.h.b16 %v534
    %v2724 = vunpack.c.l.b16 %v535
    %v2725 = vunpack.c.h.b16 %v535
    %v2726 = vunpack.c.l.b16 %v536
    %v2727 = vunpack.c.h.b16 %v536
    %v2728 = vunpack.c.l.b16 %v537
    %v2729 = vunpack.c.h.b16 %v537
    %v2730 = vunpack.c.l.b16 %v538
    %v2731 = vunpack.c.h.b16 %v538
    %v2732 = vunpack.c.l.b16 %v539
    %v2733 = vunpack.c.h.b16 %v539
    %v2734 = vunpack.c.l.b16 %v540
    %v2735 = vunpack.c.h.b16 %v540
    %v2736 = vunpack.c.l.b16 %v541
    %v2737 = vunpack.c.h.b16 %v541
    %v2738 = vunpack.c.l.b16 %v542
    %v2739 = vunpack.c.h.b16 %v542
    %v2740 = vunpack.c.l.b16 %v543
    %v2741 = vunpack.c.h.b16 %v543
    %v2742 = vunpack.c.l.b16 %v544
    %v2743 = vunpack.c.h.b16 %v544
    %v2744 = vunpack.c.l.b16 %v545
    %v2745 = vunpack.c.h.b16 %v545
    %v2746 = vunpack.c.l.b16 %v546
    %v2747 = vunpack.c.h.b16 %v546
    %v2748 = vunpack.c.l.b16 %v547
    %v2749 = vunpack.c.h.b16 %v547
    %v2750 = vunpack.c.l.b16 %v548
    %v2751 = vunpack.c.h.b16 %v548
    %v2752 = vunpack.c.l.b16 %v549
    %v2753 = vunpack.c.h.b16 %v549
    %v2754 = vunpack.c.l.b16 %v550
    %v2755 = vunpack.c.h.b16 %v550
    %v2756 = vunpack.c.l.b16 %v551
    %v2757 = vunpack.c.h.b16 %v551
    %v2758 = vunpack.c.l.b16 %v552
    %v2759 = vunpack.c.h.b16 %v552
    %v2760 = vunpack.c.l.b16 %v553
    %v2761 = vunpack.c.h.b16 %v553
    %v2762 = vunpack.c.l.b16 %v554
    %v2763 = vunpack.c.h.b16 %v554
    %v2764 = vunpack.c.l.b16 %v555
    %v2765 = vunpack.c.h.b16 %v555
    %v2766 = vunpack.c.l.b16 %v556
    %v2767 = vunpack.c.h.b16 %v556
    %v2768 = vunpack.c.l.b16 %v557
    %v2769 = vunpack.c.h.b16 %v557
    %v2770 = vunpack.c.l.b16 %v558
    %v2771 = vunpack.c.h.b16 %v558
    %v2772 = vunpack.c.l.b16 %v559
    %v2773 = vunpack.c.h.b16 %v559
    %v2774 = vunpack.c.l.b16 %v560
    %v2775 = vunpack.c.h.b16 %v560
    %v2776 = vunpack.c.l.b16 %v561
    %v2777 = vunpack.c.h.b16 %v561
    %v2778 = vunpack.c.l.b16 %v562
    %v2779 = vunpack.c.h.b16 %v562
    %v2780 = vunpack.c.l.b16 %v563
    %v2781 = vunpack.c.h.b16 %v563
    %v2782 = vunpack.c.l.b16 %v564
    %v2783 = vunpack.c.h.b16 %v564
    %v2784 = vunpack.c.l.b16 %v565
    %v2785 = vunpack.c.h.b16 %v565
    %v2786 = vunpack.c.l.b16 %v566
    %v2787 = vunpack.c.h.b16 %v566
    %v2788 = vunpack.c.l.b16 %v567
    %v2789 = vunpack.c.h.b16 %v567
    %v2790 = vunpack.c.l.b16 %v568
    %v2791 = vunpack.c.h.b16 %v568
    %v2792 = vunpack.c.l.b16 %v569
    %v2793 = vunpack.c.h.b16 %v569
    %v2794 = vunpack.c.l.b16 %v570
    %v2795 = vunpack.c.h.b16 %v570
    %v2796 = vunpack.c.l.b16 %v571
    %v2797 = vunpack.c.h.b16 %v571
    %v2798 = vunpack.c.l.b16 %v572
    %v2799 = vunpack.c.h.b16 %v572
    %v2800 = vunpack.c.l.b16 %v573
    %v2801 = vunpack.c.h.b16 %v573
    %v2802 = vunpack.c.l.b16 %v574
    %v2803 = vunpack.c.h.b16 %v574
    %v2804 = vunpack.c.l.b16 %v575
    %v2805 = vunpack.c.h.b16 %v575
    %v2806 = vunpack.c.l.b16 %v576
    %v2807 = vunpack.c.h.b16 %v576
    %v2808 = vunpack.c.l.b16 %v577
    %v2809 = vunpack.c.h.b16 %v577
    %v2810 = vunpack.c.l.b16 %v578
    %v2811 = vunpack.c.h.b16 %v578
    %v2812 = vunpack.c.l.b16 %v579
    %v2813 = vunpack.c.h.b16 %v579
    %v2814 = vunpack.c.l.b16 %v580
    %v2815 = vunpack.c.h.b16 %v580
    %v2816 = vunpack.c.l.b16 %v581
    %v2817 = vunpack.c.h.b16 %v581
    %v2818 = vunpack.c.l.b16 %v582
    %v2819 = vunpack.c.h.b16 %v582
    %v2820 = vunpack.c.l.b16 %v583
    %v2821 = vunpack.c.h.b16 %v583
    %v2822 = vunpack.c.l.b16 %v584
    %v2823 = vunpack.c.h.b16 %v584
    %v2824 = vunpack.c.l.b16 %v585
    %v2825 = vunpack.c.h.b16 %v585
    %v2826 = vunpack.c.l.b16 %v586
    %v2827 = vunpack.c.h.b16 %v586
    %v2828 = vunpack.c.l.b16 %v587
    %v2829 = vunpack.c.h.b16 %v587
    %v2830 = vunpack.c.l.b16 %v588
    %v2831 = vunpack.c.h.b16 %v588
    %v2832 = vunpack.c.l.b16 %v589
    %v2833 = vunpack.c.h.b16 %v589
    %v2834 = vunpack.c.l.b16 %v590
    %v2835 = vunpack.c.h.b16 %v590
    %v2836 = vunpack.c.l.b16 %v591
    %v2837 = vunpack.c.h.b16 %v591
    %v2838 = vunpack.c.l.b16 %v592
    %v2839 = vunpack.c.h.b16 %v592
    %v2840 = vunpack.c.l.b16 %v593
    %v2841 = vunpack.c.h.b16 %v593
    %v2842 = vunpack.c.l.b16 %v594
    %v2843 = vunpack.c.h.b16 %v594
    %v2844 = vunpack.c.l.b16 %v595
    %v2845 = vunpack.c.h.b16 %v595
    %v2846 = vunpack.c.l.b16 %v596
    %v2847 = vunpack.c.h.b16 %v596
    %v2848 = vunpack.c.l.b16 %v597
    %v2849 = vunpack.c.h.b16 %v597
    %v2850 = vunpack.c.l.b16 %v598
    %v2851 = vunpack.c.h.b16 %v598
    %v2852 = vunpack.c.l.b16 %v599
    %v2853 = vunpack.c.h.b16 %v599
    %v2854 = vunpack.c.l.b16 %v600
    %v2855 = vunpack.c.h.b16 %v600
    %v2856 = vunpack.c.l.b16 %v601
    %v2857 = vunpack.c.h.b16 %v601
    %v2858 = vunpack.c.l.b16 %v602
    %v2859 = vunpack.c.h.b16 %v602
    %v2860 = vunpack.c.l.b16 %v603
    %v2861 = vunpack.c.h.b16 %v603
    %v2862 = vunpack.c.l.b16 %v604
    %v2863 = vunpack.c.h.b16 %v604
    %v2864 = vunpack.c.l.b16 %v605
    %v2865 = vunpack.c.h.b16 %v605
    %v2866 = vunpack.c.l.b16 %v606
    %v2867 = vunpack.c.h.b16 %v606
    %v2868 = vunpack.c.l.b16 %v607
    %v2869 = vunpack.c.h.b16 %v607
    %v2870 = vunpack.c.l.b16 %v608
    %v2871 = vunpack.c.h.b16 %v608
    %v2872 = vunpack.c.l.b16 %v609
    %v2873 = vunpack.c.h.b16 %v609
    %v2874 = vunpack.c.l.b16 %v610
    %v2875 = vunpack.c.h.b16 %v610
    %v2876 = vunpack.c.l.b16 %v611
    %v2877 = vunpack.c.h.b16 %v611
    %v2878 = vunpack.c.l.b16 %v612
    %v2879 = vunpack.c.h.b16 %v612
    %v2880 = vunpack.c.l.b16 %v613
    %v2881 = vunpack.c.h.b16 %v613
    %v2882 = vunpack.c.l.b16 %v614
    %v2883 = vunpack.c.h.b16 %v614
    %v2884 = vunpack.c.l.b16 %v615
    %v2885 = vunpack.c.h.b16 %v615
    %v2886 = vunpack.c.l.b16 %v616
    %v2887 = vunpack.c.h.b16 %v616
    %v2888 = vunpack.c.l.b16 %v617
    %v2889 = vunpack.c.h.b16 %v617
    %v2890 = vunpack.c.l.b16 %v618
    %v2891 = vunpack.c.h.b16 %v618
    %v2892 = vunpack.c.l.b16 %v619
    %v2893 = vunpack.c.h.b16 %v619
    %v2894 = vunpack.c.l.b16 %v620
    %v2895 = vunpack.c.h.b16 %v620
    %v2896 = vunpack.c.l.b16 %v621
    %v2897 = vunpack.c.h.b16 %v621
    %v2898 = vunpack.c.l.b16 %v622
    %v2899 = vunpack.c.h.b16 %v622
    %v2900 = vunpack.c.l.b16 %v623
    %v2901 = vunpack.c.h.b16 %v623
    %v2902 = vunpack.c.l.b16 %v624
    %v2903 = vunpack.c.h.b16 %v624
    %v2904 = vunpack.c.l.b16 %v625
    %v2905 = vunpack.c.h.b16 %v625
    %v2906 = vunpack.c.l.b16 %v626
    %v2907 = vunpack.c.h.b16 %v626
    %v2908 = vunpack.c.l.b16 %v627
    %v2909 = vunpack.c.h.b16 %v627
    %v2910 = vunpack.c.l.b16 %v628
    %v2911 = vunpack.c.h.b16 %v628
    %v2912 = vunpack.c.l.b16 %v629
    %v2913 = vunpack.c.h.b16 %v629
    %v2914 = vunpack.c.l.b16 %v630
    %v2915 = vunpack.c.h.b16 %v630
    %v2916 = vunpack.c.l.b16 %v631
    %v2917 = vunpack.c.h.b16 %v631
    %v2918 = vunpack.c.l.b16 %v632
    %v2919 = vunpack.c.h.b16 %v632
    %v2920 = vunpack.c.l.b16 %v633
    %v2921 = vunpack.c.h.b16 %v633
    %v2922 = vunpack.c.l.b16 %v634
    %v2923 = vunpack.c.h.b16 %v634
    %v2924 = vunpack.c.l.b16 %v635
    %v2925 = vunpack.c.h.b16 %v635
    %v2926 = vunpack.c.l.b16 %v636
    %v2927 = vunpack.c.h.b16 %v636
    %v2928 = vunpack.c.l.b16 %v637
    %v2929 = vunpack.c.h.b16 %v637
    %v2930 = vunpack.c.l.b16 %v638
    %v2931 = vunpack.c.h.b16 %v638
    %v2932 = vunpack.c.l.b16 %v639
    %v2933 = vunpack.c.h.b16 %v639
    %v2934 = vunpack.c.l.b16 %v640
    %v2935 = vunpack.c.h.b16 %v640
    %v2936 = vunpack.c.l.b16 %v641
    %v2937 = vunpack.c.h.b16 %v641
    %v2938 = vunpack.c.l.b16 %v642
    %v2939 = vunpack.c.h.b16 %v642
    %v2940 = vunpack.c.l.b16 %v643
    %v2941 = vunpack.c.h.b16 %v643
    %v2942 = vunpack.c.l.b16 %v644
    %v2943 = vunpack.c.h.b16 %v644
    %v2944 = vunpack.c.l.b16 %v645
    %v2945 = vunpack.c.h.b16 %v645
    %v2946 = vunpack.c.l.b16 %v646
    %v2947 = vunpack.c.h.b16 %v646
    %v2948 = vunpack.c.l.b16 %v647
    %v2949 = vunpack.c.h.b16 %v647
    %v2950 = vunpack.c.l.b16 %v648
    %v2951 = vunpack.c.h.b16 %v648
    %v2952 = vunpack.c.l.b16 %v649
    %v2953 = vunpack.c.h.b16 %v649
    %v2954 = vunpack.c.l.b16 %v650
    %v2955 = vunpack.c.h.b16 %v650
    %v2956 = vunpack.c.l.b16 %v651
    %v2957 = vunpack.c.h.b16 %v651
    %v2958 = vunpack.c.l.b16 %v652
    %v2959 = vunpack.c.h.b16 %v652
    %v2960 = vunpack.c.l.b16 %v653
    %v2961 = vunpack.c.h.b16 %v653
    %v2962 = vunpack.c.l.b16 %v654
    %v2963 = vunpack.c.h.b16 %v654
    %v2964 = vunpack.c.l.b16 %v655
    %v2965 = vunpack.c.h.b16 %v655
    %v2966 = vunpack.c.l.b16 %v656
    %v2967 = vunpack.c.h.b16 %v656
    %v2968 = vunpack.c.l.b16 %v657
    %v2969 = vunpack.c.h.b16 %v657
    %v2970 = vunpack.c.l.b16 %v658
    %v2971 = vunpack.c.h.b16 %v658
    %v2972 = vunpack.c.l.b16 %v659
    %v2973 = vunpack.c.h.b16 %v659
    %v2974 = vunpack.c.l.b16 %v660
    %v2975 = vunpack.c.h.b16 %v660
    %v2976 = vunpack.c.l.b16 %v661
    %v2977 = vunpack.c.h.b16 %v661
    %v2978 = vunpack.c.l.b16 %v662
    %v2979 = vunpack.c.h.b16 %v662
    %v2980 = vunpack.c.l.b16 %v663
    %v2981 = vunpack.c.h.b16 %v663
    %v2982 = vunpack.c.l.b16 %v664
    %v2983 = vunpack.c.h.b16 %v664
    %v2984 = vunpack.c.l.b16 %v665
    %v2985 = vunpack.c.h.b16 %v665
    %v2986 = vunpack.c.l.b16 %v666
    %v2987 = vunpack.c.h.b16 %v666
    %v2988 = vunpack.c.l.b16 %v667
    %v2989 = vunpack.c.h.b16 %v667
    %v2990 = vunpack.c.l.b16 %v668
    %v2991 = vunpack.c.h.b16 %v668
    %v2992 = vunpack.c.l.b16 %v669
    %v2993 = vunpack.c.h.b16 %v669
    %v2994 = vunpack.c.l.b16 %v670
    %v2995 = vunpack.c.h.b16 %v670
    %v2996 = vunpack.c.l.b16 %v671
    %v2997 = vunpack.c.h.b16 %v671
    %v2998 = vunpack.c.l.b16 %v672
    %v2999 = vunpack.c.h.b16 %v672
    %v3000 = vunpack.c.l.b16 %v673
    %v3001 = vunpack.c.h.b16 %v673
    %v3002 = vunpack.c.l.b16 %v674
    %v3003 = vunpack.c.h.b16 %v674
    %v3004 = vunpack.c.l.b16 %v675
    %v3005 = vunpack.c.h.b16 %v675
    %v3006 = vunpack.c.l.b16 %v676
    %v3007 = vunpack.c.h.b16 %v676
    %v3008 = vunpack.c.l.b16 %v677
    %v3009 = vunpack.c.h.b16 %v677
    %v3010 = vunpack.c.l.b16 %v678
    %v3011 = vunpack.c.h.b16 %v678
    %v3012 = vunpack.c.l.b16 %v679
    %v3013 = vunpack.c.h.b16 %v679
    %v3014 = vunpack.c.l.b16 %v680
    %v3015 = vunpack.c.h.b16 %v680
    %v3016 = vunpack.c.l.b16 %v681
    %v3017 = vunpack.c.h.b16 %v681
    %v3018 = vunpack.c.l.b16 %v682
    %v3019 = vunpack.c.h.b16 %v682
    %v3020 = vunpack.c.l.b16 %v683
    %v3021 = vunpack.c.h.b16 %v683
    %v3022 = vunpack.c.l.b16 %v684
    %v3023 = vunpack.c.h.b16 %v684
    %v3024 = vunpack.c.l.b16 %v685
    %v3025 = vunpack.c.h.b16 %v685
    %v3026 = vunpack.c.l.b16 %v686
    %v3027 = vunpack.c.h.b16 %v686
    %v3028 = vunpack.c.l.b16 %v687
    %v3029 = vunpack.c.h.b16 %v687
    %v3030 = vunpack.c.l.b16 %v688
    %v3031 = vunpack.c.h.b16 %v688
    %v3032 = vunpack.c.l.b16 %v689
    %v3033 = vunpack.c.h.b16 %v689
    %v3034 = vunpack.c.l.b16 %v690
    %v3035 = vunpack.c.h.b16 %v690
    %v3036 = vunpack.c.l.b16 %v691
    %v3037 = vunpack.c.h.b16 %v691
    %v3038 = vunpack.c.l.b16 %v692
    %v3039 = vunpack.c.h.b16 %v692
    %v3040 = vunpack.c.l.b16 %v693
    %v3041 = vunpack.c.h.b16 %v693
    %v3042 = vunpack.c.l.b16 %v694
    %v3043 = vunpack.c.h.b16 %v694
    %v3044 = vunpack.c.l.b16 %v695
    %v3045 = vunpack.c.h.b16 %v695
    %v3046 = vunpack.c.l.b16 %v696
    %v3047 = vunpack.c.h.b16 %v696
    %v3048 = vunpack.c.l.b16 %v697
    %v3049 = vunpack.c.h.b16 %v697
    %v3050 = vunpack.c.l.b16 %v698
    %v3051 = vunpack.c.h.b16 %v698
    %v3052 = vunpack.c.l.b16 %v699
    %v3053 = vunpack.c.h.b16 %v699
    %v3054 = vunpack.c.l.b16 %v700
    %v3055 = vunpack.c.h.b16 %v700
    %v3056 = vunpack.c.l.b16 %v701
    %v3057 = vunpack.c.h.b16 %v701
    %v3058 = vunpack.c.l.b16 %v702
    %v3059 = vunpack.c.h.b16 %v702
    %v3060 = vunpack.c.l.b16 %v703
    %v3061 = vunpack.c.h.b16 %v703
    %v3062 = vunpack.c.l.b16 %v704
    %v3063 = vunpack.c.h.b16 %v704
    %v3064 = vunpack.c.l.b16 %v705
    %v3065 = vunpack.c.h.b16 %v705
    %v3066 = vunpack.c.l.b16 %v706
    %v3067 = vunpack.c.h.b16 %v706
    %v3068 = vunpack.c.l.b16 %v707
    %v3069 = vunpack.c.h.b16 %v707
    %v3070 = vunpack.c.l.b16 %v708
    %v3071 = vunpack.c.h.b16 %v708
    %v3072 = vunpack.c.l.b16 %v709
    %v3073 = vunpack.c.h.b16 %v709
    %v3074 = vunpack.c.l.b16 %v710
    %v3075 = vunpack.c.h.b16 %v710
    %v3076 = vunpack.c.l.b16 %v711
    %v3077 = vunpack.c.h.b16 %v711
    %v3078 = vunpack.c.l.b16 %v712
    %v3079 = vunpack.c.h.b16 %v712
    %v3080 = vunpack.c.l.b16 %v713
    %v3081 = vunpack.c.h.b16 %v713
    %v3082 = vunpack.c.l.b16 %v714
    %v3083 = vunpack.c.h.b16 %v714
    %v3084 = vunpack.c.l.b16 %v715
    %v3085 = vunpack.c.h.b16 %v715
    %v3086 = vunpack.c.l.b16 %v716
    %v3087 = vunpack.c.h.b16 %v716
    %v3088 = vunpack.c.l.b16 %v717
    %v3089 = vunpack.c.h.b16 %v717
    %v3090 = vunpack.c.l.b16 %v718
    %v3091 = vunpack.c.h.b16 %v718
    %v3092 = vunpack.c.l.b16 %v719
    %v3093 = vunpack.c.h.b16 %v719
    %v3094 = vunpack.c.l.b16 %v720
    %v3095 = vunpack.c.h.b16 %v720
    %v3096 = vunpack.c.l.b16 %v721
    %v3097 = vunpack.c.h.b16 %v721
    %v3098 = vunpack.c.l.b16 %v722
    %v3099 = vunpack.c.h.b16 %v722
    %v3100 = vunpack.c.l.b16 %v723
    %v3101 = vunpack.c.h.b16 %v723
    %v3102 = vunpack.c.l.b16 %v724
    %v3103 = vunpack.c.h.b16 %v724
    %v3104 = vunpack.c.l.b16 %v725
    %v3105 = vunpack.c.h.b16 %v725
    %v3106 = vunpack.c.l.b16 %v726
    %v3107 = vunpack.c.h.b16 %v726
    %v3108 = vunpack.c.l.b16 %v727
    %v3109 = vunpack.c.h.b16 %v727
    %v3110 = vunpack.c.l.b16 %v728
    %v3111 = vunpack.c.h.b16 %v728
    %v3112 = vunpack.c.l.b16 %v729
    %v3113 = vunpack.c.h.b16 %v729
    %v3114 = vunpack.c.l.b16 %v730
    %v3115 = vunpack.c.h.b16 %v730
    %v3116 = vunpack.c.l.b16 %v731
    %v3117 = vunpack.c.h.b16 %v731
    %v3118 = vunpack.c.l.b16 %v732
    %v3119 = vunpack.c.h.b16 %v732
    %v3120 = vunpack.c.l.b16 %v733
    %v3121 = vunpack.c.h.b16 %v733
    %v3122 = vunpack.c.l.b16 %v734
    %v3123 = vunpack.c.h.b16 %v734
    %v3124 = vunpack.c.l.b16 %v735
    %v3125 = vunpack.c.h.b16 %v735
    %v3126 = vunpack.c.l.b16 %v736
    %v3127 = vunpack.c.h.b16 %v736
    %v3128 = vunpack.c.l.b16 %v737
    %v3129 = vunpack.c.h.b16 %v737
    %v3130 = vunpack.c.l.b16 %v738
    %v3131 = vunpack.c.h.b16 %v738
    %v3132 = vunpack.c.l.b16 %v739
    %v3133 = vunpack.c.h.b16 %v739
    %v3134 = vunpack.c.l.b16 %v740
    %v3135 = vunpack.c.h.b16 %v740
    %v3136 = vunpack.c.l.b16 %v741
    %v3137 = vunpack.c.h.b16 %v741
    %v3138 = vunpack.c.l.b16 %v742
    %v3139 = vunpack.c.h.b16 %v742
    %v3140 = vunpack.c.l.b16 %v743
    %v3141 = vunpack.c.h.b16 %v743
    %v3142 = vunpack.c.l.b16 %v744
    %v3143 = vunpack.c.h.b16 %v744
    %v3144 = vunpack.c.l.b16 %v745
    %v3145 = vunpack.c.h.b16 %v745
    %v3146 = vunpack.c.l.b16 %v746
    %v3147 = vunpack.c.h.b16 %v746
    %v3148 = vunpack.c.l.b16 %v747
    %v3149 = vunpack.c.h.b16 %v747
    %v3150 = vunpack.c.l.b16 %v748
    %v3151 = vunpack.c.h.b16 %v748
    %v3152 = vunpack.c.l.b16 %v749
    %v3153 = vunpack.c.h.b16 %v749
    %v3154 = vunpack.c.l.b16 %v750
    %v3155 = vunpack.c.h.b16 %v750
    %v3156 = vunpack.c.l.b16 %v751
    %v3157 = vunpack.c.h.b16 %v751
    %v3158 = vunpack.c.l.b16 %v752
    %v3159 = vunpack.c.h.b16 %v752
    %v3160 = vunpack.c.l.b16 %v753
    %v3161 = vunpack.c.h.b16 %v753
    %v3162 = vunpack.c.l.b16 %v754
    %v3163 = vunpack.c.h.b16 %v754
    %v3164 = vunpack.c.l.b16 %v755
    %v3165 = vunpack.c.h.b16 %v755
    %v3166 = vunpack.c.l.b16 %v756
    %v3167 = vunpack.c.h.b16 %v756
    %v3168 = vunpack.c.l.b16 %v757
    %v3169 = vunpack.c.h.b16 %v757
    %v3170 = vunpack.c.l.b16 %v758
    %v3171 = vunpack.c.h.b16 %v758
    %v3172 = vunpack.c.l.b16 %v759
    %v3173 = vunpack.c.h.b16 %v759
    %v3174 = vunpack.c.l.b16 %v760
    %v3175 = vunpack.c.h.b16 %v760
    %v3176 = vunpack.c.l.b16 %v761
    %v3177 = vunpack.c.h.b16 %v761
    %v3178 = vunpack.c.l.b16 %v762
    %v3179 = vunpack.c.h.b16 %v762
    %v3180 = vunpack.c.l.b16 %v763
    %v3181 = vunpack.c.h.b16 %v763
    %v3182 = vunpack.c.l.b16 %v764
    %v3183 = vunpack.c.h.b16 %v764
    %v3184 = vunpack.c.l.b16 %v765
    %v3185 = vunpack.c.h.b16 %v765
    %v3186 = vunpack.c.l.b16 %v766
    %v3187 = vunpack.c.h.b16 %v766
    %v3188 = vunpack.c.l.b16 %v767
    %v3189 = vunpack.c.h.b16 %v767
    %v3190 = vunpack.c.l.b16 %v768
    %v3191 = vunpack.c.h.b16 %v768
    %v3192 = vunpack.c.l.b16 %v769
    %v3193 = vunpack.c.h.b16 %v769
    %v3194 = vunpack.c.l.b16 %v770
    %v3195 = vunpack.c.h.b16 %v770
    %v3196 = vunpack.c.l.b16 %v771
    %v3197 = vunpack.c.h.b16 %v771
    %v3198 = vunpack.c.l.b16 %v772
    %v3199 = vunpack.c.h.b16 %v772
    %v3200 = vunpack.c.l.b16 %v773
    %v3201 = vunpack.c.h.b16 %v773
    %v3202 = vunpack.c.l.b16 %v774
    %v3203 = vunpack.c.h.b16 %v774
    %v3204 = vunpack.c.l.b16 %v775
    %v3205 = vunpack.c.h.b16 %v775
    %v3206 = vunpack.c.l.b16 %v776
    %v3207 = vunpack.c.h.b16 %v776
    %v3208 = vunpack.c.l.b16 %v777
    %v3209 = vunpack.c.h.b16 %v777
    %v3210 = vunpack.c.l.b16 %v778
    %v3211 = vunpack.c.h.b16 %v778
    %v3212 = vunpack.c.l.b16 %v779
    %v3213 = vunpack.c.h.b16 %v779
    %v3214 = vunpack.c.l.b16 %v780
    %v3215 = vunpack.c.h.b16 %v780
    %v3216 = vunpack.c.l.b16 %v781
    %v3217 = vunpack.c.h.b16 %v781
    %v3218 = vunpack.c.l.b16 %v782
    %v3219 = vunpack.c.h.b16 %v782
    %v3220 = vunpack.c.l.b16 %v783
    %v3221 = vunpack.c.h.b16 %v783
    %v3222 = vunpack.c.l.b16 %v784
    %v3223 = vunpack.c.h.b16 %v784
    %v3224 = vunpack.c.l.b16 %v785
    %v3225 = vunpack.c.h.b16 %v785
    %v3226 = vunpack.c.l.b16 %v786
    %v3227 = vunpack.c.h.b16 %v786
    %v3228 = vunpack.c.l.b16 %v787
    %v3229 = vunpack.c.h.b16 %v787
    %v3230 = vunpack.c.l.b16 %v788
    %v3231 = vunpack.c.h.b16 %v788
    %v3232 = vunpack.c.l.b16 %v789
    %v3233 = vunpack.c.h.b16 %v789
    %v3234 = vunpack.c.l.b16 %v790
    %v3235 = vunpack.c.h.b16 %v790
    %v3236 = vunpack.c.l.b16 %v791
    %v3237 = vunpack.c.h.b16 %v791
    %v3238 = vunpack.c.l.b16 %v792
    %v3239 = vunpack.c.h.b16 %v792
    %v3240 = vunpack.c.l.b16 %v793
    %v3241 = vunpack.c.h.b16 %v793
    %v3242 = vunpack.c.l.b16 %v794
    %v3243 = vunpack.c.h.b16 %v794
    %v3244 = vunpack.c.l.b16 %v795
    %v3245 = vunpack.c.h.b16 %v795
    %v3246 = vunpack.c.l.b16 %v796
    %v3247 = vunpack.c.h.b16 %v796
    %v3248 = vunpack.c.l.b16 %v797
    %v3249 = vunpack.c.h.b16 %v797
    %v3250 = vunpack.c.l.b16 %v798
    %v3251 = vunpack.c.h.b16 %v798
    %v3252 = vunpack.c.l.b16 %v799
    %v3253 = vunpack.c.h.b16 %v799
    %v3254 = vunpack.c.l.b16 %v800
    %v3255 = vunpack.c.h.b16 %v800
    %v3256 = vunpack.c.l.b16 %v801
    %v3257 = vunpack.c.h.b16 %v801
    %v3258 = vunpack.c.l.b16 %v802
    %v3259 = vunpack.c.h.b16 %v802
    %v3260 = vunpack.c.l.b16 %v803
    %v3261 = vunpack.c.h.b16 %v803
    %v3262 = vunpack.c.l.b16 %v804
    %v3263 = vunpack.c.h.b16 %v804
    %v3264 = vunpack.c.l.b16 %v805
    %v3265 = vunpack.c.h.b16 %v805
    %v3266 = vunpack.c.l.b16 %v806
    %v3267 = vunpack.c.h.b16 %v806
    %v3268 = vunpack.c.l.b16 %v807
    %v3269 = vunpack.c.h.b16 %v807
    %v3270 = vunpack.c.l.b16 %v808
    %v3271 = vunpack.c.h.b16 %v808
    %v3272 = vunpack.c.l.b16 %v809
    %v3273 = vunpack.c.h.b16 %v809
    %v3274 = vunpack.c.l.b16 %v810
    %v3275 = vunpack.c.h.b16 %v810
    %v3276 = vunpack.c.l.b16 %v811
    %v3277 = vunpack.c.h.b16 %v811
    %v3278 = vunpack.c.l.b16 %v812
    %v3279 = vunpack.c.h.b16 %v812
    %v3280 = vunpack.c.l.b16 %v813
    %v3281 = vunpack.c.h.b16 %v813
    %v3282 = vunpack.c.l.b16 %v814
    %v3283 = vunpack.c.h.b16 %v814
    %v3284 = vunpack.c.l.b16 %v815
    %v3285 = vunpack.c.h.b16 %v815
    %v3286 = vunpack.c.l.b16 %v816
    %v3287 = vunpack.c.h.b16 %v816
    %v3288 = vunpack.c.l.b16 %v817
    %v3289 = vunpack.c.h.b16 %v817
    %v3290 = vunpack.c.l.b16 %v818
    %v3291 = vunpack.c.h.b16 %v818
    %v3292 = vunpack.c.l.b16 %v819
    %v3293 = vunpack.c.h.b16 %v819
    %v3294 = vunpack.c.l.b16 %v820
    %v3295 = vunpack.c.h.b16 %v820
    %v3296 = vunpack.c.l.b16 %v821
    %v3297 = vunpack.c.h.b16 %v821
    %v3298 = vunpack.c.l.b16 %v822
    %v3299 = vunpack.c.h.b16 %v822
    %v3300 = vunpack.c.l.b16 %v823
    %v3301 = vunpack.c.h.b16 %v823
    %v3302 = vunpack.c.l.b16 %v824
    %v3303 = vunpack.c.h.b16 %v824
    %v3304 = vunpack.c.l.b16 %v825
    %v3305 = vunpack.c.h.b16 %v825
    %v3306 = vunpack.c.l.b16 %v826
    %v3307 = vunpack.c.h.b16 %v826
    %v3308 = vunpack.c.l.b16 %v827
    %v3309 = vunpack.c.h.b16 %v827
    %v3310 = vunpack.c.l.b16 %v828
    %v3311 = vunpack.c.h.b16 %v828
    %v3312 = vunpack.c.l.b16 %v829
    %v3313 = vunpack.c.h.b16 %v829
    %v3314 = vunpack.c.l.b16 %v830
    %v3315 = vunpack.c.h.b16 %v830
    %v3316 = vunpack.c.l.b16 %v831
    %v3317 = vunpack.c.h.b16 %v831
    %v3318 = vunpack.c.l.b16 %v832
    %v3319 = vunpack.c.h.b16 %v832
    %v3320 = vunpack.c.l.b16 %v833
    %v3321 = vunpack.c.h.b16 %v833
    %v3322 = vunpack.c.l.b16 %v834
    %v3323 = vunpack.c.h.b16 %v834
    %v3324 = vunpack.c.l.b16 %v835
    %v3325 = vunpack.c.h.b16 %v835
    %v3326 = vunpack.c.l.b16 %v836
    %v3327 = vunpack.c.h.b16 %v836
    %v3328 = vunpack.c.l.b16 %v837
    %v3329 = vunpack.c.h.b16 %v837
    %v3330 = vunpack.c.l.b16 %v838
    %v3331 = vunpack.c.h.b16 %v838
    %v3332 = vunpack.c.l.b16 %v839
    %v3333 = vunpack.c.h.b16 %v839
    %v3334 = vunpack.c.l.b16 %v840
    %v3335 = vunpack.c.h.b16 %v840
    %v3336 = vunpack.c.l.b16 %v841
    %v3337 = vunpack.c.h.b16 %v841
    %v3338 = vunpack.c.l.b16 %v842
    %v3339 = vunpack.c.h.b16 %v842
    %v3340 = vunpack.c.l.b16 %v843
    %v3341 = vunpack.c.h.b16 %v843
    %v3342 = vunpack.c.l.b16 %v844
    %v3343 = vunpack.c.h.b16 %v844
    %v3344 = vunpack.c.l.b16 %v845
    %v3345 = vunpack.c.h.b16 %v845
    %v3346 = vunpack.c.l.b16 %v846
    %v3347 = vunpack.c.h.b16 %v846
    %v3348 = vunpack.c.l.b16 %v847
    %v3349 = vunpack.c.h.b16 %v847
    %v3350 = vunpack.c.l.b16 %v848
    %v3351 = vunpack.c.h.b16 %v848
    %v3352 = vunpack.c.l.b16 %v849
    %v3353 = vunpack.c.h.b16 %v849
    %v3354 = vunpack.c.l.b16 %v850
    %v3355 = vunpack.c.h.b16 %v850
    %v3356 = vunpack.c.l.b16 %v851
    %v3357 = vunpack.c.h.b16 %v851
    %v3358 = vunpack.c.l.b16 %v852
    %v3359 = vunpack.c.h.b16 %v852
    %v3360 = vunpack.c.l.b16 %v853
    %v3361 = vunpack.c.h.b16 %v853
    %v3362 = vunpack.c.l.b16 %v854
    %v3363 = vunpack.c.h.b16 %v854
    %v3364 = vunpack.c.l.b16 %v855
    %v3365 = vunpack.c.h.b16 %v855
    %v3366 = vunpack.c.l.b16 %v856
    %v3367 = vunpack.c.h.b16 %v856
    %v3368 = vunpack.c.l.b16 %v857
    %v3369 = vunpack.c.h.b16 %v857
    %v3370 = vunpack.c.l.b16 %v858
    %v3371 = vunpack.c.h.b16 %v858
    %v3372 = vunpack.c.l.b16 %v859
    %v3373 = vunpack.c.h.b16 %v859
    %v3374 = vunpack.c.l.b16 %v860
    %v3375 = vunpack.c.h.b16 %v860
    %v3376 = vunpack.c.l.b16 %v861
    %v3377 = vunpack.c.h.b16 %v861
    %v3378 = vunpack.c.l.b16 %v862
    %v3379 = vunpack.c.h.b16 %v862
    %v3380 = vunpack.c.l.b16 %v863
    %v3381 = vunpack.c.h.b16 %v863
    %v3382 = vunpack.c.l.b16 %v864
    %v3383 = vunpack.c.h.b16 %v864
    %v3384 = vunpack.c.l.b16 %v865
    %v3385 = vunpack.c.h.b16 %v865
    %v3386 = vunpack.c.l.b16 %v866
    %v3387 = vunpack.c.h.b16 %v866
    %v3388 = vunpack.c.l.b16 %v867
    %v3389 = vunpack.c.h.b16 %v867
    %v3390 = vunpack.c.l.b16 %v868
    %v3391 = vunpack.c.h.b16 %v868
    %v3392 = vunpack.c.l.b16 %v869
    %v3393 = vunpack.c.h.b16 %v869
    %v3394 = vunpack.c.l.b16 %v870
    %v3395 = vunpack.c.h.b16 %v870
    %v3396 = vunpack.c.l.b16 %v871
    %v3397 = vunpack.c.h.b16 %v871
    %v3398 = vunpack.c.l.b16 %v872
    %v3399 = vunpack.c.h.b16 %v872
    %v3400 = vunpack.c.l.b16 %v873
    %v3401 = vunpack.c.h.b16 %v873
    %v3402 = vunpack.c.l.b16 %v874
    %v3403 = vunpack.c.h.b16 %v874
    %v3404 = vunpack.c.l.b16 %v875
    %v3405 = vunpack.c.h.b16 %v875
    %v3406 = vunpack.c.l.b16 %v876
    %v3407 = vunpack.c.h.b16 %v876
    %v3408 = vunpack.c.l.b16 %v877
    %v3409 = vunpack.c.h.b16 %v877
    %v3410 = vunpack.c.l.b16 %v878
    %v3411 = vunpack.c.h.b16 %v878
    %v3412 = vunpack.c.l.b16 %v879
    %v3413 = vunpack.c.h.b16 %v879
    %v3414 = vunpack.c.l.b16 %v880
    %v3415 = vunpack.c.h.b16 %v880
    %v3416 = vunpack.c.l.b16 %v881
    %v3417 = vunpack.c.h.b16 %v881
    %v3418 = vunpack.c.l.b16 %v882
    %v3419 = vunpack.c.h.b16 %v882
    %v3420 = vunpack.c.l.b16 %v883
    %v3421 = vunpack.c.h.b16 %v883
    %v3422 = vunpack.c.l.b16 %v884
    %v3423 = vunpack.c.h.b16 %v884
    %v3424 = vunpack.c.l.b16 %v885
    %v3425 = vunpack.c.h.b16 %v885
    %v3426 = vunpack.c.l.b16 %v886
    %v3427 = vunpack.c.h.b16 %v886
    %v3428 = vunpack.c.l.b16 %v887
    %v3429 = vunpack.c.h.b16 %v887
    %v3430 = vunpack.c.l.b16 %v888
    %v3431 = vunpack.c.h.b16 %v888
    %v3432 = vunpack.c.l.b16 %v889
    %v3433 = vunpack.c.h.b16 %v889
    %v3434 = vunpack.c.l.b16 %v890
    %v3435 = vunpack.c.h.b16 %v890
    %v3436 = vunpack.c.l.b16 %v891
    %v3437 = vunpack.c.h.b16 %v891
    %v3438 = vunpack.c.l.b16 %v892
    %v3439 = vunpack.c.h.b16 %v892
    %v3440 = vunpack.c.l.b16 %v893
    %v3441 = vunpack.c.h.b16 %v893
    %v3442 = vunpack.c.l.b16 %v894
    %v3443 = vunpack.c.h.b16 %v894
    %v3444 = vunpack.c.l.b16 %v895
    %v3445 = vunpack.c.h.b16 %v895
    %v3446 = vunpack.c.l.b16 %v896
    %v3447 = vunpack.c.h.b16 %v896
    %v3448 = vunpack.c.l.b16 %v897
    %v3449 = vunpack.c.h.b16 %v897
    %v3450 = vunpack.c.l.b16 %v898
    %v3451 = vunpack.c.h.b16 %v898
    %v3452 = vunpack.c.l.b16 %v899
    %v3453 = vunpack.c.h.b16 %v899
    %v3454 = vunpack.c.l.b16 %v900
    %v3455 = vunpack.c.h.b16 %v900
    %v3456 = vunpack.c.l.b16 %v901
    %v3457 = vunpack.c.h.b16 %v901
    %v3458 = vunpack.c.l.b16 %v902
    %v3459 = vunpack.c.h.b16 %v902
    %v3460 = vunpack.c.l.b16 %v903
    %v3461 = vunpack.c.h.b16 %v903
    %v3462 = vunpack.c.l.b16 %v904
    %v3463 = vunpack.c.h.b16 %v904
    %v3464 = vunpack.c.l.b16 %v905
    %v3465 = vunpack.c.h.b16 %v905
    %v3466 = vunpack.c.l.b16 %v906
    %v3467 = vunpack.c.h.b16 %v906
    %v3468 = vunpack.c.l.b16 %v907
    %v3469 = vunpack.c.h.b16 %v907
    %v3470 = vunpack.c.l.b16 %v908
    %v3471 = vunpack.c.h.b16 %v908
    %v3472 = vunpack.c.l.b16 %v909
    %v3473 = vunpack.c.h.b16 %v909
    %v3474 = vunpack.c.l.b16 %v910
    %v3475 = vunpack.c.h.b16 %v910
    %v3476 = vunpack.c.l.b16 %v911
    %v3477 = vunpack.c.h.b16 %v911
    %v3478 = vunpack.c.l.b16 %v912
    %v3479 = vunpack.c.h.b16 %v912
    %v3480 = vunpack.c.l.b16 %v913
    %v3481 = vunpack.c.h.b16 %v913
    %v3482 = vunpack.c.l.b16 %v914
    %v3483 = vunpack.c.h.b16 %v914
    %v3484 = vunpack.c.l.b16 %v915
    %v3485 = vunpack.c.h.b16 %v915
    %v3486 = vunpack.c.l.b16 %v916
    %v3487 = vunpack.c.h.b16 %v916
    %v3488 = vunpack.c.l.b16 %v917
    %v3489 = vunpack.c.h.b16 %v917
    %v3490 = vunpack.c.l.b16 %v918
    %v3491 = vunpack.c.h.b16 %v918
    %v3492 = vunpack.c.l.b16 %v919
    %v3493 = vunpack.c.h.b16 %v919
    %v3494 = vunpack.c.l.b16 %v920
    %v3495 = vunpack.c.h.b16 %v920
    %v3496 = vunpack.c.l.b16 %v921
    %v3497 = vunpack.c.h.b16 %v921
    %v3498 = vunpack.c.l.b16 %v922
    %v3499 = vunpack.c.h.b16 %v922
    %v3500 = vunpack.c.l.b16 %v923
    %v3501 = vunpack.c.h.b16 %v923
    %v3502 = vunpack.c.l.b16 %v924
    %v3503 = vunpack.c.h.b16 %v924
    %v3504 = vunpack.c.l.b16 %v925
    %v3505 = vunpack.c.h.b16 %v925
    %v3506 = vunpack.c.l.b16 %v926
    %v3507 = vunpack.c.h.b16 %v926
    %v3508 = vunpack.c.l.b16 %v927
    %v3509 = vunpack.c.h.b16 %v927
    %v3510 = vunpack.c.l.b16 %v928
    %v3511 = vunpack.c.h.b16 %v928
    %v3512 = vunpack.c.l.b16 %v929
    %v3513 = vunpack.c.h.b16 %v929
    %v3514 = vunpack.c.l.b16 %v930
    %v3515 = vunpack.c.h.b16 %v930
    %v3516 = vunpack.c.l.b16 %v931
    %v3517 = vunpack.c.h.b16 %v931
    %v3518 = vunpack.c.l.b16 %v932
    %v3519 = vunpack.c.h.b16 %v932
    %v3520 = vunpack.c.l.b16 %v933
    %v3521 = vunpack.c.h.b16 %v933
    %v3522 = vunpack.c.l.b16 %v934
    %v3523 = vunpack.c.h.b16 %v934
    %v3524 = vunpack.c.l.b16 %v935
    %v3525 = vunpack.c.h.b16 %v935
    %v3526 = vunpack.c.l.b16 %v936
    %v3527 = vunpack.c.h.b16 %v936
    %v3528 = vunpack.c.l.b16 %v937
    %v3529 = vunpack.c.h.b16 %v937
    %v3530 = vunpack.c.l.b16 %v938
    %v3531 = vunpack.c.h.b16 %v938
    %v3532 = vunpack.c.l.b16 %v939
    %v3533 = vunpack.c.h.b16 %v939
    %v3534 = vunpack.c.l.b16 %v940
    %v3535 = vunpack.c.h.b16 %v940
    %v3536 = vunpack.c.l.b16 %v941
    %v3537 = vunpack.c.h.b16 %v941
    %v3538 = vunpack.c.l.b16 %v942
    %v3539 = vunpack.c.h.b16 %v942
    %v3540 = vunpack.c.l.b16 %v943
    %v3541 = vunpack.c.h.b16 %v943
    %v3542 = vunpack.c.l.b16 %v944
    %v3543 = vunpack.c.h.b16 %v944
    %v3544 = vunpack.c.l.b16 %v945
    %v3545 = vunpack.c.h.b16 %v945
    %v3546 = vunpack.c.l.b16 %v946
    %v3547 = vunpack.c.h.b16 %v946
    %v3548 = vunpack.c.l.b16 %v947
    %v3549 = vunpack.c.h.b16 %v947
    %v3550 = vunpack.c.l.b16 %v948
    %v3551 = vunpack.c.h.b16 %v948
    %v3552 = vunpack.c.l.b16 %v949
    %v3553 = vunpack.c.h.b16 %v949
    %v3554 = vunpack.c.l.b16 %v950
    %v3555 = vunpack.c.h.b16 %v950
    %v3556 = vunpack.c.l.b16 %v951
    %v3557 = vunpack.c.h.b16 %v951
    %v3558 = vunpack.c.l.b16 %v952
    %v3559 = vunpack.c.h.b16 %v952
    %v3560 = vunpack.c.l.b16 %v953
    %v3561 = vunpack.c.h.b16 %v953
    %v3562 = vunpack.c.l.b16 %v954
    %v3563 = vunpack.c.h.b16 %v954
    %v3564 = vunpack.c.l.b16 %v955
    %v3565 = vunpack.c.h.b16 %v955
    %v3566 = vunpack.c.l.b16 %v956
    %v3567 = vunpack.c.h.b16 %v956
    %v3568 = vunpack.c.l.b16 %v957
    %v3569 = vunpack.c.h.b16 %v957
    %v3570 = vunpack.c.l.b16 %v958
    %v3571 = vunpack.c.h.b16 %v958
    %v3572 = vunpack.c.l.b16 %v959
    %v3573 = vunpack.c.h.b16 %v959
    %v3574 = vunpack.c.l.b16 %v960
    %v3575 = vunpack.c.h.b16 %v960
    %v3576 = vunpack.c.l.b16 %v961
    %v3577 = vunpack.c.h.b16 %v961
    %v3578 = vunpack.c.l.b16 %v962
    %v3579 = vunpack.c.h.b16 %v962
    %v3580 = vunpack.c.l.b16 %v963
    %v3581 = vunpack.c.h.b16 %v963
    %v3582 = vunpack.c.l.b16 %v964
    %v3583 = vunpack.c.h.b16 %v964
    %v3584 = vunpack.c.l.b16 %v965
    %v3585 = vunpack.c.h.b16 %v965
    %v3586 = vunpack.c.l.b16 %v966
    %v3587 = vunpack.c.h.b16 %v966
    %v3588 = vunpack.c.l.b16 %v967
    %v3589 = vunpack.c.h.b16 %v967
    %v3590 = vunpack.c.l.b16 %v968
    %v3591 = vunpack.c.h.b16 %v968
    %v3592 = vunpack.c.l.b16 %v969
    %v3593 = vunpack.c.h.b16 %v969
    %v3594 = vunpack.c.l.b16 %v970
    %v3595 = vunpack.c.h.b16 %v970
    %v3596 = vunpack.c.l.b16 %v971
    %v3597 = vunpack.c.h.b16 %v971
    %v3598 = vunpack.c.l.b16 %v972
    %v3599 = vunpack.c.h.b16 %v972
    %v3600 = vunpack.c.l.b16 %v973
    %v3601 = vunpack.c.h.b16 %v973
    %v3602 = vunpack.c.l.b16 %v974
    %v3603 = vunpack.c.h.b16 %v974
    %v3604 = vunpack.c.l.b16 %v975
    %v3605 = vunpack.c.h.b16 %v975
    %v3606 = vunpack.c.l.b16 %v976
    %v3607 = vunpack.c.h.b16 %v976
    %v3608 = vunpack.c.l.b16 %v977
    %v3609 = vunpack.c.h.b16 %v977
    %v3610 = vunpack.c.l.b16 %v978
    %v3611 = vunpack.c.h.b16 %v978
    %v3612 = vunpack.c.l.b16 %v979
    %v3613 = vunpack.c.h.b16 %v979
    %v3614 = vunpack.c.l.b16 %v980
    %v3615 = vunpack.c.h.b16 %v980
    %v3616 = vunpack.c.l.b16 %v981
    %v3617 = vunpack.c.h.b16 %v981
    %v3618 = vunpack.c.l.b16 %v982
    %v3619 = vunpack.c.h.b16 %v982
    %v3620 = vunpack.c.l.b16 %v983
    %v3621 = vunpack.c.h.b16 %v983
    %v3622 = vunpack.c.l.b16 %v984
    %v3623 = vunpack.c.h.b16 %v984
    %v3624 = vunpack.c.l.b16 %v985
    %v3625 = vunpack.c.h.b16 %v985
    %v3626 = vunpack.c.l.b16 %v986
    %v3627 = vunpack.c.h.b16 %v986
    %v3628 = vunpack.c.l.b16 %v987
    %v3629 = vunpack.c.h.b16 %v987
    %v3630 = vunpack.c.l.b16 %v988
    %v3631 = vunpack.c.h.b16 %v988
    %v3632 = vunpack.c.l.b16 %v989
    %v3633 = vunpack.c.h.b16 %v989
    %v3634 = vunpack.c.l.b16 %v990
    %v3635 = vunpack.c.h.b16 %v990
    %v3636 = vunpack.c.l.b16 %v991
    %v3637 = vunpack.c.h.b16 %v991
    %v3638 = vunpack.c.l.b16 %v992
    %v3639 = vunpack.c.h.b16 %v992
    %v3640 = vunpack.c.l.b16 %v993
    %v3641 = vunpack.c.h.b16 %v993
    %v3642 = vunpack.c.l.b16 %v994
    %v3643 = vunpack.c.h.b16 %v994
    %v3644 = vunpack.c.l.b16 %v995
    %v3645 = vunpack.c.h.b16 %v995
    %v3646 = vunpack.c.l.b16 %v996
    %v3647 = vunpack.c.h.b16 %v996
    %v3648 = vunpack.c.l.b16 %v997
    %v3649 = vunpack.c.h.b16 %v997
    %v3650 = vunpack.c.l.b16 %v998
    %v3651 = vunpack.c.h.b16 %v998
    %v3652 = vunpack.c.l.b16 %v999
    %v3653 = vunpack.c.h.b16 %v999
    %v3654 = vunpack.c.l.b16 %v1000
    %v3655 = vunpack.c.h.b16 %v1000
    %v3656 = vunpack.c.l.b16 %v1001
    %v3657 = vunpack.c.h.b16 %v1001
    %v3658 = vunpack.c.l.b16 %v1002
    %v3659 = vunpack.c.h.b16 %v1002
    %v3660 = vunpack.c.l.b16 %v1003
    %v3661 = vunpack.c.h.b16 %v1003
    %v3662 = vunpack.c.l.b16 %v1004
    %v3663 = vunpack.c.h.b16 %v1004
    %v3664 = vunpack.c.l.b16 %v1005
    %v3665 = vunpack.c.h.b16 %v1005
    %v3666 = vunpack.c.l.b16 %v1006
    %v3667 = vunpack.c.h.b16 %v1006
    %v3668 = vunpack.c.l.b16 %v1007
    %v3669 = vunpack.c.h.b16 %v1007
    %v3670 = vunpack.c.l.b16 %v1008
    %v3671 = vunpack.c.h.b16 %v1008
    %v3672 = vunpack.c.l.b16 %v1009
    %v3673 = vunpack.c.h.b16 %v1009
    %v3674 = vunpack.c.l.b16 %v1010
    %v3675 = vunpack.c.h.b16 %v1010
    %v3676 = vunpack.c.l.b16 %v1011
    %v3677 = vunpack.c.h.b16 %v1011
    %v3678 = vunpack.c.l.b16 %v1012
    %v3679 = vunpack.c.h.b16 %v1012
    %v3680 = vunpack.c.l.b16 %v1013
    %v3681 = vunpack.c.h.b16 %v1013
    %v3682 = vunpack.c.l.b16 %v1014
    %v3683 = vunpack.c.h.b16 %v1014
    %v3684 = vunpack.c.l.b16 %v1015
    %v3685 = vunpack.c.h.b16 %v1015
    %v3686 = vunpack.c.l.b16 %v1016
    %v3687 = vunpack.c.h.b16 %v1016
    %v3688 = vunpack.c.l.b16 %v1017
    %v3689 = vunpack.c.h.b16 %v1017
    %v3690 = vunpack.c.l.b16 %v1018
    %v3691 = vunpack.c.h.b16 %v1018
    %v3692 = vunpack.c.l.b16 %v1019
    %v3693 = vunpack.c.h.b16 %v1019
    %v3694 = vunpack.c.l.b16 %v1020
    %v3695 = vunpack.c.h.b16 %v1020
    %v3696 = vunpack.c.l.b16 %v1021
    %v3697 = vunpack.c.h.b16 %v1021
    %v3698 = vunpack.c.l.b16 %v1022
    %v3699 = vunpack.c.h.b16 %v1022
    %v3700 = vunpack.c.l.b16 %v1023
    %v3701 = vunpack.c.h.b16 %v1023
    %v3702 = vunpack.c.l.b16 %v1024
    %v3703 = vunpack.c.h.b16 %v1024
    %v3704 = vunpack.c.l.b16 %v1025
    %v3705 = vunpack.c.h.b16 %v1025
    %v3706 = vunpack.c.l.b16 %v1026
    %v3707 = vunpack.c.h.b16 %v1026
    %v3708 = vunpack.c.l.b16 %v1027
    %v3709 = vunpack.c.h.b16 %v1027
    %v3710 = vunpack.c.l.b16 %v1028
    %v3711 = vunpack.c.h.b16 %v1028
    %v3712 = vunpack.c.l.b16 %v1029
    %v3713 = vunpack.c.h.b16 %v1029
    %v3714 = vunpack.c.l.b16 %v1030
    %v3715 = vunpack.c.h.b16 %v1030
    %v3716 = vunpack.c.l.b16 %v1031
    %v3717 = vunpack.c.h.b16 %v1031
    %v3718 = vunpack.c.l.b16 %v1032
    %v3719 = vunpack.c.h.b16 %v1032
    %v3720 = vunpack.c.l.b16 %v1033
    %v3721 = vunpack.c.h.b16 %v1033
    %v3722 = vunpack.c.l.b16 %v1034
    %v3723 = vunpack.c.h.b16 %v1034
    %v3724 = vunpack.c.l.b16 %v1035
    %v3725 = vunpack.c.h.b16 %v1035
    %v3726 = vunpack.c.l.b16 %v1036
    %v3727 = vunpack.c.h.b16 %v1036
    %v3728 = vunpack.c.l.b16 %v1037
    %v3729 = vunpack.c.h.b16 %v1037
    %v3730 = vunpack.c.l.b16 %v1038
    %v3731 = vunpack.c.h.b16 %v1038
    %v3732 = vunpack.c.l.b16 %v1039
    %v3733 = vunpack.c.h.b16 %v1039
    %v3734 = vunpack.c.l.b16 %v1040
    %v3735 = vunpack.c.h.b16 %v1040
    %v3736 = vunpack.c.l.b16 %v1041
    %v3737 = vunpack.c.h.b16 %v1041
    %v3738 = vunpack.c.l.b16 %v1042
    %v3739 = vunpack.c.h.b16 %v1042
    %v3740 = vunpack.c.l.b16 %v1043
    %v3741 = vunpack.c.h.b16 %v1043
    %v3742 = vunpack.c.l.b16 %v1044
    %v3743 = vunpack.c.h.b16 %v1044
    %v3744 = vunpack.c.l.b16 %v1045
    %v3745 = vunpack.c.h.b16 %v1045
    %v3746 = vunpack.c.l.b16 %v1046
    %v3747 = vunpack.c.h.b16 %v1046
    %v3748 = vunpack.c.l.b16 %v1047
    %v3749 = vunpack.c.h.b16 %v1047
    %v3750 = vunpack.c.l.b16 %v1048
    %v3751 = vunpack.c.h.b16 %v1048
    %v3752 = vunpack.c.l.b16 %v1049
    %v3753 = vunpack.c.h.b16 %v1049
    %v3754 = vunpack.c.l.b16 %v1050
    %v3755 = vunpack.c.h.b16 %v1050
    %v3756 = vunpack.c.l.b16 %v1051
    %v3757 = vunpack.c.h.b16 %v1051
    %v3758 = vunpack.c.l.b16 %v1052
    %v3759 = vunpack.c.h.b16 %v1052
    %v3760 = vunpack.c.l.b16 %v1053
    %v3761 = vunpack.c.h.b16 %v1053
    %v3762 = vunpack.c.l.b16 %v1054
    %v3763 = vunpack.c.h.b16 %v1054
    %v3764 = vunpack.c.l.b16 %v1055
    %v3765 = vunpack.c.h.b16 %v1055
    %v3766 = vunpack.c.l.b16 %v1056
    %v3767 = vunpack.c.h.b16 %v1056
    %v3768 = vunpack.c.l.b16 %v1057
    %v3769 = vunpack.c.h.b16 %v1057
    %v3770 = vunpack.c.l.b16 %v1058
    %v3771 = vunpack.c.h.b16 %v1058
    %v3772 = vunpack.c.l.b16 %v1059
    %v3773 = vunpack.c.h.b16 %v1059
    %v3774 = vunpack.c.l.b16 %v1060
    %v3775 = vunpack.c.h.b16 %v1060
    %v3776 = vunpack.c.l.b16 %v1061
    %v3777 = vunpack.c.h.b16 %v1061
    %v3778 = vunpack.c.l.b16 %v1062
    %v3779 = vunpack.c.h.b16 %v1062
    %v3780 = vunpack.c.l.b16 %v1063
    %v3781 = vunpack.c.h.b16 %v1063
    %v3782 = vunpack.c.l.b16 %v1064
    %v3783 = vunpack.c.h.b16 %v1064
    %v3784 = vunpack.c.l.b16 %v1065
    %v3785 = vunpack.c.h.b16 %v1065
    %v3786 = vunpack.c.l.b16 %v1066
    %v3787 = vunpack.c.h.b16 %v1066
    %v3788 = vunpack.c.l.b16 %v1067
    %v3789 = vunpack.c.h.b16 %v1067
    %v3790 = vunpack.c.l.b16 %v1068
    %v3791 = vunpack.c.h.b16 %v1068
    %v3792 = vunpack.c.l.b16 %v1069
    %v3793 = vunpack.c.h.b16 %v1069
    %v3794 = vunpack.c.l.b16 %v1070
    %v3795 = vunpack.c.h.b16 %v1070
    %v3796 = vunpack.c.l.b16 %v1071
    %v3797 = vunpack.c.h.b16 %v1071
    %v3798 = vunpack.c.l.b16 %v1072
    %v3799 = vunpack.c.h.b16 %v1072
    %v3800 = vunpack.c.l.b16 %v1073
    %v3801 = vunpack.c.h.b16 %v1073
    %v3802 = vunpack.c.l.b16 %v1074
    %v3803 = vunpack.c.h.b16 %v1074
    %v3804 = vunpack.c.l.b16 %v1075
    %v3805 = vunpack.c.h.b16 %v1075
    %v3806 = vunpack.c.l.b16 %v1076
    %v3807 = vunpack.c.h.b16 %v1076
    %v3808 = vunpack.c.l.b16 %v1077
    %v3809 = vunpack.c.h.b16 %v1077
    %v3810 = vunpack.c.l.b16 %v1078
    %v3811 = vunpack.c.h.b16 %v1078
    %v3812 = vunpack.c.l.b16 %v1079
    %v3813 = vunpack.c.h.b16 %v1079
    %v3814 = vunpack.c.l.b16 %v1080
    %v3815 = vunpack.c.h.b16 %v1080
    %v3816 = vunpack.c.l.b16 %v1081
    %v3817 = vunpack.c.h.b16 %v1081
    %v3818 = vunpack.c.l.b16 %v1082
    %v3819 = vunpack.c.h.b16 %v1082
    %v3820 = vunpack.c.l.b16 %v1083
    %v3821 = vunpack.c.h.b16 %v1083
    %v3822 = vunpack.c.l.b16 %v1084
    %v3823 = vunpack.c.h.b16 %v1084
    %v3824 = vunpack.c.l.b16 %v1085
    %v3825 = vunpack.c.h.b16 %v1085
    %v3826 = vunpack.c.l.b16 %v1086
    %v3827 = vunpack.c.h.b16 %v1086
    %v3828 = vunpack.c.l.b16 %v1087
    %v3829 = vunpack.c.h.b16 %v1087
    %v3830 = vunpack.c.l.b16 %v1088
    %v3831 = vunpack.c.h.b16 %v1088
    %v3832 = vunpack.c.l.b16 %v1089
    %v3833 = vunpack.c.h.b16 %v1089
    %v3834 = vunpack.c.l.b16 %v1090
    %v3835 = vunpack.c.h.b16 %v1090
    %v3836 = vunpack.c.l.b16 %v1091
    %v3837 = vunpack.c.h.b16 %v1091
    %v3838 = vunpack.c.l.b16 %v1092
    %v3839 = vunpack.c.h.b16 %v1092
    %v3840 = vunpack.c.l.b16 %v1093
    %v3841 = vunpack.c.h.b16 %v1093
    %v3842 = vunpack.c.l.b16 %v1094
    %v3843 = vunpack.c.h.b16 %v1094
    %v3844 = vunpack.c.l.b16 %v1095
    %v3845 = vunpack.c.h.b16 %v1095
    %v3846 = vunpack.c.l.b16 %v1096
    %v3847 = vunpack.c.h.b16 %v1096
    %v3848 = vunpack.c.l.b16 %v1097
    %v3849 = vunpack.c.h.b16 %v1097
    %v3850 = vunpack.c.l.b16 %v1098
    %v3851 = vunpack.c.h.b16 %v1098
    %v3852 = vunpack.c.l.b16 %v1099
    %v3853 = vunpack.c.h.b16 %v1099
    %v3854 = vunpack.c.l.b16 %v1100
    %v3855 = vunpack.c.h.b16 %v1100
    %v3856 = vunpack.c.l.b16 %v1101
    %v3857 = vunpack.c.h.b16 %v1101
    %v3858 = vunpack.c.l.b16 %v1102
    %v3859 = vunpack.c.h.b16 %v1102
    %v3860 = vunpack.c.l.b16 %v1103
    %v3861 = vunpack.c.h.b16 %v1103
    %v3862 = vunpack.c.l.b16 %v1104
    %v3863 = vunpack.c.h.b16 %v1104
    %v3864 = vunpack.c.l.b16 %v1105
    %v3865 = vunpack.c.h.b16 %v1105
    %v3866 = vunpack.c.l.b16 %v1106
    %v3867 = vunpack.c.h.b16 %v1106
    %v3868 = vunpack.c.l.b16 %v1107
    %v3869 = vunpack.c.h.b16 %v1107
    %v3870 = vunpack.c.l.b16 %v1108
    %v3871 = vunpack.c.h.b16 %v1108
    %v3872 = vunpack.c.l.b16 %v1109
    %v3873 = vunpack.c.h.b16 %v1109
    %v3874 = vunpack.c.l.b16 %v1110
    %v3875 = vunpack.c.h.b16 %v1110
    %v3876 = vunpack.c.l.b16 %v1111
    %v3877 = vunpack.c.h.b16 %v1111
    %v3878 = vunpack.c.l.b16 %v1112
    %v3879 = vunpack.c.h.b16 %v1112
    %v3880 = vunpack.c.l.b16 %v1113
    %v3881 = vunpack.c.h.b16 %v1113
    %v3882 = vunpack.c.l.b16 %v1114
    %v3883 = vunpack.c.h.b16 %v1114
    %v3884 = vunpack.c.l.b16 %v1115
    %v3885 = vunpack.c.h.b16 %v1115
    %v3886 = vunpack.c.l.b16 %v1116
    %v3887 = vunpack.c.h.b16 %v1116
    %v3888 = vunpack.c.l.b16 %v1117
    %v3889 = vunpack.c.h.b16 %v1117
    %v3890 = vunpack.c.l.b16 %v1118
    %v3891 = vunpack.c.h.b16 %v1118
    %v3892 = vunpack.c.l.b16 %v1119
    %v3893 = vunpack.c.h.b16 %v1119
    %v3894 = vunpack.c.l.b16 %v1120
    %v3895 = vunpack.c.h.b16 %v1120
    %v3896 = vunpack.c.l.b16 %v1121
    %v3897 = vunpack.c.h.b16 %v1121
    %v3898 = vunpack.c.l.b16 %v1122
    %v3899 = vunpack.c.h.b16 %v1122
    %v3900 = vunpack.c.l.b16 %v1123
    %v3901 = vunpack.c.h.b16 %v1123
    %v3902 = vunpack.c.l.b16 %v1124
    %v3903 = vunpack.c.h.b16 %v1124
    %v3904 = vunpack.c.l.b16 %v1125
    %v3905 = vunpack.c.h.b16 %v1125
    %v3906 = vunpack.c.l.b16 %v1126
    %v3907 = vunpack.c.h.b16 %v1126
    %v3908 = vunpack.c.l.b16 %v1127
    %v3909 = vunpack.c.h.b16 %v1127
    %v3910 = vunpack.c.l.b16 %v1128
    %v3911 = vunpack.c.h.b16 %v1128
    %v3912 = vunpack.c.l.b16 %v1129
    %v3913 = vunpack.c.h.b16 %v1129
    %v3914 = vunpack.c.l.b16 %v1130
    %v3915 = vunpack.c.h.b16 %v1130
    %v3916 = vunpack.c.l.b16 %v1131
    %v3917 = vunpack.c.h.b16 %v1131
    %v3918 = vunpack.c.l.b16 %v1132
    %v3919 = vunpack.c.h.b16 %v1132
    %v3920 = vunpack.c.l.b16 %v1133
    %v3921 = vunpack.c.h.b16 %v1133
    %v3922 = vunpack.c.l.b16 %v1134
    %v3923 = vunpack.c.h.b16 %v1134
    %v3924 = vunpack.c.l.b16 %v1135
    %v3925 = vunpack.c.h.b16 %v1135
    %v3926 = vunpack.c.l.b16 %v1136
    %v3927 = vunpack.c.h.b16 %v1136
    %v3928 = vunpack.c.l.b16 %v1137
    %v3929 = vunpack.c.h.b16 %v1137
    %v3930 = vunpack.c.l.b16 %v1138
    %v3931 = vunpack.c.h.b16 %v1138
    %v3932 = vunpack.c.l.b16 %v1139
    %v3933 = vunpack.c.h.b16 %v1139
    %v3934 = vunpack.c.l.b16 %v1140
    %v3935 = vunpack.c.h.b16 %v1140
    %v3936 = vunpack.c.l.b16 %v1141
    %v3937 = vunpack.c.h.b16 %v1141
    %v3938 = vunpack.c.l.b16 %v1142
    %v3939 = vunpack.c.h.b16 %v1142
    %v3940 = vunpack.c.l.b16 %v1143
    %v3941 = vunpack.c.h.b16 %v1143
    %v3942 = vunpack.c.l.b16 %v1144
    %v3943 = vunpack.c.h.b16 %v1144
    %v3944 = vunpack.c.l.b16 %v1145
    %v3945 = vunpack.c.h.b16 %v1145
    %v3946 = vunpack.c.l.b16 %v1146
    %v3947 = vunpack.c.h.b16 %v1146
    %v3948 = vunpack.c.l.b16 %v1147
    %v3949 = vunpack.c.h.b16 %v1147
    %v3950 = vunpack.c.l.b16 %v1148
    %v3951 = vunpack.c.h.b16 %v1148
    %v3952 = vunpack.c.l.b16 %v1149
    %v3953 = vunpack.c.h.b16 %v1149
    %v3954 = vunpack.c.l.b16 %v1150
    %v3955 = vunpack.c.h.b16 %v1150
    %v3956 = vunpack.c.l.b16 %v1151
    %v3957 = vunpack.c.h.b16 %v1151
    %v3958 = vunpack.c.l.b16 %v1152
    %v3959 = vunpack.c.h.b16 %v1152
    %v3960 = vunpack.c.l.b16 %v1153
    %v3961 = vunpack.c.h.b16 %v1153
    %v3962 = vunpack.c.l.b16 %v1154
    %v3963 = vunpack.c.h.b16 %v1154
    %v3964 = vunpack.c.l.b16 %v1155
    %v3965 = vunpack.c.h.b16 %v1155
    %v3966 = vunpack.c.l.b16 %v1156
    %v3967 = vunpack.c.h.b16 %v1156
    %v3968 = vunpack.c.l.b16 %v1157
    %v3969 = vunpack.c.h.b16 %v1157
    %v3970 = vunpack.c.l.b16 %v1158
    %v3971 = vunpack.c.h.b16 %v1158
    %v3972 = vunpack.c.l.b16 %v1159
    %v3973 = vunpack.c.h.b16 %v1159
    %v3974 = vunpack.c.l.b16 %v1160
    %v3975 = vunpack.c.h.b16 %v1160
    %v3976 = vunpack.c.l.b16 %v1161
    %v3977 = vunpack.c.h.b16 %v1161
    %v3978 = vunpack.c.l.b16 %v1162
    %v3979 = vunpack.c.h.b16 %v1162
    %v3980 = vunpack.c.l.b16 %v1163
    %v3981 = vunpack.c.h.b16 %v1163
    %v3982 = vunpack.c.l.b16 %v1164
    %v3983 = vunpack.c.h.b16 %v1164
    %v3984 = vunpack.c.l.b16 %v1165
    %v3985 = vunpack.c.h.b16 %v1165
    %v3986 = vunpack.c.l.b16 %v1166
    %v3987 = vunpack.c.h.b16 %v1166
    %v3988 = vunpack.c.l.b16 %v1167
    %v3989 = vunpack.c.h.b16 %v1167
    %v3990 = vunpack.c.l.b16 %v1168
    %v3991 = vunpack.c.h.b16 %v1168
    %v3992 = vunpack.c.l.b16 %v1169
    %v3993 = vunpack.c.h.b16 %v1169
    %v3994 = vunpack.c.l.b16 %v1170
    %v3995 = vunpack.c.h.b16 %v1170
    %v3996 = vunpack.c.l.b16 %v1171
    %v3997 = vunpack.c.h.b16 %v1171
    %v3998 = vunpack.c.l.b16 %v1172
    %v3999 = vunpack.c.h.b16 %v1172
    %v4000 = vunpack.c.l.b16 %v1173
    %v4001 = vunpack.c.h.b16 %v1173
    %v4002 = vunpack.c.l.b16 %v1174
    %v4003 = vunpack.c.h.b16 %v1174
    %v4004 = vunpack.c.l.b16 %v1175
    %v4005 = vunpack.c.h.b16 %v1175
    %v4006 = vunpack.c.l.b16 %v1176
    %v4007 = vunpack.c.h.b16 %v1176
    %v4008 = vunpack.c.l.b16 %v1177
    %v4009 = vunpack.c.h.b16 %v1177
    %v4010 = vunpack.c.l.b16 %v1178
    %v4011 = vunpack.c.h.b16 %v1178
    %v4012 = vunpack.c.l.b16 %v1179
    %v4013 = vunpack.c.h.b16 %v1179
    %v4014 = vunpack.c.l.b16 %v1180
    %v4015 = vunpack.c.h.b16 %v1180
    %v4016 = vunpack.c.l.b16 %v1181
    %v4017 = vunpack.c.h.b16 %v1181
    %v4018 = vunpack.c.l.b16 %v1182
    %v4019 = vunpack.c.h.b16 %v1182
    %v4020 = vunpack.c.l.b16 %v1183
    %v4021 = vunpack.c.h.b16 %v1183
    %v4022 = vunpack.c.l.b16 %v1184
    %v4023 = vunpack.c.h.b16 %v1184
    %v4024 = vunpack.c.l.b16 %v1185
    %v4025 = vunpack.c.h.b16 %v1185
    %v4026 = vunpack.c.l.b16 %v1186
    %v4027 = vunpack.c.h.b16 %v1186
    %v4028 = vunpack.c.l.b16 %v1187
    %v4029 = vunpack.c.h.b16 %v1187
    %v4030 = vunpack.c.l.b16 %v1188
    %v4031 = vunpack.c.h.b16 %v1188
    %v4032 = vunpack.c.l.b16 %v1189
    %v4033 = vunpack.c.h.b16 %v1189
    %v4034 = vunpack.c.l.b16 %v1190
    %v4035 = vunpack.c.h.b16 %v1190
    %v4036 = vunpack.c.l.b16 %v1191
    %v4037 = vunpack.c.h.b16 %v1191
    %v4038 = vunpack.c.l.b16 %v1192
    %v4039 = vunpack.c.h.b16 %v1192
    %v4040 = vunpack.c.l.b16 %v1193
    %v4041 = vunpack.c.h.b16 %v1193
    %v4042 = vunpack.c.l.b16 %v1194
    %v4043 = vunpack.c.h.b16 %v1194
    %v4044 = vunpack.c.l.b16 %v1195
    %v4045 = vunpack.c.h.b16 %v1195
    %v4046 = vunpack.c.l.b16 %v1196
    %v4047 = vunpack.c.h.b16 %v1196
    %v4048 = vunpack.c.l.b16 %v1197
    %v4049 = vunpack.c.h.b16 %v1197
    %v4050 = vunpack.c.l.b16 %v1198
    %v4051 = vunpack.c.h.b16 %v1198
    %v4052 = vunpack.c.l.b16 %v1199
    %v4053 = vunpack.c.h.b16 %v1199
    %v4054 = vunpack.c.l.b16 %v1200
    %v4055 = vunpack.c.h.b16 %v1200
    %v4056 = vunpack.c.l.b16 %v1201
    %v4057 = vunpack.c.h.b16 %v1201
    %v4058 = vunpack.c.l.b16 %v1202
    %v4059 = vunpack.c.h.b16 %v1202
    %v4060 = vunpack.c.l.b16 %v1203
    %v4061 = vunpack.c.h.b16 %v1203
    %v4062 = vunpack.c.l.b16 %v1204
    %v4063 = vunpack.c.h.b16 %v1204
    %v4064 = vunpack.c.l.b16 %v1205
    %v4065 = vunpack.c.h.b16 %v1205
    %v4066 = vunpack.c.l.b16 %v1206
    %v4067 = vunpack.c.h.b16 %v1206
    %v4068 = vunpack.c.l.b16 %v1207
    %v4069 = vunpack.c.h.b16 %v1207
    %v4070 = vunpack.c.l.b16 %v1208
    %v4071 = vunpack.c.h.b16 %v1208
    %v4072 = vunpack.c.l.b16 %v1209
    %v4073 = vunpack.c.h.b16 %v1209
    %v4074 = vunpack.c.l.b16 %v1210
    %v4075 = vunpack.c.h.b16 %v1210
    %v4076 = vunpack.c.l.b16 %v1211
    %v4077 = vunpack.c.h.b16 %v1211
    %v4078 = vunpack.c.l.b16 %v1212
    %v4079 = vunpack.c.h.b16 %v1212
    %v4080 = vunpack.c.l.b16 %v1213
    %v4081 = vunpack.c.h.b16 %v1213
    %v4082 = vunpack.c.l.b16 %v1214
    %v4083 = vunpack.c.h.b16 %v1214
    %v4084 = vunpack.c.l.b16 %v1215
    %v4085 = vunpack.c.h.b16 %v1215
    %v4086 = vunpack.c.l.b16 %v1216
    %v4087 = vunpack.c.h.b16 %v1216
    %v4088 = vunpack.c.l.b16 %v1217
    %v4089 = vunpack.c.h.b16 %v1217
    %v4090 = vunpack.c.l.b16 %v1218
    %v4091 = vunpack.c.h.b16 %v1218
    %v4092 = vunpack.c.l.b16 %v1219
    %v4093 = vunpack.c.h.b16 %v1219
    %v4094 = vunpack.c.l.b16 %v1220
    %v4095 = vunpack.c.h.b16 %v1220
    %v4096 = vunpack.c.l.b16 %v1221
    %v4097 = vunpack.c.h.b16 %v1221
    %v4098 = vunpack.c.l.b16 %v1222
    %v4099 = vunpack.c.h.b16 %v1222
    %v4100 = vunpack.c.l.b16 %v1223
    %v4101 = vunpack.c.h.b16 %v1223
    %v4102 = vunpack.c.l.b16 %v1224
    %v4103 = vunpack.c.h.b16 %v1224
    %v4104 = vunpack.c.l.b16 %v1225
    %v4105 = vunpack.c.h.b16 %v1225
    %v4106 = vunpack.c.l.b16 %v1226
    %v4107 = vunpack.c.h.b16 %v1226
    %v4108 = vunpack.c.l.b16 %v1227
    %v4109 = vunpack.c.h.b16 %v1227
    %v4110 = vunpack.c.l.b16 %v1228
    %v4111 = vunpack.c.h.b16 %v1228
    %v4112 = vunpack.c.l.b16 %v1229
    %v4113 = vunpack.c.h.b16 %v1229
    %v4114 = vunpack.c.l.b16 %v1230
    %v4115 = vunpack.c.h.b16 %v1230
    %v4116 = vunpack.c.l.b16 %v1231
    %v4117 = vunpack.c.h.b16 %v1231
    %v4118 = vunpack.c.l.b16 %v1232
    %v4119 = vunpack.c.h.b16 %v1232
    %v4120 = vunpack.c.l.b16 %v1233
    %v4121 = vunpack.c.h.b16 %v1233
    %v4122 = vunpack.c.l.b16 %v1234
    %v4123 = vunpack.c.h.b16 %v1234
    %v4124 = vunpack.c.l.b16 %v1235
    %v4125 = vunpack.c.h.b16 %v1235
    %v4126 = vunpack.c.l.b16 %v1236
    %v4127 = vunpack.c.h.b16 %v1236
    %v4128 = vunpack.c.l.b16 %v1237
    %v4129 = vunpack.c.h.b16 %v1237
    %v4130 = vunpack.c.l.b16 %v1238
    %v4131 = vunpack.c.h.b16 %v1238
    %v4132 = vunpack.c.l.b16 %v1239
    %v4133 = vunpack.c.h.b16 %v1239
    %v4134 = vunpack.c.l.b16 %v1240
    %v4135 = vunpack.c.h.b16 %v1240
    %v4136 = vunpack.c.l.b16 %v1241
    %v4137 = vunpack.c.h.b16 %v1241
    %v4138 = vunpack.c.l.b16 %v1242
    %v4139 = vunpack.c.h.b16 %v1242
    %v4140 = vunpack.c.l.b16 %v1243
    %v4141 = vunpack.c.h.b16 %v1243
    %v4142 = vunpack.c.l.b16 %v1244
    %v4143 = vunpack.c.h.b16 %v1244
    %v4144 = vunpack.c.l.b16 %v1245
    %v4145 = vunpack.c.h.b16 %v1245
    %v4146 = vunpack.c.l.b16 %v1246
    %v4147 = vunpack.c.h.b16 %v1246
    %v4148 = vunpack.c.l.b16 %v1247
    %v4149 = vunpack.c.h.b16 %v1247
    %v4150 = vunpack.c.l.b16 %v1248
    %v4151 = vunpack.c.h.b16 %v1248
    %v4152 = vunpack.c.l.b16 %v1249
    %v4153 = vunpack.c.h.b16 %v1249
    %v4154 = vunpack.c.l.b16 %v1250
    %v4155 = vunpack.c.h.b16 %v1250
    %v4156 = vunpack.c.l.b16 %v1251
    %v4157 = vunpack.c.h.b16 %v1251
    %v4158 = vunpack.c.l.b16 %v1252
    %v4159 = vunpack.c.h.b16 %v1252
    %v4160 = vunpack.c.l.b16 %v1253
    %v4161 = vunpack.c.h.b16 %v1253
    %v4162 = vunpack.c.l.b16 %v1254
    %v4163 = vunpack.c.h.b16 %v1254
    %v4164 = vunpack.c.l.b16 %v1255
    %v4165 = vunpack.c.h.b16 %v1255
    %v4166 = vunpack.c.l.b16 %v1256
    %v4167 = vunpack.c.h.b16 %v1256
    %v4168 = vunpack.c.l.b16 %v1257
    %v4169 = vunpack.c.h.b16 %v1257
    %v4170 = vunpack.c.l.b16 %v1258
    %v4171 = vunpack.c.h.b16 %v1258
    %v4172 = vunpack.c.l.b16 %v1259
    %v4173 = vunpack.c.h.b16 %v1259
    %v4174 = vunpack.c.l.b16 %v1260
    %v4175 = vunpack.c.h.b16 %v1260
    %v4176 = vunpack.c.l.b16 %v1261
    %v4177 = vunpack.c.h.b16 %v1261
    %v4178 = vunpack.c.l.b16 %v1262
    %v4179 = vunpack.c.h.b16 %v1262
    %v4180 = vunpack.c.l.b16 %v1263
    %v4181 = vunpack.c.h.b16 %v1263
    %v4182 = vunpack.c.l.b16 %v1264
    %v4183 = vunpack.c.h.b16 %v1264
    %v4184 = vunpack.c.l.b16 %v1265
    %v4185 = vunpack.c.h.b16 %v1265
    %v4186 = vunpack.c.l.b16 %v1266
    %v4187 = vunpack.c.h.b16 %v1266
    %v4188 = vunpack.c.l.b16 %v1267
    %v4189 = vunpack.c.h.b16 %v1267
    %v4190 = vunpack.c.l.b16 %v1268
    %v4191 = vunpack.c.h.b16 %v1268
    %v4192 = vunpack.c.l.b16 %v1269
    %v4193 = vunpack.c.h.b16 %v1269
    %v4194 = vunpack.c.l.b16 %v1270
    %v4195 = vunpack.c.h.b16 %v1270
    %v4196 = vunpack.c.l.b16 %v1271
    %v4197 = vunpack.c.h.b16 %v1271
    %v4198 = vunpack.c.l.b16 %v1272
    %v4199 = vunpack.c.h.b16 %v1272
    %v4200 = vunpack.c.l.b16 %v1273
    %v4201 = vunpack.c.h.b16 %v1273
    %v4202 = vunpack.c.l.b16 %v1274
    %v4203 = vunpack.c.h.b16 %v1274
    %v4204 = vunpack.c.l.b16 %v1275
    %v4205 = vunpack.c.h.b16 %v1275
    %v4206 = vunpack.c.l.b16 %v1276
    %v4207 = vunpack.c.h.b16 %v1276
    %v4208 = vunpack.c.l.b16 %v1277
    %v4209 = vunpack.c.h.b16 %v1277
    %v4210 = vunpack.c.l.b16 %v1278
    %v4211 = vunpack.c.h.b16 %v1278
    %v4212 = vunpack.c.l.b16 %v1279
    %v4213 = vunpack.c.h.b16 %v1279
    %v4214 = vunpack.c.l.b16 %v1280
    %v4215 = vunpack.c.h.b16 %v1280
    %v4216 = vunpack.c.l.b16 %v1281
    %v4217 = vunpack.c.h.b16 %v1281
    %v4218 = vunpack.c.l.b16 %v1282
    %v4219 = vunpack.c.h.b16 %v1282
    %v4220 = vunpack.c.l.b16 %v1283
    %v4221 = vunpack.c.h.b16 %v1283
    %v4222 = vunpack.c.l.b16 %v1284
    %v4223 = vunpack.c.h.b16 %v1284
    %v4224 = vunpack.c.l.b16 %v1285
    %v4225 = vunpack.c.h.b16 %v1285
    %v4226 = vunpack.c.l.b16 %v1286
    %v4227 = vunpack.c.h.b16 %v1286
    %v4228 = vunpack.c.l.b16 %v1287
    %v4229 = vunpack.c.h.b16 %v1287
    %v4230 = vunpack.c.l.b16 %v1288
    %v4231 = vunpack.c.h.b16 %v1288
    %v4232 = vunpack.c.l.b16 %v1289
    %v4233 = vunpack.c.h.b16 %v1289
    %v4234 = vunpack.c.l.b16 %v1290
    %v4235 = vunpack.c.h.b16 %v1290
    %v4236 = vunpack.c.l.b16 %v1291
    %v4237 = vunpack.c.h.b16 %v1291
    %v4238 = vunpack.c.l.b16 %v1292
    %v4239 = vunpack.c.h.b16 %v1292
    %v4240 = vunpack.c.l.b16 %v1293
    %v4241 = vunpack.c.h.b16 %v1293
    %v4242 = vunpack.c.l.b16 %v1294
    %v4243 = vunpack.c.h.b16 %v1294
    %v4244 = vunpack.c.l.b16 %v1295
    %v4245 = vunpack.c.h.b16 %v1295
    %v4246 = vunpack.c.l.b16 %v1296
    %v4247 = vunpack.c.h.b16 %v1296
    %v4248 = vunpack.c.l.b16 %v1297
    %v4249 = vunpack.c.h.b16 %v1297
    %v4250 = vunpack.c.l.b16 %v1298
    %v4251 = vunpack.c.h.b16 %v1298
    %v4252 = vunpack.c.l.b16 %v1299
    %v4253 = vunpack.c.h.b16 %v1299
    %v4254 = vunpack.c.l.b16 %v1300
    %v4255 = vunpack.c.h.b16 %v1300
    %v4256 = vunpack.c.l.b16 %v1301
    %v4257 = vunpack.c.h.b16 %v1301
    %v4258 = vunpack.c.l.b16 %v1302
    %v4259 = vunpack.c.h.b16 %v1302
    %v4260 = vunpack.c.l.b16 %v1303
    %v4261 = vunpack.c.h.b16 %v1303
    %v4262 = vunpack.c.l.b16 %v1304
    %v4263 = vunpack.c.h.b16 %v1304
    %v4264 = vunpack.c.l.b16 %v1305
    %v4265 = vunpack.c.h.b16 %v1305
    %v4266 = vunpack.c.l.b16 %v1306
    %v4267 = vunpack.c.h.b16 %v1306
    %v4268 = vunpack.c.l.b16 %v1307
    %v4269 = vunpack.c.h.b16 %v1307
    %v4270 = vunpack.c.l.b16 %v1308
    %v4271 = vunpack.c.h.b16 %v1308
    %v4272 = vunpack.c.l.b16 %v1309
    %v4273 = vunpack.c.h.b16 %v1309
    %v4274 = vunpack.c.l.b16 %v1310
    %v4275 = vunpack.c.h.b16 %v1310
    %v4276 = vunpack.c.l.b16 %v1311
    %v4277 = vunpack.c.h.b16 %v1311
    %v4278 = vunpack.c.l.b16 %v1312
    %v4279 = vunpack.c.h.b16 %v1312
    %v4280 = vunpack.c.l.b16 %v1313
    %v4281 = vunpack.c.h.b16 %v1313
    %v4282 = vunpack.c.l.b16 %v1314
    %v4283 = vunpack.c.h.b16 %v1314
    %v4284 = vunpack.c.l.b16 %v1315
    %v4285 = vunpack.c.h.b16 %v1315
    %v4286 = vunpack.c.l.b16 %v1316
    %v4287 = vunpack.c.h.b16 %v1316
    %v4288 = vunpack.c.l.b16 %v1317
    %v4289 = vunpack.c.h.b16 %v1317
    %v4290 = vunpack.c.l.b16 %v1318
    %v4291 = vunpack.c.h.b16 %v1318
    %v4292 = vunpack.c.l.b16 %v1319
    %v4293 = vunpack.c.h.b16 %v1319
    %v4294 = vunpack.c.l.b16 %v1320
    %v4295 = vunpack.c.h.b16 %v1320
    %v4296 = vunpack.c.l.b16 %v1321
    %v4297 = vunpack.c.h.b16 %v1321
    %v4298 = vunpack.c.l.b16 %v1322
    %v4299 = vunpack.c.h.b16 %v1322
    %v4300 = vunpack.c.l.b16 %v1323
    %v4301 = vunpack.c.h.b16 %v1323
    %v4302 = vunpack.c.l.b16 %v1324
    %v4303 = vunpack.c.h.b16 %v1324
    %v4304 = vunpack.c.l.b16 %v1325
    %v4305 = vunpack.c.h.b16 %v1325
    %v4306 = vunpack.c.l.b16 %v1326
    %v4307 = vunpack.c.h.b16 %v1326
    %v4308 = vunpack.c.l.b16 %v1327
    %v4309 = vunpack.c.h.b16 %v1327
    %v4310 = vunpack.c.l.b16 %v1328
    %v4311 = vunpack.c.h.b16 %v1328
    %v4312 = vunpack.c.l.b16 %v1329
    %v4313 = vunpack.c.h.b16 %v1329
    %v4314 = vunpack.c.l.b16 %v1330
    %v4315 = vunpack.c.h.b16 %v1330
    %v4316 = vunpack.c.l.b16 %v1331
    %v4317 = vunpack.c.h.b16 %v1331
    %v4318 = vunpack.c.l.b16 %v1332
    %v4319 = vunpack.c.h.b16 %v1332
    %v4320 = vunpack.c.l.b16 %v1333
    %v4321 = vunpack.c.h.b16 %v1333
    %v4322 = vunpack.c.l.b16 %v1334
    %v4323 = vunpack.c.h.b16 %v1334
    %v4324 = vunpack.c.l.b16 %v1335
    %v4325 = vunpack.c.h.b16 %v1335
    %v4326 = vunpack.c.l.b16 %v1336
    %v4327 = vunpack.c.h.b16 %v1336
    %v4328 = vunpack.c.l.b16 %v1337
    %v4329 = vunpack.c.h.b16 %v1337
    %v4330 = vunpack.c.l.b16 %v1338
    %v4331 = vunpack.c.h.b16 %v1338
    %v4332 = vunpack.c.l.b16 %v1339
    %v4333 = vunpack.c.h.b16 %v1339
    %v4334 = vunpack.c.l.b16 %v1340
    %v4335 = vunpack.c.h.b16 %v1340
    %v4336 = vunpack.c.l.b16 %v1341
    %v4337 = vunpack.c.h.b16 %v1341
    %v4338 = vunpack.c.l.b16 %v1342
    %v4339 = vunpack.c.h.b16 %v1342
    %v4340 = vunpack.c.l.b16 %v1343
    %v4341 = vunpack.c.h.b16 %v1343
    %v4342 = vunpack.c.l.b16 %v1344
    %v4343 = vunpack.c.h.b16 %v1344
    %v4344 = vunpack.c.l.b16 %v1345
    %v4345 = vunpack.c.h.b16 %v1345
    %v4346 = vunpack.c.l.b16 %v1346
    %v4347 = vunpack.c.h.b16 %v1346
    %v4348 = vunpack.c.l.b16 %v1347
    %v4349 = vunpack.c.h.b16 %v1347
    %v4350 = vunpack.c.l.b16 %v1348
    %v4351 = vunpack.c.h.b16 %v1348
    %v4352 = vunpack.c.l.b16 %v1349
    %v4353 = vunpack.c.h.b16 %v1349
    %v4354 = vunpack.c.l.b16 %v1350
    %v4355 = vunpack.c.h.b16 %v1350
    %v4356 = vunpack.c.l.b16 %v1351
    %v4357 = vunpack.c.h.b16 %v1351
    %v4358 = vunpack.c.l.b16 %v1352
    %v4359 = vunpack.c.h.b16 %v1352
    %v4360 = vunpack.c.l.b16 %v1353
    %v4361 = vunpack.c.h.b16 %v1353
    %v4362 = vunpack.c.l.b16 %v1354
    %v4363 = vunpack.c.h.b16 %v1354
    %v4364 = vunpack.c.l.b16 %v1355
    %v4365 = vunpack.c.h.b16 %v1355
    %v4366 = vunpack.c.l.b16 %v1356
    %v4367 = vunpack.c.h.b16 %v1356
    %v4368 = vunpack.c.l.b16 %v1357
    %v4369 = vunpack.c.h.b16 %v1357
    %v4370 = vunpack.c.l.b16 %v1358
    %v4371 = vunpack.c.h.b16 %v1358
    %v4372 = vunpack.c.l.b16 %v1359
    %v4373 = vunpack.c.h.b16 %v1359
    %v4374 = vunpack.c.l.b16 %v1360
    %v4375 = vunpack.c.h.b16 %v1360
    %v4376 = vunpack.c.l.b16 %v1361
    %v4377 = vunpack.c.h.b16 %v1361
    %v4378 = vunpack.c.l.b16 %v1362
    %v4379 = vunpack.c.h.b16 %v1362
    %v4380 = vunpack.c.l.b16 %v1363
    %v4381 = vunpack.c.h.b16 %v1363
    %v4382 = vunpack.c.l.b16 %v1364
    %v4383 = vunpack.c.h.b16 %v1364
    %v4384 = vunpack.c.l.b16 %v1365
    %v4385 = vunpack.c.h.b16 %v1365
    %v4386 = vunpack.c.l.b16 %v1366
    %v4387 = vunpack.c.h.b16 %v1366
    %v4388 = vunpack.c.l.b16 %v1367
    %v4389 = vunpack.c.h.b16 %v1367
    %v4390 = vunpack.c.l.b16 %v1368
    %v4391 = vunpack.c.h.b16 %v1368
    %v4392 = vunpack.c.l.b16 %v1369
    %v4393 = vunpack.c.h.b16 %v1369
    %v4394 = vunpack.c.l.b16 %v1370
    %v4395 = vunpack.c.h.b16 %v1370
    %v4396 = vunpack.c.l.b16 %v1371
    %v4397 = vunpack.c.h.b16 %v1371
    %v4398 = vunpack.c.l.b16 %v1372
    %v4399 = vunpack.c.h.b16 %v1372
    %v4400 = vunpack.c.l.b16 %v1373
    %v4401 = vunpack.c.h.b16 %v1373
    %v4402 = vunpack.c.l.b16 %v1374
    %v4403 = vunpack.c.h.b16 %v1374
    %v4404 = vunpack.c.l.b16 %v1375
    %v4405 = vunpack.c.h.b16 %v1375
    %v4406 = vunpack.c.l.b16 %v1376
    %v4407 = vunpack.c.h.b16 %v1376
    %v4408 = vunpack.c.l.b16 %v1377
    %v4409 = vunpack.c.h.b16 %v1377
    %v4410 = vunpack.c.l.b16 %v1378
    %v4411 = vunpack.c.h.b16 %v1378
    %v4412 = vunpack.c.l.b16 %v1379
    %v4413 = vunpack.c.h.b16 %v1379
    %v4414 = vunpack.c.l.b16 %v1380
    %v4415 = vunpack.c.h.b16 %v1380
    %v4416 = vunpack.c.l.b16 %v1381
    %v4417 = vunpack.c.h.b16 %v1381
    %v4418 = vunpack.c.l.b16 %v1382
    %v4419 = vunpack.c.h.b16 %v1382
    %v4420 = vunpack.c.l.b16 %v1383
    %v4421 = vunpack.c.h.b16 %v1383
    %v4422 = vunpack.c.l.b16 %v1384
    %v4423 = vunpack.c.h.b16 %v1384
    %v4424 = vunpack.c.l.b16 %v1385
    %v4425 = vunpack.c.h.b16 %v1385
    %v4426 = vunpack.c.l.b16 %v1386
    %v4427 = vunpack.c.h.b16 %v1386
    %v4428 = vunpack.c.l.b16 %v1387
    %v4429 = vunpack.c.h.b16 %v1387
    %v4430 = vunpack.c.l.b16 %v1388
    %v4431 = vunpack.c.h.b16 %v1388
    %v4432 = vunpack.c.l.b16 %v1389
    %v4433 = vunpack.c.h.b16 %v1389
    %v4434 = vunpack.c.l.b16 %v1390
    %v4435 = vunpack.c.h.b16 %v1390
    %v4436 = vunpack.c.l.b16 %v1391
    %v4437 = vunpack.c.h.b16 %v1391
    %v4438 = vunpack.c.l.b16 %v1392
    %v4439 = vunpack.c.h.b16 %v1392
    %v4440 = vunpack.c.l.b16 %v1393
    %v4441 = vunpack.c.h.b16 %v1393
    %v4442 = vunpack.c.l.b16 %v1394
    %v4443 = vunpack.c.h.b16 %v1394
    %v4444 = vunpack.c.l.b16 %v1395
    %v4445 = vunpack.c.h.b16 %v1395
    %v4446 = vunpack.c.l.b16 %v1396
    %v4447 = vunpack.c.h.b16 %v1396
    %v4448 = vunpack.c.l.b16 %v1397
    %v4449 = vunpack.c.h.b16 %v1397
    %v4450 = vunpack.c.l.b16 %v1398
    %v4451 = vunpack.c.h.b16 %v1398
    %v4452 = vunpack.c.l.b16 %v1399
    %v4453 = vunpack.c.h.b16 %v1399
    %v4454 = vunpack.c.l.b16 %v1400
    %v4455 = vunpack.c.h.b16 %v1400
    %v4456 = vunpack.c.l.b16 %v1401
    %v4457 = vunpack.c.h.b16 %v1401
    %v4458 = vunpack.c.l.b16 %v1402
    %v4459 = vunpack.c.h.b16 %v1402
    %v4460 = vunpack.c.l.b16 %v1403
    %v4461 = vunpack.c.h.b16 %v1403
    %v4462 = vunpack.c.l.b16 %v1404
    %v4463 = vunpack.c.h.b16 %v1404
    %v4464 = vunpack.c.l.b16 %v1405
    %v4465 = vunpack.c.h.b16 %v1405
    %v4466 = vunpack.c.l.b16 %v1406
    %v4467 = vunpack.c.h.b16 %v1406
    %v4468 = vunpack.c.l.b16 %v1407
    %v4469 = vunpack.c.h.b16 %v1407
    %v4470 = vunpack.c.l.b16 %v1408
    %v4471 = vunpack.c.h.b16 %v1408
    %v4472 = vunpack.c.l.b16 %v1409
    %v4473 = vunpack.c.h.b16 %v1409
    %v4474 = vunpack.c.l.b16 %v1410
    %v4475 = vunpack.c.h.b16 %v1410
    %v4476 = vunpack.c.l.b16 %v1411
    %v4477 = vunpack.c.h.b16 %v1411
    %v4478 = vunpack.c.l.b16 %v1412
    %v4479 = vunpack.c.h.b16 %v1412
    %v4480 = vunpack.c.l.b16 %v1413
    %v4481 = vunpack.c.h.b16 %v1413
    %v4482 = vunpack.c.l.b16 %v1414
    %v4483 = vunpack.c.h.b16 %v1414
    %v4484 = vunpack.c.l.b16 %v1415
    %v4485 = vunpack.c.h.b16 %v1415
    %v4486 = vunpack.c.l.b16 %v1416
    %v4487 = vunpack.c.h.b16 %v1416
    %v4488 = vunpack.c.l.b16 %v1417
    %v4489 = vunpack.c.h.b16 %v1417
    %v4490 = vunpack.c.l.b16 %v1418
    %v4491 = vunpack.c.h.b16 %v1418
    %v4492 = vunpack.c.l.b16 %v1419
    %v4493 = vunpack.c.h.b16 %v1419
    %v4494 = vunpack.c.l.b16 %v1420
    %v4495 = vunpack.c.h.b16 %v1420
    %v4496 = vunpack.c.l.b16 %v1421
    %v4497 = vunpack.c.h.b16 %v1421
    %v4498 = vunpack.c.l.b16 %v1422
    %v4499 = vunpack.c.h.b16 %v1422
    %v4500 = vunpack.c.l.b16 %v1423
    %v4501 = vunpack.c.h.b16 %v1423
    %v4502 = vunpack.c.l.b16 %v1424
    %v4503 = vunpack.c.h.b16 %v1424
    %v4504 = vunpack.c.l.b16 %v1425
    %v4505 = vunpack.c.h.b16 %v1425
    %v4506 = vunpack.c.l.b16 %v1426
    %v4507 = vunpack.c.h.b16 %v1426
    %v4508 = vunpack.c.l.b16 %v1427
    %v4509 = vunpack.c.h.b16 %v1427
    %v4510 = vunpack.c.l.b16 %v1428
    %v4511 = vunpack.c.h.b16 %v1428
    %v4512 = vunpack.c.l.b16 %v1429
    %v4513 = vunpack.c.h.b16 %v1429
    %v4514 = vunpack.c.l.b16 %v1430
    %v4515 = vunpack.c.h.b16 %v1430
    %v4516 = vunpack.c.l.b16 %v1431
    %v4517 = vunpack.c.h.b16 %v1431
    %v4518 = vunpack.c.l.b16 %v1432
    %v4519 = vunpack.c.h.b16 %v1432
    %v4520 = vunpack.c.l.b16 %v1433
    %v4521 = vunpack.c.h.b16 %v1433
    %v4522 = vunpack.c.l.b16 %v1434
    %v4523 = vunpack.c.h.b16 %v1434
    %v4524 = vunpack.c.l.b16 %v1435
    %v4525 = vunpack.c.h.b16 %v1435
    %v4526 = vpack.c.b16 %v2486, %v2478
    %v4527 = vpack.c.b16 %v2487, %v2479
    %v4528 = vpack.c.b16 %v2488, %v2480
    %v4529 = vpack.c.b16 %v2489, %v2481
    %v4530 = vpack.c.b16 %v2490, %v2482
    %v4531 = vpack.c.b16 %v2491, %v2483
    %v4532 = vpack.c.b16 %v2492, %v2484
    %v4533 = vpack.c.b16 %v2493, %v2485
    %v4534 = vpack.c.b16 %v2502, %v2494
    %v4535 = vpack.c.b16 %v2503, %v2495
    %v4536 = vpack.c.b16 %v2504, %v2496
    %v4537 = vpack.c.b16 %v2505, %v2497
    %v4538 = vpack.c.b16 %v2506, %v2498
    %v4539 = vpack.c.b16 %v2507, %v2499
    %v4540 = vpack.c.b16 %v2508, %v2500
    %v4541 = vpack.c.b16 %v2509, %v2501
    %v4542 = vpack.c.b16 %v2518, %v2510
    %v4543 = vpack.c.b16 %v2519, %v2511
    %v4544 = vpack.c.b16 %v2520, %v2512
    %v4545 = vpack.c.b16 %v2521, %v2513
    %v4546 = vpack.c.b16 %v2522, %v2514
    %v4547 = vpack.c.b16 %v2523, %v2515
    %v4548 = vpack.c.b16 %v2524, %v2516
    %v4549 = vpack.c.b16 %v2525, %v2517
    %v4550 = vpack.c.b16 %v2534, %v2526
    %v4551 = vpack.c.b16 %v2535, %v2527
    %v4552 = vpack.c.b16 %v2536, %v2528
    %v4553 = vpack.c.b16 %v2537, %v2529
    %v4554 = vpack.c.b16 %v2538, %v2530
    %v4555 = vpack.c.b16 %v2539, %v2531
    %v4556 = vpack.c.b16 %v2540, %v2532
    %v4557 = vpack.c.b16 %v2541, %v2533
    %v4558 = vpack.c.b16 %v2550, %v2542
    %v4559 = vpack.c.b16 %v2551, %v2543
    %v4560 = vpack.c.b16 %v2552, %v2544
    %v4561 = vpack.c.b16 %v2553, %v2545
    %v4562 = vpack.c.b16 %v2554, %v2546
    %v4563 = vpack.c.b16 %v2555, %v2547
    %v4564 = vpack.c.b16 %v2556, %v2548
    %v4565 = vpack.c.b16 %v2557, %v2549
    %v4566 = vpack.c.b16 %v2566, %v2558
    %v4567 = vpack.c.b16 %v2567, %v2559
    %v4568 = vpack.c.b16 %v2568, %v2560
    %v4569 = vpack.c.b16 %v2569, %v2561
    %v4570 = vpack.c.b16 %v2570, %v2562
    %v4571 = vpack.c.b16 %v2571, %v2563
    %v4572 = vpack.c.b16 %v2572, %v2564
    %v4573 = vpack.c.b16 %v2573, %v2565
    %v4574 = vpack.c.b16 %v2582, %v2574
    %v4575 = vpack.c.b16 %v2583, %v2575
    %v4576 = vpack.c.b16 %v2584, %v2576
    %v4577 = vpack.c.b16 %v2585, %v2577
    %v4578 = vpack.c.b16 %v2586, %v2578
    %v4579 = vpack.c.b16 %v2587, %v2579
    %v4580 = vpack.c.b16 %v2588, %v2580
    %v4581 = vpack.c.b16 %v2589, %v2581
    %v4582 = vpack.c.b16 %v2598, %v2590
    %v4583 = vpack.c.b16 %v2599, %v2591
    %v4584 = vpack.c.b16 %v2600, %v2592
    %v4585 = vpack.c.b16 %v2601, %v2593
    %v4586 = vpack.c.b16 %v2602, %v2594
    %v4587 = vpack.c.b16 %v2603, %v2595
    %v4588 = vpack.c.b16 %v2604, %v2596
    %v4589 = vpack.c.b16 %v2605, %v2597
    %v4590 = vpack.c.b16 %v2614, %v2606
    %v4591 = vpack.c.b16 %v2615, %v2607
    %v4592 = vpack.c.b16 %v2616, %v2608
    %v4593 = vpack.c.b16 %v2617, %v2609
    %v4594 = vpack.c.b16 %v2618, %v2610
    %v4595 = vpack.c.b16 %v2619, %v2611
    %v4596 = vpack.c.b16 %v2620, %v2612
    %v4597 = vpack.c.b16 %v2621, %v2613
    %v4598 = vpack.c.b16 %v2630, %v2622
    %v4599 = vpack.c.b16 %v2631, %v2623
    %v4600 = vpack.c.b16 %v2632, %v2624
    %v4601 = vpack.c.b16 %v2633, %v2625
    %v4602 = vpack.c.b16 %v2634, %v2626
    %v4603 = vpack.c.b16 %v2635, %v2627
    %v4604 = vpack.c.b16 %v2636, %v2628
    %v4605 = vpack.c.b16 %v2637, %v2629
    %v4606 = vpack.c.b16 %v2646, %v2638
    %v4607 = vpack.c.b16 %v2647, %v2639
    %v4608 = vpack.c.b16 %v2648, %v2640
    %v4609 = vpack.c.b16 %v2649, %v2641
    %v4610 = vpack.c.b16 %v2650, %v2642
    %v4611 = vpack.c.b16 %v2651, %v2643
    %v4612 = vpack.c.b16 %v2652, %v2644
    %v4613 = vpack.c.b16 %v2653, %v2645
    %v4614 = vpack.c.b16 %v2662, %v2654
    %v4615 = vpack.c.b16 %v2663, %v2655
    %v4616 = vpack.c.b16 %v2664, %v2656
    %v4617 = vpack.c.b16 %v2665, %v2657
    %v4618 = vpack.c.b16 %v2666, %v2658
    %v4619 = vpack.c.b16 %v2667, %v2659
    %v4620 = vpack.c.b16 %v2668, %v2660
    %v4621 = vpack.c.b16 %v2669, %v2661
    %v4622 = vpack.c.b16 %v2678, %v2670
    %v4623 = vpack.c.b16 %v2679, %v2671
    %v4624 = vpack.c.b16 %v2680, %v2672
    %v4625 = vpack.c.b16 %v2681, %v2673
    %v4626 = vpack.c.b16 %v2682, %v2674
    %v4627 = vpack.c.b16 %v2683, %v2675
    %v4628 = vpack.c.b16 %v2684, %v2676
    %v4629 = vpack.c.b16 %v2685, %v2677
    %v4630 = vpack.c.b16 %v2694, %v2686
    %v4631 = vpack.c.b16 %v2695, %v2687
    %v4632 = vpack.c.b16 %v2696, %v2688
    %v4633 = vpack.c.b16 %v2697, %v2689
    %v4634 = vpack.c.b16 %v2698, %v2690
    %v4635 = vpack.c.b16 %v2699, %v2691
    %v4636 = vpack.c.b16 %v2700, %v2692
    %v4637 = vpack.c.b16 %v2701, %v2693
    %v4638 = vpack.c.b16 %v2710, %v2702
    %v4639 = vpack.c.b16 %v2711, %v2703
    %v4640 = vpack.c.b16 %v2712, %v2704
    %v4641 = vpack.c.b16 %v2713, %v2705
    %v4642 = vpack.c.b16 %v2714, %v2706
    %v4643 = vpack.c.b16 %v2715, %v2707
    %v4644 = vpack.c.b16 %v2716, %v2708
    %v4645 = vpack.c.b16 %v2717, %v2709
    %v4646 = vpack.c.b16 %v2726, %v2718
    %v4647 = vpack.c.b16 %v2727, %v2719
    %v4648 = vpack.c.b16 %v2728, %v2720
    %v4649 = vpack.c.b16 %v2729, %v2721
    %v4650 = vpack.c.b16 %v2730, %v2722
    %v4651 = vpack.c.b16 %v2731, %v2723
    %v4652 = vpack.c.b16 %v2732, %v2724
    %v4653 = vpack.c.b16 %v2733, %v2725
    %v4654 = vpack.c.b16 %v2742, %v2734
    %v4655 = vpack.c.b16 %v2743, %v2735
    %v4656 = vpack.c.b16 %v2744, %v2736
    %v4657 = vpack.c.b16 %v2745, %v2737
    %v4658 = vpack.c.b16 %v2746, %v2738
    %v4659 = vpack.c.b16 %v2747, %v2739
    %v4660 = vpack.c.b16 %v2748, %v2740
    %v4661 = vpack.c.b16 %v2749, %v2741
    %v4662 = vpack.c.b16 %v2758, %v2750
    %v4663 = vpack.c.b16 %v2759, %v2751
    %v4664 = vpack.c.b16 %v2760, %v2752
    %v4665 = vpack.c.b16 %v2761, %v2753
    %v4666 = vpack.c.b16 %v2762, %v2754
    %v4667 = vpack.c.b16 %v2763, %v2755
    %v4668 = vpack.c.b16 %v2764, %v2756
    %v4669 = vpack.c.b16 %v2765, %v2757
    %v4670 = vpack.c.b16 %v2774, %v2766
    %v4671 = vpack.c.b16 %v2775, %v2767
    %v4672 = vpack.c.b16 %v2776, %v2768
    %v4673 = vpack.c.b16 %v2777, %v2769
    %v4674 = vpack.c.b16 %v2778, %v2770
    %v4675 = vpack.c.b16 %v2779, %v2771
    %v4676 = vpack.c.b16 %v2780, %v2772
    %v4677 = vpack.c.b16 %v2781, %v2773
    %v4678 = vpack.c.b16 %v2790, %v2782
    %v4679 = vpack.c.b16 %v2791, %v2783
    %v4680 = vpack.c.b16 %v2792, %v2784
    %v4681 = vpack.c.b16 %v2793, %v2785
    %v4682 = vpack.c.b16 %v2794, %v2786
    %v4683 = vpack.c.b16 %v2795, %v2787
    %v4684 = vpack.c.b16 %v2796, %v2788
    %v4685 = vpack.c.b16 %v2797, %v2789
    %v4686 = vpack.c.b16 %v2806, %v2798
    %v4687 = vpack.c.b16 %v2807, %v2799
    %v4688 = vpack.c.b16 %v2808, %v2800
    %v4689 = vpack.c.b16 %v2809, %v2801
    %v4690 = vpack.c.b16 %v2810, %v2802
    %v4691 = vpack.c.b16 %v2811, %v2803
    %v4692 = vpack.c.b16 %v2812, %v2804
    %v4693 = vpack.c.b16 %v2813, %v2805
    %v4694 = vpack.c.b16 %v2822, %v2814
    %v4695 = vpack.c.b16 %v2823, %v2815
    %v4696 = vpack.c.b16 %v2824, %v2816
    %v4697 = vpack.c.b16 %v2825, %v2817
    %v4698 = vpack.c.b16 %v2826, %v2818
    %v4699 = vpack.c.b16 %v2827, %v2819
    %v4700 = vpack.c.b16 %v2828, %v2820
    %v4701 = vpack.c.b16 %v2829, %v2821
    %v4702 = vpack.c.b16 %v2838, %v2830
    %v4703 = vpack.c.b16 %v2839, %v2831
    %v4704 = vpack.c.b16 %v2840, %v2832
    %v4705 = vpack.c.b16 %v2841, %v2833
    %v4706 = vpack.c.b16 %v2842, %v2834
    %v4707 = vpack.c.b16 %v2843, %v2835
    %v4708 = vpack.c.b16 %v2844, %v2836
    %v4709 = vpack.c.b16 %v2845, %v2837
    %v4710 = vpack.c.b16 %v2854, %v2846
    %v4711 = vpack.c.b16 %v2855, %v2847
    %v4712 = vpack.c.b16 %v2856, %v2848
    %v4713 = vpack.c.b16 %v2857, %v2849
    %v4714 = vpack.c.b16 %v2858, %v2850
    %v4715 = vpack.c.b16 %v2859, %v2851
    %v4716 = vpack.c.b16 %v2860, %v2852
    %v4717 = vpack.c.b16 %v2861, %v2853
    %v4718 = vpack.c.b16 %v2870, %v2862
    %v4719 = vpack.c.b16 %v2871, %v2863
    %v4720 = vpack.c.b16 %v2872, %v2864
    %v4721 = vpack.c.b16 %v2873, %v2865
    %v4722 = vpack.c.b16 %v2874, %v2866
    %v4723 = vpack.c.b16 %v2875, %v2867
    %v4724 = vpack.c.b16 %v2876, %v2868
    %v4725 = vpack.c.b16 %v2877, %v2869
    %v4726 = vpack.c.b16 %v2886, %v2878
    %v4727 = vpack.c.b16 %v2887, %v2879
    %v4728 = vpack.c.b16 %v2888, %v2880
    %v4729 = vpack.c.b16 %v2889, %v2881
    %v4730 = vpack.c.b16 %v2890, %v2882
    %v4731 = vpack.c.b16 %v2891, %v2883
    %v4732 = vpack.c.b16 %v2892, %v2884
    %v4733 = vpack.c.b16 %v2893, %v2885
    %v4734 = vpack.c.b16 %v2902, %v2894
    %v4735 = vpack.c.b16 %v2903, %v2895
    %v4736 = vpack.c.b16 %v2904, %v2896
    %v4737 = vpack.c.b16 %v2905, %v2897
    %v4738 = vpack.c.b16 %v2906, %v2898
    %v4739 = vpack.c.b16 %v2907, %v2899
    %v4740 = vpack.c.b16 %v2908, %v2900
    %v4741 = vpack.c.b16 %v2909, %v2901
    %v4742 = vpack.c.b16 %v2918, %v2910
    %v4743 = vpack.c.b16 %v2919, %v2911
    %v4744 = vpack.c.b16 %v2920, %v2912
    %v4745 = vpack.c.b16 %v2921, %v2913
    %v4746 = vpack.c.b16 %v2922, %v2914
    %v4747 = vpack.c.b16 %v2923, %v2915
    %v4748 = vpack.c.b16 %v2924, %v2916
    %v4749 = vpack.c.b16 %v2925, %v2917
    %v4750 = vpack.c.b16 %v2934, %v2926
    %v4751 = vpack.c.b16 %v2935, %v2927
    %v4752 = vpack.c.b16 %v2936, %v2928
    %v4753 = vpack.c.b16 %v2937, %v2929
    %v4754 = vpack.c.b16 %v2938, %v2930
    %v4755 = vpack.c.b16 %v2939, %v2931
    %v4756 = vpack.c.b16 %v2940, %v2932
    %v4757 = vpack.c.b16 %v2941, %v2933
    %v4758 = vpack.c.b16 %v2950, %v2942
    %v4759 = vpack.c.b16 %v2951, %v2943
    %v4760 = vpack.c.b16 %v2952, %v2944
    %v4761 = vpack.c.b16 %v2953, %v2945
    %v4762 = vpack.c.b16 %v2954, %v2946
    %v4763 = vpack.c.b16 %v2955, %v2947
    %v4764 = vpack.c.b16 %v2956, %v2948
    %v4765 = vpack.c.b16 %v2957, %v2949
    %v4766 = vpack.c.b16 %v2966, %v2958
    %v4767 = vpack.c.b16 %v2967, %v2959
    %v4768 = vpack.c.b16 %v2968, %v2960
    %v4769 = vpack.c.b16 %v2969, %v2961
    %v4770 = vpack.c.b16 %v2970, %v2962
    %v4771 = vpack.c.b16 %v2971, %v2963
    %v4772 = vpack.c.b16 %v2972, %v2964
    %v4773 = vpack.c.b16 %v2973, %v2965
    %v4774 = vpack.c.b16 %v2982, %v2974
    %v4775 = vpack.c.b16 %v2983, %v2975
    %v4776 = vpack.c.b16 %v2984, %v2976
    %v4777 = vpack.c.b16 %v2985, %v2977
    %v4778 = vpack.c.b16 %v2986, %v2978
    %v4779 = vpack.c.b16 %v2987, %v2979
    %v4780 = vpack.c.b16 %v2988, %v2980
    %v4781 = vpack.c.b16 %v2989, %v2981
    %v4782 = vpack.c.b16 %v2998, %v2990
    %v4783 = vpack.c.b16 %v2999, %v2991
    %v4784 = vpack.c.b16 %v3000, %v2992
    %v4785 = vpack.c.b16 %v3001, %v2993
    %v4786 = vpack.c.b16 %v3002, %v2994
    %v4787 = vpack.c.b16 %v3003, %v2995
    %v4788 = vpack.c.b16 %v3004, %v2996
    %v4789 = vpack.c.b16 %v3005, %v2997
    %v4790 = vpack.c.b16 %v3014, %v3006
    %v4791 = vpack.c.b16 %v3015, %v3007
    %v4792 = vpack.c.b16 %v3016, %v3008
    %v4793 = vpack.c.b16 %v3017, %v3009
    %v4794 = vpack.c.b16 %v3018, %v3010
    %v4795 = vpack.c.b16 %v3019, %v3011
    %v4796 = vpack.c.b16 %v3020, %v3012
    %v4797 = vpack.c.b16 %v3021, %v3013
    %v4798 = vpack.c.b16 %v3030, %v3022
    %v4799 = vpack.c.b16 %v3031, %v3023
    %v4800 = vpack.c.b16 %v3032, %v3024
    %v4801 = vpack.c.b16 %v3033, %v3025
    %v4802 = vpack.c.b16 %v3034, %v3026
    %v4803 = vpack.c.b16 %v3035, %v3027
    %v4804 = vpack.c.b16 %v3036, %v3028
    %v4805 = vpack.c.b16 %v3037, %v3029
    %v4806 = vpack.c.b16 %v3046, %v3038
    %v4807 = vpack.c.b16 %v3047, %v3039
    %v4808 = vpack.c.b16 %v3048, %v3040
    %v4809 = vpack.c.b16 %v3049, %v3041
    %v4810 = vpack.c.b16 %v3050, %v3042
    %v4811 = vpack.c.b16 %v3051, %v3043
    %v4812 = vpack.c.b16 %v3052, %v3044
    %v4813 = vpack.c.b16 %v3053, %v3045
    %v4814 = vpack.c.b16 %v3062, %v3054
    %v4815 = vpack.c.b16 %v3063, %v3055
    %v4816 = vpack.c.b16 %v3064, %v3056
    %v4817 = vpack.c.b16 %v3065, %v3057
    %v4818 = vpack.c.b16 %v3066, %v3058
    %v4819 = vpack.c.b16 %v3067, %v3059
    %v4820 = vpack.c.b16 %v3068, %v3060
    %v4821 = vpack.c.b16 %v3069, %v3061
    %v4822 = vpack.c.b16 %v3078, %v3070
    %v4823 = vpack.c.b16 %v3079, %v3071
    %v4824 = vpack.c.b16 %v3080, %v3072
    %v4825 = vpack.c.b16 %v3081, %v3073
    %v4826 = vpack.c.b16 %v3082, %v3074
    %v4827 = vpack.c.b16 %v3083, %v3075
    %v4828 = vpack.c.b16 %v3084, %v3076
    %v4829 = vpack.c.b16 %v3085, %v3077
    %v4830 = vpack.c.b16 %v3094, %v3086
    %v4831 = vpack.c.b16 %v3095, %v3087
    %v4832 = vpack.c.b16 %v3096, %v3088
    %v4833 = vpack.c.b16 %v3097, %v3089
    %v4834 = vpack.c.b16 %v3098, %v3090
    %v4835 = vpack.c.b16 %v3099, %v3091
    %v4836 = vpack.c.b16 %v3100, %v3092
    %v4837 = vpack.c.b16 %v3101, %v3093
    %v4838 = vpack.c.b16 %v3110, %v3102
    %v4839 = vpack.c.b16 %v3111, %v3103
    %v4840 = vpack.c.b16 %v3112, %v3104
    %v4841 = vpack.c.b16 %v3113, %v3105
    %v4842 = vpack.c.b16 %v3114, %v3106
    %v4843 = vpack.c.b16 %v3115, %v3107
    %v4844 = vpack.c.b16 %v3116, %v3108
    %v4845 = vpack.c.b16 %v3117, %v3109
    %v4846 = vpack.c.b16 %v3126, %v3118
    %v4847 = vpack.c.b16 %v3127, %v3119
    %v4848 = vpack.c.b16 %v3128, %v3120
    %v4849 = vpack.c.b16 %v3129, %v3121
    %v4850 = vpack.c.b16 %v3130, %v3122
    %v4851 = vpack.c.b16 %v3131, %v3123
    %v4852 = vpack.c.b16 %v3132, %v3124
    %v4853 = vpack.c.b16 %v3133, %v3125
    %v4854 = vpack.c.b16 %v3142, %v3134
    %v4855 = vpack.c.b16 %v3143, %v3135
    %v4856 = vpack.c.b16 %v3144, %v3136
    %v4857 = vpack.c.b16 %v3145, %v3137
    %v4858 = vpack.c.b16 %v3146, %v3138
    %v4859 = vpack.c.b16 %v3147, %v3139
    %v4860 = vpack.c.b16 %v3148, %v3140
    %v4861 = vpack.c.b16 %v3149, %v3141
    %v4862 = vpack.c.b16 %v3158, %v3150
    %v4863 = vpack.c.b16 %v3159, %v3151
    %v4864 = vpack.c.b16 %v3160, %v3152
    %v4865 = vpack.c.b16 %v3161, %v3153
    %v4866 = vpack.c.b16 %v3162, %v3154
    %v4867 = vpack.c.b16 %v3163, %v3155
    %v4868 = vpack.c.b16 %v3164, %v3156
    %v4869 = vpack.c.b16 %v3165, %v3157
    %v4870 = vpack.c.b16 %v3174, %v3166
    %v4871 = vpack.c.b16 %v3175, %v3167
    %v4872 = vpack.c.b16 %v3176, %v3168
    %v4873 = vpack.c.b16 %v3177, %v3169
    %v4874 = vpack.c.b16 %v3178, %v3170
    %v4875 = vpack.c.b16 %v3179, %v3171
    %v4876 = vpack.c.b16 %v3180, %v3172
    %v4877 = vpack.c.b16 %v3181, %v3173
    %v4878 = vpack.c.b16 %v3190, %v3182
    %v4879 = vpack.c.b16 %v3191, %v3183
    %v4880 = vpack.c.b16 %v3192, %v3184
    %v4881 = vpack.c.b16 %v3193, %v3185
    %v4882 = vpack.c.b16 %v3194, %v3186
    %v4883 = vpack.c.b16 %v3195, %v3187
    %v4884 = vpack.c.b16 %v3196, %v3188
    %v4885 = vpack.c.b16 %v3197, %v3189
    %v4886 = vpack.c.b16 %v3206, %v3198
    %v4887 = vpack.c.b16 %v3207, %v3199
    %v4888 = vpack.c.b16 %v3208, %v3200
    %v4889 = vpack.c.b16 %v3209, %v3201
    %v4890 = vpack.c.b16 %v3210, %v3202
    %v4891 = vpack.c.b16 %v3211, %v3203
    %v4892 = vpack.c.b16 %v3212, %v3204
    %v4893 = vpack.c.b16 %v3213, %v3205
    %v4894 = vpack.c.b16 %v3222, %v3214
    %v4895 = vpack.c.b16 %v3223, %v3215
    %v4896 = vpack.c.b16 %v3224, %v3216
    %v4897 = vpack.c.b16 %v3225, %v3217
    %v4898 = vpack.c.b16 %v3226, %v3218
    %v4899 = vpack.c.b16 %v3227, %v3219
    %v4900 = vpack.c.b16 %v3228, %v3220
    %v4901 = vpack.c.b16 %v3229, %v3221
    %v4902 = vpack.c.b16 %v3238, %v3230
    %v4903 = vpack.c.b16 %v3239, %v3231
    %v4904 = vpack.c.b16 %v3240, %v3232
    %v4905 = vpack.c.b16 %v3241, %v3233
    %v4906 = vpack.c.b16 %v3242, %v3234
    %v4907 = vpack.c.b16 %v3243, %v3235
    %v4908 = vpack.c.b16 %v3244, %v3236
    %v4909 = vpack.c.b16 %v3245, %v3237
    %v4910 = vpack.c.b16 %v3254, %v3246
    %v4911 = vpack.c.b16 %v3255, %v3247
    %v4912 = vpack.c.b16 %v3256, %v3248
    %v4913 = vpack.c.b16 %v3257, %v3249
    %v4914 = vpack.c.b16 %v3258, %v3250
    %v4915 = vpack.c.b16 %v3259, %v3251
    %v4916 = vpack.c.b16 %v3260, %v3252
    %v4917 = vpack.c.b16 %v3261, %v3253
    %v4918 = vpack.c.b16 %v3270, %v3262
    %v4919 = vpack.c.b16 %v3271, %v3263
    %v4920 = vpack.c.b16 %v3272, %v3264
    %v4921 = vpack.c.b16 %v3273, %v3265
    %v4922 = vpack.c.b16 %v3274, %v3266
    %v4923 = vpack.c.b16 %v3275, %v3267
    %v4924 = vpack.c.b16 %v3276, %v3268
    %v4925 = vpack.c.b16 %v3277, %v3269
    %v4926 = vpack.c.b16 %v3286, %v3278
    %v4927 = vpack.c.b16 %v3287, %v3279
    %v4928 = vpack.c.b16 %v3288, %v3280
    %v4929 = vpack.c.b16 %v3289, %v3281
    %v4930 = vpack.c.b16 %v3290, %v3282
    %v4931 = vpack.c.b16 %v3291, %v3283
    %v4932 = vpack.c.b16 %v3292, %v3284
    %v4933 = vpack.c.b16 %v3293, %v3285
    %v4934 = vpack.c.b16 %v3302, %v3294
    %v4935 = vpack.c.b16 %v3303, %v3295
    %v4936 = vpack.c.b16 %v3304, %v3296
    %v4937 = vpack.c.b16 %v3305, %v3297
    %v4938 = vpack.c.b16 %v3306, %v3298
    %v4939 = vpack.c.b16 %v3307, %v3299
    %v4940 = vpack.c.b16 %v3308, %v3300
    %v4941 = vpack.c.b16 %v3309, %v3301
    %v4942 = vpack.c.b16 %v3318, %v3310
    %v4943 = vpack.c.b16 %v3319, %v3311
    %v4944 = vpack.c.b16 %v3320, %v3312
    %v4945 = vpack.c.b16 %v3321, %v3313
    %v4946 = vpack.c.b16 %v3322, %v3314
    %v4947 = vpack.c.b16 %v3323, %v3315
    %v4948 = vpack.c.b16 %v3324, %v3316
    %v4949 = vpack.c.b16 %v3325, %v3317
    %v4950 = vpack.c.b16 %v3334, %v3326
    %v4951 = vpack.c.b16 %v3335, %v3327
    %v4952 = vpack.c.b16 %v3336, %v3328
    %v4953 = vpack.c.b16 %v3337, %v3329
    %v4954 = vpack.c.b16 %v3338, %v3330
    %v4955 = vpack.c.b16 %v3339, %v3331
    %v4956 = vpack.c.b16 %v3340, %v3332
    %v4957 = vpack.c.b16 %v3341, %v3333
    %v4958 = vpack.c.b16 %v3350, %v3342
    %v4959 = vpack.c.b16 %v3351, %v3343
    %v4960 = vpack.c.b16 %v3352, %v3344
    %v4961 = vpack.c.b16 %v3353, %v3345
    %v4962 = vpack.c.b16 %v3354, %v3346
    %v4963 = vpack.c.b16 %v3355, %v3347
    %v4964 = vpack.c.b16 %v3356, %v3348
    %v4965 = vpack.c.b16 %v3357, %v3349
    %v4966 = vpack.c.b16 %v3366, %v3358
    %v4967 = vpack.c.b16 %v3367, %v3359
    %v4968 = vpack.c.b16 %v3368, %v3360
    %v4969 = vpack.c.b16 %v3369, %v3361
    %v4970 = vpack.c.b16 %v3370, %v3362
    %v4971 = vpack.c.b16 %v3371, %v3363
    %v4972 = vpack.c.b16 %v3372, %v3364
    %v4973 = vpack.c.b16 %v3373, %v3365
    %v4974 = vpack.c.b16 %v3382, %v3374
    %v4975 = vpack.c.b16 %v3383, %v3375
    %v4976 = vpack.c.b16 %v3384, %v3376
    %v4977 = vpack.c.b16 %v3385, %v3377
    %v4978 = vpack.c.b16 %v3386, %v3378
    %v4979 = vpack.c.b16 %v3387, %v3379
    %v4980 = vpack.c.b16 %v3388, %v3380
    %v4981 = vpack.c.b16 %v3389, %v3381
    %v4982 = vpack.c.b16 %v3398, %v3390
    %v4983 = vpack.c.b16 %v3399, %v3391
    %v4984 = vpack.c.b16 %v3400, %v3392
    %v4985 = vpack.c.b16 %v3401, %v3393
    %v4986 = vpack.c.b16 %v3402, %v3394
    %v4987 = vpack.c.b16 %v3403, %v3395
    %v4988 = vpack.c.b16 %v3404, %v3396
    %v4989 = vpack.c.b16 %v3405, %v3397
    %v4990 = vpack.c.b16 %v3414, %v3406
    %v4991 = vpack.c.b16 %v3415, %v3407
    %v4992 = vpack.c.b16 %v3416, %v3408
    %v4993 = vpack.c.b16 %v3417, %v3409
    %v4994 = vpack.c.b16 %v3418, %v3410
    %v4995 = vpack.c.b16 %v3419, %v3411
    %v4996 = vpack.c.b16 %v3420, %v3412
    %v4997 = vpack.c.b16 %v3421, %v3413
    %v4998 = vpack.c.b16 %v3430, %v3422
    %v4999 = vpack.c.b16 %v3431, %v3423
    %v5000 = vpack.c.b16 %v3432, %v3424
    %v5001 = vpack.c.b16 %v3433, %v3425
    %v5002 = vpack.c.b16 %v3434, %v3426
    %v5003 = vpack.c.b16 %v3435, %v3427
    %v5004 = vpack.c.b16 %v3436, %v3428
    %v5005 = vpack.c.b16 %v3437, %v3429
    %v5006 = vpack.c.b16 %v3446, %v3438
    %v5007 = vpack.c.b16 %v3447, %v3439
    %v5008 = vpack.c.b16 %v3448, %v3440
    %v5009 = vpack.c.b16 %v3449, %v3441
    %v5010 = vpack.c.b16 %v3450, %v3442
    %v5011 = vpack.c.b16 %v3451, %v3443
    %v5012 = vpack.c.b16 %v3452, %v3444
    %v5013 = vpack.c.b16 %v3453, %v3445
    %v5014 = vpack.c.b16 %v3462, %v3454
    %v5015 = vpack.c.b16 %v3463, %v3455
    %v5016 = vpack.c.b16 %v3464, %v3456
    %v5017 = vpack.c.b16 %v3465, %v3457
    %v5018 = vpack.c.b16 %v3466, %v3458
    %v5019 = vpack.c.b16 %v3467, %v3459
    %v5020 = vpack.c.b16 %v3468, %v3460
    %v5021 = vpack.c.b16 %v3469, %v3461
    %v5022 = vpack.c.b16 %v3478, %v3470
    %v5023 = vpack.c.b16 %v3479, %v3471
    %v5024 = vpack.c.b16 %v3480, %v3472
    %v5025 = vpack.c.b16 %v3481, %v3473
    %v5026 = vpack.c.b16 %v3482, %v3474
    %v5027 = vpack.c.b16 %v3483, %v3475
    %v5028 = vpack.c.b16 %v3484, %v3476
    %v5029 = vpack.c.b16 %v3485, %v3477
    %v5030 = vpack.c.b16 %v3494, %v3486
    %v5031 = vpack.c.b16 %v3495, %v3487
    %v5032 = vpack.c.b16 %v3496, %v3488
    %v5033 = vpack.c.b16 %v3497, %v3489
    %v5034 = vpack.c.b16 %v3498, %v3490
    %v5035 = vpack.c.b16 %v3499, %v3491
    %v5036 = vpack.c.b16 %v3500, %v3492
    %v5037 = vpack.c.b16 %v3501, %v3493
    %v5038 = vpack.c.b16 %v3510, %v3502
    %v5039 = vpack.c.b16 %v3511, %v3503
    %v5040 = vpack.c.b16 %v3512, %v3504
    %v5041 = vpack.c.b16 %v3513, %v3505
    %v5042 = vpack.c.b16 %v3514, %v3506
    %v5043 = vpack.c.b16 %v3515, %v3507
    %v5044 = vpack.c.b16 %v3516, %v3508
    %v5045 = vpack.c.b16 %v3517, %v3509
    %v5046 = vpack.c.b16 %v3526, %v3518
    %v5047 = vpack.c.b16 %v3527, %v3519
    %v5048 = vpack.c.b16 %v3528, %v3520
    %v5049 = vpack.c.b16 %v3529, %v3521
    %v5050 = vpack.c.b16 %v3530, %v3522
    %v5051 = vpack.c.b16 %v3531, %v3523
    %v5052 = vpack.c.b16 %v3532, %v3524
    %v5053 = vpack.c.b16 %v3533, %v3525
    %v5054 = vpack.c.b16 %v3542, %v3534
    %v5055 = vpack.c.b16 %v3543, %v3535
    %v5056 = vpack.c.b16 %v3544, %v3536
    %v5057 = vpack.c.b16 %v3545, %v3537
    %v5058 = vpack.c.b16 %v3546, %v3538
    %v5059 = vpack.c.b16 %v3547, %v3539
    %v5060 = vpack.c.b16 %v3548, %v3540
    %v5061 = vpack.c.b16 %v3549, %v3541
    %v5062 = vpack.c.b16 %v3558, %v3550
    %v5063 = vpack.c.b16 %v3559, %v3551
    %v5064 = vpack.c.b16 %v3560, %v3552
    %v5065 = vpack.c.b16 %v3561, %v3553
    %v5066 = vpack.c.b16 %v3562, %v3554
    %v5067 = vpack.c.b16 %v3563, %v3555
    %v5068 = vpack.c.b16 %v3564, %v3556
    %v5069 = vpack.c.b16 %v3565, %v3557
    %v5070 = vpack.c.b16 %v3574, %v3566
    %v5071 = vpack.c.b16 %v3575, %v3567
    %v5072 = vpack.c.b16 %v3576, %v3568
    %v5073 = vpack.c.b16 %v3577, %v3569
    %v5074 = vpack.c.b16 %v3578, %v3570
    %v5075 = vpack.c.b16 %v3579, %v3571
    %v5076 = vpack.c.b16 %v3580, %v3572
    %v5077 = vpack.c.b16 %v3581, %v3573
    %v5078 = vpack.c.b16 %v3590, %v3582
    %v5079 = vpack.c.b16 %v3591, %v3583
    %v5080 = vpack.c.b16 %v3592, %v3584
    %v5081 = vpack.c.b16 %v3593, %v3585
    %v5082 = vpack.c.b16 %v3594, %v3586
    %v5083 = vpack.c.b16 %v3595, %v3587
    %v5084 = vpack.c.b16 %v3596, %v3588
    %v5085 = vpack.c.b16 %v3597, %v3589
    %v5086 = vpack.c.b16 %v3606, %v3598
    %v5087 = vpack.c.b16 %v3607, %v3599
    %v5088 = vpack.c.b16 %v3608, %v3600
    %v5089 = vpack.c.b16 %v3609, %v3601
    %v5090 = vpack.c.b16 %v3610, %v3602
    %v5091 = vpack.c.b16 %v3611, %v3603
    %v5092 = vpack.c.b16 %v3612, %v3604
    %v5093 = vpack.c.b16 %v3613, %v3605
    %v5094 = vpack.c.b16 %v3622, %v3614
    %v5095 = vpack.c.b16 %v3623, %v3615
    %v5096 = vpack.c.b16 %v3624, %v3616
    %v5097 = vpack.c.b16 %v3625, %v3617
    %v5098 = vpack.c.b16 %v3626, %v3618
    %v5099 = vpack.c.b16 %v3627, %v3619
    %v5100 = vpack.c.b16 %v3628, %v3620
    %v5101 = vpack.c.b16 %v3629, %v3621
    %v5102 = vpack.c.b16 %v3638, %v3630
    %v5103 = vpack.c.b16 %v3639, %v3631
    %v5104 = vpack.c.b16 %v3640, %v3632
    %v5105 = vpack.c.b16 %v3641, %v3633
    %v5106 = vpack.c.b16 %v3642, %v3634
    %v5107 = vpack.c.b16 %v3643, %v3635
    %v5108 = vpack.c.b16 %v3644, %v3636
    %v5109 = vpack.c.b16 %v3645, %v3637
    %v5110 = vpack.c.b16 %v3654, %v3646
    %v5111 = vpack.c.b16 %v3655, %v3647
    %v5112 = vpack.c.b16 %v3656, %v3648
    %v5113 = vpack.c.b16 %v3657, %v3649
    %v5114 = vpack.c.b16 %v3658, %v3650
    %v5115 = vpack.c.b16 %v3659, %v3651
    %v5116 = vpack.c.b16 %v3660, %v3652
    %v5117 = vpack.c.b16 %v3661, %v3653
    %v5118 = vpack.c.b16 %v3670, %v3662
    %v5119 = vpack.c.b16 %v3671, %v3663
    %v5120 = vpack.c.b16 %v3672, %v3664
    %v5121 = vpack.c.b16 %v3673, %v3665
    %v5122 = vpack.c.b16 %v3674, %v3666
    %v5123 = vpack.c.b16 %v3675, %v3667
    %v5124 = vpack.c.b16 %v3676, %v3668
    %v5125 = vpack.c.b16 %v3677, %v3669
    %v5126 = vpack.c.b16 %v3686, %v3678
    %v5127 = vpack.c.b16 %v3687, %v3679
    %v5128 = vpack.c.b16 %v3688, %v3680
    %v5129 = vpack.c.b16 %v3689, %v3681
    %v5130 = vpack.c.b16 %v3690, %v3682
    %v5131 = vpack.c.b16 %v3691, %v3683
    %v5132 = vpack.c.b16 %v3692, %v3684
    %v5133 = vpack.c.b16 %v3693, %v3685
    %v5134 = vpack.c.b16 %v3702, %v3694
    %v5135 = vpack.c.b16 %v3703, %v3695
    %v5136 = vpack.c.b16 %v3704, %v3696
    %v5137 = vpack.c.b16 %v3705, %v3697
    %v5138 = vpack.c.b16 %v3706, %v3698
    %v5139 = vpack.c.b16 %v3707, %v3699
    %v5140 = vpack.c.b16 %v3708, %v3700
    %v5141 = vpack.c.b16 %v3709, %v3701
    %v5142 = vpack.c.b16 %v3718, %v3710
    %v5143 = vpack.c.b16 %v3719, %v3711
    %v5144 = vpack.c.b16 %v3720, %v3712
    %v5145 = vpack.c.b16 %v3721, %v3713
    %v5146 = vpack.c.b16 %v3722, %v3714
    %v5147 = vpack.c.b16 %v3723, %v3715
    %v5148 = vpack.c.b16 %v3724, %v3716
    %v5149 = vpack.c.b16 %v3725, %v3717
    %v5150 = vpack.c.b16 %v3734, %v3726
    %v5151 = vpack.c.b16 %v3735, %v3727
    %v5152 = vpack.c.b16 %v3736, %v3728
    %v5153 = vpack.c.b16 %v3737, %v3729
    %v5154 = vpack.c.b16 %v3738, %v3730
    %v5155 = vpack.c.b16 %v3739, %v3731
    %v5156 = vpack.c.b16 %v3740, %v3732
    %v5157 = vpack.c.b16 %v3741, %v3733
    %v5158 = vpack.c.b16 %v3750, %v3742
    %v5159 = vpack.c.b16 %v3751, %v3743
    %v5160 = vpack.c.b16 %v3752, %v3744
    %v5161 = vpack.c.b16 %v3753, %v3745
    %v5162 = vpack.c.b16 %v3754, %v3746
    %v5163 = vpack.c.b16 %v3755, %v3747
    %v5164 = vpack.c.b16 %v3756, %v3748
    %v5165 = vpack.c.b16 %v3757, %v3749
    %v5166 = vpack.c.b16 %v3766, %v3758
    %v5167 = vpack.c.b16 %v3767, %v3759
    %v5168 = vpack.c.b16 %v3768, %v3760
    %v5169 = vpack.c.b16 %v3769, %v3761
    %v5170 = vpack.c.b16 %v3770, %v3762
    %v5171 = vpack.c.b16 %v3771, %v3763
    %v5172 = vpack.c.b16 %v3772, %v3764
    %v5173 = vpack.c.b16 %v3773, %v3765
    %v5174 = vpack.c.b16 %v3782, %v3774
    %v5175 = vpack.c.b16 %v3783, %v3775
    %v5176 = vpack.c.b16 %v3784, %v3776
    %v5177 = vpack.c.b16 %v3785, %v3777
    %v5178 = vpack.c.b16 %v3786, %v3778
    %v5179 = vpack.c.b16 %v3787, %v3779
    %v5180 = vpack.c.b16 %v3788, %v3780
    %v5181 = vpack.c.b16 %v3789, %v3781
    %v5182 = vpack.c.b16 %v3798, %v3790
    %v5183 = vpack.c.b16 %v3799, %v3791
    %v5184 = vpack.c.b16 %v3800, %v3792
    %v5185 = vpack.c.b16 %v3801, %v3793
    %v5186 = vpack.c.b16 %v3802, %v3794
    %v5187 = vpack.c.b16 %v3803, %v3795
    %v5188 = vpack.c.b16 %v3804, %v3796
    %v5189 = vpack.c.b16 %v3805, %v3797
    %v5190 = vpack.c.b16 %v3814, %v3806
    %v5191 = vpack.c.b16 %v3815, %v3807
    %v5192 = vpack.c.b16 %v3816, %v3808
    %v5193 = vpack.c.b16 %v3817, %v3809
    %v5194 = vpack.c.b16 %v3818, %v3810
    %v5195 = vpack.c.b16 %v3819, %v3811
    %v5196 = vpack.c.b16 %v3820, %v3812
    %v5197 = vpack.c.b16 %v3821, %v3813
    %v5198 = vpack.c.b16 %v3830, %v3822
    %v5199 = vpack.c.b16 %v3831, %v3823
    %v5200 = vpack.c.b16 %v3832, %v3824
    %v5201 = vpack.c.b16 %v3833, %v3825
    %v5202 = vpack.c.b16 %v3834, %v3826
    %v5203 = vpack.c.b16 %v3835, %v3827
    %v5204 = vpack.c.b16 %v3836, %v3828
    %v5205 = vpack.c.b16 %v3837, %v3829
    %v5206 = vpack.c.b16 %v3846, %v3838
    %v5207 = vpack.c.b16 %v3847, %v3839
    %v5208 = vpack.c.b16 %v3848, %v3840
    %v5209 = vpack.c.b16 %v3849, %v3841
    %v5210 = vpack.c.b16 %v3850, %v3842
    %v5211 = vpack.c.b16 %v3851, %v3843
    %v5212 = vpack.c.b16 %v3852, %v3844
    %v5213 = vpack.c.b16 %v3853, %v3845
    %v5214 = vpack.c.b16 %v3862, %v3854
    %v5215 = vpack.c.b16 %v3863, %v3855
    %v5216 = vpack.c.b16 %v3864, %v3856
    %v5217 = vpack.c.b16 %v3865, %v3857
    %v5218 = vpack.c.b16 %v3866, %v3858
    %v5219 = vpack.c.b16 %v3867, %v3859
    %v5220 = vpack.c.b16 %v3868, %v3860
    %v5221 = vpack.c.b16 %v3869, %v3861
    %v5222 = vpack.c.b16 %v3878, %v3870
    %v5223 = vpack.c.b16 %v3879, %v3871
    %v5224 = vpack.c.b16 %v3880, %v3872
    %v5225 = vpack.c.b16 %v3881, %v3873
    %v5226 = vpack.c.b16 %v3882, %v3874
    %v5227 = vpack.c.b16 %v3883, %v3875
    %v5228 = vpack.c.b16 %v3884, %v3876
    %v5229 = vpack.c.b16 %v3885, %v3877
    %v5230 = vpack.c.b16 %v3894, %v3886
    %v5231 = vpack.c.b16 %v3895, %v3887
    %v5232 = vpack.c.b16 %v3896, %v3888
    %v5233 = vpack.c.b16 %v3897, %v3889
    %v5234 = vpack.c.b16 %v3898, %v3890
    %v5235 = vpack.c.b16 %v3899, %v3891
    %v5236 = vpack.c.b16 %v3900, %v3892
    %v5237 = vpack.c.b16 %v3901, %v3893
    %v5238 = vpack.c.b16 %v3910, %v3902
    %v5239 = vpack.c.b16 %v3911, %v3903
    %v5240 = vpack.c.b16 %v3912, %v3904
    %v5241 = vpack.c.b16 %v3913, %v3905
    %v5242 = vpack.c.b16 %v3914, %v3906
    %v5243 = vpack.c.b16 %v3915, %v3907
    %v5244 = vpack.c.b16 %v3916, %v3908
    %v5245 = vpack.c.b16 %v3917, %v3909
    %v5246 = vpack.c.b16 %v3926, %v3918
    %v5247 = vpack.c.b16 %v3927, %v3919
    %v5248 = vpack.c.b16 %v3928, %v3920
    %v5249 = vpack.c.b16 %v3929, %v3921
    %v5250 = vpack.c.b16 %v3930, %v3922
    %v5251 = vpack.c.b16 %v3931, %v3923
    %v5252 = vpack.c.b16 %v3932, %v3924
    %v5253 = vpack.c.b16 %v3933, %v3925
    %v5254 = vpack.c.b16 %v3942, %v3934
    %v5255 = vpack.c.b16 %v3943, %v3935
    %v5256 = vpack.c.b16 %v3944, %v3936
    %v5257 = vpack.c.b16 %v3945, %v3937
    %v5258 = vpack.c.b16 %v3946, %v3938
    %v5259 = vpack.c.b16 %v3947, %v3939
    %v5260 = vpack.c.b16 %v3948, %v3940
    %v5261 = vpack.c.b16 %v3949, %v3941
    %v5262 = vpack.c.b16 %v3958, %v3950
    %v5263 = vpack.c.b16 %v3959, %v3951
    %v5264 = vpack.c.b16 %v3960, %v3952
    %v5265 = vpack.c.b16 %v3961, %v3953
    %v5266 = vpack.c.b16 %v3962, %v3954
    %v5267 = vpack.c.b16 %v3963, %v3955
    %v5268 = vpack.c.b16 %v3964, %v3956
    %v5269 = vpack.c.b16 %v3965, %v3957
    %v5270 = vpack.c.b16 %v3974, %v3966
    %v5271 = vpack.c.b16 %v3975, %v3967
    %v5272 = vpack.c.b16 %v3976, %v3968
    %v5273 = vpack.c.b16 %v3977, %v3969
    %v5274 = vpack.c.b16 %v3978, %v3970
    %v5275 = vpack.c.b16 %v3979, %v3971
    %v5276 = vpack.c.b16 %v3980, %v3972
    %v5277 = vpack.c.b16 %v3981, %v3973
    %v5278 = vpack.c.b16 %v3990, %v3982
    %v5279 = vpack.c.b16 %v3991, %v3983
    %v5280 = vpack.c.b16 %v3992, %v3984
    %v5281 = vpack.c.b16 %v3993, %v3985
    %v5282 = vpack.c.b16 %v3994, %v3986
    %v5283 = vpack.c.b16 %v3995, %v3987
    %v5284 = vpack.c.b16 %v3996, %v3988
    %v5285 = vpack.c.b16 %v3997, %v3989
    %v5286 = vpack.c.b16 %v4006, %v3998
    %v5287 = vpack.c.b16 %v4007, %v3999
    %v5288 = vpack.c.b16 %v4008, %v4000
    %v5289 = vpack.c.b16 %v4009, %v4001
    %v5290 = vpack.c.b16 %v4010, %v4002
    %v5291 = vpack.c.b16 %v4011, %v4003
    %v5292 = vpack.c.b16 %v4012, %v4004
    %v5293 = vpack.c.b16 %v4013, %v4005
    %v5294 = vpack.c.b16 %v4022, %v4014
    %v5295 = vpack.c.b16 %v4023, %v4015
    %v5296 = vpack.c.b16 %v4024, %v4016
    %v5297 = vpack.c.b16 %v4025, %v4017
    %v5298 = vpack.c.b16 %v4026, %v4018
    %v5299 = vpack.c.b16 %v4027, %v4019
    %v5300 = vpack.c.b16 %v4028, %v4020
    %v5301 = vpack.c.b16 %v4029, %v4021
    %v5302 = vpack.c.b16 %v4038, %v4030
    %v5303 = vpack.c.b16 %v4039, %v4031
    %v5304 = vpack.c.b16 %v4040, %v4032
    %v5305 = vpack.c.b16 %v4041, %v4033
    %v5306 = vpack.c.b16 %v4042, %v4034
    %v5307 = vpack.c.b16 %v4043, %v4035
    %v5308 = vpack.c.b16 %v4044, %v4036
    %v5309 = vpack.c.b16 %v4045, %v4037
    %v5310 = vpack.c.b16 %v4054, %v4046
    %v5311 = vpack.c.b16 %v4055, %v4047
    %v5312 = vpack.c.b16 %v4056, %v4048
    %v5313 = vpack.c.b16 %v4057, %v4049
    %v5314 = vpack.c.b16 %v4058, %v4050
    %v5315 = vpack.c.b16 %v4059, %v4051
    %v5316 = vpack.c.b16 %v4060, %v4052
    %v5317 = vpack.c.b16 %v4061, %v4053
    %v5318 = vpack.c.b16 %v4070, %v4062
    %v5319 = vpack.c.b16 %v4071, %v4063
    %v5320 = vpack.c.b16 %v4072, %v4064
    %v5321 = vpack.c.b16 %v4073, %v4065
    %v5322 = vpack.c.b16 %v4074, %v4066
    %v5323 = vpack.c.b16 %v4075, %v4067
    %v5324 = vpack.c.b16 %v4076, %v4068
    %v5325 = vpack.c.b16 %v4077, %v4069
    %v5326 = vpack.c.b16 %v4086, %v4078
    %v5327 = vpack.c.b16 %v4087, %v4079
    %v5328 = vpack.c.b16 %v4088, %v4080
    %v5329 = vpack.c.b16 %v4089, %v4081
    %v5330 = vpack.c.b16 %v4090, %v4082
    %v5331 = vpack.c.b16 %v4091, %v4083
    %v5332 = vpack.c.b16 %v4092, %v4084
    %v5333 = vpack.c.b16 %v4093, %v4085
    %v5334 = vpack.c.b16 %v4102, %v4094
    %v5335 = vpack.c.b16 %v4103, %v4095
    %v5336 = vpack.c.b16 %v4104, %v4096
    %v5337 = vpack.c.b16 %v4105, %v4097
    %v5338 = vpack.c.b16 %v4106, %v4098
    %v5339 = vpack.c.b16 %v4107, %v4099
    %v5340 = vpack.c.b16 %v4108, %v4100
    %v5341 = vpack.c.b16 %v4109, %v4101
    %v5342 = vpack.c.b16 %v4118, %v4110
    %v5343 = vpack.c.b16 %v4119, %v4111
    %v5344 = vpack.c.b16 %v4120, %v4112
    %v5345 = vpack.c.b16 %v4121, %v4113
    %v5346 = vpack.c.b16 %v4122, %v4114
    %v5347 = vpack.c.b16 %v4123, %v4115
    %v5348 = vpack.c.b16 %v4124, %v4116
    %v5349 = vpack.c.b16 %v4125, %v4117
    %v5350 = vpack.c.b16 %v4134, %v4126
    %v5351 = vpack.c.b16 %v4135, %v4127
    %v5352 = vpack.c.b16 %v4136, %v4128
    %v5353 = vpack.c.b16 %v4137, %v4129
    %v5354 = vpack.c.b16 %v4138, %v4130
    %v5355 = vpack.c.b16 %v4139, %v4131
    %v5356 = vpack.c.b16 %v4140, %v4132
    %v5357 = vpack.c.b16 %v4141, %v4133
    %v5358 = vpack.c.b16 %v4150, %v4142
    %v5359 = vpack.c.b16 %v4151, %v4143
    %v5360 = vpack.c.b16 %v4152, %v4144
    %v5361 = vpack.c.b16 %v4153, %v4145
    %v5362 = vpack.c.b16 %v4154, %v4146
    %v5363 = vpack.c.b16 %v4155, %v4147
    %v5364 = vpack.c.b16 %v4156, %v4148
    %v5365 = vpack.c.b16 %v4157, %v4149
    %v5366 = vpack.c.b16 %v4166, %v4158
    %v5367 = vpack.c.b16 %v4167, %v4159
    %v5368 = vpack.c.b16 %v4168, %v4160
    %v5369 = vpack.c.b16 %v4169, %v4161
    %v5370 = vpack.c.b16 %v4170, %v4162
    %v5371 = vpack.c.b16 %v4171, %v4163
    %v5372 = vpack.c.b16 %v4172, %v4164
    %v5373 = vpack.c.b16 %v4173, %v4165
    %v5374 = vpack.c.b16 %v4182, %v4174
    %v5375 = vpack.c.b16 %v4183, %v4175
    %v5376 = vpack.c.b16 %v4184, %v4176
    %v5377 = vpack.c.b16 %v4185, %v4177
    %v5378 = vpack.c.b16 %v4186, %v4178
    %v5379 = vpack.c.b16 %v4187, %v4179
    %v5380 = vpack.c.b16 %v4188, %v4180
    %v5381 = vpack.c.b16 %v4189, %v4181
    %v5382 = vpack.c.b16 %v4198, %v4190
    %v5383 = vpack.c.b16 %v4199, %v4191
    %v5384 = vpack.c.b16 %v4200, %v4192
    %v5385 = vpack.c.b16 %v4201, %v4193
    %v5386 = vpack.c.b16 %v4202, %v4194
    %v5387 = vpack.c.b16 %v4203, %v4195
    %v5388 = vpack.c.b16 %v4204, %v4196
    %v5389 = vpack.c.b16 %v4205, %v4197
    %v5390 = vpack.c.b16 %v4214, %v4206
    %v5391 = vpack.c.b16 %v4215, %v4207
    %v5392 = vpack.c.b16 %v4216, %v4208
    %v5393 = vpack.c.b16 %v4217, %v4209
    %v5394 = vpack.c.b16 %v4218, %v4210
    %v5395 = vpack.c.b16 %v4219, %v4211
    %v5396 = vpack.c.b16 %v4220, %v4212
    %v5397 = vpack.c.b16 %v4221, %v4213
    %v5398 = vpack.c.b16 %v4230, %v4222
    %v5399 = vpack.c.b16 %v4231, %v4223
    %v5400 = vpack.c.b16 %v4232, %v4224
    %v5401 = vpack.c.b16 %v4233, %v4225
    %v5402 = vpack.c.b16 %v4234, %v4226
    %v5403 = vpack.c.b16 %v4235, %v4227
    %v5404 = vpack.c.b16 %v4236, %v4228
    %v5405 = vpack.c.b16 %v4237, %v4229
    %v5406 = vpack.c.b16 %v4246, %v4238
    %v5407 = vpack.c.b16 %v4247, %v4239
    %v5408 = vpack.c.b16 %v4248, %v4240
    %v5409 = vpack.c.b16 %v4249, %v4241
    %v5410 = vpack.c.b16 %v4250, %v4242
    %v5411 = vpack.c.b16 %v4251, %v4243
    %v5412 = vpack.c.b16 %v4252, %v4244
    %v5413 = vpack.c.b16 %v4253, %v4245
    %v5414 = vpack.c.b16 %v4262, %v4254
    %v5415 = vpack.c.b16 %v4263, %v4255
    %v5416 = vpack.c.b16 %v4264, %v4256
    %v5417 = vpack.c.b16 %v4265, %v4257
    %v5418 = vpack.c.b16 %v4266, %v4258
    %v5419 = vpack.c.b16 %v4267, %v4259
    %v5420 = vpack.c.b16 %v4268, %v4260
    %v5421 = vpack.c.b16 %v4269, %v4261
    %v5422 = vpack.c.b16 %v4278, %v4270
    %v5423 = vpack.c.b16 %v4279, %v4271
    %v5424 = vpack.c.b16 %v4280, %v4272
    %v5425 = vpack.c.b16 %v4281, %v4273
    %v5426 = vpack.c.b16 %v4282, %v4274
    %v5427 = vpack.c.b16 %v4283, %v4275
    %v5428 = vpack.c.b16 %v4284, %v4276
    %v5429 = vpack.c.b16 %v4285, %v4277
    %v5430 = vpack.c.b16 %v4294, %v4286
    %v5431 = vpack.c.b16 %v4295, %v4287
    %v5432 = vpack.c.b16 %v4296, %v4288
    %v5433 = vpack.c.b16 %v4297, %v4289
    %v5434 = vpack.c.b16 %v4298, %v4290
    %v5435 = vpack.c.b16 %v4299, %v4291
    %v5436 = vpack.c.b16 %v4300, %v4292
    %v5437 = vpack.c.b16 %v4301, %v4293
    %v5438 = vpack.c.b16 %v4310, %v4302
    %v5439 = vpack.c.b16 %v4311, %v4303
    %v5440 = vpack.c.b16 %v4312, %v4304
    %v5441 = vpack.c.b16 %v4313, %v4305
    %v5442 = vpack.c.b16 %v4314, %v4306
    %v5443 = vpack.c.b16 %v4315, %v4307
    %v5444 = vpack.c.b16 %v4316, %v4308
    %v5445 = vpack.c.b16 %v4317, %v4309
    %v5446 = vpack.c.b16 %v4326, %v4318
    %v5447 = vpack.c.b16 %v4327, %v4319
    %v5448 = vpack.c.b16 %v4328, %v4320
    %v5449 = vpack.c.b16 %v4329, %v4321
    %v5450 = vpack.c.b16 %v4330, %v4322
    %v5451 = vpack.c.b16 %v4331, %v4323
    %v5452 = vpack.c.b16 %v4332, %v4324
    %v5453 = vpack.c.b16 %v4333, %v4325
    %v5454 = vpack.c.b16 %v4342, %v4334
    %v5455 = vpack.c.b16 %v4343, %v4335
    %v5456 = vpack.c.b16 %v4344, %v4336
    %v5457 = vpack.c.b16 %v4345, %v4337
    %v5458 = vpack.c.b16 %v4346, %v4338
    %v5459 = vpack.c.b16 %v4347, %v4339
    %v5460 = vpack.c.b16 %v4348, %v4340
    %v5461 = vpack.c.b16 %v4349, %v4341
    %v5462 = vpack.c.b16 %v4358, %v4350
    %v5463 = vpack.c.b16 %v4359, %v4351
    %v5464 = vpack.c.b16 %v4360, %v4352
    %v5465 = vpack.c.b16 %v4361, %v4353
    %v5466 = vpack.c.b16 %v4362, %v4354
    %v5467 = vpack.c.b16 %v4363, %v4355
    %v5468 = vpack.c.b16 %v4364, %v4356
    %v5469 = vpack.c.b16 %v4365, %v4357
    %v5470 = vpack.c.b16 %v4374, %v4366
    %v5471 = vpack.c.b16 %v4375, %v4367
    %v5472 = vpack.c.b16 %v4376, %v4368
    %v5473 = vpack.c.b16 %v4377, %v4369
    %v5474 = vpack.c.b16 %v4378, %v4370
    %v5475 = vpack.c.b16 %v4379, %v4371
    %v5476 = vpack.c.b16 %v4380, %v4372
    %v5477 = vpack.c.b16 %v4381, %v4373
    %v5478 = vpack.c.b16 %v4390, %v4382
    %v5479 = vpack.c.b16 %v4391, %v4383
    %v5480 = vpack.c.b16 %v4392, %v4384
    %v5481 = vpack.c.b16 %v4393, %v4385
    %v5482 = vpack.c.b16 %v4394, %v4386
    %v5483 = vpack.c.b16 %v4395, %v4387
    %v5484 = vpack.c.b16 %v4396, %v4388
    %v5485 = vpack.c.b16 %v4397, %v4389
    %v5486 = vpack.c.b16 %v4406, %v4398
    %v5487 = vpack.c.b16 %v4407, %v4399
    %v5488 = vpack.c.b16 %v4408, %v4400
    %v5489 = vpack.c.b16 %v4409, %v4401
    %v5490 = vpack.c.b16 %v4410, %v4402
    %v5491 = vpack.c.b16 %v4411, %v4403
    %v5492 = vpack.c.b16 %v4412, %v4404
    %v5493 = vpack.c.b16 %v4413, %v4405
    %v5494 = vpack.c.b16 %v4422, %v4414
    %v5495 = vpack.c.b16 %v4423, %v4415
    %v5496 = vpack.c.b16 %v4424, %v4416
    %v5497 = vpack.c.b16 %v4425, %v4417
    %v5498 = vpack.c.b16 %v4426, %v4418
    %v5499 = vpack.c.b16 %v4427, %v4419
    %v5500 = vpack.c.b16 %v4428, %v4420
    %v5501 = vpack.c.b16 %v4429, %v4421
    %v5502 = vpack.c.b16 %v4438, %v4430
    %v5503 = vpack.c.b16 %v4439, %v4431
    %v5504 = vpack.c.b16 %v4440, %v4432
    %v5505 = vpack.c.b16 %v4441, %v4433
    %v5506 = vpack.c.b16 %v4442, %v4434
    %v5507 = vpack.c.b16 %v4443, %v4435
    %v5508 = vpack.c.b16 %v4444, %v4436
    %v5509 = vpack.c.b16 %v4445, %v4437
    %v5510 = vpack.c.b16 %v4454, %v4446
    %v5511 = vpack.c.b16 %v4455, %v4447
    %v5512 = vpack.c.b16 %v4456, %v4448
    %v5513 = vpack.c.b16 %v4457, %v4449
    %v5514 = vpack.c.b16 %v4458, %v4450
    %v5515 = vpack.c.b16 %v4459, %v4451
    %v5516 = vpack.c.b16 %v4460, %v4452
    %v5517 = vpack.c.b16 %v4461, %v4453
    %v5518 = vpack.c.b16 %v4470, %v4462
    %v5519 = vpack.c.b16 %v4471, %v4463
    %v5520 = vpack.c.b16 %v4472, %v4464
    %v5521 = vpack.c.b16 %v4473, %v4465
    %v5522 = vpack.c.b16 %v4474, %v4466
    %v5523 = vpack.c.b16 %v4475, %v4467
    %v5524 = vpack.c.b16 %v4476, %v4468
    %v5525 = vpack.c.b16 %v4477, %v4469
    %v5526 = vpack.c.b16 %v4486, %v4478
    %v5527 = vpack.c.b16 %v4487, %v4479
    %v5528 = vpack.c.b16 %v4488, %v4480
    %v5529 = vpack.c.b16 %v4489, %v4481
    %v5530 = vpack.c.b16 %v4490, %v4482
    %v5531 = vpack.c.b16 %v4491, %v4483
    %v5532 = vpack.c.b16 %v4492, %v4484
    %v5533 = vpack.c.b16 %v4493, %v4485
    %v5534 = vpack.c.b16 %v4502, %v4494
    %v5535 = vpack.c.b16 %v4503, %v4495
    %v5536 = vpack.c.b16 %v4504, %v4496
    %v5537 = vpack.c.b16 %v4505, %v4497
    %v5538 = vpack.c.b16 %v4506, %v4498
    %v5539 = vpack.c.b16 %v4507, %v4499
    %v5540 = vpack.c.b16 %v4508, %v4500
    %v5541 = vpack.c.b16 %v4509, %v4501
    %v5542 = vpack.c.b16 %v4518, %v4510
    %v5543 = vpack.c.b16 %v4519, %v4511
    %v5544 = vpack.c.b16 %v4520, %v4512
    %v5545 = vpack.c.b16 %v4521, %v4513
    %v5546 = vpack.c.b16 %v4522, %v4514
    %v5547 = vpack.c.b16 %v4523, %v4515
    %v5548 = vpack.c.b16 %v4524, %v4516
    %v5549 = vpack.c.b16 %v4525, %v4517
    %6574 = vmatpush.bf16.msra.mxu0 %v4582
    %6575 = vmatpush.bf16.msra.mxu0 %v4574
    %6576 = vmatpush.bf16.msra.mxu0 %v4566
    %6577 = vmatpush.bf16.msra.mxu0 %v4558
    %6578 = vmatpush.bf16.msra.mxu0 %v4550
    %6579 = vmatpush.bf16.msra.mxu0 %v4542
    %6580 = vmatpush.bf16.msra.mxu0 %v4534
    %6581 = vmatpush.bf16.msra.mxu0 %v4526
    %6582 = vmatmul.bf16.gmra.mxu0 %v396
    %v6583 = vpop.f32.mrf.mxu0
    %v6584 = vadd.f32 %v1438, %v6583
    %v6585 = vpop.f32.mrf.mxu0
    %6586 = vdwg.mxu0
    %6587 = vmatpush.bf16.msra.mxu0 %v4646
    %6588 = vmatpush.bf16.msra.mxu0 %v4638
    %6589 = vmatpush.bf16.msra.mxu0 %v4630
    %6590 = vmatpush.bf16.msra.mxu0 %v4622
    %6591 = vmatpush.bf16.msra.mxu0 %v4614
    %6592 = vmatpush.bf16.msra.mxu0 %v4606
    %6593 = vmatpush.bf16.msra.mxu0 %v4598
    %6594 = vmatpush.bf16.msra.mxu0 %v4590
    %6595 = vmatmul.bf16.gmra.mxu0 %v397
    %v6596 = vpop.f32.mrf.mxu0
    %v6597 = vadd.f32 %v6584, %v6596
    %v6598 = vpop.f32.mrf.mxu0
    %6599 = vdwg.mxu0
    %6600 = vmatpush.bf16.msra.mxu0 %v4710
    %6601 = vmatpush.bf16.msra.mxu0 %v4702
    %6602 = vmatpush.bf16.msra.mxu0 %v4694
    %6603 = vmatpush.bf16.msra.mxu0 %v4686
    %6604 = vmatpush.bf16.msra.mxu0 %v4678
    %6605 = vmatpush.bf16.msra.mxu0 %v4670
    %6606 = vmatpush.bf16.msra.mxu0 %v4662
    %6607 = vmatpush.bf16.msra.mxu0 %v4654
    %6608 = vmatmul.bf16.gmra.mxu0 %v398
    %v6609 = vpop.f32.mrf.mxu0
    %v6610 = vadd.f32 %v6597, %v6609
    %v6611 = vpop.f32.mrf.mxu0
    %6612 = vdwg.mxu0
    %6613 = vmatpush.bf16.msra.mxu0 %v4774
    %6614 = vmatpush.bf16.msra.mxu0 %v4766
    %6615 = vmatpush.bf16.msra.mxu0 %v4758
    %6616 = vmatpush.bf16.msra.mxu0 %v4750
    %6617 = vmatpush.bf16.msra.mxu0 %v4742
    %6618 = vmatpush.bf16.msra.mxu0 %v4734
    %6619 = vmatpush.bf16.msra.mxu0 %v4726
    %6620 = vmatpush.bf16.msra.mxu0 %v4718
    %6621 = vmatmul.bf16.gmra.mxu0 %v399
    %v6622 = vpop.f32.mrf.mxu0
    %v6623 = vadd.f32 %v6610, %v6622
    %v6624 = vpop.f32.mrf.mxu0
    %6625 = vdwg.mxu0
    %6626 = vmatpush.bf16.msra.mxu0 %v4838
    %6627 = vmatpush.bf16.msra.mxu0 %v4830
    %6628 = vmatpush.bf16.msra.mxu0 %v4822
    %6629 = vmatpush.bf16.msra.mxu0 %v4814
    %6630 = vmatpush.bf16.msra.mxu0 %v4806
    %6631 = vmatpush.bf16.msra.mxu0 %v4798
    %6632 = vmatpush.bf16.msra.mxu0 %v4790
    %6633 = vmatpush.bf16.msra.mxu0 %v4782
    %6634 = vmatmul.bf16.gmra.mxu0 %v400
    %v6635 = vpop.f32.mrf.mxu0
    %v6636 = vadd.f32 %v6623, %v6635
    %v6637 = vpop.f32.mrf.mxu0
    %6638 = vdwg.mxu0
    %6639 = vmatpush.bf16.msra.mxu0 %v4902
    %6640 = vmatpush.bf16.msra.mxu0 %v4894
    %6641 = vmatpush.bf16.msra.mxu0 %v4886
    %6642 = vmatpush.bf16.msra.mxu0 %v4878
    %6643 = vmatpush.bf16.msra.mxu0 %v4870
    %6644 = vmatpush.bf16.msra.mxu0 %v4862
    %6645 = vmatpush.bf16.msra.mxu0 %v4854
    %6646 = vmatpush.bf16.msra.mxu0 %v4846
    %6647 = vmatmul.bf16.gmra.mxu0 %v401
    %v6648 = vpop.f32.mrf.mxu0
    %v6649 = vadd.f32 %v6636, %v6648
    %v6650 = vpop.f32.mrf.mxu0
    %6651 = vdwg.mxu0
    %6652 = vmatpush.bf16.msra.mxu0 %v4966
    %6653 = vmatpush.bf16.msra.mxu0 %v4958
    %6654 = vmatpush.bf16.msra.mxu0 %v4950
    %6655 = vmatpush.bf16.msra.mxu0 %v4942
    %6656 = vmatpush.bf16.msra.mxu0 %v4934
    %6657 = vmatpush.bf16.msra.mxu0 %v4926
    %6658 = vmatpush.bf16.msra.mxu0 %v4918
    %6659 = vmatpush.bf16.msra.mxu0 %v4910
    %6660 = vmatmul.bf16.gmra.mxu0 %v402
    %v6661 = vpop.f32.mrf.mxu0
    %v6662 = vadd.f32 %v6649, %v6661
    %v6663 = vpop.f32.mrf.mxu0
    %6664 = vdwg.mxu0
    %6665 = vmatpush.bf16.msra.mxu0 %v5030
    %6666 = vmatpush.bf16.msra.mxu0 %v5022
    %6667 = vmatpush.bf16.msra.mxu0 %v5014
    %6668 = vmatpush.bf16.msra.mxu0 %v5006
    %6669 = vmatpush.bf16.msra.mxu0 %v4998
    %6670 = vmatpush.bf16.msra.mxu0 %v4990
    %6671 = vmatpush.bf16.msra.mxu0 %v4982
    %6672 = vmatpush.bf16.msra.mxu0 %v4974
    %6673 = vmatmul.bf16.gmra.mxu0 %v403
    %v6674 = vpop.f32.mrf.mxu0
    %v6675 = vadd.f32 %v6662, %v6674
    %v6676 = vpop.f32.mrf.mxu0
    %6677 = vdwg.mxu0
    %6678 = vmatpush.bf16.msra.mxu0 %v5094
    %6679 = vmatpush.bf16.msra.mxu0 %v5086
    %6680 = vmatpush.bf16.msra.mxu0 %v5078
    %6681 = vmatpush.bf16.msra.mxu0 %v5070
    %6682 = vmatpush.bf16.msra.mxu0 %v5062
    %6683 = vmatpush.bf16.msra.mxu0 %v5054
    %6684 = vmatpush.bf16.msra.mxu0 %v5046
    %6685 = vmatpush.bf16.msra.mxu0 %v5038
    %6686 = vmatmul.bf16.gmra.mxu0 %v404
    %v6687 = vpop.f32.mrf.mxu0
    %v6688 = vadd.f32 %v6675, %v6687
    %v6689 = vpop.f32.mrf.mxu0
    %6690 = vdwg.mxu0
    %6691 = vmatpush.bf16.msra.mxu0 %v5158
    %6692 = vmatpush.bf16.msra.mxu0 %v5150
    %6693 = vmatpush.bf16.msra.mxu0 %v5142
    %6694 = vmatpush.bf16.msra.mxu0 %v5134
    %6695 = vmatpush.bf16.msra.mxu0 %v5126
    %6696 = vmatpush.bf16.msra.mxu0 %v5118
    %6697 = vmatpush.bf16.msra.mxu0 %v5110
    %6698 = vmatpush.bf16.msra.mxu0 %v5102
    %6699 = vmatmul.bf16.gmra.mxu0 %v405
    %v6700 = vpop.f32.mrf.mxu0
    %v6701 = vadd.f32 %v6688, %v6700
    %v6702 = vpop.f32.mrf.mxu0
    %6703 = vdwg.mxu0
    %6704 = vmatpush.bf16.msra.mxu0 %v5222
    %6705 = vmatpush.bf16.msra.mxu0 %v5214
    %6706 = vmatpush.bf16.msra.mxu0 %v5206
    %6707 = vmatpush.bf16.msra.mxu0 %v5198
    %6708 = vmatpush.bf16.msra.mxu0 %v5190
    %6709 = vmatpush.bf16.msra.mxu0 %v5182
    %6710 = vmatpush.bf16.msra.mxu0 %v5174
    %6711 = vmatpush.bf16.msra.mxu0 %v5166
    %6712 = vmatmul.bf16.gmra.mxu0 %v406
    %v6713 = vpop.f32.mrf.mxu0
    %v6714 = vadd.f32 %v6701, %v6713
    %v6715 = vpop.f32.mrf.mxu0
    %6716 = vdwg.mxu0
    %6717 = vmatpush.bf16.msra.mxu0 %v5286
    %6718 = vmatpush.bf16.msra.mxu0 %v5278
    %6719 = vmatpush.bf16.msra.mxu0 %v5270
    %6720 = vmatpush.bf16.msra.mxu0 %v5262
    %6721 = vmatpush.bf16.msra.mxu0 %v5254
    %6722 = vmatpush.bf16.msra.mxu0 %v5246
    %6723 = vmatpush.bf16.msra.mxu0 %v5238
    %6724 = vmatpush.bf16.msra.mxu0 %v5230
    %6725 = vmatmul.bf16.gmra.mxu0 %v407
    %v6726 = vpop.f32.mrf.mxu0
    %v6727 = vadd.f32 %v6714, %v6726
    %v6728 = vpop.f32.mrf.mxu0
    %6729 = vdwg.mxu0
    %6730 = vmatpush.bf16.msra.mxu0 %v5350
    %6731 = vmatpush.bf16.msra.mxu0 %v5342
    %6732 = vmatpush.bf16.msra.mxu0 %v5334
    %6733 = vmatpush.bf16.msra.mxu0 %v5326
    %6734 = vmatpush.bf16.msra.mxu0 %v5318
    %6735 = vmatpush.bf16.msra.mxu0 %v5310
    %6736 = vmatpush.bf16.msra.mxu0 %v5302
    %6737 = vmatpush.bf16.msra.mxu0 %v5294
    %6738 = vmatmul.bf16.gmra.mxu0 %v408
    %v6739 = vpop.f32.mrf.mxu0
    %v6740 = vadd.f32 %v6727, %v6739
    %v6741 = vpop.f32.mrf.mxu0
    %6742 = vdwg.mxu0
    %6743 = vmatpush.bf16.msra.mxu0 %v5414
    %6744 = vmatpush.bf16.msra.mxu0 %v5406
    %6745 = vmatpush.bf16.msra.mxu0 %v5398
    %6746 = vmatpush.bf16.msra.mxu0 %v5390
    %6747 = vmatpush.bf16.msra.mxu0 %v5382
    %6748 = vmatpush.bf16.msra.mxu0 %v5374
    %6749 = vmatpush.bf16.msra.mxu0 %v5366
    %6750 = vmatpush.bf16.msra.mxu0 %v5358
    %6751 = vmatmul.bf16.gmra.mxu0 %v409
    %v6752 = vpop.f32.mrf.mxu0
    %v6753 = vadd.f32 %v6740, %v6752
    %v6754 = vpop.f32.mrf.mxu0
    %6755 = vdwg.mxu0
    %6756 = vmatpush.bf16.msra.mxu0 %v5478
    %6757 = vmatpush.bf16.msra.mxu0 %v5470
    %6758 = vmatpush.bf16.msra.mxu0 %v5462
    %6759 = vmatpush.bf16.msra.mxu0 %v5454
    %6760 = vmatpush.bf16.msra.mxu0 %v5446
    %6761 = vmatpush.bf16.msra.mxu0 %v5438
    %6762 = vmatpush.bf16.msra.mxu0 %v5430
    %6763 = vmatpush.bf16.msra.mxu0 %v5422
    %6764 = vmatmul.bf16.gmra.mxu0 %v410
    %v6765 = vpop.f32.mrf.mxu0
    %v6766 = vadd.f32 %v6753, %v6765
    %v6767 = vpop.f32.mrf.mxu0
    %6768 = vdwg.mxu0
    %6769 = vmatpush.bf16.msra.mxu0 %v5542
    %6770 = vmatpush.bf16.msra.mxu0 %v5534
    %6771 = vmatpush.bf16.msra.mxu0 %v5526
    %6772 = vmatpush.bf16.msra.mxu0 %v5518
    %6773 = vmatpush.bf16.msra.mxu0 %v5510
    %6774 = vmatpush.bf16.msra.mxu0 %v5502
    %6775 = vmatpush.bf16.msra.mxu0 %v5494
    %6776 = vmatpush.bf16.msra.mxu0 %v5486
    %6777 = vmatmul.bf16.gmra.mxu0 %v411
    %v6778 = vpop.f32.mrf.mxu0
    %v6779 = vadd.f32 %v6766, %v6778
    %v6780 = vpop.f32.mrf.mxu0
    %6781 = vdwg.mxu0
    %6782 = vmatpush.bf16.msra.mxu0 %v4583
    %6783 = vmatpush.bf16.msra.mxu0 %v4575
    %6784 = vmatpush.bf16.msra.mxu0 %v4567
    %6785 = vmatpush.bf16.msra.mxu0 %v4559
    %6786 = vmatpush.bf16.msra.mxu0 %v4551
    %6787 = vmatpush.bf16.msra.mxu0 %v4543
    %6788 = vmatpush.bf16.msra.mxu0 %v4535
    %6789 = vmatpush.bf16.msra.mxu0 %v4527
    %6790 = vmatmul.bf16.gmra.mxu0 %v396
    %v6791 = vpop.f32.mrf.mxu0
    %v6792 = vadd.f32 %v1439, %v6791
    %v6793 = vpop.f32.mrf.mxu0
    %6794 = vdwg.mxu0
    %6795 = vmatpush.bf16.msra.mxu0 %v4647
    %6796 = vmatpush.bf16.msra.mxu0 %v4639
    %6797 = vmatpush.bf16.msra.mxu0 %v4631
    %6798 = vmatpush.bf16.msra.mxu0 %v4623
    %6799 = vmatpush.bf16.msra.mxu0 %v4615
    %6800 = vmatpush.bf16.msra.mxu0 %v4607
    %6801 = vmatpush.bf16.msra.mxu0 %v4599
    %6802 = vmatpush.bf16.msra.mxu0 %v4591
    %6803 = vmatmul.bf16.gmra.mxu0 %v397
    %v6804 = vpop.f32.mrf.mxu0
    %v6805 = vadd.f32 %v6792, %v6804
    %v6806 = vpop.f32.mrf.mxu0
    %6807 = vdwg.mxu0
    %6808 = vmatpush.bf16.msra.mxu0 %v4711
    %6809 = vmatpush.bf16.msra.mxu0 %v4703
    %6810 = vmatpush.bf16.msra.mxu0 %v4695
    %6811 = vmatpush.bf16.msra.mxu0 %v4687
    %6812 = vmatpush.bf16.msra.mxu0 %v4679
    %6813 = vmatpush.bf16.msra.mxu0 %v4671
    %6814 = vmatpush.bf16.msra.mxu0 %v4663
    %6815 = vmatpush.bf16.msra.mxu0 %v4655
    %6816 = vmatmul.bf16.gmra.mxu0 %v398
    %v6817 = vpop.f32.mrf.mxu0
    %v6818 = vadd.f32 %v6805, %v6817
    %v6819 = vpop.f32.mrf.mxu0
    %6820 = vdwg.mxu0
    %6821 = vmatpush.bf16.msra.mxu0 %v4775
    %6822 = vmatpush.bf16.msra.mxu0 %v4767
    %6823 = vmatpush.bf16.msra.mxu0 %v4759
    %6824 = vmatpush.bf16.msra.mxu0 %v4751
    %6825 = vmatpush.bf16.msra.mxu0 %v4743
    %6826 = vmatpush.bf16.msra.mxu0 %v4735
    %6827 = vmatpush.bf16.msra.mxu0 %v4727
    %6828 = vmatpush.bf16.msra.mxu0 %v4719
    %6829 = vmatmul.bf16.gmra.mxu0 %v399
    %v6830 = vpop.f32.mrf.mxu0
    %v6831 = vadd.f32 %v6818, %v6830
    %v6832 = vpop.f32.mrf.mxu0
    %6833 = vdwg.mxu0
    %6834 = vmatpush.bf16.msra.mxu0 %v4839
    %6835 = vmatpush.bf16.msra.mxu0 %v4831
    %6836 = vmatpush.bf16.msra.mxu0 %v4823
    %6837 = vmatpush.bf16.msra.mxu0 %v4815
    %6838 = vmatpush.bf16.msra.mxu0 %v4807
    %6839 = vmatpush.bf16.msra.mxu0 %v4799
    %6840 = vmatpush.bf16.msra.mxu0 %v4791
    %6841 = vmatpush.bf16.msra.mxu0 %v4783
    %6842 = vmatmul.bf16.gmra.mxu0 %v400
    %v6843 = vpop.f32.mrf.mxu0
    %v6844 = vadd.f32 %v6831, %v6843
    %v6845 = vpop.f32.mrf.mxu0
    %6846 = vdwg.mxu0
    %6847 = vmatpush.bf16.msra.mxu0 %v4903
    %6848 = vmatpush.bf16.msra.mxu0 %v4895
    %6849 = vmatpush.bf16.msra.mxu0 %v4887
    %6850 = vmatpush.bf16.msra.mxu0 %v4879
    %6851 = vmatpush.bf16.msra.mxu0 %v4871
    %6852 = vmatpush.bf16.msra.mxu0 %v4863
    %6853 = vmatpush.bf16.msra.mxu0 %v4855
    %6854 = vmatpush.bf16.msra.mxu0 %v4847
    %6855 = vmatmul.bf16.gmra.mxu0 %v401
    %v6856 = vpop.f32.mrf.mxu0
    %v6857 = vadd.f32 %v6844, %v6856
    %v6858 = vpop.f32.mrf.mxu0
    %6859 = vdwg.mxu0
    %6860 = vmatpush.bf16.msra.mxu0 %v4967
    %6861 = vmatpush.bf16.msra.mxu0 %v4959
    %6862 = vmatpush.bf16.msra.mxu0 %v4951
    %6863 = vmatpush.bf16.msra.mxu0 %v4943
    %6864 = vmatpush.bf16.msra.mxu0 %v4935
    %6865 = vmatpush.bf16.msra.mxu0 %v4927
    %6866 = vmatpush.bf16.msra.mxu0 %v4919
    %6867 = vmatpush.bf16.msra.mxu0 %v4911
    %6868 = vmatmul.bf16.gmra.mxu0 %v402
    %v6869 = vpop.f32.mrf.mxu0
    %v6870 = vadd.f32 %v6857, %v6869
    %v6871 = vpop.f32.mrf.mxu0
    %6872 = vdwg.mxu0
    %6873 = vmatpush.bf16.msra.mxu0 %v5031
    %6874 = vmatpush.bf16.msra.mxu0 %v5023
    %6875 = vmatpush.bf16.msra.mxu0 %v5015
    %6876 = vmatpush.bf16.msra.mxu0 %v5007
    %6877 = vmatpush.bf16.msra.mxu0 %v4999
    %6878 = vmatpush.bf16.msra.mxu0 %v4991
    %6879 = vmatpush.bf16.msra.mxu0 %v4983
    %6880 = vmatpush.bf16.msra.mxu0 %v4975
    %6881 = vmatmul.bf16.gmra.mxu0 %v403
    %v6882 = vpop.f32.mrf.mxu0
    %v6883 = vadd.f32 %v6870, %v6882
    %v6884 = vpop.f32.mrf.mxu0
    %6885 = vdwg.mxu0
    %6886 = vmatpush.bf16.msra.mxu0 %v5095
    %6887 = vmatpush.bf16.msra.mxu0 %v5087
    %6888 = vmatpush.bf16.msra.mxu0 %v5079
    %6889 = vmatpush.bf16.msra.mxu0 %v5071
    %6890 = vmatpush.bf16.msra.mxu0 %v5063
    %6891 = vmatpush.bf16.msra.mxu0 %v5055
    %6892 = vmatpush.bf16.msra.mxu0 %v5047
    %6893 = vmatpush.bf16.msra.mxu0 %v5039
    %6894 = vmatmul.bf16.gmra.mxu0 %v404
    %v6895 = vpop.f32.mrf.mxu0
    %v6896 = vadd.f32 %v6883, %v6895
    %v6897 = vpop.f32.mrf.mxu0
    %6898 = vdwg.mxu0
    %6899 = vmatpush.bf16.msra.mxu0 %v5159
    %6900 = vmatpush.bf16.msra.mxu0 %v5151
    %6901 = vmatpush.bf16.msra.mxu0 %v5143
    %6902 = vmatpush.bf16.msra.mxu0 %v5135
    %6903 = vmatpush.bf16.msra.mxu0 %v5127
    %6904 = vmatpush.bf16.msra.mxu0 %v5119
    %6905 = vmatpush.bf16.msra.mxu0 %v5111
    %6906 = vmatpush.bf16.msra.mxu0 %v5103
    %6907 = vmatmul.bf16.gmra.mxu0 %v405
    %v6908 = vpop.f32.mrf.mxu0
    %v6909 = vadd.f32 %v6896, %v6908
    %v6910 = vpop.f32.mrf.mxu0
    %6911 = vdwg.mxu0
    %6912 = vmatpush.bf16.msra.mxu0 %v5223
    %6913 = vmatpush.bf16.msra.mxu0 %v5215
    %6914 = vmatpush.bf16.msra.mxu0 %v5207
    %6915 = vmatpush.bf16.msra.mxu0 %v5199
    %6916 = vmatpush.bf16.msra.mxu0 %v5191
    %6917 = vmatpush.bf16.msra.mxu0 %v5183
    %6918 = vmatpush.bf16.msra.mxu0 %v5175
    %6919 = vmatpush.bf16.msra.mxu0 %v5167
    %6920 = vmatmul.bf16.gmra.mxu0 %v406
    %v6921 = vpop.f32.mrf.mxu0
    %v6922 = vadd.f32 %v6909, %v6921
    %v6923 = vpop.f32.mrf.mxu0
    %6924 = vdwg.mxu0
    %6925 = vmatpush.bf16.msra.mxu0 %v5287
    %6926 = vmatpush.bf16.msra.mxu0 %v5279
    %6927 = vmatpush.bf16.msra.mxu0 %v5271
    %6928 = vmatpush.bf16.msra.mxu0 %v5263
    %6929 = vmatpush.bf16.msra.mxu0 %v5255
    %6930 = vmatpush.bf16.msra.mxu0 %v5247
    %6931 = vmatpush.bf16.msra.mxu0 %v5239
    %6932 = vmatpush.bf16.msra.mxu0 %v5231
    %6933 = vmatmul.bf16.gmra.mxu0 %v407
    %v6934 = vpop.f32.mrf.mxu0
    %v6935 = vadd.f32 %v6922, %v6934
    %v6936 = vpop.f32.mrf.mxu0
    %6937 = vdwg.mxu0
    %6938 = vmatpush.bf16.msra.mxu0 %v5351
    %6939 = vmatpush.bf16.msra.mxu0 %v5343
    %6940 = vmatpush.bf16.msra.mxu0 %v5335
    %6941 = vmatpush.bf16.msra.mxu0 %v5327
    %6942 = vmatpush.bf16.msra.mxu0 %v5319
    %6943 = vmatpush.bf16.msra.mxu0 %v5311
    %6944 = vmatpush.bf16.msra.mxu0 %v5303
    %6945 = vmatpush.bf16.msra.mxu0 %v5295
    %6946 = vmatmul.bf16.gmra.mxu0 %v408
    %v6947 = vpop.f32.mrf.mxu0
    %v6948 = vadd.f32 %v6935, %v6947
    %v6949 = vpop.f32.mrf.mxu0
    %6950 = vdwg.mxu0
    %6951 = vmatpush.bf16.msra.mxu0 %v5415
    %6952 = vmatpush.bf16.msra.mxu0 %v5407
    %6953 = vmatpush.bf16.msra.mxu0 %v5399
    %6954 = vmatpush.bf16.msra.mxu0 %v5391
    %6955 = vmatpush.bf16.msra.mxu0 %v5383
    %6956 = vmatpush.bf16.msra.mxu0 %v5375
    %6957 = vmatpush.bf16.msra.mxu0 %v5367
    %6958 = vmatpush.bf16.msra.mxu0 %v5359
    %6959 = vmatmul.bf16.gmra.mxu0 %v409
    %v6960 = vpop.f32.mrf.mxu0
    %v6961 = vadd.f32 %v6948, %v6960
    %v6962 = vpop.f32.mrf.mxu0
    %6963 = vdwg.mxu0
    %6964 = vmatpush.bf16.msra.mxu0 %v5479
    %6965 = vmatpush.bf16.msra.mxu0 %v5471
    %6966 = vmatpush.bf16.msra.mxu0 %v5463
    %6967 = vmatpush.bf16.msra.mxu0 %v5455
    %6968 = vmatpush.bf16.msra.mxu0 %v5447
    %6969 = vmatpush.bf16.msra.mxu0 %v5439
    %6970 = vmatpush.bf16.msra.mxu0 %v5431
    %6971 = vmatpush.bf16.msra.mxu0 %v5423
    %6972 = vmatmul.bf16.gmra.mxu0 %v410
    %v6973 = vpop.f32.mrf.mxu0
    %v6974 = vadd.f32 %v6961, %v6973
    %v6975 = vpop.f32.mrf.mxu0
    %6976 = vdwg.mxu0
    %6977 = vmatpush.bf16.msra.mxu0 %v5543
    %6978 = vmatpush.bf16.msra.mxu0 %v5535
    %6979 = vmatpush.bf16.msra.mxu0 %v5527
    %6980 = vmatpush.bf16.msra.mxu0 %v5519
    %6981 = vmatpush.bf16.msra.mxu0 %v5511
    %6982 = vmatpush.bf16.msra.mxu0 %v5503
    %6983 = vmatpush.bf16.msra.mxu0 %v5495
    %6984 = vmatpush.bf16.msra.mxu0 %v5487
    %6985 = vmatmul.bf16.gmra.mxu0 %v411
    %v6986 = vpop.f32.mrf.mxu0
    %v6987 = vadd.f32 %v6974, %v6986
    %v6988 = vpop.f32.mrf.mxu0
    %6989 = vdwg.mxu0
    %6990 = vmatpush.bf16.msra.mxu0 %v4584
    %6991 = vmatpush.bf16.msra.mxu0 %v4576
    %6992 = vmatpush.bf16.msra.mxu0 %v4568
    %6993 = vmatpush.bf16.msra.mxu0 %v4560
    %6994 = vmatpush.bf16.msra.mxu0 %v4552
    %6995 = vmatpush.bf16.msra.mxu0 %v4544
    %6996 = vmatpush.bf16.msra.mxu0 %v4536
    %6997 = vmatpush.bf16.msra.mxu0 %v4528
    %6998 = vmatmul.bf16.gmra.mxu0 %v396
    %v6999 = vpop.f32.mrf.mxu0
    %v7000 = vadd.f32 %v1440, %v6999
    %v7001 = vpop.f32.mrf.mxu0
    %7002 = vdwg.mxu0
    %7003 = vmatpush.bf16.msra.mxu0 %v4648
    %7004 = vmatpush.bf16.msra.mxu0 %v4640
    %7005 = vmatpush.bf16.msra.mxu0 %v4632
    %7006 = vmatpush.bf16.msra.mxu0 %v4624
    %7007 = vmatpush.bf16.msra.mxu0 %v4616
    %7008 = vmatpush.bf16.msra.mxu0 %v4608
    %7009 = vmatpush.bf16.msra.mxu0 %v4600
    %7010 = vmatpush.bf16.msra.mxu0 %v4592
    %7011 = vmatmul.bf16.gmra.mxu0 %v397
    %v7012 = vpop.f32.mrf.mxu0
    %v7013 = vadd.f32 %v7000, %v7012
    %v7014 = vpop.f32.mrf.mxu0
    %7015 = vdwg.mxu0
    %7016 = vmatpush.bf16.msra.mxu0 %v4712
    %7017 = vmatpush.bf16.msra.mxu0 %v4704
    %7018 = vmatpush.bf16.msra.mxu0 %v4696
    %7019 = vmatpush.bf16.msra.mxu0 %v4688
    %7020 = vmatpush.bf16.msra.mxu0 %v4680
    %7021 = vmatpush.bf16.msra.mxu0 %v4672
    %7022 = vmatpush.bf16.msra.mxu0 %v4664
    %7023 = vmatpush.bf16.msra.mxu0 %v4656
    %7024 = vmatmul.bf16.gmra.mxu0 %v398
    %v7025 = vpop.f32.mrf.mxu0
    %v7026 = vadd.f32 %v7013, %v7025
    %v7027 = vpop.f32.mrf.mxu0
    %7028 = vdwg.mxu0
    %7029 = vmatpush.bf16.msra.mxu0 %v4776
    %7030 = vmatpush.bf16.msra.mxu0 %v4768
    %7031 = vmatpush.bf16.msra.mxu0 %v4760
    %7032 = vmatpush.bf16.msra.mxu0 %v4752
    %7033 = vmatpush.bf16.msra.mxu0 %v4744
    %7034 = vmatpush.bf16.msra.mxu0 %v4736
    %7035 = vmatpush.bf16.msra.mxu0 %v4728
    %7036 = vmatpush.bf16.msra.mxu0 %v4720
    %7037 = vmatmul.bf16.gmra.mxu0 %v399
    %v7038 = vpop.f32.mrf.mxu0
    %v7039 = vadd.f32 %v7026, %v7038
    %v7040 = vpop.f32.mrf.mxu0
    %7041 = vdwg.mxu0
    %7042 = vmatpush.bf16.msra.mxu0 %v4840
    %7043 = vmatpush.bf16.msra.mxu0 %v4832
    %7044 = vmatpush.bf16.msra.mxu0 %v4824
    %7045 = vmatpush.bf16.msra.mxu0 %v4816
    %7046 = vmatpush.bf16.msra.mxu0 %v4808
    %7047 = vmatpush.bf16.msra.mxu0 %v4800
    %7048 = vmatpush.bf16.msra.mxu0 %v4792
    %7049 = vmatpush.bf16.msra.mxu0 %v4784
    %7050 = vmatmul.bf16.gmra.mxu0 %v400
    %v7051 = vpop.f32.mrf.mxu0
    %v7052 = vadd.f32 %v7039, %v7051
    %v7053 = vpop.f32.mrf.mxu0
    %7054 = vdwg.mxu0
    %7055 = vmatpush.bf16.msra.mxu0 %v4904
    %7056 = vmatpush.bf16.msra.mxu0 %v4896
    %7057 = vmatpush.bf16.msra.mxu0 %v4888
    %7058 = vmatpush.bf16.msra.mxu0 %v4880
    %7059 = vmatpush.bf16.msra.mxu0 %v4872
    %7060 = vmatpush.bf16.msra.mxu0 %v4864
    %7061 = vmatpush.bf16.msra.mxu0 %v4856
    %7062 = vmatpush.bf16.msra.mxu0 %v4848
    %7063 = vmatmul.bf16.gmra.mxu0 %v401
    %v7064 = vpop.f32.mrf.mxu0
    %v7065 = vadd.f32 %v7052, %v7064
    %v7066 = vpop.f32.mrf.mxu0
    %7067 = vdwg.mxu0
    %7068 = vmatpush.bf16.msra.mxu0 %v4968
    %7069 = vmatpush.bf16.msra.mxu0 %v4960
    %7070 = vmatpush.bf16.msra.mxu0 %v4952
    %7071 = vmatpush.bf16.msra.mxu0 %v4944
    %7072 = vmatpush.bf16.msra.mxu0 %v4936
    %7073 = vmatpush.bf16.msra.mxu0 %v4928
    %7074 = vmatpush.bf16.msra.mxu0 %v4920
    %7075 = vmatpush.bf16.msra.mxu0 %v4912
    %7076 = vmatmul.bf16.gmra.mxu0 %v402
    %v7077 = vpop.f32.mrf.mxu0
    %v7078 = vadd.f32 %v7065, %v7077
    %v7079 = vpop.f32.mrf.mxu0
    %7080 = vdwg.mxu0
    %7081 = vmatpush.bf16.msra.mxu0 %v5032
    %7082 = vmatpush.bf16.msra.mxu0 %v5024
    %7083 = vmatpush.bf16.msra.mxu0 %v5016
    %7084 = vmatpush.bf16.msra.mxu0 %v5008
    %7085 = vmatpush.bf16.msra.mxu0 %v5000
    %7086 = vmatpush.bf16.msra.mxu0 %v4992
    %7087 = vmatpush.bf16.msra.mxu0 %v4984
    %7088 = vmatpush.bf16.msra.mxu0 %v4976
    %7089 = vmatmul.bf16.gmra.mxu0 %v403
    %v7090 = vpop.f32.mrf.mxu0
    %v7091 = vadd.f32 %v7078, %v7090
    %v7092 = vpop.f32.mrf.mxu0
    %7093 = vdwg.mxu0
    %7094 = vmatpush.bf16.msra.mxu0 %v5096
    %7095 = vmatpush.bf16.msra.mxu0 %v5088
    %7096 = vmatpush.bf16.msra.mxu0 %v5080
    %7097 = vmatpush.bf16.msra.mxu0 %v5072
    %7098 = vmatpush.bf16.msra.mxu0 %v5064
    %7099 = vmatpush.bf16.msra.mxu0 %v5056
    %7100 = vmatpush.bf16.msra.mxu0 %v5048
    %7101 = vmatpush.bf16.msra.mxu0 %v5040
    %7102 = vmatmul.bf16.gmra.mxu0 %v404
    %v7103 = vpop.f32.mrf.mxu0
    %v7104 = vadd.f32 %v7091, %v7103
    %v7105 = vpop.f32.mrf.mxu0
    %7106 = vdwg.mxu0
    %7107 = vmatpush.bf16.msra.mxu0 %v5160
    %7108 = vmatpush.bf16.msra.mxu0 %v5152
    %7109 = vmatpush.bf16.msra.mxu0 %v5144
    %7110 = vmatpush.bf16.msra.mxu0 %v5136
    %7111 = vmatpush.bf16.msra.mxu0 %v5128
    %7112 = vmatpush.bf16.msra.mxu0 %v5120
    %7113 = vmatpush.bf16.msra.mxu0 %v5112
    %7114 = vmatpush.bf16.msra.mxu0 %v5104
    %7115 = vmatmul.bf16.gmra.mxu0 %v405
    %v7116 = vpop.f32.mrf.mxu0
    %v7117 = vadd.f32 %v7104, %v7116
    %v7118 = vpop.f32.mrf.mxu0
    %7119 = vdwg.mxu0
    %7120 = vmatpush.bf16.msra.mxu0 %v5224
    %7121 = vmatpush.bf16.msra.mxu0 %v5216
    %7122 = vmatpush.bf16.msra.mxu0 %v5208
    %7123 = vmatpush.bf16.msra.mxu0 %v5200
    %7124 = vmatpush.bf16.msra.mxu0 %v5192
    %7125 = vmatpush.bf16.msra.mxu0 %v5184
    %7126 = vmatpush.bf16.msra.mxu0 %v5176
    %7127 = vmatpush.bf16.msra.mxu0 %v5168
    %7128 = vmatmul.bf16.gmra.mxu0 %v406
    %v7129 = vpop.f32.mrf.mxu0
    %v7130 = vadd.f32 %v7117, %v7129
    %v7131 = vpop.f32.mrf.mxu0
    %7132 = vdwg.mxu0
    %7133 = vmatpush.bf16.msra.mxu0 %v5288
    %7134 = vmatpush.bf16.msra.mxu0 %v5280
    %7135 = vmatpush.bf16.msra.mxu0 %v5272
    %7136 = vmatpush.bf16.msra.mxu0 %v5264
    %7137 = vmatpush.bf16.msra.mxu0 %v5256
    %7138 = vmatpush.bf16.msra.mxu0 %v5248
    %7139 = vmatpush.bf16.msra.mxu0 %v5240
    %7140 = vmatpush.bf16.msra.mxu0 %v5232
    %7141 = vmatmul.bf16.gmra.mxu0 %v407
    %v7142 = vpop.f32.mrf.mxu0
    %v7143 = vadd.f32 %v7130, %v7142
    %v7144 = vpop.f32.mrf.mxu0
    %7145 = vdwg.mxu0
    %7146 = vmatpush.bf16.msra.mxu0 %v5352
    %7147 = vmatpush.bf16.msra.mxu0 %v5344
    %7148 = vmatpush.bf16.msra.mxu0 %v5336
    %7149 = vmatpush.bf16.msra.mxu0 %v5328
    %7150 = vmatpush.bf16.msra.mxu0 %v5320
    %7151 = vmatpush.bf16.msra.mxu0 %v5312
    %7152 = vmatpush.bf16.msra.mxu0 %v5304
    %7153 = vmatpush.bf16.msra.mxu0 %v5296
    %7154 = vmatmul.bf16.gmra.mxu0 %v408
    %v7155 = vpop.f32.mrf.mxu0
    %v7156 = vadd.f32 %v7143, %v7155
    %v7157 = vpop.f32.mrf.mxu0
    %7158 = vdwg.mxu0
    %7159 = vmatpush.bf16.msra.mxu0 %v5416
    %7160 = vmatpush.bf16.msra.mxu0 %v5408
    %7161 = vmatpush.bf16.msra.mxu0 %v5400
    %7162 = vmatpush.bf16.msra.mxu0 %v5392
    %7163 = vmatpush.bf16.msra.mxu0 %v5384
    %7164 = vmatpush.bf16.msra.mxu0 %v5376
    %7165 = vmatpush.bf16.msra.mxu0 %v5368
    %7166 = vmatpush.bf16.msra.mxu0 %v5360
    %7167 = vmatmul.bf16.gmra.mxu0 %v409
    %v7168 = vpop.f32.mrf.mxu0
    %v7169 = vadd.f32 %v7156, %v7168
    %v7170 = vpop.f32.mrf.mxu0
    %7171 = vdwg.mxu0
    %7172 = vmatpush.bf16.msra.mxu0 %v5480
    %7173 = vmatpush.bf16.msra.mxu0 %v5472
    %7174 = vmatpush.bf16.msra.mxu0 %v5464
    %7175 = vmatpush.bf16.msra.mxu0 %v5456
    %7176 = vmatpush.bf16.msra.mxu0 %v5448
    %7177 = vmatpush.bf16.msra.mxu0 %v5440
    %7178 = vmatpush.bf16.msra.mxu0 %v5432
    %7179 = vmatpush.bf16.msra.mxu0 %v5424
    %7180 = vmatmul.bf16.gmra.mxu0 %v410
    %v7181 = vpop.f32.mrf.mxu0
    %v7182 = vadd.f32 %v7169, %v7181
    %v7183 = vpop.f32.mrf.mxu0
    %7184 = vdwg.mxu0
    %7185 = vmatpush.bf16.msra.mxu0 %v5544
    %7186 = vmatpush.bf16.msra.mxu0 %v5536
    %7187 = vmatpush.bf16.msra.mxu0 %v5528
    %7188 = vmatpush.bf16.msra.mxu0 %v5520
    %7189 = vmatpush.bf16.msra.mxu0 %v5512
    %7190 = vmatpush.bf16.msra.mxu0 %v5504
    %7191 = vmatpush.bf16.msra.mxu0 %v5496
    %7192 = vmatpush.bf16.msra.mxu0 %v5488
    %7193 = vmatmul.bf16.gmra.mxu0 %v411
    %v7194 = vpop.f32.mrf.mxu0
    %v7195 = vadd.f32 %v7182, %v7194
    %v7196 = vpop.f32.mrf.mxu0
    %7197 = vdwg.mxu0
    %7198 = vmatpush.bf16.msra.mxu0 %v4585
    %7199 = vmatpush.bf16.msra.mxu0 %v4577
    %7200 = vmatpush.bf16.msra.mxu0 %v4569
    %7201 = vmatpush.bf16.msra.mxu0 %v4561
    %7202 = vmatpush.bf16.msra.mxu0 %v4553
    %7203 = vmatpush.bf16.msra.mxu0 %v4545
    %7204 = vmatpush.bf16.msra.mxu0 %v4537
    %7205 = vmatpush.bf16.msra.mxu0 %v4529
    %7206 = vmatmul.bf16.gmra.mxu0 %v396
    %v7207 = vpop.f32.mrf.mxu0
    %v7208 = vadd.f32 %v1441, %v7207
    %v7209 = vpop.f32.mrf.mxu0
    %7210 = vdwg.mxu0
    %7211 = vmatpush.bf16.msra.mxu0 %v4649
    %7212 = vmatpush.bf16.msra.mxu0 %v4641
    %7213 = vmatpush.bf16.msra.mxu0 %v4633
    %7214 = vmatpush.bf16.msra.mxu0 %v4625
    %7215 = vmatpush.bf16.msra.mxu0 %v4617
    %7216 = vmatpush.bf16.msra.mxu0 %v4609
    %7217 = vmatpush.bf16.msra.mxu0 %v4601
    %7218 = vmatpush.bf16.msra.mxu0 %v4593
    %7219 = vmatmul.bf16.gmra.mxu0 %v397
    %v7220 = vpop.f32.mrf.mxu0
    %v7221 = vadd.f32 %v7208, %v7220
    %v7222 = vpop.f32.mrf.mxu0
    %7223 = vdwg.mxu0
    %7224 = vmatpush.bf16.msra.mxu0 %v4713
    %7225 = vmatpush.bf16.msra.mxu0 %v4705
    %7226 = vmatpush.bf16.msra.mxu0 %v4697
    %7227 = vmatpush.bf16.msra.mxu0 %v4689
    %7228 = vmatpush.bf16.msra.mxu0 %v4681
    %7229 = vmatpush.bf16.msra.mxu0 %v4673
    %7230 = vmatpush.bf16.msra.mxu0 %v4665
    %7231 = vmatpush.bf16.msra.mxu0 %v4657
    %7232 = vmatmul.bf16.gmra.mxu0 %v398
    %v7233 = vpop.f32.mrf.mxu0
    %v7234 = vadd.f32 %v7221, %v7233
    %v7235 = vpop.f32.mrf.mxu0
    %7236 = vdwg.mxu0
    %7237 = vmatpush.bf16.msra.mxu0 %v4777
    %7238 = vmatpush.bf16.msra.mxu0 %v4769
    %7239 = vmatpush.bf16.msra.mxu0 %v4761
    %7240 = vmatpush.bf16.msra.mxu0 %v4753
    %7241 = vmatpush.bf16.msra.mxu0 %v4745
    %7242 = vmatpush.bf16.msra.mxu0 %v4737
    %7243 = vmatpush.bf16.msra.mxu0 %v4729
    %7244 = vmatpush.bf16.msra.mxu0 %v4721
    %7245 = vmatmul.bf16.gmra.mxu0 %v399
    %v7246 = vpop.f32.mrf.mxu0
    %v7247 = vadd.f32 %v7234, %v7246
    %v7248 = vpop.f32.mrf.mxu0
    %7249 = vdwg.mxu0
    %7250 = vmatpush.bf16.msra.mxu0 %v4841
    %7251 = vmatpush.bf16.msra.mxu0 %v4833
    %7252 = vmatpush.bf16.msra.mxu0 %v4825
    %7253 = vmatpush.bf16.msra.mxu0 %v4817
    %7254 = vmatpush.bf16.msra.mxu0 %v4809
    %7255 = vmatpush.bf16.msra.mxu0 %v4801
    %7256 = vmatpush.bf16.msra.mxu0 %v4793
    %7257 = vmatpush.bf16.msra.mxu0 %v4785
    %7258 = vmatmul.bf16.gmra.mxu0 %v400
    %v7259 = vpop.f32.mrf.mxu0
    %v7260 = vadd.f32 %v7247, %v7259
    %v7261 = vpop.f32.mrf.mxu0
    %7262 = vdwg.mxu0
    %7263 = vmatpush.bf16.msra.mxu0 %v4905
    %7264 = vmatpush.bf16.msra.mxu0 %v4897
    %7265 = vmatpush.bf16.msra.mxu0 %v4889
    %7266 = vmatpush.bf16.msra.mxu0 %v4881
    %7267 = vmatpush.bf16.msra.mxu0 %v4873
    %7268 = vmatpush.bf16.msra.mxu0 %v4865
    %7269 = vmatpush.bf16.msra.mxu0 %v4857
    %7270 = vmatpush.bf16.msra.mxu0 %v4849
    %7271 = vmatmul.bf16.gmra.mxu0 %v401
    %v7272 = vpop.f32.mrf.mxu0
    %v7273 = vadd.f32 %v7260, %v7272
    %v7274 = vpop.f32.mrf.mxu0
    %7275 = vdwg.mxu0
    %7276 = vmatpush.bf16.msra.mxu0 %v4969
    %7277 = vmatpush.bf16.msra.mxu0 %v4961
    %7278 = vmatpush.bf16.msra.mxu0 %v4953
    %7279 = vmatpush.bf16.msra.mxu0 %v4945
    %7280 = vmatpush.bf16.msra.mxu0 %v4937
    %7281 = vmatpush.bf16.msra.mxu0 %v4929
    %7282 = vmatpush.bf16.msra.mxu0 %v4921
    %7283 = vmatpush.bf16.msra.mxu0 %v4913
    %7284 = vmatmul.bf16.gmra.mxu0 %v402
    %v7285 = vpop.f32.mrf.mxu0
    %v7286 = vadd.f32 %v7273, %v7285
    %v7287 = vpop.f32.mrf.mxu0
    %7288 = vdwg.mxu0
    %7289 = vmatpush.bf16.msra.mxu0 %v5033
    %7290 = vmatpush.bf16.msra.mxu0 %v5025
    %7291 = vmatpush.bf16.msra.mxu0 %v5017
    %7292 = vmatpush.bf16.msra.mxu0 %v5009
    %7293 = vmatpush.bf16.msra.mxu0 %v5001
    %7294 = vmatpush.bf16.msra.mxu0 %v4993
    %7295 = vmatpush.bf16.msra.mxu0 %v4985
    %7296 = vmatpush.bf16.msra.mxu0 %v4977
    %7297 = vmatmul.bf16.gmra.mxu0 %v403
    %v7298 = vpop.f32.mrf.mxu0
    %v7299 = vadd.f32 %v7286, %v7298
    %v7300 = vpop.f32.mrf.mxu0
    %7301 = vdwg.mxu0
    %7302 = vmatpush.bf16.msra.mxu0 %v5097
    %7303 = vmatpush.bf16.msra.mxu0 %v5089
    %7304 = vmatpush.bf16.msra.mxu0 %v5081
    %7305 = vmatpush.bf16.msra.mxu0 %v5073
    %7306 = vmatpush.bf16.msra.mxu0 %v5065
    %7307 = vmatpush.bf16.msra.mxu0 %v5057
    %7308 = vmatpush.bf16.msra.mxu0 %v5049
    %7309 = vmatpush.bf16.msra.mxu0 %v5041
    %7310 = vmatmul.bf16.gmra.mxu0 %v404
    %v7311 = vpop.f32.mrf.mxu0
    %v7312 = vadd.f32 %v7299, %v7311
    %v7313 = vpop.f32.mrf.mxu0
    %7314 = vdwg.mxu0
    %7315 = vmatpush.bf16.msra.mxu0 %v5161
    %7316 = vmatpush.bf16.msra.mxu0 %v5153
    %7317 = vmatpush.bf16.msra.mxu0 %v5145
    %7318 = vmatpush.bf16.msra.mxu0 %v5137
    %7319 = vmatpush.bf16.msra.mxu0 %v5129
    %7320 = vmatpush.bf16.msra.mxu0 %v5121
    %7321 = vmatpush.bf16.msra.mxu0 %v5113
    %7322 = vmatpush.bf16.msra.mxu0 %v5105
    %7323 = vmatmul.bf16.gmra.mxu0 %v405
    %v7324 = vpop.f32.mrf.mxu0
    %v7325 = vadd.f32 %v7312, %v7324
    %v7326 = vpop.f32.mrf.mxu0
    %7327 = vdwg.mxu0
    %7328 = vmatpush.bf16.msra.mxu0 %v5225
    %7329 = vmatpush.bf16.msra.mxu0 %v5217
    %7330 = vmatpush.bf16.msra.mxu0 %v5209
    %7331 = vmatpush.bf16.msra.mxu0 %v5201
    %7332 = vmatpush.bf16.msra.mxu0 %v5193
    %7333 = vmatpush.bf16.msra.mxu0 %v5185
    %7334 = vmatpush.bf16.msra.mxu0 %v5177
    %7335 = vmatpush.bf16.msra.mxu0 %v5169
    %7336 = vmatmul.bf16.gmra.mxu0 %v406
    %v7337 = vpop.f32.mrf.mxu0
    %v7338 = vadd.f32 %v7325, %v7337
    %v7339 = vpop.f32.mrf.mxu0
    %7340 = vdwg.mxu0
    %7341 = vmatpush.bf16.msra.mxu0 %v5289
    %7342 = vmatpush.bf16.msra.mxu0 %v5281
    %7343 = vmatpush.bf16.msra.mxu0 %v5273
    %7344 = vmatpush.bf16.msra.mxu0 %v5265
    %7345 = vmatpush.bf16.msra.mxu0 %v5257
    %7346 = vmatpush.bf16.msra.mxu0 %v5249
    %7347 = vmatpush.bf16.msra.mxu0 %v5241
    %7348 = vmatpush.bf16.msra.mxu0 %v5233
    %7349 = vmatmul.bf16.gmra.mxu0 %v407
    %v7350 = vpop.f32.mrf.mxu0
    %v7351 = vadd.f32 %v7338, %v7350
    %v7352 = vpop.f32.mrf.mxu0
    %7353 = vdwg.mxu0
    %7354 = vmatpush.bf16.msra.mxu0 %v5353
    %7355 = vmatpush.bf16.msra.mxu0 %v5345
    %7356 = vmatpush.bf16.msra.mxu0 %v5337
    %7357 = vmatpush.bf16.msra.mxu0 %v5329
    %7358 = vmatpush.bf16.msra.mxu0 %v5321
    %7359 = vmatpush.bf16.msra.mxu0 %v5313
    %7360 = vmatpush.bf16.msra.mxu0 %v5305
    %7361 = vmatpush.bf16.msra.mxu0 %v5297
    %7362 = vmatmul.bf16.gmra.mxu0 %v408
    %v7363 = vpop.f32.mrf.mxu0
    %v7364 = vadd.f32 %v7351, %v7363
    %v7365 = vpop.f32.mrf.mxu0
    %7366 = vdwg.mxu0
    %7367 = vmatpush.bf16.msra.mxu0 %v5417
    %7368 = vmatpush.bf16.msra.mxu0 %v5409
    %7369 = vmatpush.bf16.msra.mxu0 %v5401
    %7370 = vmatpush.bf16.msra.mxu0 %v5393
    %7371 = vmatpush.bf16.msra.mxu0 %v5385
    %7372 = vmatpush.bf16.msra.mxu0 %v5377
    %7373 = vmatpush.bf16.msra.mxu0 %v5369
    %7374 = vmatpush.bf16.msra.mxu0 %v5361
    %7375 = vmatmul.bf16.gmra.mxu0 %v409
    %v7376 = vpop.f32.mrf.mxu0
    %v7377 = vadd.f32 %v7364, %v7376
    %v7378 = vpop.f32.mrf.mxu0
    %7379 = vdwg.mxu0
    %7380 = vmatpush.bf16.msra.mxu0 %v5481
    %7381 = vmatpush.bf16.msra.mxu0 %v5473
    %7382 = vmatpush.bf16.msra.mxu0 %v5465
    %7383 = vmatpush.bf16.msra.mxu0 %v5457
    %7384 = vmatpush.bf16.msra.mxu0 %v5449
    %7385 = vmatpush.bf16.msra.mxu0 %v5441
    %7386 = vmatpush.bf16.msra.mxu0 %v5433
    %7387 = vmatpush.bf16.msra.mxu0 %v5425
    %7388 = vmatmul.bf16.gmra.mxu0 %v410
    %v7389 = vpop.f32.mrf.mxu0
    %v7390 = vadd.f32 %v7377, %v7389
    %v7391 = vpop.f32.mrf.mxu0
    %7392 = vdwg.mxu0
    %7393 = vmatpush.bf16.msra.mxu0 %v5545
    %7394 = vmatpush.bf16.msra.mxu0 %v5537
    %7395 = vmatpush.bf16.msra.mxu0 %v5529
    %7396 = vmatpush.bf16.msra.mxu0 %v5521
    %7397 = vmatpush.bf16.msra.mxu0 %v5513
    %7398 = vmatpush.bf16.msra.mxu0 %v5505
    %7399 = vmatpush.bf16.msra.mxu0 %v5497
    %7400 = vmatpush.bf16.msra.mxu0 %v5489
    %7401 = vmatmul.bf16.gmra.mxu0 %v411
    %v7402 = vpop.f32.mrf.mxu0
    %v7403 = vadd.f32 %v7390, %v7402
    %v7404 = vpop.f32.mrf.mxu0
    %7405 = vdwg.mxu0
    %7406 = vmatpush.bf16.msra.mxu0 %v4586
    %7407 = vmatpush.bf16.msra.mxu0 %v4578
    %7408 = vmatpush.bf16.msra.mxu0 %v4570
    %7409 = vmatpush.bf16.msra.mxu0 %v4562
    %7410 = vmatpush.bf16.msra.mxu0 %v4554
    %7411 = vmatpush.bf16.msra.mxu0 %v4546
    %7412 = vmatpush.bf16.msra.mxu0 %v4538
    %7413 = vmatpush.bf16.msra.mxu0 %v4530
    %7414 = vmatmul.bf16.gmra.mxu0 %v396
    %v7415 = vpop.f32.mrf.mxu0
    %v7416 = vadd.f32 %v1442, %v7415
    %v7417 = vpop.f32.mrf.mxu0
    %7418 = vdwg.mxu0
    %7419 = vmatpush.bf16.msra.mxu0 %v4650
    %7420 = vmatpush.bf16.msra.mxu0 %v4642
    %7421 = vmatpush.bf16.msra.mxu0 %v4634
    %7422 = vmatpush.bf16.msra.mxu0 %v4626
    %7423 = vmatpush.bf16.msra.mxu0 %v4618
    %7424 = vmatpush.bf16.msra.mxu0 %v4610
    %7425 = vmatpush.bf16.msra.mxu0 %v4602
    %7426 = vmatpush.bf16.msra.mxu0 %v4594
    %7427 = vmatmul.bf16.gmra.mxu0 %v397
    %v7428 = vpop.f32.mrf.mxu0
    %v7429 = vadd.f32 %v7416, %v7428
    %v7430 = vpop.f32.mrf.mxu0
    %7431 = vdwg.mxu0
    %7432 = vmatpush.bf16.msra.mxu0 %v4714
    %7433 = vmatpush.bf16.msra.mxu0 %v4706
    %7434 = vmatpush.bf16.msra.mxu0 %v4698
    %7435 = vmatpush.bf16.msra.mxu0 %v4690
    %7436 = vmatpush.bf16.msra.mxu0 %v4682
    %7437 = vmatpush.bf16.msra.mxu0 %v4674
    %7438 = vmatpush.bf16.msra.mxu0 %v4666
    %7439 = vmatpush.bf16.msra.mxu0 %v4658
    %7440 = vmatmul.bf16.gmra.mxu0 %v398
    %v7441 = vpop.f32.mrf.mxu0
    %v7442 = vadd.f32 %v7429, %v7441
    %v7443 = vpop.f32.mrf.mxu0
    %7444 = vdwg.mxu0
    %7445 = vmatpush.bf16.msra.mxu0 %v4778
    %7446 = vmatpush.bf16.msra.mxu0 %v4770
    %7447 = vmatpush.bf16.msra.mxu0 %v4762
    %7448 = vmatpush.bf16.msra.mxu0 %v4754
    %7449 = vmatpush.bf16.msra.mxu0 %v4746
    %7450 = vmatpush.bf16.msra.mxu0 %v4738
    %7451 = vmatpush.bf16.msra.mxu0 %v4730
    %7452 = vmatpush.bf16.msra.mxu0 %v4722
    %7453 = vmatmul.bf16.gmra.mxu0 %v399
    %v7454 = vpop.f32.mrf.mxu0
    %v7455 = vadd.f32 %v7442, %v7454
    %v7456 = vpop.f32.mrf.mxu0
    %7457 = vdwg.mxu0
    %7458 = vmatpush.bf16.msra.mxu0 %v4842
    %7459 = vmatpush.bf16.msra.mxu0 %v4834
    %7460 = vmatpush.bf16.msra.mxu0 %v4826
    %7461 = vmatpush.bf16.msra.mxu0 %v4818
    %7462 = vmatpush.bf16.msra.mxu0 %v4810
    %7463 = vmatpush.bf16.msra.mxu0 %v4802
    %7464 = vmatpush.bf16.msra.mxu0 %v4794
    %7465 = vmatpush.bf16.msra.mxu0 %v4786
    %7466 = vmatmul.bf16.gmra.mxu0 %v400
    %v7467 = vpop.f32.mrf.mxu0
    %v7468 = vadd.f32 %v7455, %v7467
    %v7469 = vpop.f32.mrf.mxu0
    %7470 = vdwg.mxu0
    %7471 = vmatpush.bf16.msra.mxu0 %v4906
    %7472 = vmatpush.bf16.msra.mxu0 %v4898
    %7473 = vmatpush.bf16.msra.mxu0 %v4890
    %7474 = vmatpush.bf16.msra.mxu0 %v4882
    %7475 = vmatpush.bf16.msra.mxu0 %v4874
    %7476 = vmatpush.bf16.msra.mxu0 %v4866
    %7477 = vmatpush.bf16.msra.mxu0 %v4858
    %7478 = vmatpush.bf16.msra.mxu0 %v4850
    %7479 = vmatmul.bf16.gmra.mxu0 %v401
    %v7480 = vpop.f32.mrf.mxu0
    %v7481 = vadd.f32 %v7468, %v7480
    %v7482 = vpop.f32.mrf.mxu0
    %7483 = vdwg.mxu0
    %7484 = vmatpush.bf16.msra.mxu0 %v4970
    %7485 = vmatpush.bf16.msra.mxu0 %v4962
    %7486 = vmatpush.bf16.msra.mxu0 %v4954
    %7487 = vmatpush.bf16.msra.mxu0 %v4946
    %7488 = vmatpush.bf16.msra.mxu0 %v4938
    %7489 = vmatpush.bf16.msra.mxu0 %v4930
    %7490 = vmatpush.bf16.msra.mxu0 %v4922
    %7491 = vmatpush.bf16.msra.mxu0 %v4914
    %7492 = vmatmul.bf16.gmra.mxu0 %v402
    %v7493 = vpop.f32.mrf.mxu0
    %v7494 = vadd.f32 %v7481, %v7493
    %v7495 = vpop.f32.mrf.mxu0
    %7496 = vdwg.mxu0
    %7497 = vmatpush.bf16.msra.mxu0 %v5034
    %7498 = vmatpush.bf16.msra.mxu0 %v5026
    %7499 = vmatpush.bf16.msra.mxu0 %v5018
    %7500 = vmatpush.bf16.msra.mxu0 %v5010
    %7501 = vmatpush.bf16.msra.mxu0 %v5002
    %7502 = vmatpush.bf16.msra.mxu0 %v4994
    %7503 = vmatpush.bf16.msra.mxu0 %v4986
    %7504 = vmatpush.bf16.msra.mxu0 %v4978
    %7505 = vmatmul.bf16.gmra.mxu0 %v403
    %v7506 = vpop.f32.mrf.mxu0
    %v7507 = vadd.f32 %v7494, %v7506
    %v7508 = vpop.f32.mrf.mxu0
    %7509 = vdwg.mxu0
    %7510 = vmatpush.bf16.msra.mxu0 %v5098
    %7511 = vmatpush.bf16.msra.mxu0 %v5090
    %7512 = vmatpush.bf16.msra.mxu0 %v5082
    %7513 = vmatpush.bf16.msra.mxu0 %v5074
    %7514 = vmatpush.bf16.msra.mxu0 %v5066
    %7515 = vmatpush.bf16.msra.mxu0 %v5058
    %7516 = vmatpush.bf16.msra.mxu0 %v5050
    %7517 = vmatpush.bf16.msra.mxu0 %v5042
    %7518 = vmatmul.bf16.gmra.mxu0 %v404
    %v7519 = vpop.f32.mrf.mxu0
    %v7520 = vadd.f32 %v7507, %v7519
    %v7521 = vpop.f32.mrf.mxu0
    %7522 = vdwg.mxu0
    %7523 = vmatpush.bf16.msra.mxu0 %v5162
    %7524 = vmatpush.bf16.msra.mxu0 %v5154
    %7525 = vmatpush.bf16.msra.mxu0 %v5146
    %7526 = vmatpush.bf16.msra.mxu0 %v5138
    %7527 = vmatpush.bf16.msra.mxu0 %v5130
    %7528 = vmatpush.bf16.msra.mxu0 %v5122
    %7529 = vmatpush.bf16.msra.mxu0 %v5114
    %7530 = vmatpush.bf16.msra.mxu0 %v5106
    %7531 = vmatmul.bf16.gmra.mxu0 %v405
    %v7532 = vpop.f32.mrf.mxu0
    %v7533 = vadd.f32 %v7520, %v7532
    %v7534 = vpop.f32.mrf.mxu0
    %7535 = vdwg.mxu0
    %7536 = vmatpush.bf16.msra.mxu0 %v5226
    %7537 = vmatpush.bf16.msra.mxu0 %v5218
    %7538 = vmatpush.bf16.msra.mxu0 %v5210
    %7539 = vmatpush.bf16.msra.mxu0 %v5202
    %7540 = vmatpush.bf16.msra.mxu0 %v5194
    %7541 = vmatpush.bf16.msra.mxu0 %v5186
    %7542 = vmatpush.bf16.msra.mxu0 %v5178
    %7543 = vmatpush.bf16.msra.mxu0 %v5170
    %7544 = vmatmul.bf16.gmra.mxu0 %v406
    %v7545 = vpop.f32.mrf.mxu0
    %v7546 = vadd.f32 %v7533, %v7545
    %v7547 = vpop.f32.mrf.mxu0
    %7548 = vdwg.mxu0
    %7549 = vmatpush.bf16.msra.mxu0 %v5290
    %7550 = vmatpush.bf16.msra.mxu0 %v5282
    %7551 = vmatpush.bf16.msra.mxu0 %v5274
    %7552 = vmatpush.bf16.msra.mxu0 %v5266
    %7553 = vmatpush.bf16.msra.mxu0 %v5258
    %7554 = vmatpush.bf16.msra.mxu0 %v5250
    %7555 = vmatpush.bf16.msra.mxu0 %v5242
    %7556 = vmatpush.bf16.msra.mxu0 %v5234
    %7557 = vmatmul.bf16.gmra.mxu0 %v407
    %v7558 = vpop.f32.mrf.mxu0
    %v7559 = vadd.f32 %v7546, %v7558
    %v7560 = vpop.f32.mrf.mxu0
    %7561 = vdwg.mxu0
    %7562 = vmatpush.bf16.msra.mxu0 %v5354
    %7563 = vmatpush.bf16.msra.mxu0 %v5346
    %7564 = vmatpush.bf16.msra.mxu0 %v5338
    %7565 = vmatpush.bf16.msra.mxu0 %v5330
    %7566 = vmatpush.bf16.msra.mxu0 %v5322
    %7567 = vmatpush.bf16.msra.mxu0 %v5314
    %7568 = vmatpush.bf16.msra.mxu0 %v5306
    %7569 = vmatpush.bf16.msra.mxu0 %v5298
    %7570 = vmatmul.bf16.gmra.mxu0 %v408
    %v7571 = vpop.f32.mrf.mxu0
    %v7572 = vadd.f32 %v7559, %v7571
    %v7573 = vpop.f32.mrf.mxu0
    %7574 = vdwg.mxu0
    %7575 = vmatpush.bf16.msra.mxu0 %v5418
    %7576 = vmatpush.bf16.msra.mxu0 %v5410
    %7577 = vmatpush.bf16.msra.mxu0 %v5402
    %7578 = vmatpush.bf16.msra.mxu0 %v5394
    %7579 = vmatpush.bf16.msra.mxu0 %v5386
    %7580 = vmatpush.bf16.msra.mxu0 %v5378
    %7581 = vmatpush.bf16.msra.mxu0 %v5370
    %7582 = vmatpush.bf16.msra.mxu0 %v5362
    %7583 = vmatmul.bf16.gmra.mxu0 %v409
    %v7584 = vpop.f32.mrf.mxu0
    %v7585 = vadd.f32 %v7572, %v7584
    %v7586 = vpop.f32.mrf.mxu0
    %7587 = vdwg.mxu0
    %7588 = vmatpush.bf16.msra.mxu0 %v5482
    %7589 = vmatpush.bf16.msra.mxu0 %v5474
    %7590 = vmatpush.bf16.msra.mxu0 %v5466
    %7591 = vmatpush.bf16.msra.mxu0 %v5458
    %7592 = vmatpush.bf16.msra.mxu0 %v5450
    %7593 = vmatpush.bf16.msra.mxu0 %v5442
    %7594 = vmatpush.bf16.msra.mxu0 %v5434
    %7595 = vmatpush.bf16.msra.mxu0 %v5426
    %7596 = vmatmul.bf16.gmra.mxu0 %v410
    %v7597 = vpop.f32.mrf.mxu0
    %v7598 = vadd.f32 %v7585, %v7597
    %v7599 = vpop.f32.mrf.mxu0
    %7600 = vdwg.mxu0
    %7601 = vmatpush.bf16.msra.mxu0 %v5546
    %7602 = vmatpush.bf16.msra.mxu0 %v5538
    %7603 = vmatpush.bf16.msra.mxu0 %v5530
    %7604 = vmatpush.bf16.msra.mxu0 %v5522
    %7605 = vmatpush.bf16.msra.mxu0 %v5514
    %7606 = vmatpush.bf16.msra.mxu0 %v5506
    %7607 = vmatpush.bf16.msra.mxu0 %v5498
    %7608 = vmatpush.bf16.msra.mxu0 %v5490
    %7609 = vmatmul.bf16.gmra.mxu0 %v411
    %v7610 = vpop.f32.mrf.mxu0
    %v7611 = vadd.f32 %v7598, %v7610
    %v7612 = vpop.f32.mrf.mxu0
    %7613 = vdwg.mxu0
    %7614 = vmatpush.bf16.msra.mxu0 %v4587
    %7615 = vmatpush.bf16.msra.mxu0 %v4579
    %7616 = vmatpush.bf16.msra.mxu0 %v4571
    %7617 = vmatpush.bf16.msra.mxu0 %v4563
    %7618 = vmatpush.bf16.msra.mxu0 %v4555
    %7619 = vmatpush.bf16.msra.mxu0 %v4547
    %7620 = vmatpush.bf16.msra.mxu0 %v4539
    %7621 = vmatpush.bf16.msra.mxu0 %v4531
    %7622 = vmatmul.bf16.gmra.mxu0 %v396
    %v7623 = vpop.f32.mrf.mxu0
    %v7624 = vadd.f32 %v1443, %v7623
    %v7625 = vpop.f32.mrf.mxu0
    %7626 = vdwg.mxu0
    %7627 = vmatpush.bf16.msra.mxu0 %v4651
    %7628 = vmatpush.bf16.msra.mxu0 %v4643
    %7629 = vmatpush.bf16.msra.mxu0 %v4635
    %7630 = vmatpush.bf16.msra.mxu0 %v4627
    %7631 = vmatpush.bf16.msra.mxu0 %v4619
    %7632 = vmatpush.bf16.msra.mxu0 %v4611
    %7633 = vmatpush.bf16.msra.mxu0 %v4603
    %7634 = vmatpush.bf16.msra.mxu0 %v4595
    %7635 = vmatmul.bf16.gmra.mxu0 %v397
    %v7636 = vpop.f32.mrf.mxu0
    %v7637 = vadd.f32 %v7624, %v7636
    %v7638 = vpop.f32.mrf.mxu0
    %7639 = vdwg.mxu0
    %7640 = vmatpush.bf16.msra.mxu0 %v4715
    %7641 = vmatpush.bf16.msra.mxu0 %v4707
    %7642 = vmatpush.bf16.msra.mxu0 %v4699
    %7643 = vmatpush.bf16.msra.mxu0 %v4691
    %7644 = vmatpush.bf16.msra.mxu0 %v4683
    %7645 = vmatpush.bf16.msra.mxu0 %v4675
    %7646 = vmatpush.bf16.msra.mxu0 %v4667
    %7647 = vmatpush.bf16.msra.mxu0 %v4659
    %7648 = vmatmul.bf16.gmra.mxu0 %v398
    %v7649 = vpop.f32.mrf.mxu0
    %v7650 = vadd.f32 %v7637, %v7649
    %v7651 = vpop.f32.mrf.mxu0
    %7652 = vdwg.mxu0
    %7653 = vmatpush.bf16.msra.mxu0 %v4779
    %7654 = vmatpush.bf16.msra.mxu0 %v4771
    %7655 = vmatpush.bf16.msra.mxu0 %v4763
    %7656 = vmatpush.bf16.msra.mxu0 %v4755
    %7657 = vmatpush.bf16.msra.mxu0 %v4747
    %7658 = vmatpush.bf16.msra.mxu0 %v4739
    %7659 = vmatpush.bf16.msra.mxu0 %v4731
    %7660 = vmatpush.bf16.msra.mxu0 %v4723
    %7661 = vmatmul.bf16.gmra.mxu0 %v399
    %v7662 = vpop.f32.mrf.mxu0
    %v7663 = vadd.f32 %v7650, %v7662
    %v7664 = vpop.f32.mrf.mxu0
    %7665 = vdwg.mxu0
    %7666 = vmatpush.bf16.msra.mxu0 %v4843
    %7667 = vmatpush.bf16.msra.mxu0 %v4835
    %7668 = vmatpush.bf16.msra.mxu0 %v4827
    %7669 = vmatpush.bf16.msra.mxu0 %v4819
    %7670 = vmatpush.bf16.msra.mxu0 %v4811
    %7671 = vmatpush.bf16.msra.mxu0 %v4803
    %7672 = vmatpush.bf16.msra.mxu0 %v4795
    %7673 = vmatpush.bf16.msra.mxu0 %v4787
    %7674 = vmatmul.bf16.gmra.mxu0 %v400
    %v7675 = vpop.f32.mrf.mxu0
    %v7676 = vadd.f32 %v7663, %v7675
    %v7677 = vpop.f32.mrf.mxu0
    %7678 = vdwg.mxu0
    %7679 = vmatpush.bf16.msra.mxu0 %v4907
    %7680 = vmatpush.bf16.msra.mxu0 %v4899
    %7681 = vmatpush.bf16.msra.mxu0 %v4891
    %7682 = vmatpush.bf16.msra.mxu0 %v4883
    %7683 = vmatpush.bf16.msra.mxu0 %v4875
    %7684 = vmatpush.bf16.msra.mxu0 %v4867
    %7685 = vmatpush.bf16.msra.mxu0 %v4859
    %7686 = vmatpush.bf16.msra.mxu0 %v4851
    %7687 = vmatmul.bf16.gmra.mxu0 %v401
    %v7688 = vpop.f32.mrf.mxu0
    %v7689 = vadd.f32 %v7676, %v7688
    %v7690 = vpop.f32.mrf.mxu0
    %7691 = vdwg.mxu0
    %7692 = vmatpush.bf16.msra.mxu0 %v4971
    %7693 = vmatpush.bf16.msra.mxu0 %v4963
    %7694 = vmatpush.bf16.msra.mxu0 %v4955
    %7695 = vmatpush.bf16.msra.mxu0 %v4947
    %7696 = vmatpush.bf16.msra.mxu0 %v4939
    %7697 = vmatpush.bf16.msra.mxu0 %v4931
    %7698 = vmatpush.bf16.msra.mxu0 %v4923
    %7699 = vmatpush.bf16.msra.mxu0 %v4915
    %7700 = vmatmul.bf16.gmra.mxu0 %v402
    %v7701 = vpop.f32.mrf.mxu0
    %v7702 = vadd.f32 %v7689, %v7701
    %v7703 = vpop.f32.mrf.mxu0
    %7704 = vdwg.mxu0
    %7705 = vmatpush.bf16.msra.mxu0 %v5035
    %7706 = vmatpush.bf16.msra.mxu0 %v5027
    %7707 = vmatpush.bf16.msra.mxu0 %v5019
    %7708 = vmatpush.bf16.msra.mxu0 %v5011
    %7709 = vmatpush.bf16.msra.mxu0 %v5003
    %7710 = vmatpush.bf16.msra.mxu0 %v4995
    %7711 = vmatpush.bf16.msra.mxu0 %v4987
    %7712 = vmatpush.bf16.msra.mxu0 %v4979
    %7713 = vmatmul.bf16.gmra.mxu0 %v403
    %v7714 = vpop.f32.mrf.mxu0
    %v7715 = vadd.f32 %v7702, %v7714
    %v7716 = vpop.f32.mrf.mxu0
    %7717 = vdwg.mxu0
    %7718 = vmatpush.bf16.msra.mxu0 %v5099
    %7719 = vmatpush.bf16.msra.mxu0 %v5091
    %7720 = vmatpush.bf16.msra.mxu0 %v5083
    %7721 = vmatpush.bf16.msra.mxu0 %v5075
    %7722 = vmatpush.bf16.msra.mxu0 %v5067
    %7723 = vmatpush.bf16.msra.mxu0 %v5059
    %7724 = vmatpush.bf16.msra.mxu0 %v5051
    %7725 = vmatpush.bf16.msra.mxu0 %v5043
    %7726 = vmatmul.bf16.gmra.mxu0 %v404
    %v7727 = vpop.f32.mrf.mxu0
    %v7728 = vadd.f32 %v7715, %v7727
    %v7729 = vpop.f32.mrf.mxu0
    %7730 = vdwg.mxu0
    %7731 = vmatpush.bf16.msra.mxu0 %v5163
    %7732 = vmatpush.bf16.msra.mxu0 %v5155
    %7733 = vmatpush.bf16.msra.mxu0 %v5147
    %7734 = vmatpush.bf16.msra.mxu0 %v5139
    %7735 = vmatpush.bf16.msra.mxu0 %v5131
    %7736 = vmatpush.bf16.msra.mxu0 %v5123
    %7737 = vmatpush.bf16.msra.mxu0 %v5115
    %7738 = vmatpush.bf16.msra.mxu0 %v5107
    %7739 = vmatmul.bf16.gmra.mxu0 %v405
    %v7740 = vpop.f32.mrf.mxu0
    %v7741 = vadd.f32 %v7728, %v7740
    %v7742 = vpop.f32.mrf.mxu0
    %7743 = vdwg.mxu0
    %7744 = vmatpush.bf16.msra.mxu0 %v5227
    %7745 = vmatpush.bf16.msra.mxu0 %v5219
    %7746 = vmatpush.bf16.msra.mxu0 %v5211
    %7747 = vmatpush.bf16.msra.mxu0 %v5203
    %7748 = vmatpush.bf16.msra.mxu0 %v5195
    %7749 = vmatpush.bf16.msra.mxu0 %v5187
    %7750 = vmatpush.bf16.msra.mxu0 %v5179
    %7751 = vmatpush.bf16.msra.mxu0 %v5171
    %7752 = vmatmul.bf16.gmra.mxu0 %v406
    %v7753 = vpop.f32.mrf.mxu0
    %v7754 = vadd.f32 %v7741, %v7753
    %v7755 = vpop.f32.mrf.mxu0
    %7756 = vdwg.mxu0
    %7757 = vmatpush.bf16.msra.mxu0 %v5291
    %7758 = vmatpush.bf16.msra.mxu0 %v5283
    %7759 = vmatpush.bf16.msra.mxu0 %v5275
    %7760 = vmatpush.bf16.msra.mxu0 %v5267
    %7761 = vmatpush.bf16.msra.mxu0 %v5259
    %7762 = vmatpush.bf16.msra.mxu0 %v5251
    %7763 = vmatpush.bf16.msra.mxu0 %v5243
    %7764 = vmatpush.bf16.msra.mxu0 %v5235
    %7765 = vmatmul.bf16.gmra.mxu0 %v407
    %v7766 = vpop.f32.mrf.mxu0
    %v7767 = vadd.f32 %v7754, %v7766
    %v7768 = vpop.f32.mrf.mxu0
    %7769 = vdwg.mxu0
    %7770 = vmatpush.bf16.msra.mxu0 %v5355
    %7771 = vmatpush.bf16.msra.mxu0 %v5347
    %7772 = vmatpush.bf16.msra.mxu0 %v5339
    %7773 = vmatpush.bf16.msra.mxu0 %v5331
    %7774 = vmatpush.bf16.msra.mxu0 %v5323
    %7775 = vmatpush.bf16.msra.mxu0 %v5315
    %7776 = vmatpush.bf16.msra.mxu0 %v5307
    %7777 = vmatpush.bf16.msra.mxu0 %v5299
    %7778 = vmatmul.bf16.gmra.mxu0 %v408
    %v7779 = vpop.f32.mrf.mxu0
    %v7780 = vadd.f32 %v7767, %v7779
    %v7781 = vpop.f32.mrf.mxu0
    %7782 = vdwg.mxu0
    %7783 = vmatpush.bf16.msra.mxu0 %v5419
    %7784 = vmatpush.bf16.msra.mxu0 %v5411
    %7785 = vmatpush.bf16.msra.mxu0 %v5403
    %7786 = vmatpush.bf16.msra.mxu0 %v5395
    %7787 = vmatpush.bf16.msra.mxu0 %v5387
    %7788 = vmatpush.bf16.msra.mxu0 %v5379
    %7789 = vmatpush.bf16.msra.mxu0 %v5371
    %7790 = vmatpush.bf16.msra.mxu0 %v5363
    %7791 = vmatmul.bf16.gmra.mxu0 %v409
    %v7792 = vpop.f32.mrf.mxu0
    %v7793 = vadd.f32 %v7780, %v7792
    %v7794 = vpop.f32.mrf.mxu0
    %7795 = vdwg.mxu0
    %7796 = vmatpush.bf16.msra.mxu0 %v5483
    %7797 = vmatpush.bf16.msra.mxu0 %v5475
    %7798 = vmatpush.bf16.msra.mxu0 %v5467
    %7799 = vmatpush.bf16.msra.mxu0 %v5459
    %7800 = vmatpush.bf16.msra.mxu0 %v5451
    %7801 = vmatpush.bf16.msra.mxu0 %v5443
    %7802 = vmatpush.bf16.msra.mxu0 %v5435
    %7803 = vmatpush.bf16.msra.mxu0 %v5427
    %7804 = vmatmul.bf16.gmra.mxu0 %v410
    %v7805 = vpop.f32.mrf.mxu0
    %v7806 = vadd.f32 %v7793, %v7805
    %v7807 = vpop.f32.mrf.mxu0
    %7808 = vdwg.mxu0
    %7809 = vmatpush.bf16.msra.mxu0 %v5547
    %7810 = vmatpush.bf16.msra.mxu0 %v5539
    %7811 = vmatpush.bf16.msra.mxu0 %v5531
    %7812 = vmatpush.bf16.msra.mxu0 %v5523
    %7813 = vmatpush.bf16.msra.mxu0 %v5515
    %7814 = vmatpush.bf16.msra.mxu0 %v5507
    %7815 = vmatpush.bf16.msra.mxu0 %v5499
    %7816 = vmatpush.bf16.msra.mxu0 %v5491
    %7817 = vmatmul.bf16.gmra.mxu0 %v411
    %v7818 = vpop.f32.mrf.mxu0
    %v7819 = vadd.f32 %v7806, %v7818
    %v7820 = vpop.f32.mrf.mxu0
    %7821 = vdwg.mxu0
    %7822 = vmatpush.bf16.msra.mxu0 %v4588
    %7823 = vmatpush.bf16.msra.mxu0 %v4580
    %7824 = vmatpush.bf16.msra.mxu0 %v4572
    %7825 = vmatpush.bf16.msra.mxu0 %v4564
    %7826 = vmatpush.bf16.msra.mxu0 %v4556
    %7827 = vmatpush.bf16.msra.mxu0 %v4548
    %7828 = vmatpush.bf16.msra.mxu0 %v4540
    %7829 = vmatpush.bf16.msra.mxu0 %v4532
    %7830 = vmatmul.bf16.gmra.mxu0 %v396
    %v7831 = vpop.f32.mrf.mxu0
    %v7832 = vadd.f32 %v1444, %v7831
    %v7833 = vpop.f32.mrf.mxu0
    %7834 = vdwg.mxu0
    %7835 = vmatpush.bf16.msra.mxu0 %v4652
    %7836 = vmatpush.bf16.msra.mxu0 %v4644
    %7837 = vmatpush.bf16.msra.mxu0 %v4636
    %7838 = vmatpush.bf16.msra.mxu0 %v4628
    %7839 = vmatpush.bf16.msra.mxu0 %v4620
    %7840 = vmatpush.bf16.msra.mxu0 %v4612
    %7841 = vmatpush.bf16.msra.mxu0 %v4604
    %7842 = vmatpush.bf16.msra.mxu0 %v4596
    %7843 = vmatmul.bf16.gmra.mxu0 %v397
    %v7844 = vpop.f32.mrf.mxu0
    %v7845 = vadd.f32 %v7832, %v7844
    %v7846 = vpop.f32.mrf.mxu0
    %7847 = vdwg.mxu0
    %7848 = vmatpush.bf16.msra.mxu0 %v4716
    %7849 = vmatpush.bf16.msra.mxu0 %v4708
    %7850 = vmatpush.bf16.msra.mxu0 %v4700
    %7851 = vmatpush.bf16.msra.mxu0 %v4692
    %7852 = vmatpush.bf16.msra.mxu0 %v4684
    %7853 = vmatpush.bf16.msra.mxu0 %v4676
    %7854 = vmatpush.bf16.msra.mxu0 %v4668
    %7855 = vmatpush.bf16.msra.mxu0 %v4660
    %7856 = vmatmul.bf16.gmra.mxu0 %v398
    %v7857 = vpop.f32.mrf.mxu0
    %v7858 = vadd.f32 %v7845, %v7857
    %v7859 = vpop.f32.mrf.mxu0
    %7860 = vdwg.mxu0
    %7861 = vmatpush.bf16.msra.mxu0 %v4780
    %7862 = vmatpush.bf16.msra.mxu0 %v4772
    %7863 = vmatpush.bf16.msra.mxu0 %v4764
    %7864 = vmatpush.bf16.msra.mxu0 %v4756
    %7865 = vmatpush.bf16.msra.mxu0 %v4748
    %7866 = vmatpush.bf16.msra.mxu0 %v4740
    %7867 = vmatpush.bf16.msra.mxu0 %v4732
    %7868 = vmatpush.bf16.msra.mxu0 %v4724
    %7869 = vmatmul.bf16.gmra.mxu0 %v399
    %v7870 = vpop.f32.mrf.mxu0
    %v7871 = vadd.f32 %v7858, %v7870
    %v7872 = vpop.f32.mrf.mxu0
    %7873 = vdwg.mxu0
    %7874 = vmatpush.bf16.msra.mxu0 %v4844
    %7875 = vmatpush.bf16.msra.mxu0 %v4836
    %7876 = vmatpush.bf16.msra.mxu0 %v4828
    %7877 = vmatpush.bf16.msra.mxu0 %v4820
    %7878 = vmatpush.bf16.msra.mxu0 %v4812
    %7879 = vmatpush.bf16.msra.mxu0 %v4804
    %7880 = vmatpush.bf16.msra.mxu0 %v4796
    %7881 = vmatpush.bf16.msra.mxu0 %v4788
    %7882 = vmatmul.bf16.gmra.mxu0 %v400
    %v7883 = vpop.f32.mrf.mxu0
    %v7884 = vadd.f32 %v7871, %v7883
    %v7885 = vpop.f32.mrf.mxu0
    %7886 = vdwg.mxu0
    %7887 = vmatpush.bf16.msra.mxu0 %v4908
    %7888 = vmatpush.bf16.msra.mxu0 %v4900
    %7889 = vmatpush.bf16.msra.mxu0 %v4892
    %7890 = vmatpush.bf16.msra.mxu0 %v4884
    %7891 = vmatpush.bf16.msra.mxu0 %v4876
    %7892 = vmatpush.bf16.msra.mxu0 %v4868
    %7893 = vmatpush.bf16.msra.mxu0 %v4860
    %7894 = vmatpush.bf16.msra.mxu0 %v4852
    %7895 = vmatmul.bf16.gmra.mxu0 %v401
    %v7896 = vpop.f32.mrf.mxu0
    %v7897 = vadd.f32 %v7884, %v7896
    %v7898 = vpop.f32.mrf.mxu0
    %7899 = vdwg.mxu0
    %7900 = vmatpush.bf16.msra.mxu0 %v4972
    %7901 = vmatpush.bf16.msra.mxu0 %v4964
    %7902 = vmatpush.bf16.msra.mxu0 %v4956
    %7903 = vmatpush.bf16.msra.mxu0 %v4948
    %7904 = vmatpush.bf16.msra.mxu0 %v4940
    %7905 = vmatpush.bf16.msra.mxu0 %v4932
    %7906 = vmatpush.bf16.msra.mxu0 %v4924
    %7907 = vmatpush.bf16.msra.mxu0 %v4916
    %7908 = vmatmul.bf16.gmra.mxu0 %v402
    %v7909 = vpop.f32.mrf.mxu0
    %v7910 = vadd.f32 %v7897, %v7909
    %v7911 = vpop.f32.mrf.mxu0
    %7912 = vdwg.mxu0
    %7913 = vmatpush.bf16.msra.mxu0 %v5036
    %7914 = vmatpush.bf16.msra.mxu0 %v5028
    %7915 = vmatpush.bf16.msra.mxu0 %v5020
    %7916 = vmatpush.bf16.msra.mxu0 %v5012
    %7917 = vmatpush.bf16.msra.mxu0 %v5004
    %7918 = vmatpush.bf16.msra.mxu0 %v4996
    %7919 = vmatpush.bf16.msra.mxu0 %v4988
    %7920 = vmatpush.bf16.msra.mxu0 %v4980
    %7921 = vmatmul.bf16.gmra.mxu0 %v403
    %v7922 = vpop.f32.mrf.mxu0
    %v7923 = vadd.f32 %v7910, %v7922
    %v7924 = vpop.f32.mrf.mxu0
    %7925 = vdwg.mxu0
    %7926 = vmatpush.bf16.msra.mxu0 %v5100
    %7927 = vmatpush.bf16.msra.mxu0 %v5092
    %7928 = vmatpush.bf16.msra.mxu0 %v5084
    %7929 = vmatpush.bf16.msra.mxu0 %v5076
    %7930 = vmatpush.bf16.msra.mxu0 %v5068
    %7931 = vmatpush.bf16.msra.mxu0 %v5060
    %7932 = vmatpush.bf16.msra.mxu0 %v5052
    %7933 = vmatpush.bf16.msra.mxu0 %v5044
    %7934 = vmatmul.bf16.gmra.mxu0 %v404
    %v7935 = vpop.f32.mrf.mxu0
    %v7936 = vadd.f32 %v7923, %v7935
    %v7937 = vpop.f32.mrf.mxu0
    %7938 = vdwg.mxu0
    %7939 = vmatpush.bf16.msra.mxu0 %v5164
    %7940 = vmatpush.bf16.msra.mxu0 %v5156
    %7941 = vmatpush.bf16.msra.mxu0 %v5148
    %7942 = vmatpush.bf16.msra.mxu0 %v5140
    %7943 = vmatpush.bf16.msra.mxu0 %v5132
    %7944 = vmatpush.bf16.msra.mxu0 %v5124
    %7945 = vmatpush.bf16.msra.mxu0 %v5116
    %7946 = vmatpush.bf16.msra.mxu0 %v5108
    %7947 = vmatmul.bf16.gmra.mxu0 %v405
    %v7948 = vpop.f32.mrf.mxu0
    %v7949 = vadd.f32 %v7936, %v7948
    %v7950 = vpop.f32.mrf.mxu0
    %7951 = vdwg.mxu0
    %7952 = vmatpush.bf16.msra.mxu0 %v5228
    %7953 = vmatpush.bf16.msra.mxu0 %v5220
    %7954 = vmatpush.bf16.msra.mxu0 %v5212
    %7955 = vmatpush.bf16.msra.mxu0 %v5204
    %7956 = vmatpush.bf16.msra.mxu0 %v5196
    %7957 = vmatpush.bf16.msra.mxu0 %v5188
    %7958 = vmatpush.bf16.msra.mxu0 %v5180
    %7959 = vmatpush.bf16.msra.mxu0 %v5172
    %7960 = vmatmul.bf16.gmra.mxu0 %v406
    %v7961 = vpop.f32.mrf.mxu0
    %v7962 = vadd.f32 %v7949, %v7961
    %v7963 = vpop.f32.mrf.mxu0
    %7964 = vdwg.mxu0
    %7965 = vmatpush.bf16.msra.mxu0 %v5292
    %7966 = vmatpush.bf16.msra.mxu0 %v5284
    %7967 = vmatpush.bf16.msra.mxu0 %v5276
    %7968 = vmatpush.bf16.msra.mxu0 %v5268
    %7969 = vmatpush.bf16.msra.mxu0 %v5260
    %7970 = vmatpush.bf16.msra.mxu0 %v5252
    %7971 = vmatpush.bf16.msra.mxu0 %v5244
    %7972 = vmatpush.bf16.msra.mxu0 %v5236
    %7973 = vmatmul.bf16.gmra.mxu0 %v407
    %v7974 = vpop.f32.mrf.mxu0
    %v7975 = vadd.f32 %v7962, %v7974
    %v7976 = vpop.f32.mrf.mxu0
    %7977 = vdwg.mxu0
    %7978 = vmatpush.bf16.msra.mxu0 %v5356
    %7979 = vmatpush.bf16.msra.mxu0 %v5348
    %7980 = vmatpush.bf16.msra.mxu0 %v5340
    %7981 = vmatpush.bf16.msra.mxu0 %v5332
    %7982 = vmatpush.bf16.msra.mxu0 %v5324
    %7983 = vmatpush.bf16.msra.mxu0 %v5316
    %7984 = vmatpush.bf16.msra.mxu0 %v5308
    %7985 = vmatpush.bf16.msra.mxu0 %v5300
    %7986 = vmatmul.bf16.gmra.mxu0 %v408
    %v7987 = vpop.f32.mrf.mxu0
    %v7988 = vadd.f32 %v7975, %v7987
    %v7989 = vpop.f32.mrf.mxu0
    %7990 = vdwg.mxu0
    %7991 = vmatpush.bf16.msra.mxu0 %v5420
    %7992 = vmatpush.bf16.msra.mxu0 %v5412
    %7993 = vmatpush.bf16.msra.mxu0 %v5404
    %7994 = vmatpush.bf16.msra.mxu0 %v5396
    %7995 = vmatpush.bf16.msra.mxu0 %v5388
    %7996 = vmatpush.bf16.msra.mxu0 %v5380
    %7997 = vmatpush.bf16.msra.mxu0 %v5372
    %7998 = vmatpush.bf16.msra.mxu0 %v5364
    %7999 = vmatmul.bf16.gmra.mxu0 %v409
    %v8000 = vpop.f32.mrf.mxu0
    %v8001 = vadd.f32 %v7988, %v8000
    %v8002 = vpop.f32.mrf.mxu0
    %8003 = vdwg.mxu0
    %8004 = vmatpush.bf16.msra.mxu0 %v5484
    %8005 = vmatpush.bf16.msra.mxu0 %v5476
    %8006 = vmatpush.bf16.msra.mxu0 %v5468
    %8007 = vmatpush.bf16.msra.mxu0 %v5460
    %8008 = vmatpush.bf16.msra.mxu0 %v5452
    %8009 = vmatpush.bf16.msra.mxu0 %v5444
    %8010 = vmatpush.bf16.msra.mxu0 %v5436
    %8011 = vmatpush.bf16.msra.mxu0 %v5428
    %8012 = vmatmul.bf16.gmra.mxu0 %v410
    %v8013 = vpop.f32.mrf.mxu0
    %v8014 = vadd.f32 %v8001, %v8013
    %v8015 = vpop.f32.mrf.mxu0
    %8016 = vdwg.mxu0
    %8017 = vmatpush.bf16.msra.mxu0 %v5548
    %8018 = vmatpush.bf16.msra.mxu0 %v5540
    %8019 = vmatpush.bf16.msra.mxu0 %v5532
    %8020 = vmatpush.bf16.msra.mxu0 %v5524
    %8021 = vmatpush.bf16.msra.mxu0 %v5516
    %8022 = vmatpush.bf16.msra.mxu0 %v5508
    %8023 = vmatpush.bf16.msra.mxu0 %v5500
    %8024 = vmatpush.bf16.msra.mxu0 %v5492
    %8025 = vmatmul.bf16.gmra.mxu0 %v411
    %v8026 = vpop.f32.mrf.mxu0
    %v8027 = vadd.f32 %v8014, %v8026
    %v8028 = vpop.f32.mrf.mxu0
    %8029 = vdwg.mxu0
    %8030 = vmatpush.bf16.msra.mxu0 %v4589
    %8031 = vmatpush.bf16.msra.mxu0 %v4581
    %8032 = vmatpush.bf16.msra.mxu0 %v4573
    %8033 = vmatpush.bf16.msra.mxu0 %v4565
    %8034 = vmatpush.bf16.msra.mxu0 %v4557
    %8035 = vmatpush.bf16.msra.mxu0 %v4549
    %8036 = vmatpush.bf16.msra.mxu0 %v4541
    %8037 = vmatpush.bf16.msra.mxu0 %v4533
    %8038 = vmatmul.bf16.gmra.mxu0 %v396
    %v8039 = vpop.f32.mrf.mxu0
    %v8040 = vadd.f32 %v1445, %v8039
    %v8041 = vpop.f32.mrf.mxu0
    %8042 = vdwg.mxu0
    %8043 = vmatpush.bf16.msra.mxu0 %v4653
    %8044 = vmatpush.bf16.msra.mxu0 %v4645
    %8045 = vmatpush.bf16.msra.mxu0 %v4637
    %8046 = vmatpush.bf16.msra.mxu0 %v4629
    %8047 = vmatpush.bf16.msra.mxu0 %v4621
    %8048 = vmatpush.bf16.msra.mxu0 %v4613
    %8049 = vmatpush.bf16.msra.mxu0 %v4605
    %8050 = vmatpush.bf16.msra.mxu0 %v4597
    %8051 = vmatmul.bf16.gmra.mxu0 %v397
    %v8052 = vpop.f32.mrf.mxu0
    %v8053 = vadd.f32 %v8040, %v8052
    %v8054 = vpop.f32.mrf.mxu0
    %8055 = vdwg.mxu0
    %8056 = vmatpush.bf16.msra.mxu0 %v4717
    %8057 = vmatpush.bf16.msra.mxu0 %v4709
    %8058 = vmatpush.bf16.msra.mxu0 %v4701
    %8059 = vmatpush.bf16.msra.mxu0 %v4693
    %8060 = vmatpush.bf16.msra.mxu0 %v4685
    %8061 = vmatpush.bf16.msra.mxu0 %v4677
    %8062 = vmatpush.bf16.msra.mxu0 %v4669
    %8063 = vmatpush.bf16.msra.mxu0 %v4661
    %8064 = vmatmul.bf16.gmra.mxu0 %v398
    %v8065 = vpop.f32.mrf.mxu0
    %v8066 = vadd.f32 %v8053, %v8065
    %v8067 = vpop.f32.mrf.mxu0
    %8068 = vdwg.mxu0
    %8069 = vmatpush.bf16.msra.mxu0 %v4781
    %8070 = vmatpush.bf16.msra.mxu0 %v4773
    %8071 = vmatpush.bf16.msra.mxu0 %v4765
    %8072 = vmatpush.bf16.msra.mxu0 %v4757
    %8073 = vmatpush.bf16.msra.mxu0 %v4749
    %8074 = vmatpush.bf16.msra.mxu0 %v4741
    %8075 = vmatpush.bf16.msra.mxu0 %v4733
    %8076 = vmatpush.bf16.msra.mxu0 %v4725
    %8077 = vmatmul.bf16.gmra.mxu0 %v399
    %v8078 = vpop.f32.mrf.mxu0
    %v8079 = vadd.f32 %v8066, %v8078
    %v8080 = vpop.f32.mrf.mxu0
    %8081 = vdwg.mxu0
    %8082 = vmatpush.bf16.msra.mxu0 %v4845
    %8083 = vmatpush.bf16.msra.mxu0 %v4837
    %8084 = vmatpush.bf16.msra.mxu0 %v4829
    %8085 = vmatpush.bf16.msra.mxu0 %v4821
    %8086 = vmatpush.bf16.msra.mxu0 %v4813
    %8087 = vmatpush.bf16.msra.mxu0 %v4805
    %8088 = vmatpush.bf16.msra.mxu0 %v4797
    %8089 = vmatpush.bf16.msra.mxu0 %v4789
    %8090 = vmatmul.bf16.gmra.mxu0 %v400
    %v8091 = vpop.f32.mrf.mxu0
    %v8092 = vadd.f32 %v8079, %v8091
    %v8093 = vpop.f32.mrf.mxu0
    %8094 = vdwg.mxu0
    %8095 = vmatpush.bf16.msra.mxu0 %v4909
    %8096 = vmatpush.bf16.msra.mxu0 %v4901
    %8097 = vmatpush.bf16.msra.mxu0 %v4893
    %8098 = vmatpush.bf16.msra.mxu0 %v4885
    %8099 = vmatpush.bf16.msra.mxu0 %v4877
    %8100 = vmatpush.bf16.msra.mxu0 %v4869
    %8101 = vmatpush.bf16.msra.mxu0 %v4861
    %8102 = vmatpush.bf16.msra.mxu0 %v4853
    %8103 = vmatmul.bf16.gmra.mxu0 %v401
    %v8104 = vpop.f32.mrf.mxu0
    %v8105 = vadd.f32 %v8092, %v8104
    %v8106 = vpop.f32.mrf.mxu0
    %8107 = vdwg.mxu0
    %8108 = vmatpush.bf16.msra.mxu0 %v4973
    %8109 = vmatpush.bf16.msra.mxu0 %v4965
    %8110 = vmatpush.bf16.msra.mxu0 %v4957
    %8111 = vmatpush.bf16.msra.mxu0 %v4949
    %8112 = vmatpush.bf16.msra.mxu0 %v4941
    %8113 = vmatpush.bf16.msra.mxu0 %v4933
    %8114 = vmatpush.bf16.msra.mxu0 %v4925
    %8115 = vmatpush.bf16.msra.mxu0 %v4917
    %8116 = vmatmul.bf16.gmra.mxu0 %v402
    %v8117 = vpop.f32.mrf.mxu0
    %v8118 = vadd.f32 %v8105, %v8117
    %v8119 = vpop.f32.mrf.mxu0
    %8120 = vdwg.mxu0
    %8121 = vmatpush.bf16.msra.mxu0 %v5037
    %8122 = vmatpush.bf16.msra.mxu0 %v5029
    %8123 = vmatpush.bf16.msra.mxu0 %v5021
    %8124 = vmatpush.bf16.msra.mxu0 %v5013
    %8125 = vmatpush.bf16.msra.mxu0 %v5005
    %8126 = vmatpush.bf16.msra.mxu0 %v4997
    %8127 = vmatpush.bf16.msra.mxu0 %v4989
    %8128 = vmatpush.bf16.msra.mxu0 %v4981
    %8129 = vmatmul.bf16.gmra.mxu0 %v403
    %v8130 = vpop.f32.mrf.mxu0
    %v8131 = vadd.f32 %v8118, %v8130
    %v8132 = vpop.f32.mrf.mxu0
    %8133 = vdwg.mxu0
    %8134 = vmatpush.bf16.msra.mxu0 %v5101
    %8135 = vmatpush.bf16.msra.mxu0 %v5093
    %8136 = vmatpush.bf16.msra.mxu0 %v5085
    %8137 = vmatpush.bf16.msra.mxu0 %v5077
    %8138 = vmatpush.bf16.msra.mxu0 %v5069
    %8139 = vmatpush.bf16.msra.mxu0 %v5061
    %8140 = vmatpush.bf16.msra.mxu0 %v5053
    %8141 = vmatpush.bf16.msra.mxu0 %v5045
    %8142 = vmatmul.bf16.gmra.mxu0 %v404
    %v8143 = vpop.f32.mrf.mxu0
    %v8144 = vadd.f32 %v8131, %v8143
    %v8145 = vpop.f32.mrf.mxu0
    %8146 = vdwg.mxu0
    %8147 = vmatpush.bf16.msra.mxu0 %v5165
    %8148 = vmatpush.bf16.msra.mxu0 %v5157
    %8149 = vmatpush.bf16.msra.mxu0 %v5149
    %8150 = vmatpush.bf16.msra.mxu0 %v5141
    %8151 = vmatpush.bf16.msra.mxu0 %v5133
    %8152 = vmatpush.bf16.msra.mxu0 %v5125
    %8153 = vmatpush.bf16.msra.mxu0 %v5117
    %8154 = vmatpush.bf16.msra.mxu0 %v5109
    %8155 = vmatmul.bf16.gmra.mxu0 %v405
    %v8156 = vpop.f32.mrf.mxu0
    %v8157 = vadd.f32 %v8144, %v8156
    %v8158 = vpop.f32.mrf.mxu0
    %8159 = vdwg.mxu0
    %8160 = vmatpush.bf16.msra.mxu0 %v5229
    %8161 = vmatpush.bf16.msra.mxu0 %v5221
    %8162 = vmatpush.bf16.msra.mxu0 %v5213
    %8163 = vmatpush.bf16.msra.mxu0 %v5205
    %8164 = vmatpush.bf16.msra.mxu0 %v5197
    %8165 = vmatpush.bf16.msra.mxu0 %v5189
    %8166 = vmatpush.bf16.msra.mxu0 %v5181
    %8167 = vmatpush.bf16.msra.mxu0 %v5173
    %8168 = vmatmul.bf16.gmra.mxu0 %v406
    %v8169 = vpop.f32.mrf.mxu0
    %v8170 = vadd.f32 %v8157, %v8169
    %v8171 = vpop.f32.mrf.mxu0
    %8172 = vdwg.mxu0
    %8173 = vmatpush.bf16.msra.mxu0 %v5293
    %8174 = vmatpush.bf16.msra.mxu0 %v5285
    %8175 = vmatpush.bf16.msra.mxu0 %v5277
    %8176 = vmatpush.bf16.msra.mxu0 %v5269
    %8177 = vmatpush.bf16.msra.mxu0 %v5261
    %8178 = vmatpush.bf16.msra.mxu0 %v5253
    %8179 = vmatpush.bf16.msra.mxu0 %v5245
    %8180 = vmatpush.bf16.msra.mxu0 %v5237
    %8181 = vmatmul.bf16.gmra.mxu0 %v407
    %v8182 = vpop.f32.mrf.mxu0
    %v8183 = vadd.f32 %v8170, %v8182
    %v8184 = vpop.f32.mrf.mxu0
    %8185 = vdwg.mxu0
    %8186 = vmatpush.bf16.msra.mxu0 %v5357
    %8187 = vmatpush.bf16.msra.mxu0 %v5349
    %8188 = vmatpush.bf16.msra.mxu0 %v5341
    %8189 = vmatpush.bf16.msra.mxu0 %v5333
    %8190 = vmatpush.bf16.msra.mxu0 %v5325
    %8191 = vmatpush.bf16.msra.mxu0 %v5317
    %8192 = vmatpush.bf16.msra.mxu0 %v5309
    %8193 = vmatpush.bf16.msra.mxu0 %v5301
    %8194 = vmatmul.bf16.gmra.mxu0 %v408
    %v8195 = vpop.f32.mrf.mxu0
    %v8196 = vadd.f32 %v8183, %v8195
    %v8197 = vpop.f32.mrf.mxu0
    %8198 = vdwg.mxu0
    %8199 = vmatpush.bf16.msra.mxu0 %v5421
    %8200 = vmatpush.bf16.msra.mxu0 %v5413
    %8201 = vmatpush.bf16.msra.mxu0 %v5405
    %8202 = vmatpush.bf16.msra.mxu0 %v5397
    %8203 = vmatpush.bf16.msra.mxu0 %v5389
    %8204 = vmatpush.bf16.msra.mxu0 %v5381
    %8205 = vmatpush.bf16.msra.mxu0 %v5373
    %8206 = vmatpush.bf16.msra.mxu0 %v5365
    %8207 = vmatmul.bf16.gmra.mxu0 %v409
    %v8208 = vpop.f32.mrf.mxu0
    %v8209 = vadd.f32 %v8196, %v8208
    %v8210 = vpop.f32.mrf.mxu0
    %8211 = vdwg.mxu0
    %8212 = vmatpush.bf16.msra.mxu0 %v5485
    %8213 = vmatpush.bf16.msra.mxu0 %v5477
    %8214 = vmatpush.bf16.msra.mxu0 %v5469
    %8215 = vmatpush.bf16.msra.mxu0 %v5461
    %8216 = vmatpush.bf16.msra.mxu0 %v5453
    %8217 = vmatpush.bf16.msra.mxu0 %v5445
    %8218 = vmatpush.bf16.msra.mxu0 %v5437
    %8219 = vmatpush.bf16.msra.mxu0 %v5429
    %8220 = vmatmul.bf16.gmra.mxu0 %v410
    %v8221 = vpop.f32.mrf.mxu0
    %v8222 = vadd.f32 %v8209, %v8221
    %v8223 = vpop.f32.mrf.mxu0
    %8224 = vdwg.mxu0
    %8225 = vmatpush.bf16.msra.mxu0 %v5549
    %8226 = vmatpush.bf16.msra.mxu0 %v5541
    %8227 = vmatpush.bf16.msra.mxu0 %v5533
    %8228 = vmatpush.bf16.msra.mxu0 %v5525
    %8229 = vmatpush.bf16.msra.mxu0 %v5517
    %8230 = vmatpush.bf16.msra.mxu0 %v5509
    %8231 = vmatpush.bf16.msra.mxu0 %v5501
    %8232 = vmatpush.bf16.msra.mxu0 %v5493
    %8233 = vmatmul.bf16.gmra.mxu0 %v411
    %v8234 = vpop.f32.mrf.mxu0
    %v8235 = vadd.f32 %v8222, %v8234
    %v8236 = vpop.f32.mrf.mxu0
    %8237 = vdwg.mxu0
    %v8238 = vmax.f32 %v6779, 0.0
    %v8239 = vmax.f32 %v6987, 0.0
    %v8240 = vmax.f32 %v7195, 0.0
    %v8241 = vmax.f32 %v7403, 0.0
    %v8242 = vmax.f32 %v7611, 0.0
    %v8243 = vmax.f32 %v7819, 0.0
    %v8244 = vmax.f32 %v8027, 0.0
    %v8245 = vmax.f32 %v8235, 0.0
    %v8246 = vpack.c.bf16 %v8238, %v8238
    %v8247 = vpack.c.bf16 %v8239, %v8239
    %v8248 = vpack.c.bf16 %v8240, %v8240
    %v8249 = vpack.c.bf16 %v8241, %v8241
    %v8250 = vpack.c.bf16 %v8242, %v8242
    %v8251 = vpack.c.bf16 %v8243, %v8243
    %v8252 = vpack.c.bf16 %v8244, %v8244
    %v8253 = vpack.c.bf16 %v8245, %v8245
    %v8254 = vld [vmem:[%s7] sm:$0xf]
    %v8255 = vld [vmem:[%s7 + $0x4] sm:$0xf]
    %v8256 = vld [vmem:[%s7 + $0x8] sm:$0xf]
    %v8257 = vld [vmem:[%s7 + $0xc] sm:$0xf]
    %v8258 = vld [vmem:[%s7 + $0x10] sm:$0xf]
    %v8259 = vld [vmem:[%s7 + $0x14] sm:$0xf]
    %v8260 = vld [vmem:[%s7 + $0x18] sm:$0xf]
    %v8261 = vld [vmem:[%s7 + $0x1c] sm:$0xf]
    %v8262 = vld [vmem:[%s7 + $0x20] sm:$0xf]
    %v8263 = vld [vmem:[%s7 + $0x24] sm:$0xf]
    %v8264 = vld [vmem:[%s7 + $0x28] sm:$0xf]
    %v8265 = vld [vmem:[%s7 + $0x2c] sm:$0xf]
    %v8266 = vld [vmem:[%s7 + $0x30] sm:$0xf]
    %v8267 = vld [vmem:[%s7 + $0x34] sm:$0xf]
    %v8268 = vld [vmem:[%s7 + $0x38] sm:$0xf]
    %v8269 = vld [vmem:[%s7 + $0x3c] sm:$0xf]
    %v8270 = vld [vmem:[%s7 + $0x40] sm:$0xf]
    %v8271 = vld [vmem:[%s7 + $0x44] sm:$0xf]
    %v8272 = vld [vmem:[%s7 + $0x48] sm:$0xf]
    %v8273 = vld [vmem:[%s7 + $0x4c] sm:$0xf]
    %v8274 = vld [vmem:[%s7 + $0x50] sm:$0xf]
    %v8275 = vld [vmem:[%s7 + $0x54] sm:$0xf]
    %v8276 = vld [vmem:[%s7 + $0x58] sm:$0xf]
    %v8277 = vld [vmem:[%s7 + $0x5c] sm:$0xf]
    %v8278 = vld [vmem:[%s7 + $0x60] sm:$0xf]
    %v8279 = vld [vmem:[%s7 + $0x64] sm:$0xf]
    %v8280 = vld [vmem:[%s7 + $0x68] sm:$0xf]
    %v8281 = vld [vmem:[%s7 + $0x6c] sm:$0xf]
    %v8282 = vld [vmem:[%s7 + $0x70] sm:$0xf]
    %v8283 = vld [vmem:[%s7 + $0x74] sm:$0xf]
    %v8284 = vld [vmem:[%s7 + $0x78] sm:$0xf]
    %v8285 = vld [vmem:[%s7 + $0x7c] sm:$0xf]
    %v8286 = vld [vmem:[%s7 + $0x80] sm:$0xf]
    %v8287 = vld [vmem:[%s7 + $0x84] sm:$0xf]
    %v8288 = vld [vmem:[%s7 + $0x88] sm:$0xf]
    %v8289 = vld [vmem:[%s7 + $0x8c] sm:$0xf]
    %v8290 = vld [vmem:[%s7 + $0x90] sm:$0xf]
    %v8291 = vld [vmem:[%s7 + $0x94] sm:$0xf]
    %v8292 = vld [vmem:[%s7 + $0x98] sm:$0xf]
    %v8293 = vld [vmem:[%s7 + $0x9c] sm:$0xf]
    %v8294 = vld [vmem:[%s7 + $0xa0] sm:$0xf]
    %v8295 = vld [vmem:[%s7 + $0xa4] sm:$0xf]
    %v8296 = vld [vmem:[%s7 + $0xa8] sm:$0xf]
    %v8297 = vld [vmem:[%s7 + $0xac] sm:$0xf]
    %v8298 = vld [vmem:[%s7 + $0xb0] sm:$0xf]
    %v8299 = vld [vmem:[%s7 + $0xb4] sm:$0xf]
    %v8300 = vld [vmem:[%s7 + $0xb8] sm:$0xf]
    %v8301 = vld [vmem:[%s7 + $0xbc] sm:$0xf]
    %v8302 = vld [vmem:[%s7 + $0xc0] sm:$0xf]
    %v8303 = vld [vmem:[%s7 + $0xc4] sm:$0xf]
    %v8304 = vld [vmem:[%s7 + $0xc8] sm:$0xf]
    %v8305 = vld [vmem:[%s7 + $0xcc] sm:$0xf]
    %v8306 = vld [vmem:[%s7 + $0xd0] sm:$0xf]
    %v8307 = vld [vmem:[%s7 + $0xd4] sm:$0xf]
    %v8308 = vld [vmem:[%s7 + $0xd8] sm:$0xf]
    %v8309 = vld [vmem:[%s7 + $0xdc] sm:$0xf]
    %v8310 = vld [vmem:[%s7 + $0xe0] sm:$0xf]
    %v8311 = vld [vmem:[%s7 + $0xe4] sm:$0xf]
    %v8312 = vld [vmem:[%s7 + $0xe8] sm:$0xf]
    %v8313 = vld [vmem:[%s7 + $0xec] sm:$0xf]
    %v8314 = vld [vmem:[%s7 + $0xf0] sm:$0xf]
    %v8315 = vld [vmem:[%s7 + $0xf4] sm:$0xf]
    %v8316 = vld [vmem:[%s7 + $0xf8] sm:$0xf]
    %v8317 = vld [vmem:[%s7 + $0xfc] sm:$0xf]
    %v8318 = vld [vmem:[%s7 + $0x100] sm:$0xf]
    %v8319 = vld [vmem:[%s7 + $0x104] sm:$0xf]
    %v8320 = vld [vmem:[%s7 + $0x108] sm:$0xf]
    %v8321 = vld [vmem:[%s7 + $0x10c] sm:$0xf]
    %v8322 = vld [vmem:[%s7 + $0x110] sm:$0xf]
    %v8323 = vld [vmem:[%s7 + $0x114] sm:$0xf]
    %v8324 = vld [vmem:[%s7 + $0x118] sm:$0xf]
    %v8325 = vld [vmem:[%s7 + $0x11c] sm:$0xf]
    %v8326 = vld [vmem:[%s7 + $0x120] sm:$0xf]
    %v8327 = vld [vmem:[%s7 + $0x124] sm:$0xf]
    %v8328 = vld [vmem:[%s7 + $0x128] sm:$0xf]
    %v8329 = vld [vmem:[%s7 + $0x12c] sm:$0xf]
    %v8330 = vld [vmem:[%s7 + $0x130] sm:$0xf]
    %v8331 = vld [vmem:[%s7 + $0x134] sm:$0xf]
    %v8332 = vld [vmem:[%s7 + $0x138] sm:$0xf]
    %v8333 = vld [vmem:[%s7 + $0x13c] sm:$0xf]
    %v8334 = vld [vmem:[%s7 + $0x140] sm:$0xf]
    %v8335 = vld [vmem:[%s7 + $0x144] sm:$0xf]
    %v8336 = vld [vmem:[%s7 + $0x148] sm:$0xf]
    %v8337 = vld [vmem:[%s7 + $0x14c] sm:$0xf]
    %v8338 = vld [vmem:[%s7 + $0x150] sm:$0xf]
    %v8339 = vld [vmem:[%s7 + $0x154] sm:$0xf]
    %v8340 = vld [vmem:[%s7 + $0x158] sm:$0xf]
    %v8341 = vld [vmem:[%s7 + $0x15c] sm:$0xf]
    %v8342 = vld [vmem:[%s7 + $0x160] sm:$0xf]
    %v8343 = vld [vmem:[%s7 + $0x164] sm:$0xf]
    %v8344 = vld [vmem:[%s7 + $0x168] sm:$0xf]
    %v8345 = vld [vmem:[%s7 + $0x16c] sm:$0xf]
    %v8346 = vld [vmem:[%s7 + $0x170] sm:$0xf]
    %v8347 = vld [vmem:[%s7 + $0x174] sm:$0xf]
    %v8348 = vld [vmem:[%s7 + $0x178] sm:$0xf]
    %v8349 = vld [vmem:[%s7 + $0x17c] sm:$0xf]
    %v8350 = vld [vmem:[%s7 + $0x180] sm:$0xf]
    %v8351 = vld [vmem:[%s7 + $0x184] sm:$0xf]
    %v8352 = vld [vmem:[%s7 + $0x188] sm:$0xf]
    %v8353 = vld [vmem:[%s7 + $0x18c] sm:$0xf]
    %v8354 = vld [vmem:[%s7 + $0x190] sm:$0xf]
    %v8355 = vld [vmem:[%s7 + $0x194] sm:$0xf]
    %v8356 = vld [vmem:[%s7 + $0x198] sm:$0xf]
    %v8357 = vld [vmem:[%s7 + $0x19c] sm:$0xf]
    %v8358 = vld [vmem:[%s7 + $0x1a0] sm:$0xf]
    %v8359 = vld [vmem:[%s7 + $0x1a4] sm:$0xf]
    %v8360 = vld [vmem:[%s7 + $0x1a8] sm:$0xf]
    %v8361 = vld [vmem:[%s7 + $0x1ac] sm:$0xf]
    %v8362 = vld [vmem:[%s7 + $0x1b0] sm:$0xf]
    %v8363 = vld [vmem:[%s7 + $0x1b4] sm:$0xf]
    %v8364 = vld [vmem:[%s7 + $0x1b8] sm:$0xf]
    %v8365 = vld [vmem:[%s7 + $0x1bc] sm:$0xf]
    %v8366 = vld [vmem:[%s7 + $0x1c0] sm:$0xf]
    %v8367 = vld [vmem:[%s7 + $0x1c4] sm:$0xf]
    %v8368 = vld [vmem:[%s7 + $0x1c8] sm:$0xf]
    %v8369 = vld [vmem:[%s7 + $0x1cc] sm:$0xf]
    %v8370 = vld [vmem:[%s7 + $0x1d0] sm:$0xf]
    %v8371 = vld [vmem:[%s7 + $0x1d4] sm:$0xf]
    %v8372 = vld [vmem:[%s7 + $0x1d8] sm:$0xf]
    %v8373 = vld [vmem:[%s7 + $0x1dc] sm:$0xf]
    %v8374 = vld [vmem:[%s7 + $0x1e0] sm:$0xf]
    %v8375 = vld [vmem:[%s7 + $0x1e4] sm:$0xf]
    %v8376 = vld [vmem:[%s7 + $0x1e8] sm:$0xf]
    %v8377 = vld [vmem:[%s7 + $0x1ec] sm:$0xf]
    %v8378 = vld [vmem:[%s7 + $0x1f0] sm:$0xf]
    %v8379 = vld [vmem:[%s7 + $0x1f4] sm:$0xf]
    %v8380 = vld [vmem:[%s7 + $0x1f8] sm:$0xf]
    %v8381 = vld [vmem:[%s7 + $0x1fc] sm:$0xf]
    %v8382 = vld [vmem:[#allocation11] sm:$0x1]
    %v8384 = vperm.slane %v8382, 0
    %v8514 = vunpack.c.l.b16 %v8254
    %v8515 = vunpack.c.l.b16 %v8255
    %v8516 = vunpack.c.l.b16 %v8256
    %v8517 = vunpack.c.l.b16 %v8257
    %v8518 = vunpack.c.l.b16 %v8258
    %v8519 = vunpack.c.l.b16 %v8259
    %v8520 = vunpack.c.l.b16 %v8260
    %v8521 = vunpack.c.l.b16 %v8261
    %v8522 = vunpack.c.l.b16 %v8262
    %v8523 = vunpack.c.l.b16 %v8263
    %v8524 = vunpack.c.l.b16 %v8264
    %v8525 = vunpack.c.l.b16 %v8265
    %v8526 = vunpack.c.l.b16 %v8266
    %v8527 = vunpack.c.l.b16 %v8267
    %v8528 = vunpack.c.l.b16 %v8268
    %v8529 = vunpack.c.l.b16 %v8269
    %v8530 = vunpack.c.l.b16 %v8270
    %v8531 = vunpack.c.l.b16 %v8271
    %v8532 = vunpack.c.l.b16 %v8272
    %v8533 = vunpack.c.l.b16 %v8273
    %v8534 = vunpack.c.l.b16 %v8274
    %v8535 = vunpack.c.l.b16 %v8275
    %v8536 = vunpack.c.l.b16 %v8276
    %v8537 = vunpack.c.l.b16 %v8277
    %v8538 = vunpack.c.l.b16 %v8278
    %v8539 = vunpack.c.l.b16 %v8279
    %v8540 = vunpack.c.l.b16 %v8280
    %v8541 = vunpack.c.l.b16 %v8281
    %v8542 = vunpack.c.l.b16 %v8282
    %v8543 = vunpack.c.l.b16 %v8283
    %v8544 = vunpack.c.l.b16 %v8284
    %v8545 = vunpack.c.l.b16 %v8285
    %v8546 = vunpack.c.l.b16 %v8286
    %v8547 = vunpack.c.l.b16 %v8287
    %v8548 = vunpack.c.l.b16 %v8288
    %v8549 = vunpack.c.l.b16 %v8289
    %v8550 = vunpack.c.l.b16 %v8290
    %v8551 = vunpack.c.l.b16 %v8291
    %v8552 = vunpack.c.l.b16 %v8292
    %v8553 = vunpack.c.l.b16 %v8293
    %v8554 = vunpack.c.l.b16 %v8294
    %v8555 = vunpack.c.l.b16 %v8295
    %v8556 = vunpack.c.l.b16 %v8296
    %v8557 = vunpack.c.l.b16 %v8297
    %v8558 = vunpack.c.l.b16 %v8298
    %v8559 = vunpack.c.l.b16 %v8299
    %v8560 = vunpack.c.l.b16 %v8300
    %v8561 = vunpack.c.l.b16 %v8301
    %v8562 = vunpack.c.l.b16 %v8302
    %v8563 = vunpack.c.l.b16 %v8303
    %v8564 = vunpack.c.l.b16 %v8304
    %v8565 = vunpack.c.l.b16 %v8305
    %v8566 = vunpack.c.l.b16 %v8306
    %v8567 = vunpack.c.l.b16 %v8307
    %v8568 = vunpack.c.l.b16 %v8308
    %v8569 = vunpack.c.l.b16 %v8309
    %v8570 = vunpack.c.l.b16 %v8310
    %v8571 = vunpack.c.l.b16 %v8311
    %v8572 = vunpack.c.l.b16 %v8312
    %v8573 = vunpack.c.l.b16 %v8313
    %v8574 = vunpack.c.l.b16 %v8314
    %v8575 = vunpack.c.l.b16 %v8315
    %v8576 = vunpack.c.l.b16 %v8316
    %v8577 = vunpack.c.l.b16 %v8317
    %v8578 = vunpack.c.l.b16 %v8318
    %v8579 = vunpack.c.l.b16 %v8319
    %v8580 = vunpack.c.l.b16 %v8320
    %v8581 = vunpack.c.l.b16 %v8321
    %v8582 = vunpack.c.l.b16 %v8322
    %v8583 = vunpack.c.l.b16 %v8323
    %v8584 = vunpack.c.l.b16 %v8324
    %v8585 = vunpack.c.l.b16 %v8325
    %v8586 = vunpack.c.l.b16 %v8326
    %v8587 = vunpack.c.l.b16 %v8327
    %v8588 = vunpack.c.l.b16 %v8328
    %v8589 = vunpack.c.l.b16 %v8329
    %v8590 = vunpack.c.l.b16 %v8330
    %v8591 = vunpack.c.l.b16 %v8331
    %v8592 = vunpack.c.l.b16 %v8332
    %v8593 = vunpack.c.l.b16 %v8333
    %v8594 = vunpack.c.l.b16 %v8334
    %v8595 = vunpack.c.l.b16 %v8335
    %v8596 = vunpack.c.l.b16 %v8336
    %v8597 = vunpack.c.l.b16 %v8337
    %v8598 = vunpack.c.l.b16 %v8338
    %v8599 = vunpack.c.l.b16 %v8339
    %v8600 = vunpack.c.l.b16 %v8340
    %v8601 = vunpack.c.l.b16 %v8341
    %v8602 = vunpack.c.l.b16 %v8342
    %v8603 = vunpack.c.l.b16 %v8343
    %v8604 = vunpack.c.l.b16 %v8344
    %v8605 = vunpack.c.l.b16 %v8345
    %v8606 = vunpack.c.l.b16 %v8346
    %v8607 = vunpack.c.l.b16 %v8347
    %v8608 = vunpack.c.l.b16 %v8348
    %v8609 = vunpack.c.l.b16 %v8349
    %v8610 = vunpack.c.l.b16 %v8350
    %v8611 = vunpack.c.l.b16 %v8351
    %v8612 = vunpack.c.l.b16 %v8352
    %v8613 = vunpack.c.l.b16 %v8353
    %v8614 = vunpack.c.l.b16 %v8354
    %v8615 = vunpack.c.l.b16 %v8355
    %v8616 = vunpack.c.l.b16 %v8356
    %v8617 = vunpack.c.l.b16 %v8357
    %v8618 = vunpack.c.l.b16 %v8358
    %v8619 = vunpack.c.l.b16 %v8359
    %v8620 = vunpack.c.l.b16 %v8360
    %v8621 = vunpack.c.l.b16 %v8361
    %v8622 = vunpack.c.l.b16 %v8362
    %v8623 = vunpack.c.l.b16 %v8363
    %v8624 = vunpack.c.l.b16 %v8364
    %v8625 = vunpack.c.l.b16 %v8365
    %v8626 = vunpack.c.l.b16 %v8366
    %v8627 = vunpack.c.l.b16 %v8367
    %v8628 = vunpack.c.l.b16 %v8368
    %v8629 = vunpack.c.l.b16 %v8369
    %v8630 = vunpack.c.l.b16 %v8370
    %v8631 = vunpack.c.l.b16 %v8371
    %v8632 = vunpack.c.l.b16 %v8372
    %v8633 = vunpack.c.l.b16 %v8373
    %v8634 = vunpack.c.l.b16 %v8374
    %v8635 = vunpack.c.l.b16 %v8375
    %v8636 = vunpack.c.l.b16 %v8376
    %v8637 = vunpack.c.l.b16 %v8377
    %v8638 = vunpack.c.l.b16 %v8378
    %v8639 = vunpack.c.l.b16 %v8379
    %v8640 = vunpack.c.l.b16 %v8380
    %v8641 = vunpack.c.l.b16 %v8381
    %v8642 = vpack.c.b16 %v8515, %v8514
    %v8643 = vpack.c.b16 %v8517, %v8516
    %v8644 = vpack.c.b16 %v8519, %v8518
    %v8645 = vpack.c.b16 %v8521, %v8520
    %v8646 = vpack.c.b16 %v8523, %v8522
    %v8647 = vpack.c.b16 %v8525, %v8524
    %v8648 = vpack.c.b16 %v8527, %v8526
    %v8649 = vpack.c.b16 %v8529, %v8528
    %v8650 = vpack.c.b16 %v8531, %v8530
    %v8651 = vpack.c.b16 %v8533, %v8532
    %v8652 = vpack.c.b16 %v8535, %v8534
    %v8653 = vpack.c.b16 %v8537, %v8536
    %v8654 = vpack.c.b16 %v8539, %v8538
    %v8655 = vpack.c.b16 %v8541, %v8540
    %v8656 = vpack.c.b16 %v8543, %v8542
    %v8657 = vpack.c.b16 %v8545, %v8544
    %v8658 = vpack.c.b16 %v8547, %v8546
    %v8659 = vpack.c.b16 %v8549, %v8548
    %v8660 = vpack.c.b16 %v8551, %v8550
    %v8661 = vpack.c.b16 %v8553, %v8552
    %v8662 = vpack.c.b16 %v8555, %v8554
    %v8663 = vpack.c.b16 %v8557, %v8556
    %v8664 = vpack.c.b16 %v8559, %v8558
    %v8665 = vpack.c.b16 %v8561, %v8560
    %v8666 = vpack.c.b16 %v8563, %v8562
    %v8667 = vpack.c.b16 %v8565, %v8564
    %v8668 = vpack.c.b16 %v8567, %v8566
    %v8669 = vpack.c.b16 %v8569, %v8568
    %v8670 = vpack.c.b16 %v8571, %v8570
    %v8671 = vpack.c.b16 %v8573, %v8572
    %v8672 = vpack.c.b16 %v8575, %v8574
    %v8673 = vpack.c.b16 %v8577, %v8576
    %v8674 = vpack.c.b16 %v8579, %v8578
    %v8675 = vpack.c.b16 %v8581, %v8580
    %v8676 = vpack.c.b16 %v8583, %v8582
    %v8677 = vpack.c.b16 %v8585, %v8584
    %v8678 = vpack.c.b16 %v8587, %v8586
    %v8679 = vpack.c.b16 %v8589, %v8588
    %v8680 = vpack.c.b16 %v8591, %v8590
    %v8681 = vpack.c.b16 %v8593, %v8592
    %v8682 = vpack.c.b16 %v8595, %v8594
    %v8683 = vpack.c.b16 %v8597, %v8596
    %v8684 = vpack.c.b16 %v8599, %v8598
    %v8685 = vpack.c.b16 %v8601, %v8600
    %v8686 = vpack.c.b16 %v8603, %v8602
    %v8687 = vpack.c.b16 %v8605, %v8604
    %v8688 = vpack.c.b16 %v8607, %v8606
    %v8689 = vpack.c.b16 %v8609, %v8608
    %v8690 = vpack.c.b16 %v8611, %v8610
    %v8691 = vpack.c.b16 %v8613, %v8612
    %v8692 = vpack.c.b16 %v8615, %v8614
    %v8693 = vpack.c.b16 %v8617, %v8616
    %v8694 = vpack.c.b16 %v8619, %v8618
    %v8695 = vpack.c.b16 %v8621, %v8620
    %v8696 = vpack.c.b16 %v8623, %v8622
    %v8697 = vpack.c.b16 %v8625, %v8624
    %v8698 = vpack.c.b16 %v8627, %v8626
    %v8699 = vpack.c.b16 %v8629, %v8628
    %v8700 = vpack.c.b16 %v8631, %v8630
    %v8701 = vpack.c.b16 %v8633, %v8632
    %v8702 = vpack.c.b16 %v8635, %v8634
    %v8703 = vpack.c.b16 %v8637, %v8636
    %v8704 = vpack.c.b16 %v8639, %v8638
    %v8705 = vpack.c.b16 %v8641, %v8640
    %8770 = vmatpush.bf16.msra.mxu0 %v8649
    %8771 = vmatpush.bf16.msra.mxu0 %v8648
    %8772 = vmatpush.bf16.msra.mxu0 %v8647
    %8773 = vmatpush.bf16.msra.mxu0 %v8646
    %8774 = vmatpush.bf16.msra.mxu0 %v8645
    %8775 = vmatpush.bf16.msra.mxu0 %v8644
    %8776 = vmatpush.bf16.msra.mxu0 %v8643
    %8777 = vmatpush.bf16.msra.mxu0 %v8642
    %8778 = vmatmul.bf16.gmra.mxu0 %v8246
    %v8779 = vpop.f32.mrf.mxu0
    %v8780 = vadd.f32 %v8384, %v8779
    %v8781 = vpop.f32.mrf.mxu0
    %8782 = vdwg.mxu0
    %8783 = vmatpush.bf16.msra.mxu0 %v8657
    %8784 = vmatpush.bf16.msra.mxu0 %v8656
    %8785 = vmatpush.bf16.msra.mxu0 %v8655
    %8786 = vmatpush.bf16.msra.mxu0 %v8654
    %8787 = vmatpush.bf16.msra.mxu0 %v8653
    %8788 = vmatpush.bf16.msra.mxu0 %v8652
    %8789 = vmatpush.bf16.msra.mxu0 %v8651
    %8790 = vmatpush.bf16.msra.mxu0 %v8650
    %8791 = vmatmul.bf16.gmra.mxu0 %v8247
    %v8792 = vpop.f32.mrf.mxu0
    %v8793 = vadd.f32 %v8780, %v8792
    %v8794 = vpop.f32.mrf.mxu0
    %8795 = vdwg.mxu0
    %8796 = vmatpush.bf16.msra.mxu0 %v8665
    %8797 = vmatpush.bf16.msra.mxu0 %v8664
    %8798 = vmatpush.bf16.msra.mxu0 %v8663
    %8799 = vmatpush.bf16.msra.mxu0 %v8662
    %8800 = vmatpush.bf16.msra.mxu0 %v8661
    %8801 = vmatpush.bf16.msra.mxu0 %v8660
    %8802 = vmatpush.bf16.msra.mxu0 %v8659
    %8803 = vmatpush.bf16.msra.mxu0 %v8658
    %8804 = vmatmul.bf16.gmra.mxu0 %v8248
    %v8805 = vpop.f32.mrf.mxu0
    %v8806 = vadd.f32 %v8793, %v8805
    %v8807 = vpop.f32.mrf.mxu0
    %8808 = vdwg.mxu0
    %8809 = vmatpush.bf16.msra.mxu0 %v8673
    %8810 = vmatpush.bf16.msra.mxu0 %v8672
    %8811 = vmatpush.bf16.msra.mxu0 %v8671
    %8812 = vmatpush.bf16.msra.mxu0 %v8670
    %8813 = vmatpush.bf16.msra.mxu0 %v8669
    %8814 = vmatpush.bf16.msra.mxu0 %v8668
    %8815 = vmatpush.bf16.msra.mxu0 %v8667
    %8816 = vmatpush.bf16.msra.mxu0 %v8666
    %8817 = vmatmul.bf16.gmra.mxu0 %v8249
    %v8818 = vpop.f32.mrf.mxu0
    %v8819 = vadd.f32 %v8806, %v8818
    %v8820 = vpop.f32.mrf.mxu0
    %8821 = vdwg.mxu0
    %8822 = vmatpush.bf16.msra.mxu0 %v8681
    %8823 = vmatpush.bf16.msra.mxu0 %v8680
    %8824 = vmatpush.bf16.msra.mxu0 %v8679
    %8825 = vmatpush.bf16.msra.mxu0 %v8678
    %8826 = vmatpush.bf16.msra.mxu0 %v8677
    %8827 = vmatpush.bf16.msra.mxu0 %v8676
    %8828 = vmatpush.bf16.msra.mxu0 %v8675
    %8829 = vmatpush.bf16.msra.mxu0 %v8674
    %8830 = vmatmul.bf16.gmra.mxu0 %v8250
    %v8831 = vpop.f32.mrf.mxu0
    %v8832 = vadd.f32 %v8819, %v8831
    %v8833 = vpop.f32.mrf.mxu0
    %8834 = vdwg.mxu0
    %8835 = vmatpush.bf16.msra.mxu0 %v8689
    %8836 = vmatpush.bf16.msra.mxu0 %v8688
    %8837 = vmatpush.bf16.msra.mxu0 %v8687
    %8838 = vmatpush.bf16.msra.mxu0 %v8686
    %8839 = vmatpush.bf16.msra.mxu0 %v8685
    %8840 = vmatpush.bf16.msra.mxu0 %v8684
    %8841 = vmatpush.bf16.msra.mxu0 %v8683
    %8842 = vmatpush.bf16.msra.mxu0 %v8682
    %8843 = vmatmul.bf16.gmra.mxu0 %v8251
    %v8844 = vpop.f32.mrf.mxu0
    %v8845 = vadd.f32 %v8832, %v8844
    %v8846 = vpop.f32.mrf.mxu0
    %8847 = vdwg.mxu0
    %8848 = vmatpush.bf16.msra.mxu0 %v8697
    %8849 = vmatpush.bf16.msra.mxu0 %v8696
    %8850 = vmatpush.bf16.msra.mxu0 %v8695
    %8851 = vmatpush.bf16.msra.mxu0 %v8694
    %8852 = vmatpush.bf16.msra.mxu0 %v8693
    %8853 = vmatpush.bf16.msra.mxu0 %v8692
    %8854 = vmatpush.bf16.msra.mxu0 %v8691
    %8855 = vmatpush.bf16.msra.mxu0 %v8690
    %8856 = vmatmul.bf16.gmra.mxu0 %v8252
    %v8857 = vpop.f32.mrf.mxu0
    %v8858 = vadd.f32 %v8845, %v8857
    %v8859 = vpop.f32.mrf.mxu0
    %8860 = vdwg.mxu0
    %8861 = vmatpush.bf16.msra.mxu0 %v8705
    %8862 = vmatpush.bf16.msra.mxu0 %v8704
    %8863 = vmatpush.bf16.msra.mxu0 %v8703
    %8864 = vmatpush.bf16.msra.mxu0 %v8702
    %8865 = vmatpush.bf16.msra.mxu0 %v8701
    %8866 = vmatpush.bf16.msra.mxu0 %v8700
    %8867 = vmatpush.bf16.msra.mxu0 %v8699
    %8868 = vmatpush.bf16.msra.mxu0 %v8698
    %8869 = vmatmul.bf16.gmra.mxu0 %v8253
    %v8870 = vpop.f32.mrf.mxu0
    %v8871 = vadd.f32 %v8858, %v8870
    %v8872 = vpop.f32.mrf.mxu0
    %8873 = vdwg.mxu0
    %vm8874 = vcmask 74752
    %8875 = vst.msk [vmem:[#allocation13] sm:$0x3] %vm8874, %v8871
    // Predicated region
    $region62: #{inception_aux_forward.1} parent=1 // pred_check
      _
    $region63: #{inception_aux_forward.1} parent=1 // pred_check_branch
      %8877 = sbr.rel (0) target = $region65
    $region64: #{inception_aux_forward.1} parent=1 // pred_region
      %8879 = vsyncadd [#allocation4], 0
      %s8881 = sshll.u32 [#allocation13], 4
      %s8882 = int_to_ptr.vmem [resolvable:$true] %s8881
      %s8883 = sshll.u32 %s9, 4
      %s8884 = int_to_ptr.hbm [resolvable:$true] %s8883
      %8886 = dma.vmem_to_hbm [thread:$0]  %s8882, 32, %s8884, [#allocation4]
    $region65: #{inception_aux_forward.1} parent=1 // pred_fallthru
      _
    // Predicated region
    $region66: #{inception_aux_forward.1} parent=1 // pred_check
      _
    $region67: #{inception_aux_forward.1} parent=1 // pred_check_branch
      %8888 = sbr.rel (0) target = $region69
    $region68: #{inception_aux_forward.1} parent=1 // pred_region
      %8890 = dma.done [#allocation4], 32
    $region69: #{inception_aux_forward.1} parent=1 // pred_fallthru
      _
    %8891 = vsyncpa [#allocation3], 1
    %8892 = vsyncpa [#allocation6], 1
    %8893 = vsyncpa [#allocation9], 1
    %8894 = vsyncpa [#allocation12], 1
    %8895 = vsyncpa [#allocation4], 1

</llo_original>
